<compile_context>
chip_gen: v7x
topology: tpu7x:2x2x1
jax: 0.10.0
libtpu: 0.0.40
codegen_flags: <defaults>
</compile_context>

<pallas_src>
import jax
import jax.numpy as jnp
from jax import lax
from jax.experimental import pallas as pl
from jax.experimental.pallas import tpu as pltpu

LRELU_SLOPE = 0.01   # torch.nn.LeakyReLU default negative_slope
GN_EPS = 1e-5        # torch.nn.GroupNorm default eps


def _gn_lrelu(h3, gamma, beta, num_group):
    """Fused GroupNorm + LeakyReLU on a (TB, N, C) f32 tile.

    All statistics stay in f32 on the VPU/XLU: per-sample sums over the point
    axis, per-group sums over the (small) channel sub-axis, and a (TB, 1, C)
    broadcast back to points.  Nothing here touches the MXU.
    """
    tb, n, c = h3.shape
    cs = c // num_group
    cnt = float(n * cs)

    s = jnp.sum(h3, axis=1)                                    # (TB, C)
    ss = jnp.sum(h3 * h3, axis=1)                              # (TB, C)
    s_g = jnp.sum(s.reshape(tb, num_group, cs), axis=-1, keepdims=True)   # (TB, G, 1)
    ss_g = jnp.sum(ss.reshape(tb, num_group, cs), axis=-1, keepdims=True)
    mean_g = s_g / cnt
    var_g = jnp.maximum(ss_g / cnt - mean_g * mean_g, 0.0)     # cancellation guard
    inv_g = lax.rsqrt(var_g + GN_EPS)                          # (TB, G, 1)

    mean_c = jnp.broadcast_to(mean_g, (tb, num_group, cs)).reshape(tb, c)
    inv_c = jnp.broadcast_to(inv_g, (tb, num_group, cs)).reshape(tb, c)
    scale = inv_c * gamma                                      # gamma: (1, C)
    shift = beta - mean_c * scale

    y = h3 * scale[:, None, :] + shift[:, None, :]
    return jnp.maximum(y, LRELU_SLOPE * y)                     # LeakyReLU


def _make_kernel(tb, n, num_group):
    def kernel(h0_ref,
               g1, be1,
               w2, b2, g2, be2,
               w3, b3, g3, be3,
               wfc, bfc,
               o_ref):
        c1 = h0_ref.shape[1]
        c2 = w2.shape[1]
        c3 = w3.shape[1]

        # ---- Block 1: conv1 was hoisted to the wrapper; do its GN + LeakyReLU.
        h = _gn_lrelu(h0_ref[...].reshape(tb, n, c1), g1[...], be1[...], num_group)

        # ---- Block 2: bf16 MXU matmul (f32 accumulation) + GN + LeakyReLU.
        h = jnp.dot(h.reshape(tb * n, c1).astype(jnp.bfloat16), w2[...],
                    preferred_element_type=jnp.float32) + b2[...]
        h = _gn_lrelu(h.reshape(tb, n, c2), g2[...], be2[...], num_group)

        # ---- Block 3.
        h = jnp.dot(h.reshape(tb * n, c2).astype(jnp.bfloat16), w3[...],
                    preferred_element_type=jnp.float32) + b3[...]
        h = _gn_lrelu(h.reshape(tb, n, c3), g3[...], be3[...], num_group)

        # ---- adaptive_max_pool1d(., 1): per-sample global max over the N points,
        # kept in registers and fed straight into the FC (no VMEM scratch).
        pooled = jnp.max(h, axis=1)                            # (TB, C3) f32

        # ---- fc head: DenseBlock(C3, out, 0, activation=None) == Linear.
        o_ref[...] = jnp.dot(pooled.astype(jnp.bfloat16), wfc[...],
                             preferred_element_type=jnp.float32) + bfc[...]
    return kernel


def pointnet_encoder(x, params, num_group=8, tb=32):
    """x: (B, N, point_dim) float; params: [w, b, gamma, beta] x3 + [wfc, bfc]."""
    (w1, b1, g1, be1, w2, b2, g2, be2, w3, b3, g3, be3, wfc, bfc) = params
    B, N, D = x.shape
    assert N % 8 == 0, "N must be a multiple of 8 (sublane tiling)"
    out_ch = wfc.shape[1]
    c1 = w1.shape[1]

    # Samples per grid step: as large as allowed, but keep >= 2 grid steps so the
    # single 'parallel' batch axis still splits across v7x's two TensorCores.
    tb = min(tb, B)
    if B >= 16:
        tb = min(tb, B // 2)
    tb = max(8, (tb // 8) * 8)                 # multiple of 8 for output sublanes
    pad = (-B) % tb
    bp = B + pad

    xf = x.astype(jnp.float32)
    if pad:
        xf = jnp.concatenate([xf, jnp.zeros((pad, N, D), jnp.float32)], axis=0)

    # Conv1 (K = point_dim = 3) hoisted to XLA: a (Bp*N, 3)x(3, 64) matmul here is
    # far cheaper than shipping a lane-padded point cloud into the kernel (the old
    # (D, TB*N, 1) layout cost ~128x its logical bytes).  Done in f32 'highest'
    # since the GroupNorm statistics consume it.
    h0 = (jnp.einsum('bnd,dc->bnc', xf, w1.astype(jnp.float32),
                     precision='highest') + b1).reshape(bp * N, c1)

    consts = [
        g1, be1,
        w2.astype(jnp.bfloat16), b2, g2, be2,
        w3.astype(jnp.bfloat16), b3, g3, be3,
        wfc.astype(jnp.bfloat16), bfc,
    ]

    def const_spec(a):
        nd = a.ndim
        return pl.BlockSpec(a.shape, lambda i, _nd=nd: (0,) * _nd)

    out = pl.pallas_call(
        _make_kernel(tb, N, num_group),
        out_shape=jax.ShapeDtypeStruct((bp, out_ch), jnp.float32),
        grid_spec=pltpu.PrefetchScalarGridSpec(
            num_scalar_prefetch=0,
            grid=(bp // tb,),
            in_specs=[pl.BlockSpec((tb * N, c1), lambda i: (i, 0))]
                     + [const_spec(a) for a in consts],
            out_specs=pl.BlockSpec((tb, out_ch), lambda i: (i, 0)),
        ),
        compiler_params=pltpu.CompilerParams(
            dimension_semantics=("parallel",),
            vmem_limit_bytes=32 * 1024 * 1024),
    )(h0, *consts)
    return out[:B]


def pointnet_encoder_ref(x, params, num_group=8):
    """Pure-JAX f32 reference mirroring the PyTorch forward (eval mode)."""
    (w1, b1, g1, be1, w2, b2, g2, be2, w3, b3, g3, be3, wfc, bfc) = params

    def gn(h, gamma, beta):
        B, N, C = h.shape
        cs = C // num_group
        hg = h.reshape(B, N, num_group, cs)
        mean = hg.mean(axis=(1, 3), keepdims=True)
        var = ((hg - mean) ** 2).mean(axis=(1, 3), keepdims=True)
        hn = ((hg - mean) / jnp.sqrt(var + GN_EPS)).reshape(B, N, C)
        return hn * gamma + beta

    h = x.astype(jnp.float32)
    for (w, b, g, be) in ((w1, b1, g1, be1), (w2, b2, g2, be2), (w3, b3, g3, be3)):
        h = jnp.einsum('bnd,dc->bnc', h, w, precision='highest') + b
        h = gn(h, g, be)
        h = jnp.where(h >= 0, h, LRELU_SLOPE * h)
    pooled = h.max(axis=1)                                       # (B, C_last)
    return jnp.dot(pooled, wfc, precision='highest') + bfc


if __name__ == "__main__":
    B, N, point_dim = 16, 128, 3
    conv_channels = [64, 128, 256]
    fc_out = 256
    num_group = 8

    key = jax.random.PRNGKey(0)
    keys = iter(jax.random.split(key, 16))

    params = []
    cin = point_dim
    for cout in conv_channels:
        w = jax.random.normal(next(keys), (cin, cout), jnp.float32) / jnp.sqrt(cin)
        b = 0.1 * jax.random.normal(next(keys), (1, cout), jnp.float32)
        gamma = 1.0 + 0.1 * jax.random.normal(next(keys), (1, cout), jnp.float32)
        beta = 0.1 * jax.random.normal(next(keys), (1, cout), jnp.float32)
        params += [w, b, gamma, beta]
        cin = cout
    wfc = jax.random.normal(next(keys), (cin, fc_out), jnp.float32) / jnp.sqrt(cin)
    bfc = 0.1 * jax.random.normal(next(keys), (1, fc_out), jnp.float32)
    params += [wfc, bfc]

    x = jax.random.normal(next(keys), (B, N, point_dim), jnp.float32)

    out = jax.block_until_ready(
        pointnet_encoder(x, params, num_group=num_group, tb=32))
    ref = jax.block_until_ready(
        pointnet_encoder_ref(x, params, num_group=num_group))

    assert out.shape == (B, fc_out), out.shape
    err = float(jnp.max(jnp.abs(out - ref)))
    scale = float(jnp.sqrt(jnp.mean(ref * ref)))
    # Tolerance sized for bf16 MXU matmuls with f32 accumulation vs. an f32 reference.
    assert err <= 5e-2 * scale + 5e-2, (err, scale)
    print("KERNEL_OK")
</pallas_src>

<mosaic_0001>
module attributes {stable_mosaic.version = 11 : i64} {
  func.func @kernel(%arg0: i32, %arg1: memref<1024x64xf32, #tpu.memory_space<vmem>>, %arg2: memref<1x64xf32, #tpu.memory_space<vmem>>, %arg3: memref<1x64xf32, #tpu.memory_space<vmem>>, %arg4: memref<64x128xbf16, #tpu.memory_space<vmem>>, %arg5: memref<1x128xf32, #tpu.memory_space<vmem>>, %arg6: memref<1x128xf32, #tpu.memory_space<vmem>>, %arg7: memref<1x128xf32, #tpu.memory_space<vmem>>, %arg8: memref<128x256xbf16, #tpu.memory_space<vmem>>, %arg9: memref<1x256xf32, #tpu.memory_space<vmem>>, %arg10: memref<1x256xf32, #tpu.memory_space<vmem>>, %arg11: memref<1x256xf32, #tpu.memory_space<vmem>>, %arg12: memref<256x256xbf16, #tpu.memory_space<vmem>>, %arg13: memref<1x256xf32, #tpu.memory_space<vmem>>, %arg14: memref<8x256xf32, #tpu.memory_space<vmem>>) attributes {dimension_semantics = [#tpu.dimension_semantics<parallel>], iteration_bounds = array<i64: 2>, scalar_prefetch = 0 : i64, scratch_operands = 0 : i64, tpu.core_type = #tpu.core_type<tc>, window_params = [{transform_indices = @transform_0, window_bounds = array<i64: 1024, 64>}, {pipeline_mode = #tpu.pipeline_mode<synchronous>, transform_indices = @transform_1, window_bounds = array<i64: 1, 64>}, {pipeline_mode = #tpu.pipeline_mode<synchronous>, transform_indices = @transform_2, window_bounds = array<i64: 1, 64>}, {pipeline_mode = #tpu.pipeline_mode<synchronous>, transform_indices = @transform_3, window_bounds = array<i64: 64, 128>}, {pipeline_mode = #tpu.pipeline_mode<synchronous>, transform_indices = @transform_4, window_bounds = array<i64: 1, 128>}, {pipeline_mode = #tpu.pipeline_mode<synchronous>, transform_indices = @transform_5, window_bounds = array<i64: 1, 128>}, {pipeline_mode = #tpu.pipeline_mode<synchronous>, transform_indices = @transform_6, window_bounds = array<i64: 1, 128>}, {pipeline_mode = #tpu.pipeline_mode<synchronous>, transform_indices = @transform_7, window_bounds = array<i64: 128, 256>}, {pipeline_mode = #tpu.pipeline_mode<synchronous>, transform_indices = @transform_8, window_bounds = array<i64: 1, 256>}, {pipeline_mode = #tpu.pipeline_mode<synchronous>, transform_indices = @transform_9, window_bounds = array<i64: 1, 256>}, {pipeline_mode = #tpu.pipeline_mode<synchronous>, transform_indices = @transform_10, window_bounds = array<i64: 1, 256>}, {pipeline_mode = #tpu.pipeline_mode<synchronous>, transform_indices = @transform_11, window_bounds = array<i64: 256, 256>}, {pipeline_mode = #tpu.pipeline_mode<synchronous>, transform_indices = @transform_12, window_bounds = array<i64: 1, 256>}, {transform_indices = @transform_13, window_bounds = array<i64: 8, 256>}]} {
    %c0 = arith.constant 0 : index
    %c0_0 = arith.constant 0 : index
    %0 = vector.load %arg1[%c0, %c0_0] : memref<1024x64xf32, #tpu.memory_space<vmem>>, vector<1024x64xf32>
    %1 = vector.shape_cast %0 : vector<1024x64xf32> to vector<8x128x64xf32>
    %c0_1 = arith.constant 0 : index
    %c0_2 = arith.constant 0 : index
    %2 = vector.load %arg2[%c0_1, %c0_2] : memref<1x64xf32, #tpu.memory_space<vmem>>, vector<1x64xf32>
    %c0_3 = arith.constant 0 : index
    %c0_4 = arith.constant 0 : index
    %3 = vector.load %arg3[%c0_3, %c0_4] : memref<1x64xf32, #tpu.memory_space<vmem>>, vector<1x64xf32>
    %cst = arith.constant dense<0.000000e+00> : vector<8x64xf32>
    %4 = vector.multi_reduction <add>, %1, %cst [1] : vector<8x128x64xf32> to vector<8x64xf32>
    %5 = arith.mulf %1, %1 : vector<8x128x64xf32>
    %cst_5 = arith.constant dense<0.000000e+00> : vector<8x64xf32>
    %6 = vector.multi_reduction <add>, %5, %cst_5 [1] : vector<8x128x64xf32> to vector<8x64xf32>
    %7 = vector.shape_cast %4 : vector<8x64xf32> to vector<8x8x8xf32>
    %cst_6 = arith.constant dense<0.000000e+00> : vector<8x8xf32>
    %8 = vector.multi_reduction <add>, %7, %cst_6 [2] : vector<8x8x8xf32> to vector<8x8xf32>
    %9 = vector.shape_cast %8 : vector<8x8xf32> to vector<8x8x1xf32>
    %10 = vector.shape_cast %6 : vector<8x64xf32> to vector<8x8x8xf32>
    %cst_7 = arith.constant dense<0.000000e+00> : vector<8x8xf32>
    %11 = vector.multi_reduction <add>, %10, %cst_7 [2] : vector<8x8x8xf32> to vector<8x8xf32>
    %12 = vector.shape_cast %11 : vector<8x8xf32> to vector<8x8x1xf32>
    %cst_8 = arith.constant 1.024000e+03 : f32
    %13 = vector.broadcast %cst_8 : f32 to vector<8x8x1xf32>
    %14 = arith.divf %9, %13 : vector<8x8x1xf32>
    %cst_9 = arith.constant 1.024000e+03 : f32
    %15 = vector.broadcast %cst_9 : f32 to vector<8x8x1xf32>
    %16 = arith.divf %12, %15 : vector<8x8x1xf32>
    %17 = arith.mulf %14, %14 : vector<8x8x1xf32>
    %18 = arith.subf %16, %17 : vector<8x8x1xf32>
    %cst_10 = arith.constant 0.000000e+00 : f32
    %19 = vector.broadcast %cst_10 : f32 to vector<8x8x1xf32>
    %20 = arith.maximumf %18, %19 : vector<8x8x1xf32>
    %cst_11 = arith.constant 9.99999974E-6 : f32
    %21 = vector.broadcast %cst_11 : f32 to vector<8x8x1xf32>
    %22 = arith.addf %20, %21 : vector<8x8x1xf32>
    %23 = math.rsqrt %22 : vector<8x8x1xf32>
    %24 = vector.shape_cast %14 : vector<8x8x1xf32> to vector<8x8x1xf32>
    %25 = vector.broadcast %24 : vector<8x8x1xf32> to vector<8x8x8xf32>
    %26 = vector.shape_cast %25 : vector<8x8x8xf32> to vector<8x64xf32>
    %27 = vector.shape_cast %23 : vector<8x8x1xf32> to vector<8x8x1xf32>
    %28 = vector.broadcast %27 : vector<8x8x1xf32> to vector<8x8x8xf32>
    %29 = vector.shape_cast %28 : vector<8x8x8xf32> to vector<8x64xf32>
    %30 = vector.broadcast %2 : vector<1x64xf32> to vector<8x64xf32>
    %31 = arith.mulf %29, %30 : vector<8x64xf32>
    %32 = arith.mulf %26, %31 : vector<8x64xf32>
    %33 = vector.broadcast %3 : vector<1x64xf32> to vector<8x64xf32>
    %34 = arith.subf %33, %32 : vector<8x64xf32>
    %35 = vector.shape_cast %31 : vector<8x64xf32> to vector<8x1x64xf32>
    %36 = vector.broadcast %35 : vector<8x1x64xf32> to vector<8x128x64xf32>
    %37 = arith.mulf %1, %36 : vector<8x128x64xf32>
    %38 = vector.shape_cast %34 : vector<8x64xf32> to vector<8x1x64xf32>
    %39 = vector.broadcast %38 : vector<8x1x64xf32> to vector<8x128x64xf32>
    %40 = arith.addf %37, %39 : vector<8x128x64xf32>
    %cst_12 = arith.constant 0.00999999977 : f32
    %41 = vector.broadcast %cst_12 : f32 to vector<8x128x64xf32>
    %42 = arith.mulf %41, %40 : vector<8x128x64xf32>
    %43 = arith.maximumf %40, %42 : vector<8x128x64xf32>
    %44 = vector.shape_cast %43 : vector<8x128x64xf32> to vector<1024x64xf32>
    %45 = arith.truncf %44 : vector<1024x64xf32> to vector<1024x64xbf16>
    %c0_13 = arith.constant 0 : index
    %c0_14 = arith.constant 0 : index
    %46 = vector.load %arg4[%c0_13, %c0_14] : memref<64x128xbf16, #tpu.memory_space<vmem>>, vector<64x128xbf16>
    %cst_15 = arith.constant dense<0.000000e+00> : vector<1024x128xf32>
    %47 = tpu.matmul %45, %46, %cst_15 {dimension_numbers = #tpu.dot_dimension_numbers<[1], [0], [0], [1], [0, 0, 1, 1], [], []>} : vector<1024x64xbf16>, vector<64x128xbf16>, vector<1024x128xf32> -> vector<1024x128xf32>
    %c0_16 = arith.constant 0 : index
    %c0_17 = arith.constant 0 : index
    %48 = vector.load %arg5[%c0_16, %c0_17] : memref<1x128xf32, #tpu.memory_space<vmem>>, vector<1x128xf32>
    %49 = vector.broadcast %48 : vector<1x128xf32> to vector<1024x128xf32>
    %50 = arith.addf %47, %49 : vector<1024x128xf32>
    %51 = vector.shape_cast %50 : vector<1024x128xf32> to vector<8x128x128xf32>
    %c0_18 = arith.constant 0 : index
    %c0_19 = arith.constant 0 : index
    %52 = vector.load %arg6[%c0_18, %c0_19] : memref<1x128xf32, #tpu.memory_space<vmem>>, vector<1x128xf32>
    %c0_20 = arith.constant 0 : index
    %c0_21 = arith.constant 0 : index
    %53 = vector.load %arg7[%c0_20, %c0_21] : memref<1x128xf32, #tpu.memory_space<vmem>>, vector<1x128xf32>
    %cst_22 = arith.constant dense<0.000000e+00> : vector<8x128xf32>
    %54 = vector.multi_reduction <add>, %51, %cst_22 [1] : vector<8x128x128xf32> to vector<8x128xf32>
    %55 = arith.mulf %51, %51 : vector<8x128x128xf32>
    %cst_23 = arith.constant dense<0.000000e+00> : vector<8x128xf32>
    %56 = vector.multi_reduction <add>, %55, %cst_23 [1] : vector<8x128x128xf32> to vector<8x128xf32>
    %57 = vector.shape_cast %54 : vector<8x128xf32> to vector<8x8x16xf32>
    %cst_24 = arith.constant dense<0.000000e+00> : vector<8x8xf32>
    %58 = vector.multi_reduction <add>, %57, %cst_24 [2] : vector<8x8x16xf32> to vector<8x8xf32>
    %59 = vector.shape_cast %58 : vector<8x8xf32> to vector<8x8x1xf32>
    %60 = vector.shape_cast %56 : vector<8x128xf32> to vector<8x8x16xf32>
    %cst_25 = arith.constant dense<0.000000e+00> : vector<8x8xf32>
    %61 = vector.multi_reduction <add>, %60, %cst_25 [2] : vector<8x8x16xf32> to vector<8x8xf32>
    %62 = vector.shape_cast %61 : vector<8x8xf32> to vector<8x8x1xf32>
    %cst_26 = arith.constant 2.048000e+03 : f32
    %63 = vector.broadcast %cst_26 : f32 to vector<8x8x1xf32>
    %64 = arith.divf %59, %63 : vector<8x8x1xf32>
    %cst_27 = arith.constant 2.048000e+03 : f32
    %65 = vector.broadcast %cst_27 : f32 to vector<8x8x1xf32>
    %66 = arith.divf %62, %65 : vector<8x8x1xf32>
    %67 = arith.mulf %64, %64 : vector<8x8x1xf32>
    %68 = arith.subf %66, %67 : vector<8x8x1xf32>
    %cst_28 = arith.constant 0.000000e+00 : f32
    %69 = vector.broadcast %cst_28 : f32 to vector<8x8x1xf32>
    %70 = arith.maximumf %68, %69 : vector<8x8x1xf32>
    %cst_29 = arith.constant 9.99999974E-6 : f32
    %71 = vector.broadcast %cst_29 : f32 to vector<8x8x1xf32>
    %72 = arith.addf %70, %71 : vector<8x8x1xf32>
    %73 = math.rsqrt %72 : vector<8x8x1xf32>
    %74 = vector.shape_cast %64 : vector<8x8x1xf32> to vector<8x8x1xf32>
    %75 = vector.broadcast %74 : vector<8x8x1xf32> to vector<8x8x16xf32>
    %76 = vector.shape_cast %75 : vector<8x8x16xf32> to vector<8x128xf32>
    %77 = vector.shape_cast %73 : vector<8x8x1xf32> to vector<8x8x1xf32>
    %78 = vector.broadcast %77 : vector<8x8x1xf32> to vector<8x8x16xf32>
    %79 = vector.shape_cast %78 : vector<8x8x16xf32> to vector<8x128xf32>
    %80 = vector.broadcast %52 : vector<1x128xf32> to vector<8x128xf32>
    %81 = arith.mulf %79, %80 : vector<8x128xf32>
    %82 = arith.mulf %76, %81 : vector<8x128xf32>
    %83 = vector.broadcast %53 : vector<1x128xf32> to vector<8x128xf32>
    %84 = arith.subf %83, %82 : vector<8x128xf32>
    %85 = vector.shape_cast %81 : vector<8x128xf32> to vector<8x1x128xf32>
    %86 = vector.broadcast %85 : vector<8x1x128xf32> to vector<8x128x128xf32>
    %87 = arith.mulf %51, %86 : vector<8x128x128xf32>
    %88 = vector.shape_cast %84 : vector<8x128xf32> to vector<8x1x128xf32>
    %89 = vector.broadcast %88 : vector<8x1x128xf32> to vector<8x128x128xf32>
    %90 = arith.addf %87, %89 : vector<8x128x128xf32>
    %cst_30 = arith.constant 0.00999999977 : f32
    %91 = vector.broadcast %cst_30 : f32 to vector<8x128x128xf32>
    %92 = arith.mulf %91, %90 : vector<8x128x128xf32>
    %93 = arith.maximumf %90, %92 : vector<8x128x128xf32>
    %94 = vector.shape_cast %93 : vector<8x128x128xf32> to vector<1024x128xf32>
    %95 = arith.truncf %94 : vector<1024x128xf32> to vector<1024x128xbf16>
    %c0_31 = arith.constant 0 : index
    %c0_32 = arith.constant 0 : index
    %96 = vector.load %arg8[%c0_31, %c0_32] : memref<128x256xbf16, #tpu.memory_space<vmem>>, vector<128x256xbf16>
    %cst_33 = arith.constant dense<0.000000e+00> : vector<1024x256xf32>
    %97 = tpu.matmul %95, %96, %cst_33 {dimension_numbers = #tpu.dot_dimension_numbers<[1], [0], [0], [1], [0, 0, 1, 1], [], []>} : vector<1024x128xbf16>, vector<128x256xbf16>, vector<1024x256xf32> -> vector<1024x256xf32>
    %c0_34 = arith.constant 0 : index
    %c0_35 = arith.constant 0 : index
    %98 = vector.load %arg9[%c0_34, %c0_35] : memref<1x256xf32, #tpu.memory_space<vmem>>, vector<1x256xf32>
    %99 = vector.broadcast %98 : vector<1x256xf32> to vector<1024x256xf32>
    %100 = arith.addf %97, %99 : vector<1024x256xf32>
    %101 = vector.shape_cast %100 : vector<1024x256xf32> to vector<8x128x256xf32>
    %c0_36 = arith.constant 0 : index
    %c0_37 = arith.constant 0 : index
    %102 = vector.load %arg10[%c0_36, %c0_37] : memref<1x256xf32, #tpu.memory_space<vmem>>, vector<1x256xf32>
    %c0_38 = arith.constant 0 : index
    %c0_39 = arith.constant 0 : index
    %103 = vector.load %arg11[%c0_38, %c0_39] : memref<1x256xf32, #tpu.memory_space<vmem>>, vector<1x256xf32>
    %cst_40 = arith.constant dense<0.000000e+00> : vector<8x256xf32>
    %104 = vector.multi_reduction <add>, %101, %cst_40 [1] : vector<8x128x256xf32> to vector<8x256xf32>
    %105 = arith.mulf %101, %101 : vector<8x128x256xf32>
    %cst_41 = arith.constant dense<0.000000e+00> : vector<8x256xf32>
    %106 = vector.multi_reduction <add>, %105, %cst_41 [1] : vector<8x128x256xf32> to vector<8x256xf32>
    %107 = vector.shape_cast %104 : vector<8x256xf32> to vector<8x8x32xf32>
    %cst_42 = arith.constant dense<0.000000e+00> : vector<8x8xf32>
    %108 = vector.multi_reduction <add>, %107, %cst_42 [2] : vector<8x8x32xf32> to vector<8x8xf32>
    %109 = vector.shape_cast %108 : vector<8x8xf32> to vector<8x8x1xf32>
    %110 = vector.shape_cast %106 : vector<8x256xf32> to vector<8x8x32xf32>
    %cst_43 = arith.constant dense<0.000000e+00> : vector<8x8xf32>
    %111 = vector.multi_reduction <add>, %110, %cst_43 [2] : vector<8x8x32xf32> to vector<8x8xf32>
    %112 = vector.shape_cast %111 : vector<8x8xf32> to vector<8x8x1xf32>
    %cst_44 = arith.constant 4.096000e+03 : f32
    %113 = vector.broadcast %cst_44 : f32 to vector<8x8x1xf32>
    %114 = arith.divf %109, %113 : vector<8x8x1xf32>
    %cst_45 = arith.constant 4.096000e+03 : f32
    %115 = vector.broadcast %cst_45 : f32 to vector<8x8x1xf32>
    %116 = arith.divf %112, %115 : vector<8x8x1xf32>
    %117 = arith.mulf %114, %114 : vector<8x8x1xf32>
    %118 = arith.subf %116, %117 : vector<8x8x1xf32>
    %cst_46 = arith.constant 0.000000e+00 : f32
    %119 = vector.broadcast %cst_46 : f32 to vector<8x8x1xf32>
    %120 = arith.maximumf %118, %119 : vector<8x8x1xf32>
    %cst_47 = arith.constant 9.99999974E-6 : f32
    %121 = vector.broadcast %cst_47 : f32 to vector<8x8x1xf32>
    %122 = arith.addf %120, %121 : vector<8x8x1xf32>
    %123 = math.rsqrt %122 : vector<8x8x1xf32>
    %124 = vector.shape_cast %114 : vector<8x8x1xf32> to vector<8x8x1xf32>
    %125 = vector.broadcast %124 : vector<8x8x1xf32> to vector<8x8x32xf32>
    %126 = vector.shape_cast %125 : vector<8x8x32xf32> to vector<8x256xf32>
    %127 = vector.shape_cast %123 : vector<8x8x1xf32> to vector<8x8x1xf32>
    %128 = vector.broadcast %127 : vector<8x8x1xf32> to vector<8x8x32xf32>
    %129 = vector.shape_cast %128 : vector<8x8x32xf32> to vector<8x256xf32>
    %130 = vector.broadcast %102 : vector<1x256xf32> to vector<8x256xf32>
    %131 = arith.mulf %129, %130 : vector<8x256xf32>
    %132 = arith.mulf %126, %131 : vector<8x256xf32>
    %133 = vector.broadcast %103 : vector<1x256xf32> to vector<8x256xf32>
    %134 = arith.subf %133, %132 : vector<8x256xf32>
    %135 = vector.shape_cast %131 : vector<8x256xf32> to vector<8x1x256xf32>
    %136 = vector.broadcast %135 : vector<8x1x256xf32> to vector<8x128x256xf32>
    %137 = arith.mulf %101, %136 : vector<8x128x256xf32>
    %138 = vector.shape_cast %134 : vector<8x256xf32> to vector<8x1x256xf32>
    %139 = vector.broadcast %138 : vector<8x1x256xf32> to vector<8x128x256xf32>
    %140 = arith.addf %137, %139 : vector<8x128x256xf32>
    %cst_48 = arith.constant 0.00999999977 : f32
    %141 = vector.broadcast %cst_48 : f32 to vector<8x128x256xf32>
    %142 = arith.mulf %141, %140 : vector<8x128x256xf32>
    %143 = arith.maximumf %140, %142 : vector<8x128x256xf32>
    %cst_49 = arith.constant dense<0xFF800000> : vector<8x256xf32>
    %144 = vector.multi_reduction <maximumf>, %143, %cst_49 [1] : vector<8x128x256xf32> to vector<8x256xf32>
    %145 = arith.truncf %144 : vector<8x256xf32> to vector<8x256xbf16>
    %c0_50 = arith.constant 0 : index
    %c0_51 = arith.constant 0 : index
    %146 = vector.load %arg12[%c0_50, %c0_51] : memref<256x256xbf16, #tpu.memory_space<vmem>>, vector<256x256xbf16>
    %cst_52 = arith.constant dense<0.000000e+00> : vector<8x256xf32>
    %147 = tpu.matmul %145, %146, %cst_52 {dimension_numbers = #tpu.dot_dimension_numbers<[1], [0], [0], [1], [0, 0, 1, 1], [], []>} : vector<8x256xbf16>, vector<256x256xbf16>, vector<8x256xf32> -> vector<8x256xf32>
    %c0_53 = arith.constant 0 : index
    %c0_54 = arith.constant 0 : index
    %148 = vector.load %arg13[%c0_53, %c0_54] : memref<1x256xf32, #tpu.memory_space<vmem>>, vector<1x256xf32>
    %149 = vector.broadcast %148 : vector<1x256xf32> to vector<8x256xf32>
    %150 = arith.addf %147, %149 : vector<8x256xf32>
    %c0_55 = arith.constant 0 : index
    %c0_56 = arith.constant 0 : index
    %151 = vector.load %arg14[%c0_55, %c0_56] : memref<8x256xf32, #tpu.memory_space<vmem>>, vector<8x256xf32>
    tpu.vector_store %arg14[%c0_55, %c0_56], %150 {strides = array<i32>} : memref<8x256xf32, #tpu.memory_space<vmem>>, vector<8x256xf32>,
    return
  }
  func.func @transform_0(%arg0: i32) -> (i32, i32) {
    %c0_i32 = arith.constant 0 : i32
    %c0_i32_0 = arith.constant 0 : i32
    return %arg0, %c0_i32 : i32, i32
  }
  func.func @transform_1(%arg0: i32) -> (i32, i32) {
    %c0_i32 = arith.constant 0 : i32
    %c0_i32_0 = arith.constant 0 : i32
    %c0_i32_1 = arith.constant 0 : i32
    return %c0_i32, %c0_i32_0 : i32, i32
  }
  func.func @transform_2(%arg0: i32) -> (i32, i32) {
    %c0_i32 = arith.constant 0 : i32
    %c0_i32_0 = arith.constant 0 : i32
    %c0_i32_1 = arith.constant 0 : i32
    return %c0_i32, %c0_i32_0 : i32, i32
  }
  func.func @transform_3(%arg0: i32) -> (i32, i32) {
    %c0_i32 = arith.constant 0 : i32
    %c0_i32_0 = arith.constant 0 : i32
    %c0_i32_1 = arith.constant 0 : i32
    return %c0_i32, %c0_i32_0 : i32, i32
  }
  func.func @transform_4(%arg0: i32) -> (i32, i32) {
    %c0_i32 = arith.constant 0 : i32
    %c0_i32_0 = arith.constant 0 : i32
    %c0_i32_1 = arith.constant 0 : i32
    return %c0_i32, %c0_i32_0 : i32, i32
  }
  func.func @transform_5(%arg0: i32) -> (i32, i32) {
    %c0_i32 = arith.constant 0 : i32
    %c0_i32_0 = arith.constant 0 : i32
    %c0_i32_1 = arith.constant 0 : i32
    return %c0_i32, %c0_i32_0 : i32, i32
  }
  func.func @transform_6(%arg0: i32) -> (i32, i32) {
    %c0_i32 = arith.constant 0 : i32
    %c0_i32_0 = arith.constant 0 : i32
    %c0_i32_1 = arith.constant 0 : i32
    return %c0_i32, %c0_i32_0 : i32, i32
  }
  func.func @transform_7(%arg0: i32) -> (i32, i32) {
    %c0_i32 = arith.constant 0 : i32
    %c0_i32_0 = arith.constant 0 : i32
    %c0_i32_1 = arith.constant 0 : i32
    return %c0_i32, %c0_i32_0 : i32, i32
  }
  func.func @transform_8(%arg0: i32) -> (i32, i32) {
    %c0_i32 = arith.constant 0 : i32
    %c0_i32_0 = arith.constant 0 : i32
    %c0_i32_1 = arith.constant 0 : i32
    return %c0_i32, %c0_i32_0 : i32, i32
  }
  func.func @transform_9(%arg0: i32) -> (i32, i32) {
    %c0_i32 = arith.constant 0 : i32
    %c0_i32_0 = arith.constant 0 : i32
    %c0_i32_1 = arith.constant 0 : i32
    return %c0_i32, %c0_i32_0 : i32, i32
  }
  func.func @transform_10(%arg0: i32) -> (i32, i32) {
    %c0_i32 = arith.constant 0 : i32
    %c0_i32_0 = arith.constant 0 : i32
    %c0_i32_1 = arith.constant 0 : i32
    return %c0_i32, %c0_i32_0 : i32, i32
  }
  func.func @transform_11(%arg0: i32) -> (i32, i32) {
    %c0_i32 = arith.constant 0 : i32
    %c0_i32_0 = arith.constant 0 : i32
    %c0_i32_1 = arith.constant 0 : i32
    return %c0_i32, %c0_i32_0 : i32, i32
  }
  func.func @transform_12(%arg0: i32) -> (i32, i32) {
    %c0_i32 = arith.constant 0 : i32
    %c0_i32_0 = arith.constant 0 : i32
    %c0_i32_1 = arith.constant 0 : i32
    return %c0_i32, %c0_i32_0 : i32, i32
  }
  func.func @transform_13(%arg0: i32) -> (i32, i32) {
    %c0_i32 = arith.constant 0 : i32
    %c0_i32_0 = arith.constant 0 : i32
    return %arg0, %c0_i32 : i32, i32
  }
}

</mosaic_0001>

<llo_original>
// kernel: tpu_custom_call.1
$region0: #{tpu_custom_call.1}
  #allocation0 [shape = 'u32[]', space=smem, size = 0x4, offset = 0x4, fixed_abs, tag = 'smem constant byte address 0x4 - core index']
  #allocation1 [shape = 'u32[144,128]{1,0:T(1,128)}', space=vmem, size = 0x12000, scoped, tag = 'internal scratch']
  %s0 = inlined_call_operand.vmem [shape: f32[2048,64], index: 0, kind: input, shape index: {}]
  %s1 = inlined_call_operand.vmem [shape: f32[1,64], index: 1, kind: input, shape index: {}]
  %s2 = inlined_call_operand.vmem [shape: f32[1,64], index: 2, kind: input, shape index: {}]
  %s3 = inlined_call_operand.vmem [shape: bf16[64,128], index: 3, kind: input, shape index: {}]
  %s4 = inlined_call_operand.vmem [shape: f32[1,128], index: 4, kind: input, shape index: {}]
  %s5 = inlined_call_operand.vmem [shape: f32[1,128], index: 5, kind: input, shape index: {}]
  %s6 = inlined_call_operand.vmem [shape: f32[1,128], index: 6, kind: input, shape index: {}]
  %s7 = inlined_call_operand.vmem [shape: bf16[128,256], index: 7, kind: input, shape index: {}]
  %s8 = inlined_call_operand.vmem [shape: f32[1,256], index: 8, kind: input, shape index: {}]
  %s9 = inlined_call_operand.vmem [shape: f32[1,256], index: 9, kind: input, shape index: {}]
  %s10 = inlined_call_operand.vmem [shape: f32[1,256], index: 10, kind: input, shape index: {}]
  %s11 = inlined_call_operand.vmem [shape: bf16[256,256], index: 11, kind: input, shape index: {}]
  %s12 = inlined_call_operand.vmem [shape: f32[1,256], index: 12, kind: input, shape index: {}]
  %s13 = inlined_call_operand.hbm [shape: f32[16,256], index: 13, kind: output, shape index: {}]
  %s14 = sld [smem:[#allocation0]]
  $region85: #{tpu_custom_call.1} parent=0
    _
  %s16 = ssub.s32 1, %s14
  %s17 = scalar_select 0, %s16, %s14
  $region1: #{tpu_custom_call.1} parent=0
    #allocation2 [shape = 'u8[16384]{0}', space=vmem, size = 0x4000, scoped, tag = 'output window, operand 0']
    #allocation3 [shape = 's32[2]{0}', space=sflag, size = 0x8, scoped, tag = 'scoped memory for tpu_custom_call.1']
    %18 = vsyncpa [#allocation3], 0
    %s19 = scalar_lea.sflag [#allocation3], 1
    %20 = vsyncpa %s19, 0
    loop: start=0, step=1, limit=4
    $region2: #{tpu_custom_call.1} parent=1 // loop_pre_header
      _
    $region3: #{tpu_custom_call.1} parent=1 // loop_header
      %s22 = sphi 0, %s26
      %p23 = scmp.ge.s32.totalorder %s22, 4
      %s32 = sphi 0, %s34
      %s35 = sphi 0, %s32
      %s36 = sphi 0, %s35
      %s52 = sphi 0, %s36
      %s56 = sphi 0, %s56
      %s58 = sphi 0, %s56
      %s59 = sphi 0, %s58
      %s73 = sphi 0, %s59
      %s77 = sphi 0, %s77
      %s79 = sphi 0, %s77
      %s80 = sphi 0, %s79
      %s94 = sphi 0, %s80
      %s98 = sphi 0, %s98
      %s100 = sphi 0, %s98
      %s101 = sphi 0, %s100
      %s115 = sphi 0, %s101
      %s119 = sphi 0, %s119
      %s121 = sphi 0, %s119
      %s122 = sphi 0, %s121
      %s136 = sphi 0, %s122
      %s140 = sphi 0, %s140
      %s142 = sphi 0, %s140
      %s143 = sphi 0, %s142
      %s157 = sphi 0, %s143
      %s161 = sphi 0, %s161
      %s163 = sphi 0, %s161
      %s164 = sphi 0, %s163
      %s178 = sphi 0, %s164
      %s182 = sphi 0, %s182
      %s184 = sphi 0, %s182
      %s185 = sphi 0, %s184
      %s199 = sphi 0, %s185
      %s203 = sphi 0, %s203
      %s205 = sphi 0, %s203
      %s206 = sphi 0, %s205
      %s220 = sphi 0, %s206
      %s224 = sphi 0, %s224
      %s226 = sphi 0, %s224
      %s227 = sphi 0, %s226
      %s241 = sphi 0, %s227
      %s245 = sphi 0, %s245
      %s247 = sphi 0, %s245
      %s248 = sphi 0, %s247
      %s262 = sphi 0, %s248
      %s266 = sphi 0, %s266
      %s268 = sphi 0, %s266
      %s269 = sphi 0, %s268
      %s283 = sphi 0, %s269
      %s287 = sphi 0, %s287
      %s289 = sphi 0, %s287
      %s290 = sphi 0, %s289
      %s304 = sphi 0, %s290
      %s310 = sphi 0, %s312
      %s313 = sphi 0, %s310
      %s314 = sphi 0, %s313
      %s330 = sphi 0, %s314
    $region4: #{tpu_custom_call.1} parent=1 // loop_header_branch
      %25 = sbr.rel (%p23) target = $region8
    $region5: #{tpu_custom_call.1} parent=1 // loop_body
      %s27 = ssub.s32 %s22, 1
      %s28 = ssub.s32 %s22, 2
      %s29 = sadd.s32 %s22, 1
      %s30 = ssub.s32 %s22, %s29
      %p31 = scmp.eq.s32.totalorder %s30, 0
      %s33 = sadd.s32 %s32, 1
      %s34 = scalar_select %p31, %s32, %s33
      %p37 = pneg %p31
      %p38 = scmp.eq.s32.totalorder %s22, 1
      %p39 = por %p37, %p38
      %p40 = scmp.ne.s32.totalorder %s32, %s35
      %p41 = scmp.eq.s32.totalorder %s22, 0
      %p42 = por %p40, %p41
      %p43 = scmp.ne.s32.totalorder %s32, %s35
      %p44 = scmp.eq.s32.totalorder %s27, 1
      %p45 = por %p43, %p44
      %p46 = scmp.ne.s32.totalorder %s35, %s36
      %p47 = scmp.eq.s32.totalorder %s27, 0
      %p48 = por %p46, %p47
      %p49 = scmp.ne.s32.totalorder %s35, %s36
      %p50 = scmp.eq.s32.totalorder %s28, 1
      %p51 = por %p49, %p50
      %p53 = scmp.ne.s32.totalorder %s36, %s52
      %p54 = scmp.eq.s32.totalorder %s28, 0
      %p55 = por %p53, %p54
      %s57 = sadd.s32 %s56, 1
      %p60 = scmp.eq.s32.totalorder %s22, 1
      %p61 = scmp.ne.s32.totalorder %s56, %s58
      %p62 = scmp.eq.s32.totalorder %s22, 0
      %p63 = por %p61, %p62
      %p64 = scmp.ne.s32.totalorder %s56, %s58
      %p65 = scmp.eq.s32.totalorder %s27, 1
      %p66 = por %p64, %p65
      %p67 = scmp.ne.s32.totalorder %s58, %s59
      %p68 = scmp.eq.s32.totalorder %s27, 0
      %p69 = por %p67, %p68
      %p70 = scmp.ne.s32.totalorder %s58, %s59
      %p71 = scmp.eq.s32.totalorder %s28, 1
      %p72 = por %p70, %p71
      %p74 = scmp.ne.s32.totalorder %s59, %s73
      %p75 = scmp.eq.s32.totalorder %s28, 0
      %p76 = por %p74, %p75
      %s78 = sadd.s32 %s77, 1
      %p81 = scmp.eq.s32.totalorder %s22, 1
      %p82 = scmp.ne.s32.totalorder %s77, %s79
      %p83 = scmp.eq.s32.totalorder %s22, 0
      %p84 = por %p82, %p83
      %p85 = scmp.ne.s32.totalorder %s77, %s79
      %p86 = scmp.eq.s32.totalorder %s27, 1
      %p87 = por %p85, %p86
      %p88 = scmp.ne.s32.totalorder %s79, %s80
      %p89 = scmp.eq.s32.totalorder %s27, 0
      %p90 = por %p88, %p89
      %p91 = scmp.ne.s32.totalorder %s79, %s80
      %p92 = scmp.eq.s32.totalorder %s28, 1
      %p93 = por %p91, %p92
      %p95 = scmp.ne.s32.totalorder %s80, %s94
      %p96 = scmp.eq.s32.totalorder %s28, 0
      %p97 = por %p95, %p96
      %s99 = sadd.s32 %s98, 1
      %p102 = scmp.eq.s32.totalorder %s22, 1
      %p103 = scmp.ne.s32.totalorder %s98, %s100
      %p104 = scmp.eq.s32.totalorder %s22, 0
      %p105 = por %p103, %p104
      %p106 = scmp.ne.s32.totalorder %s98, %s100
      %p107 = scmp.eq.s32.totalorder %s27, 1
      %p108 = por %p106, %p107
      %p109 = scmp.ne.s32.totalorder %s100, %s101
      %p110 = scmp.eq.s32.totalorder %s27, 0
      %p111 = por %p109, %p110
      %p112 = scmp.ne.s32.totalorder %s100, %s101
      %p113 = scmp.eq.s32.totalorder %s28, 1
      %p114 = por %p112, %p113
      %p116 = scmp.ne.s32.totalorder %s101, %s115
      %p117 = scmp.eq.s32.totalorder %s28, 0
      %p118 = por %p116, %p117
      %s120 = sadd.s32 %s119, 1
      %p123 = scmp.eq.s32.totalorder %s22, 1
      %p124 = scmp.ne.s32.totalorder %s119, %s121
      %p125 = scmp.eq.s32.totalorder %s22, 0
      %p126 = por %p124, %p125
      %p127 = scmp.ne.s32.totalorder %s119, %s121
      %p128 = scmp.eq.s32.totalorder %s27, 1
      %p129 = por %p127, %p128
      %p130 = scmp.ne.s32.totalorder %s121, %s122
      %p131 = scmp.eq.s32.totalorder %s27, 0
      %p132 = por %p130, %p131
      %p133 = scmp.ne.s32.totalorder %s121, %s122
      %p134 = scmp.eq.s32.totalorder %s28, 1
      %p135 = por %p133, %p134
      %p137 = scmp.ne.s32.totalorder %s122, %s136
      %p138 = scmp.eq.s32.totalorder %s28, 0
      %p139 = por %p137, %p138
      %s141 = sadd.s32 %s140, 1
      %p144 = scmp.eq.s32.totalorder %s22, 1
      %p145 = scmp.ne.s32.totalorder %s140, %s142
      %p146 = scmp.eq.s32.totalorder %s22, 0
      %p147 = por %p145, %p146
      %p148 = scmp.ne.s32.totalorder %s140, %s142
      %p149 = scmp.eq.s32.totalorder %s27, 1
      %p150 = por %p148, %p149
      %p151 = scmp.ne.s32.totalorder %s142, %s143
      %p152 = scmp.eq.s32.totalorder %s27, 0
      %p153 = por %p151, %p152
      %p154 = scmp.ne.s32.totalorder %s142, %s143
      %p155 = scmp.eq.s32.totalorder %s28, 1
      %p156 = por %p154, %p155
      %p158 = scmp.ne.s32.totalorder %s143, %s157
      %p159 = scmp.eq.s32.totalorder %s28, 0
      %p160 = por %p158, %p159
      %s162 = sadd.s32 %s161, 1
      %p165 = scmp.eq.s32.totalorder %s22, 1
      %p166 = scmp.ne.s32.totalorder %s161, %s163
      %p167 = scmp.eq.s32.totalorder %s22, 0
      %p168 = por %p166, %p167
      %p169 = scmp.ne.s32.totalorder %s161, %s163
      %p170 = scmp.eq.s32.totalorder %s27, 1
      %p171 = por %p169, %p170
      %p172 = scmp.ne.s32.totalorder %s163, %s164
      %p173 = scmp.eq.s32.totalorder %s27, 0
      %p174 = por %p172, %p173
      %p175 = scmp.ne.s32.totalorder %s163, %s164
      %p176 = scmp.eq.s32.totalorder %s28, 1
      %p177 = por %p175, %p176
      %p179 = scmp.ne.s32.totalorder %s164, %s178
      %p180 = scmp.eq.s32.totalorder %s28, 0
      %p181 = por %p179, %p180
      %s183 = sadd.s32 %s182, 1
      %p186 = scmp.eq.s32.totalorder %s22, 1
      %p187 = scmp.ne.s32.totalorder %s182, %s184
      %p188 = scmp.eq.s32.totalorder %s22, 0
      %p189 = por %p187, %p188
      %p190 = scmp.ne.s32.totalorder %s182, %s184
      %p191 = scmp.eq.s32.totalorder %s27, 1
      %p192 = por %p190, %p191
      %p193 = scmp.ne.s32.totalorder %s184, %s185
      %p194 = scmp.eq.s32.totalorder %s27, 0
      %p195 = por %p193, %p194
      %p196 = scmp.ne.s32.totalorder %s184, %s185
      %p197 = scmp.eq.s32.totalorder %s28, 1
      %p198 = por %p196, %p197
      %p200 = scmp.ne.s32.totalorder %s185, %s199
      %p201 = scmp.eq.s32.totalorder %s28, 0
      %p202 = por %p200, %p201
      %s204 = sadd.s32 %s203, 1
      %p207 = scmp.eq.s32.totalorder %s22, 1
      %p208 = scmp.ne.s32.totalorder %s203, %s205
      %p209 = scmp.eq.s32.totalorder %s22, 0
      %p210 = por %p208, %p209
      %p211 = scmp.ne.s32.totalorder %s203, %s205
      %p212 = scmp.eq.s32.totalorder %s27, 1
      %p213 = por %p211, %p212
      %p214 = scmp.ne.s32.totalorder %s205, %s206
      %p215 = scmp.eq.s32.totalorder %s27, 0
      %p216 = por %p214, %p215
      %p217 = scmp.ne.s32.totalorder %s205, %s206
      %p218 = scmp.eq.s32.totalorder %s28, 1
      %p219 = por %p217, %p218
      %p221 = scmp.ne.s32.totalorder %s206, %s220
      %p222 = scmp.eq.s32.totalorder %s28, 0
      %p223 = por %p221, %p222
      %s225 = sadd.s32 %s224, 1
      %p228 = scmp.eq.s32.totalorder %s22, 1
      %p229 = scmp.ne.s32.totalorder %s224, %s226
      %p230 = scmp.eq.s32.totalorder %s22, 0
      %p231 = por %p229, %p230
      %p232 = scmp.ne.s32.totalorder %s224, %s226
      %p233 = scmp.eq.s32.totalorder %s27, 1
      %p234 = por %p232, %p233
      %p235 = scmp.ne.s32.totalorder %s226, %s227
      %p236 = scmp.eq.s32.totalorder %s27, 0
      %p237 = por %p235, %p236
      %p238 = scmp.ne.s32.totalorder %s226, %s227
      %p239 = scmp.eq.s32.totalorder %s28, 1
      %p240 = por %p238, %p239
      %p242 = scmp.ne.s32.totalorder %s227, %s241
      %p243 = scmp.eq.s32.totalorder %s28, 0
      %p244 = por %p242, %p243
      %s246 = sadd.s32 %s245, 1
      %p249 = scmp.eq.s32.totalorder %s22, 1
      %p250 = scmp.ne.s32.totalorder %s245, %s247
      %p251 = scmp.eq.s32.totalorder %s22, 0
      %p252 = por %p250, %p251
      %p253 = scmp.ne.s32.totalorder %s245, %s247
      %p254 = scmp.eq.s32.totalorder %s27, 1
      %p255 = por %p253, %p254
      %p256 = scmp.ne.s32.totalorder %s247, %s248
      %p257 = scmp.eq.s32.totalorder %s27, 0
      %p258 = por %p256, %p257
      %p259 = scmp.ne.s32.totalorder %s247, %s248
      %p260 = scmp.eq.s32.totalorder %s28, 1
      %p261 = por %p259, %p260
      %p263 = scmp.ne.s32.totalorder %s248, %s262
      %p264 = scmp.eq.s32.totalorder %s28, 0
      %p265 = por %p263, %p264
      %s267 = sadd.s32 %s266, 1
      %p270 = scmp.eq.s32.totalorder %s22, 1
      %p271 = scmp.ne.s32.totalorder %s266, %s268
      %p272 = scmp.eq.s32.totalorder %s22, 0
      %p273 = por %p271, %p272
      %p274 = scmp.ne.s32.totalorder %s266, %s268
      %p275 = scmp.eq.s32.totalorder %s27, 1
      %p276 = por %p274, %p275
      %p277 = scmp.ne.s32.totalorder %s268, %s269
      %p278 = scmp.eq.s32.totalorder %s27, 0
      %p279 = por %p277, %p278
      %p280 = scmp.ne.s32.totalorder %s268, %s269
      %p281 = scmp.eq.s32.totalorder %s28, 1
      %p282 = por %p280, %p281
      %p284 = scmp.ne.s32.totalorder %s269, %s283
      %p285 = scmp.eq.s32.totalorder %s28, 0
      %p286 = por %p284, %p285
      %s288 = sadd.s32 %s287, 1
      %p291 = scmp.eq.s32.totalorder %s22, 1
      %p292 = scmp.ne.s32.totalorder %s287, %s289
      %p293 = scmp.eq.s32.totalorder %s22, 0
      %p294 = por %p292, %p293
      %p295 = scmp.ne.s32.totalorder %s287, %s289
      %p296 = scmp.eq.s32.totalorder %s27, 1
      %p297 = por %p295, %p296
      %p298 = scmp.ne.s32.totalorder %s289, %s290
      %p299 = scmp.eq.s32.totalorder %s27, 0
      %p300 = por %p298, %p299
      %p301 = scmp.ne.s32.totalorder %s289, %s290
      %p302 = scmp.eq.s32.totalorder %s28, 1
      %p303 = por %p301, %p302
      %p305 = scmp.ne.s32.totalorder %s290, %s304
      %p306 = scmp.eq.s32.totalorder %s28, 0
      %p307 = por %p305, %p306
      %s308 = ssub.s32 %s22, %s29
      %p309 = scmp.eq.s32.totalorder %s308, 0
      %s311 = sadd.s32 %s310, 1
      %s312 = scalar_select %p309, %s310, %s311
      %p315 = pneg %p309
      %p316 = scmp.eq.s32.totalorder %s22, 1
      %p317 = por %p315, %p316
      %p318 = scmp.ne.s32.totalorder %s310, %s313
      %p319 = scmp.eq.s32.totalorder %s22, 0
      %p320 = por %p318, %p319
      %p321 = scmp.ne.s32.totalorder %s310, %s313
      %p322 = scmp.eq.s32.totalorder %s27, 1
      %p323 = por %p321, %p322
      %p324 = scmp.ne.s32.totalorder %s313, %s314
      %p325 = scmp.eq.s32.totalorder %s27, 0
      %p326 = por %p324, %p325
      %p327 = scmp.ne.s32.totalorder %s313, %s314
      %p328 = scmp.eq.s32.totalorder %s28, 1
      %p329 = por %p327, %p328
      %p331 = scmp.ne.s32.totalorder %s314, %s330
      %p332 = scmp.eq.s32.totalorder %s28, 0
      %p333 = por %p331, %p332
      %p334 = scmp.le.s32.totalorder 1, %s22
      %p335 = scmp.lt.s32.totalorder %s22, 3
      %p336 = pnand %p334, %p335
      %p337 = pneg %p336
      // Predicated region
      $region9: #{tpu_custom_call.1} parent=5 // pred_check
        _
      $region10: #{tpu_custom_call.1} parent=5 // pred_check_branch
        %339 = sbr.rel (%p336) target = $region12
      $region11: #{tpu_custom_call.1} parent=5 // pred_region
        %s340 = ssub.s32 %s22, 1
        // Predicated region
        $region13: #{tpu_custom_call.1} parent=11 // pred_check
          %p341 = pneg %p69
        $region14: #{tpu_custom_call.1} parent=11 // pred_check_branch
          %343 = sbr.rel (%p341) target = $region16
        $region15: #{tpu_custom_call.1} parent=11 // pred_region
          _
        $region16: #{tpu_custom_call.1} parent=11 // pred_fallthru
          _
        // Predicated region
        $region17: #{tpu_custom_call.1} parent=11 // pred_check
          %p344 = pneg %p90
        $region18: #{tpu_custom_call.1} parent=11 // pred_check_branch
          %346 = sbr.rel (%p344) target = $region20
        $region19: #{tpu_custom_call.1} parent=11 // pred_region
          _
        $region20: #{tpu_custom_call.1} parent=11 // pred_fallthru
          _
        // Predicated region
        $region21: #{tpu_custom_call.1} parent=11 // pred_check
          %p347 = pneg %p111
        $region22: #{tpu_custom_call.1} parent=11 // pred_check_branch
          %349 = sbr.rel (%p347) target = $region24
        $region23: #{tpu_custom_call.1} parent=11 // pred_region
          _
        $region24: #{tpu_custom_call.1} parent=11 // pred_fallthru
          _
        // Predicated region
        $region25: #{tpu_custom_call.1} parent=11 // pred_check
          %p350 = pneg %p132
        $region26: #{tpu_custom_call.1} parent=11 // pred_check_branch
          %352 = sbr.rel (%p350) target = $region28
        $region27: #{tpu_custom_call.1} parent=11 // pred_region
          _
        $region28: #{tpu_custom_call.1} parent=11 // pred_fallthru
          _
        // Predicated region
        $region29: #{tpu_custom_call.1} parent=11 // pred_check
          %p353 = pneg %p153
        $region30: #{tpu_custom_call.1} parent=11 // pred_check_branch
          %355 = sbr.rel (%p353) target = $region32
        $region31: #{tpu_custom_call.1} parent=11 // pred_region
          _
        $region32: #{tpu_custom_call.1} parent=11 // pred_fallthru
          _
        // Predicated region
        $region33: #{tpu_custom_call.1} parent=11 // pred_check
          %p356 = pneg %p174
        $region34: #{tpu_custom_call.1} parent=11 // pred_check_branch
          %358 = sbr.rel (%p356) target = $region36
        $region35: #{tpu_custom_call.1} parent=11 // pred_region
          _
        $region36: #{tpu_custom_call.1} parent=11 // pred_fallthru
          _
        // Predicated region
        $region37: #{tpu_custom_call.1} parent=11 // pred_check
          %p359 = pneg %p195
        $region38: #{tpu_custom_call.1} parent=11 // pred_check_branch
          %361 = sbr.rel (%p359) target = $region40
        $region39: #{tpu_custom_call.1} parent=11 // pred_region
          _
        $region40: #{tpu_custom_call.1} parent=11 // pred_fallthru
          _
        // Predicated region
        $region41: #{tpu_custom_call.1} parent=11 // pred_check
          %p362 = pneg %p216
        $region42: #{tpu_custom_call.1} parent=11 // pred_check_branch
          %364 = sbr.rel (%p362) target = $region44
        $region43: #{tpu_custom_call.1} parent=11 // pred_region
          _
        $region44: #{tpu_custom_call.1} parent=11 // pred_fallthru
          _
        // Predicated region
        $region45: #{tpu_custom_call.1} parent=11 // pred_check
          %p365 = pneg %p237
        $region46: #{tpu_custom_call.1} parent=11 // pred_check_branch
          %367 = sbr.rel (%p365) target = $region48
        $region47: #{tpu_custom_call.1} parent=11 // pred_region
          _
        $region48: #{tpu_custom_call.1} parent=11 // pred_fallthru
          _
        // Predicated region
        $region49: #{tpu_custom_call.1} parent=11 // pred_check
          %p368 = pneg %p258
        $region50: #{tpu_custom_call.1} parent=11 // pred_check_branch
          %370 = sbr.rel (%p368) target = $region52
        $region51: #{tpu_custom_call.1} parent=11 // pred_region
          _
        $region52: #{tpu_custom_call.1} parent=11 // pred_fallthru
          _
        // Predicated region
        $region53: #{tpu_custom_call.1} parent=11 // pred_check
          %p371 = pneg %p279
        $region54: #{tpu_custom_call.1} parent=11 // pred_check_branch
          %373 = sbr.rel (%p371) target = $region56
        $region55: #{tpu_custom_call.1} parent=11 // pred_region
          _
        $region56: #{tpu_custom_call.1} parent=11 // pred_fallthru
          _
        // Predicated region
        $region57: #{tpu_custom_call.1} parent=11 // pred_check
          %p374 = pneg %p300
        $region58: #{tpu_custom_call.1} parent=11 // pred_check_branch
          %376 = sbr.rel (%p374) target = $region60
        $region59: #{tpu_custom_call.1} parent=11 // pred_region
          _
        $region60: #{tpu_custom_call.1} parent=11 // pred_fallthru
          _
      $region12: #{tpu_custom_call.1} parent=5 // pred_fallthru
        _
      %p377 = scmp.lt.s32.totalorder %s22, 2
      // Predicated region
      $region61: #{tpu_custom_call.1} parent=5 // pred_check
        %p378 = pneg %p377
      $region62: #{tpu_custom_call.1} parent=5 // pred_check_branch
        %380 = sbr.rel (%p378) target = $region64
      $region63: #{tpu_custom_call.1} parent=5 // pred_region
        // Predicated region
        $region65: #{tpu_custom_call.1} parent=63 // pred_check
          %p381 = pneg %p42
        $region66: #{tpu_custom_call.1} parent=63 // pred_check_branch
          %383 = sbr.rel (%p381) target = $region68
        $region67: #{tpu_custom_call.1} parent=63 // pred_region
          %s384 = smul.u32 128, %s22
          %p385 = scmp.lt.s32.totalorder %s384, 255
          %s386 = scalar_select %p385, %s384, 255
          %s387 = smul.addr %s386, 8
          %s388 = scalar_lea.vmem %s0, %s387
          %s389 = smul.u32 128, %s22
        $region68: #{tpu_custom_call.1} parent=63 // pred_fallthru
          _
      $region64: #{tpu_custom_call.1} parent=5 // pred_fallthru
        _
      %p390 = scmp.le.s32.totalorder 1, %s22
      %p391 = scmp.lt.s32.totalorder %s22, 3
      %p392 = pnand %p390, %p391
      %p393 = pneg %p392
      // Predicated region
      $region69: #{tpu_custom_call.1} parent=5 // pred_check
        _
      $region70: #{tpu_custom_call.1} parent=5 // pred_check_branch
        %395 = sbr.rel (%p392) target = $region72
      $region71: #{tpu_custom_call.1} parent=5 // pred_region
        %s396 = ssub.s32 %s22, 1
        %s397 = smul.u32 128, %s27
        %p398 = scmp.lt.s32.totalorder %s397, 255
        %s399 = scalar_select %p398, %s397, 255
        %s400 = smul.addr %s399, 8
        %s401 = scalar_lea.vmem %s0, %s400
        %p402 = pneg %p48
        %p403 = pneg %p45
        %p404 = pneg %p69
        %p405 = pneg %p66
        %p406 = pneg %p90
        %p407 = pneg %p87
        %p408 = pneg %p111
        %p409 = pneg %p108
        %p410 = pneg %p132
        %p411 = pneg %p129
        %p412 = pneg %p153
        %p413 = pneg %p150
        %p414 = pneg %p174
        %p415 = pneg %p171
        %p416 = pneg %p195
        %p417 = pneg %p192
        %p418 = pneg %p216
        %p419 = pneg %p213
        %p420 = pneg %p237
        %p421 = pneg %p234
        %p422 = pneg %p258
        %p423 = pneg %p255
        %p424 = pneg %p279
        %p425 = pneg %p276
        %p426 = pneg %p300
        %p427 = pneg %p297
        %p428 = pneg %p326
        %p429 = pneg %p323
        %s430 = sand.u32 %s313, 1
        %s431 = scalar_lea.sflag [#allocation3], %s430
        %s432 = sand.u32 %s313, 1
        %s433 = smul.addr %s432, 16
        %s434 = scalar_lea.vmem [#allocation2], %s433
        %s435 = smul.u32 128, %s27
        %p436 = scmp.lt.s32.totalorder %s435, 255
        %s437 = scalar_select %p436, %s435, 255
        %s438 = smul.addr %s437, 8
        %s439 = scalar_lea.vmem %s0, %s438
        %s440 = smul.u32 128, %s27
        %v442 = vld [vmem:[%s439] sm:$0xff]
        %v443 = vld [vmem:[%s439 + $0x8] sm:$0xff]
        %v444 = vld [vmem:[%s439 + $0x10] sm:$0xff]
        %v445 = vld [vmem:[%s439 + $0x18] sm:$0xff]
        %v446 = vld [vmem:[%s439 + $0x20] sm:$0xff]
        %v447 = vld [vmem:[%s439 + $0x28] sm:$0xff]
        %v448 = vld [vmem:[%s439 + $0x30] sm:$0xff]
        %v449 = vld [vmem:[%s439 + $0x38] sm:$0xff]
        %v450 = vld [vmem:[%s439 + $0x40] sm:$0xff]
        %v451 = vld [vmem:[%s439 + $0x48] sm:$0xff]
        %v452 = vld [vmem:[%s439 + $0x50] sm:$0xff]
        %v453 = vld [vmem:[%s439 + $0x58] sm:$0xff]
        %v454 = vld [vmem:[%s439 + $0x60] sm:$0xff]
        %v455 = vld [vmem:[%s439 + $0x68] sm:$0xff]
        %v456 = vld [vmem:[%s439 + $0x70] sm:$0xff]
        %v457 = vld [vmem:[%s439 + $0x78] sm:$0xff]
        %v458 = vld [vmem:[%s439 + $0x80] sm:$0xff]
        %v459 = vld [vmem:[%s439 + $0x88] sm:$0xff]
        %v460 = vld [vmem:[%s439 + $0x90] sm:$0xff]
        %v461 = vld [vmem:[%s439 + $0x98] sm:$0xff]
        %v462 = vld [vmem:[%s439 + $0xa0] sm:$0xff]
        %v463 = vld [vmem:[%s439 + $0xa8] sm:$0xff]
        %v464 = vld [vmem:[%s439 + $0xb0] sm:$0xff]
        %v465 = vld [vmem:[%s439 + $0xb8] sm:$0xff]
        %v466 = vld [vmem:[%s439 + $0xc0] sm:$0xff]
        %v467 = vld [vmem:[%s439 + $0xc8] sm:$0xff]
        %v468 = vld [vmem:[%s439 + $0xd0] sm:$0xff]
        %v469 = vld [vmem:[%s439 + $0xd8] sm:$0xff]
        %v470 = vld [vmem:[%s439 + $0xe0] sm:$0xff]
        %v471 = vld [vmem:[%s439 + $0xe8] sm:$0xff]
        %v472 = vld [vmem:[%s439 + $0xf0] sm:$0xff]
        %v473 = vld [vmem:[%s439 + $0xf8] sm:$0xff]
        %v474 = vld [vmem:[%s439 + $0x100] sm:$0xff]
        %v475 = vld [vmem:[%s439 + $0x108] sm:$0xff]
        %v476 = vld [vmem:[%s439 + $0x110] sm:$0xff]
        %v477 = vld [vmem:[%s439 + $0x118] sm:$0xff]
        %v478 = vld [vmem:[%s439 + $0x120] sm:$0xff]
        %v479 = vld [vmem:[%s439 + $0x128] sm:$0xff]
        %v480 = vld [vmem:[%s439 + $0x130] sm:$0xff]
        %v481 = vld [vmem:[%s439 + $0x138] sm:$0xff]
        %v482 = vld [vmem:[%s439 + $0x140] sm:$0xff]
        %v483 = vld [vmem:[%s439 + $0x148] sm:$0xff]
        %v484 = vld [vmem:[%s439 + $0x150] sm:$0xff]
        %v485 = vld [vmem:[%s439 + $0x158] sm:$0xff]
        %v486 = vld [vmem:[%s439 + $0x160] sm:$0xff]
        %v487 = vld [vmem:[%s439 + $0x168] sm:$0xff]
        %v488 = vld [vmem:[%s439 + $0x170] sm:$0xff]
        %v489 = vld [vmem:[%s439 + $0x178] sm:$0xff]
        %v490 = vld [vmem:[%s439 + $0x180] sm:$0xff]
        %v491 = vld [vmem:[%s439 + $0x188] sm:$0xff]
        %v492 = vld [vmem:[%s439 + $0x190] sm:$0xff]
        %v493 = vld [vmem:[%s439 + $0x198] sm:$0xff]
        %v494 = vld [vmem:[%s439 + $0x1a0] sm:$0xff]
        %v495 = vld [vmem:[%s439 + $0x1a8] sm:$0xff]
        %v496 = vld [vmem:[%s439 + $0x1b0] sm:$0xff]
        %v497 = vld [vmem:[%s439 + $0x1b8] sm:$0xff]
        %v498 = vld [vmem:[%s439 + $0x1c0] sm:$0xff]
        %v499 = vld [vmem:[%s439 + $0x1c8] sm:$0xff]
        %v500 = vld [vmem:[%s439 + $0x1d0] sm:$0xff]
        %v501 = vld [vmem:[%s439 + $0x1d8] sm:$0xff]
        %v502 = vld [vmem:[%s439 + $0x1e0] sm:$0xff]
        %v503 = vld [vmem:[%s439 + $0x1e8] sm:$0xff]
        %v504 = vld [vmem:[%s439 + $0x1f0] sm:$0xff]
        %v505 = vld [vmem:[%s439 + $0x1f8] sm:$0xff]
        %v506 = vld [vmem:[%s439 + $0x200] sm:$0xff]
        %v507 = vld [vmem:[%s439 + $0x208] sm:$0xff]
        %v508 = vld [vmem:[%s439 + $0x210] sm:$0xff]
        %v509 = vld [vmem:[%s439 + $0x218] sm:$0xff]
        %v510 = vld [vmem:[%s439 + $0x220] sm:$0xff]
        %v511 = vld [vmem:[%s439 + $0x228] sm:$0xff]
        %v512 = vld [vmem:[%s439 + $0x230] sm:$0xff]
        %v513 = vld [vmem:[%s439 + $0x238] sm:$0xff]
        %v514 = vld [vmem:[%s439 + $0x240] sm:$0xff]
        %v515 = vld [vmem:[%s439 + $0x248] sm:$0xff]
        %v516 = vld [vmem:[%s439 + $0x250] sm:$0xff]
        %v517 = vld [vmem:[%s439 + $0x258] sm:$0xff]
        %v518 = vld [vmem:[%s439 + $0x260] sm:$0xff]
        %v519 = vld [vmem:[%s439 + $0x268] sm:$0xff]
        %v520 = vld [vmem:[%s439 + $0x270] sm:$0xff]
        %v521 = vld [vmem:[%s439 + $0x278] sm:$0xff]
        %v522 = vld [vmem:[%s439 + $0x280] sm:$0xff]
        %v523 = vld [vmem:[%s439 + $0x288] sm:$0xff]
        %v524 = vld [vmem:[%s439 + $0x290] sm:$0xff]
        %v525 = vld [vmem:[%s439 + $0x298] sm:$0xff]
        %v526 = vld [vmem:[%s439 + $0x2a0] sm:$0xff]
        %v527 = vld [vmem:[%s439 + $0x2a8] sm:$0xff]
        %v528 = vld [vmem:[%s439 + $0x2b0] sm:$0xff]
        %v529 = vld [vmem:[%s439 + $0x2b8] sm:$0xff]
        %v530 = vld [vmem:[%s439 + $0x2c0] sm:$0xff]
        %v531 = vld [vmem:[%s439 + $0x2c8] sm:$0xff]
        %v532 = vld [vmem:[%s439 + $0x2d0] sm:$0xff]
        %v533 = vld [vmem:[%s439 + $0x2d8] sm:$0xff]
        %v534 = vld [vmem:[%s439 + $0x2e0] sm:$0xff]
        %v535 = vld [vmem:[%s439 + $0x2e8] sm:$0xff]
        %v536 = vld [vmem:[%s439 + $0x2f0] sm:$0xff]
        %v537 = vld [vmem:[%s439 + $0x2f8] sm:$0xff]
        %v538 = vld [vmem:[%s439 + $0x300] sm:$0xff]
        %v539 = vld [vmem:[%s439 + $0x308] sm:$0xff]
        %v540 = vld [vmem:[%s439 + $0x310] sm:$0xff]
        %v541 = vld [vmem:[%s439 + $0x318] sm:$0xff]
        %v542 = vld [vmem:[%s439 + $0x320] sm:$0xff]
        %v543 = vld [vmem:[%s439 + $0x328] sm:$0xff]
        %v544 = vld [vmem:[%s439 + $0x330] sm:$0xff]
        %v545 = vld [vmem:[%s439 + $0x338] sm:$0xff]
        %v546 = vld [vmem:[%s439 + $0x340] sm:$0xff]
        %v547 = vld [vmem:[%s439 + $0x348] sm:$0xff]
        %v548 = vld [vmem:[%s439 + $0x350] sm:$0xff]
        %v549 = vld [vmem:[%s439 + $0x358] sm:$0xff]
        %v550 = vld [vmem:[%s439 + $0x360] sm:$0xff]
        %v551 = vld [vmem:[%s439 + $0x368] sm:$0xff]
        %v552 = vld [vmem:[%s439 + $0x370] sm:$0xff]
        %v553 = vld [vmem:[%s439 + $0x378] sm:$0xff]
        %v554 = vld [vmem:[%s439 + $0x380] sm:$0xff]
        %v555 = vld [vmem:[%s439 + $0x388] sm:$0xff]
        %v556 = vld [vmem:[%s439 + $0x390] sm:$0xff]
        %v557 = vld [vmem:[%s439 + $0x398] sm:$0xff]
        %v558 = vld [vmem:[%s439 + $0x3a0] sm:$0xff]
        %v559 = vld [vmem:[%s439 + $0x3a8] sm:$0xff]
        %v560 = vld [vmem:[%s439 + $0x3b0] sm:$0xff]
        %v561 = vld [vmem:[%s439 + $0x3b8] sm:$0xff]
        %v562 = vld [vmem:[%s439 + $0x3c0] sm:$0xff]
        %v563 = vld [vmem:[%s439 + $0x3c8] sm:$0xff]
        %v564 = vld [vmem:[%s439 + $0x3d0] sm:$0xff]
        %v565 = vld [vmem:[%s439 + $0x3d8] sm:$0xff]
        %v566 = vld [vmem:[%s439 + $0x3e0] sm:$0xff]
        %v567 = vld [vmem:[%s439 + $0x3e8] sm:$0xff]
        %v568 = vld [vmem:[%s439 + $0x3f0] sm:$0xff]
        %v569 = vld [vmem:[%s439 + $0x3f8] sm:$0xff]
        %v570 = vld [vmem:[%s1] sm:$0x1]
        %v571 = vld [vmem:[%s2] sm:$0x1]
        %vm572 = vcmask 523264
        %v573 = vsel %vm572, %v442, 0.0
        %v574 = vsel %vm572, %v443, 0.0
        %v575 = vadd.f32 %v573, %v574
        %v576 = vsel %vm572, %v444, 0.0
        %v577 = vadd.f32 %v575, %v576
        %v578 = vsel %vm572, %v445, 0.0
        %v579 = vadd.f32 %v577, %v578
        %v580 = vsel %vm572, %v446, 0.0
        %v581 = vadd.f32 %v579, %v580
        %v582 = vsel %vm572, %v447, 0.0
        %v583 = vadd.f32 %v581, %v582
        %v584 = vsel %vm572, %v448, 0.0
        %v585 = vadd.f32 %v583, %v584
        %v586 = vsel %vm572, %v449, 0.0
        %v587 = vadd.f32 %v585, %v586
        %v588 = vsel %vm572, %v450, 0.0
        %v589 = vadd.f32 %v587, %v588
        %v590 = vsel %vm572, %v451, 0.0
        %v591 = vadd.f32 %v589, %v590
        %v592 = vsel %vm572, %v452, 0.0
        %v593 = vadd.f32 %v591, %v592
        %v594 = vsel %vm572, %v453, 0.0
        %v595 = vadd.f32 %v593, %v594
        %v596 = vsel %vm572, %v454, 0.0
        %v597 = vadd.f32 %v595, %v596
        %v598 = vsel %vm572, %v455, 0.0
        %v599 = vadd.f32 %v597, %v598
        %v600 = vsel %vm572, %v456, 0.0
        %v601 = vadd.f32 %v599, %v600
        %v602 = vsel %vm572, %v457, 0.0
        %v603 = vadd.f32 %v601, %v602
        %v604 = vrot.slane %v603, 4
        %v605 = vadd.f32 %v603, %v604
        %v606 = vrot.slane %v605, 2
        %v607 = vadd.f32 %v605, %v606
        %v608 = vrot.slane %v607, 1
        %v609 = vadd.f32 %v607, %v608
        %v610 = vsel %vm572, %v458, 0.0
        %v611 = vsel %vm572, %v459, 0.0
        %v612 = vadd.f32 %v610, %v611
        %v613 = vsel %vm572, %v460, 0.0
        %v614 = vadd.f32 %v612, %v613
        %v615 = vsel %vm572, %v461, 0.0
        %v616 = vadd.f32 %v614, %v615
        %v617 = vsel %vm572, %v462, 0.0
        %v618 = vadd.f32 %v616, %v617
        %v619 = vsel %vm572, %v463, 0.0
        %v620 = vadd.f32 %v618, %v619
        %v621 = vsel %vm572, %v464, 0.0
        %v622 = vadd.f32 %v620, %v621
        %v623 = vsel %vm572, %v465, 0.0
        %v624 = vadd.f32 %v622, %v623
        %v625 = vsel %vm572, %v466, 0.0
        %v626 = vadd.f32 %v624, %v625
        %v627 = vsel %vm572, %v467, 0.0
        %v628 = vadd.f32 %v626, %v627
        %v629 = vsel %vm572, %v468, 0.0
        %v630 = vadd.f32 %v628, %v629
        %v631 = vsel %vm572, %v469, 0.0
        %v632 = vadd.f32 %v630, %v631
        %v633 = vsel %vm572, %v470, 0.0
        %v634 = vadd.f32 %v632, %v633
        %v635 = vsel %vm572, %v471, 0.0
        %v636 = vadd.f32 %v634, %v635
        %v637 = vsel %vm572, %v472, 0.0
        %v638 = vadd.f32 %v636, %v637
        %v639 = vsel %vm572, %v473, 0.0
        %v640 = vadd.f32 %v638, %v639
        %v641 = vrot.slane %v640, 4
        %v642 = vadd.f32 %v640, %v641
        %v643 = vrot.slane %v642, 2
        %v644 = vadd.f32 %v642, %v643
        %v645 = vrot.slane %v644, 1
        %v646 = vadd.f32 %v644, %v645
        %v647 = vsel %vm572, %v474, 0.0
        %v648 = vsel %vm572, %v475, 0.0
        %v649 = vadd.f32 %v647, %v648
        %v650 = vsel %vm572, %v476, 0.0
        %v651 = vadd.f32 %v649, %v650
        %v652 = vsel %vm572, %v477, 0.0
        %v653 = vadd.f32 %v651, %v652
        %v654 = vsel %vm572, %v478, 0.0
        %v655 = vadd.f32 %v653, %v654
        %v656 = vsel %vm572, %v479, 0.0
        %v657 = vadd.f32 %v655, %v656
        %v658 = vsel %vm572, %v480, 0.0
        %v659 = vadd.f32 %v657, %v658
        %v660 = vsel %vm572, %v481, 0.0
        %v661 = vadd.f32 %v659, %v660
        %v662 = vsel %vm572, %v482, 0.0
        %v663 = vadd.f32 %v661, %v662
        %v664 = vsel %vm572, %v483, 0.0
        %v665 = vadd.f32 %v663, %v664
        %v666 = vsel %vm572, %v484, 0.0
        %v667 = vadd.f32 %v665, %v666
        %v668 = vsel %vm572, %v485, 0.0
        %v669 = vadd.f32 %v667, %v668
        %v670 = vsel %vm572, %v486, 0.0
        %v671 = vadd.f32 %v669, %v670
        %v672 = vsel %vm572, %v487, 0.0
        %v673 = vadd.f32 %v671, %v672
        %v674 = vsel %vm572, %v488, 0.0
        %v675 = vadd.f32 %v673, %v674
        %v676 = vsel %vm572, %v489, 0.0
        %v677 = vadd.f32 %v675, %v676
        %v678 = vrot.slane %v677, 4
        %v679 = vadd.f32 %v677, %v678
        %v680 = vrot.slane %v679, 2
        %v681 = vadd.f32 %v679, %v680
        %v682 = vrot.slane %v681, 1
        %v683 = vadd.f32 %v681, %v682
        %v684 = vsel %vm572, %v490, 0.0
        %v685 = vsel %vm572, %v491, 0.0
        %v686 = vadd.f32 %v684, %v685
        %v687 = vsel %vm572, %v492, 0.0
        %v688 = vadd.f32 %v686, %v687
        %v689 = vsel %vm572, %v493, 0.0
        %v690 = vadd.f32 %v688, %v689
        %v691 = vsel %vm572, %v494, 0.0
        %v692 = vadd.f32 %v690, %v691
        %v693 = vsel %vm572, %v495, 0.0
        %v694 = vadd.f32 %v692, %v693
        %v695 = vsel %vm572, %v496, 0.0
        %v696 = vadd.f32 %v694, %v695
        %v697 = vsel %vm572, %v497, 0.0
        %v698 = vadd.f32 %v696, %v697
        %v699 = vsel %vm572, %v498, 0.0
        %v700 = vadd.f32 %v698, %v699
        %v701 = vsel %vm572, %v499, 0.0
        %v702 = vadd.f32 %v700, %v701
        %v703 = vsel %vm572, %v500, 0.0
        %v704 = vadd.f32 %v702, %v703
        %v705 = vsel %vm572, %v501, 0.0
        %v706 = vadd.f32 %v704, %v705
        %v707 = vsel %vm572, %v502, 0.0
        %v708 = vadd.f32 %v706, %v707
        %v709 = vsel %vm572, %v503, 0.0
        %v710 = vadd.f32 %v708, %v709
        %v711 = vsel %vm572, %v504, 0.0
        %v712 = vadd.f32 %v710, %v711
        %v713 = vsel %vm572, %v505, 0.0
        %v714 = vadd.f32 %v712, %v713
        %v715 = vrot.slane %v714, 4
        %v716 = vadd.f32 %v714, %v715
        %v717 = vrot.slane %v716, 2
        %v718 = vadd.f32 %v716, %v717
        %v719 = vrot.slane %v718, 1
        %v720 = vadd.f32 %v718, %v719
        %v721 = vsel %vm572, %v506, 0.0
        %v722 = vsel %vm572, %v507, 0.0
        %v723 = vadd.f32 %v721, %v722
        %v724 = vsel %vm572, %v508, 0.0
        %v725 = vadd.f32 %v723, %v724
        %v726 = vsel %vm572, %v509, 0.0
        %v727 = vadd.f32 %v725, %v726
        %v728 = vsel %vm572, %v510, 0.0
        %v729 = vadd.f32 %v727, %v728
        %v730 = vsel %vm572, %v511, 0.0
        %v731 = vadd.f32 %v729, %v730
        %v732 = vsel %vm572, %v512, 0.0
        %v733 = vadd.f32 %v731, %v732
        %v734 = vsel %vm572, %v513, 0.0
        %v735 = vadd.f32 %v733, %v734
        %v736 = vsel %vm572, %v514, 0.0
        %v737 = vadd.f32 %v735, %v736
        %v738 = vsel %vm572, %v515, 0.0
        %v739 = vadd.f32 %v737, %v738
        %v740 = vsel %vm572, %v516, 0.0
        %v741 = vadd.f32 %v739, %v740
        %v742 = vsel %vm572, %v517, 0.0
        %v743 = vadd.f32 %v741, %v742
        %v744 = vsel %vm572, %v518, 0.0
        %v745 = vadd.f32 %v743, %v744
        %v746 = vsel %vm572, %v519, 0.0
        %v747 = vadd.f32 %v745, %v746
        %v748 = vsel %vm572, %v520, 0.0
        %v749 = vadd.f32 %v747, %v748
        %v750 = vsel %vm572, %v521, 0.0
        %v751 = vadd.f32 %v749, %v750
        %v752 = vrot.slane %v751, 4
        %v753 = vadd.f32 %v751, %v752
        %v754 = vrot.slane %v753, 2
        %v755 = vadd.f32 %v753, %v754
        %v756 = vrot.slane %v755, 1
        %v757 = vadd.f32 %v755, %v756
        %v758 = vsel %vm572, %v522, 0.0
        %v759 = vsel %vm572, %v523, 0.0
        %v760 = vadd.f32 %v758, %v759
        %v761 = vsel %vm572, %v524, 0.0
        %v762 = vadd.f32 %v760, %v761
        %v763 = vsel %vm572, %v525, 0.0
        %v764 = vadd.f32 %v762, %v763
        %v765 = vsel %vm572, %v526, 0.0
        %v766 = vadd.f32 %v764, %v765
        %v767 = vsel %vm572, %v527, 0.0
        %v768 = vadd.f32 %v766, %v767
        %v769 = vsel %vm572, %v528, 0.0
        %v770 = vadd.f32 %v768, %v769
        %v771 = vsel %vm572, %v529, 0.0
        %v772 = vadd.f32 %v770, %v771
        %v773 = vsel %vm572, %v530, 0.0
        %v774 = vadd.f32 %v772, %v773
        %v775 = vsel %vm572, %v531, 0.0
        %v776 = vadd.f32 %v774, %v775
        %v777 = vsel %vm572, %v532, 0.0
        %v778 = vadd.f32 %v776, %v777
        %v779 = vsel %vm572, %v533, 0.0
        %v780 = vadd.f32 %v778, %v779
        %v781 = vsel %vm572, %v534, 0.0
        %v782 = vadd.f32 %v780, %v781
        %v783 = vsel %vm572, %v535, 0.0
        %v784 = vadd.f32 %v782, %v783
        %v785 = vsel %vm572, %v536, 0.0
        %v786 = vadd.f32 %v784, %v785
        %v787 = vsel %vm572, %v537, 0.0
        %v788 = vadd.f32 %v786, %v787
        %v789 = vrot.slane %v788, 4
        %v790 = vadd.f32 %v788, %v789
        %v791 = vrot.slane %v790, 2
        %v792 = vadd.f32 %v790, %v791
        %v793 = vrot.slane %v792, 1
        %v794 = vadd.f32 %v792, %v793
        %v795 = vsel %vm572, %v538, 0.0
        %v796 = vsel %vm572, %v539, 0.0
        %v797 = vadd.f32 %v795, %v796
        %v798 = vsel %vm572, %v540, 0.0
        %v799 = vadd.f32 %v797, %v798
        %v800 = vsel %vm572, %v541, 0.0
        %v801 = vadd.f32 %v799, %v800
        %v802 = vsel %vm572, %v542, 0.0
        %v803 = vadd.f32 %v801, %v802
        %v804 = vsel %vm572, %v543, 0.0
        %v805 = vadd.f32 %v803, %v804
        %v806 = vsel %vm572, %v544, 0.0
        %v807 = vadd.f32 %v805, %v806
        %v808 = vsel %vm572, %v545, 0.0
        %v809 = vadd.f32 %v807, %v808
        %v810 = vsel %vm572, %v546, 0.0
        %v811 = vadd.f32 %v809, %v810
        %v812 = vsel %vm572, %v547, 0.0
        %v813 = vadd.f32 %v811, %v812
        %v814 = vsel %vm572, %v548, 0.0
        %v815 = vadd.f32 %v813, %v814
        %v816 = vsel %vm572, %v549, 0.0
        %v817 = vadd.f32 %v815, %v816
        %v818 = vsel %vm572, %v550, 0.0
        %v819 = vadd.f32 %v817, %v818
        %v820 = vsel %vm572, %v551, 0.0
        %v821 = vadd.f32 %v819, %v820
        %v822 = vsel %vm572, %v552, 0.0
        %v823 = vadd.f32 %v821, %v822
        %v824 = vsel %vm572, %v553, 0.0
        %v825 = vadd.f32 %v823, %v824
        %v826 = vrot.slane %v825, 4
        %v827 = vadd.f32 %v825, %v826
        %v828 = vrot.slane %v827, 2
        %v829 = vadd.f32 %v827, %v828
        %v830 = vrot.slane %v829, 1
        %v831 = vadd.f32 %v829, %v830
        %v832 = vsel %vm572, %v554, 0.0
        %v833 = vsel %vm572, %v555, 0.0
        %v834 = vadd.f32 %v832, %v833
        %v835 = vsel %vm572, %v556, 0.0
        %v836 = vadd.f32 %v834, %v835
        %v837 = vsel %vm572, %v557, 0.0
        %v838 = vadd.f32 %v836, %v837
        %v839 = vsel %vm572, %v558, 0.0
        %v840 = vadd.f32 %v838, %v839
        %v841 = vsel %vm572, %v559, 0.0
        %v842 = vadd.f32 %v840, %v841
        %v843 = vsel %vm572, %v560, 0.0
        %v844 = vadd.f32 %v842, %v843
        %v845 = vsel %vm572, %v561, 0.0
        %v846 = vadd.f32 %v844, %v845
        %v847 = vsel %vm572, %v562, 0.0
        %v848 = vadd.f32 %v846, %v847
        %v849 = vsel %vm572, %v563, 0.0
        %v850 = vadd.f32 %v848, %v849
        %v851 = vsel %vm572, %v564, 0.0
        %v852 = vadd.f32 %v850, %v851
        %v853 = vsel %vm572, %v565, 0.0
        %v854 = vadd.f32 %v852, %v853
        %v855 = vsel %vm572, %v566, 0.0
        %v856 = vadd.f32 %v854, %v855
        %v857 = vsel %vm572, %v567, 0.0
        %v858 = vadd.f32 %v856, %v857
        %v859 = vsel %vm572, %v568, 0.0
        %v860 = vadd.f32 %v858, %v859
        %v861 = vsel %vm572, %v569, 0.0
        %v862 = vadd.f32 %v860, %v861
        %v863 = vrot.slane %v862, 4
        %v864 = vadd.f32 %v862, %v863
        %v865 = vrot.slane %v864, 2
        %v866 = vadd.f32 %v864, %v865
        %v867 = vrot.slane %v866, 1
        %v868 = vadd.f32 %v866, %v867
        %v869 = vmul.f32 %v442, %v442
        %v870 = vmul.f32 %v443, %v443
        %v871 = vmul.f32 %v444, %v444
        %v872 = vmul.f32 %v445, %v445
        %v873 = vmul.f32 %v446, %v446
        %v874 = vmul.f32 %v447, %v447
        %v875 = vmul.f32 %v448, %v448
        %v876 = vmul.f32 %v449, %v449
        %v877 = vmul.f32 %v450, %v450
        %v878 = vmul.f32 %v451, %v451
        %v879 = vmul.f32 %v452, %v452
        %v880 = vmul.f32 %v453, %v453
        %v881 = vmul.f32 %v454, %v454
        %v882 = vmul.f32 %v455, %v455
        %v883 = vmul.f32 %v456, %v456
        %v884 = vmul.f32 %v457, %v457
        %v885 = vmul.f32 %v458, %v458
        %v886 = vmul.f32 %v459, %v459
        %v887 = vmul.f32 %v460, %v460
        %v888 = vmul.f32 %v461, %v461
        %v889 = vmul.f32 %v462, %v462
        %v890 = vmul.f32 %v463, %v463
        %v891 = vmul.f32 %v464, %v464
        %v892 = vmul.f32 %v465, %v465
        %v893 = vmul.f32 %v466, %v466
        %v894 = vmul.f32 %v467, %v467
        %v895 = vmul.f32 %v468, %v468
        %v896 = vmul.f32 %v469, %v469
        %v897 = vmul.f32 %v470, %v470
        %v898 = vmul.f32 %v471, %v471
        %v899 = vmul.f32 %v472, %v472
        %v900 = vmul.f32 %v473, %v473
        %v901 = vmul.f32 %v474, %v474
        %v902 = vmul.f32 %v475, %v475
        %v903 = vmul.f32 %v476, %v476
        %v904 = vmul.f32 %v477, %v477
        %v905 = vmul.f32 %v478, %v478
        %v906 = vmul.f32 %v479, %v479
        %v907 = vmul.f32 %v480, %v480
        %v908 = vmul.f32 %v481, %v481
        %v909 = vmul.f32 %v482, %v482
        %v910 = vmul.f32 %v483, %v483
        %v911 = vmul.f32 %v484, %v484
        %v912 = vmul.f32 %v485, %v485
        %v913 = vmul.f32 %v486, %v486
        %v914 = vmul.f32 %v487, %v487
        %v915 = vmul.f32 %v488, %v488
        %v916 = vmul.f32 %v489, %v489
        %v917 = vmul.f32 %v490, %v490
        %v918 = vmul.f32 %v491, %v491
        %v919 = vmul.f32 %v492, %v492
        %v920 = vmul.f32 %v493, %v493
        %v921 = vmul.f32 %v494, %v494
        %v922 = vmul.f32 %v495, %v495
        %v923 = vmul.f32 %v496, %v496
        %v924 = vmul.f32 %v497, %v497
        %v925 = vmul.f32 %v498, %v498
        %v926 = vmul.f32 %v499, %v499
        %v927 = vmul.f32 %v500, %v500
        %v928 = vmul.f32 %v501, %v501
        %v929 = vmul.f32 %v502, %v502
        %v930 = vmul.f32 %v503, %v503
        %v931 = vmul.f32 %v504, %v504
        %v932 = vmul.f32 %v505, %v505
        %v933 = vmul.f32 %v506, %v506
        %v934 = vmul.f32 %v507, %v507
        %v935 = vmul.f32 %v508, %v508
        %v936 = vmul.f32 %v509, %v509
        %v937 = vmul.f32 %v510, %v510
        %v938 = vmul.f32 %v511, %v511
        %v939 = vmul.f32 %v512, %v512
        %v940 = vmul.f32 %v513, %v513
        %v941 = vmul.f32 %v514, %v514
        %v942 = vmul.f32 %v515, %v515
        %v943 = vmul.f32 %v516, %v516
        %v944 = vmul.f32 %v517, %v517
        %v945 = vmul.f32 %v518, %v518
        %v946 = vmul.f32 %v519, %v519
        %v947 = vmul.f32 %v520, %v520
        %v948 = vmul.f32 %v521, %v521
        %v949 = vmul.f32 %v522, %v522
        %v950 = vmul.f32 %v523, %v523
        %v951 = vmul.f32 %v524, %v524
        %v952 = vmul.f32 %v525, %v525
        %v953 = vmul.f32 %v526, %v526
        %v954 = vmul.f32 %v527, %v527
        %v955 = vmul.f32 %v528, %v528
        %v956 = vmul.f32 %v529, %v529
        %v957 = vmul.f32 %v530, %v530
        %v958 = vmul.f32 %v531, %v531
        %v959 = vmul.f32 %v532, %v532
        %v960 = vmul.f32 %v533, %v533
        %v961 = vmul.f32 %v534, %v534
        %v962 = vmul.f32 %v535, %v535
        %v963 = vmul.f32 %v536, %v536
        %v964 = vmul.f32 %v537, %v537
        %v965 = vmul.f32 %v538, %v538
        %v966 = vmul.f32 %v539, %v539
        %v967 = vmul.f32 %v540, %v540
        %v968 = vmul.f32 %v541, %v541
        %v969 = vmul.f32 %v542, %v542
        %v970 = vmul.f32 %v543, %v543
        %v971 = vmul.f32 %v544, %v544
        %v972 = vmul.f32 %v545, %v545
        %v973 = vmul.f32 %v546, %v546
        %v974 = vmul.f32 %v547, %v547
        %v975 = vmul.f32 %v548, %v548
        %v976 = vmul.f32 %v549, %v549
        %v977 = vmul.f32 %v550, %v550
        %v978 = vmul.f32 %v551, %v551
        %v979 = vmul.f32 %v552, %v552
        %v980 = vmul.f32 %v553, %v553
        %v981 = vmul.f32 %v554, %v554
        %v982 = vmul.f32 %v555, %v555
        %v983 = vmul.f32 %v556, %v556
        %v984 = vmul.f32 %v557, %v557
        %v985 = vmul.f32 %v558, %v558
        %v986 = vmul.f32 %v559, %v559
        %v987 = vmul.f32 %v560, %v560
        %v988 = vmul.f32 %v561, %v561
        %v989 = vmul.f32 %v562, %v562
        %v990 = vmul.f32 %v563, %v563
        %v991 = vmul.f32 %v564, %v564
        %v992 = vmul.f32 %v565, %v565
        %v993 = vmul.f32 %v566, %v566
        %v994 = vmul.f32 %v567, %v567
        %v995 = vmul.f32 %v568, %v568
        %v996 = vmul.f32 %v569, %v569
        %v997 = vsel %vm572, %v869, 0.0
        %v998 = vsel %vm572, %v870, 0.0
        %v999 = vadd.f32 %v997, %v998
        %v1000 = vsel %vm572, %v871, 0.0
        %v1001 = vadd.f32 %v999, %v1000
        %v1002 = vsel %vm572, %v872, 0.0
        %v1003 = vadd.f32 %v1001, %v1002
        %v1004 = vsel %vm572, %v873, 0.0
        %v1005 = vadd.f32 %v1003, %v1004
        %v1006 = vsel %vm572, %v874, 0.0
        %v1007 = vadd.f32 %v1005, %v1006
        %v1008 = vsel %vm572, %v875, 0.0
        %v1009 = vadd.f32 %v1007, %v1008
        %v1010 = vsel %vm572, %v876, 0.0
        %v1011 = vadd.f32 %v1009, %v1010
        %v1012 = vsel %vm572, %v877, 0.0
        %v1013 = vadd.f32 %v1011, %v1012
        %v1014 = vsel %vm572, %v878, 0.0
        %v1015 = vadd.f32 %v1013, %v1014
        %v1016 = vsel %vm572, %v879, 0.0
        %v1017 = vadd.f32 %v1015, %v1016
        %v1018 = vsel %vm572, %v880, 0.0
        %v1019 = vadd.f32 %v1017, %v1018
        %v1020 = vsel %vm572, %v881, 0.0
        %v1021 = vadd.f32 %v1019, %v1020
        %v1022 = vsel %vm572, %v882, 0.0
        %v1023 = vadd.f32 %v1021, %v1022
        %v1024 = vsel %vm572, %v883, 0.0
        %v1025 = vadd.f32 %v1023, %v1024
        %v1026 = vsel %vm572, %v884, 0.0
        %v1027 = vadd.f32 %v1025, %v1026
        %v1028 = vrot.slane %v1027, 4
        %v1029 = vadd.f32 %v1027, %v1028
        %v1030 = vrot.slane %v1029, 2
        %v1031 = vadd.f32 %v1029, %v1030
        %v1032 = vrot.slane %v1031, 1
        %v1033 = vadd.f32 %v1031, %v1032
        %v1034 = vsel %vm572, %v885, 0.0
        %v1035 = vsel %vm572, %v886, 0.0
        %v1036 = vadd.f32 %v1034, %v1035
        %v1037 = vsel %vm572, %v887, 0.0
        %v1038 = vadd.f32 %v1036, %v1037
        %v1039 = vsel %vm572, %v888, 0.0
        %v1040 = vadd.f32 %v1038, %v1039
        %v1041 = vsel %vm572, %v889, 0.0
        %v1042 = vadd.f32 %v1040, %v1041
        %v1043 = vsel %vm572, %v890, 0.0
        %v1044 = vadd.f32 %v1042, %v1043
        %v1045 = vsel %vm572, %v891, 0.0
        %v1046 = vadd.f32 %v1044, %v1045
        %v1047 = vsel %vm572, %v892, 0.0
        %v1048 = vadd.f32 %v1046, %v1047
        %v1049 = vsel %vm572, %v893, 0.0
        %v1050 = vadd.f32 %v1048, %v1049
        %v1051 = vsel %vm572, %v894, 0.0
        %v1052 = vadd.f32 %v1050, %v1051
        %v1053 = vsel %vm572, %v895, 0.0
        %v1054 = vadd.f32 %v1052, %v1053
        %v1055 = vsel %vm572, %v896, 0.0
        %v1056 = vadd.f32 %v1054, %v1055
        %v1057 = vsel %vm572, %v897, 0.0
        %v1058 = vadd.f32 %v1056, %v1057
        %v1059 = vsel %vm572, %v898, 0.0
        %v1060 = vadd.f32 %v1058, %v1059
        %v1061 = vsel %vm572, %v899, 0.0
        %v1062 = vadd.f32 %v1060, %v1061
        %v1063 = vsel %vm572, %v900, 0.0
        %v1064 = vadd.f32 %v1062, %v1063
        %v1065 = vrot.slane %v1064, 4
        %v1066 = vadd.f32 %v1064, %v1065
        %v1067 = vrot.slane %v1066, 2
        %v1068 = vadd.f32 %v1066, %v1067
        %v1069 = vrot.slane %v1068, 1
        %v1070 = vadd.f32 %v1068, %v1069
        %v1071 = vsel %vm572, %v901, 0.0
        %v1072 = vsel %vm572, %v902, 0.0
        %v1073 = vadd.f32 %v1071, %v1072
        %v1074 = vsel %vm572, %v903, 0.0
        %v1075 = vadd.f32 %v1073, %v1074
        %v1076 = vsel %vm572, %v904, 0.0
        %v1077 = vadd.f32 %v1075, %v1076
        %v1078 = vsel %vm572, %v905, 0.0
        %v1079 = vadd.f32 %v1077, %v1078
        %v1080 = vsel %vm572, %v906, 0.0
        %v1081 = vadd.f32 %v1079, %v1080
        %v1082 = vsel %vm572, %v907, 0.0
        %v1083 = vadd.f32 %v1081, %v1082
        %v1084 = vsel %vm572, %v908, 0.0
        %v1085 = vadd.f32 %v1083, %v1084
        %v1086 = vsel %vm572, %v909, 0.0
        %v1087 = vadd.f32 %v1085, %v1086
        %v1088 = vsel %vm572, %v910, 0.0
        %v1089 = vadd.f32 %v1087, %v1088
        %v1090 = vsel %vm572, %v911, 0.0
        %v1091 = vadd.f32 %v1089, %v1090
        %v1092 = vsel %vm572, %v912, 0.0
        %v1093 = vadd.f32 %v1091, %v1092
        %v1094 = vsel %vm572, %v913, 0.0
        %v1095 = vadd.f32 %v1093, %v1094
        %v1096 = vsel %vm572, %v914, 0.0
        %v1097 = vadd.f32 %v1095, %v1096
        %v1098 = vsel %vm572, %v915, 0.0
        %v1099 = vadd.f32 %v1097, %v1098
        %v1100 = vsel %vm572, %v916, 0.0
        %v1101 = vadd.f32 %v1099, %v1100
        %v1102 = vrot.slane %v1101, 4
        %v1103 = vadd.f32 %v1101, %v1102
        %v1104 = vrot.slane %v1103, 2
        %v1105 = vadd.f32 %v1103, %v1104
        %v1106 = vrot.slane %v1105, 1
        %v1107 = vadd.f32 %v1105, %v1106
        %v1108 = vsel %vm572, %v917, 0.0
        %v1109 = vsel %vm572, %v918, 0.0
        %v1110 = vadd.f32 %v1108, %v1109
        %v1111 = vsel %vm572, %v919, 0.0
        %v1112 = vadd.f32 %v1110, %v1111
        %v1113 = vsel %vm572, %v920, 0.0
        %v1114 = vadd.f32 %v1112, %v1113
        %v1115 = vsel %vm572, %v921, 0.0
        %v1116 = vadd.f32 %v1114, %v1115
        %v1117 = vsel %vm572, %v922, 0.0
        %v1118 = vadd.f32 %v1116, %v1117
        %v1119 = vsel %vm572, %v923, 0.0
        %v1120 = vadd.f32 %v1118, %v1119
        %v1121 = vsel %vm572, %v924, 0.0
        %v1122 = vadd.f32 %v1120, %v1121
        %v1123 = vsel %vm572, %v925, 0.0
        %v1124 = vadd.f32 %v1122, %v1123
        %v1125 = vsel %vm572, %v926, 0.0
        %v1126 = vadd.f32 %v1124, %v1125
        %v1127 = vsel %vm572, %v927, 0.0
        %v1128 = vadd.f32 %v1126, %v1127
        %v1129 = vsel %vm572, %v928, 0.0
        %v1130 = vadd.f32 %v1128, %v1129
        %v1131 = vsel %vm572, %v929, 0.0
        %v1132 = vadd.f32 %v1130, %v1131
        %v1133 = vsel %vm572, %v930, 0.0
        %v1134 = vadd.f32 %v1132, %v1133
        %v1135 = vsel %vm572, %v931, 0.0
        %v1136 = vadd.f32 %v1134, %v1135
        %v1137 = vsel %vm572, %v932, 0.0
        %v1138 = vadd.f32 %v1136, %v1137
        %v1139 = vrot.slane %v1138, 4
        %v1140 = vadd.f32 %v1138, %v1139
        %v1141 = vrot.slane %v1140, 2
        %v1142 = vadd.f32 %v1140, %v1141
        %v1143 = vrot.slane %v1142, 1
        %v1144 = vadd.f32 %v1142, %v1143
        %v1145 = vsel %vm572, %v933, 0.0
        %v1146 = vsel %vm572, %v934, 0.0
        %v1147 = vadd.f32 %v1145, %v1146
        %v1148 = vsel %vm572, %v935, 0.0
        %v1149 = vadd.f32 %v1147, %v1148
        %v1150 = vsel %vm572, %v936, 0.0
        %v1151 = vadd.f32 %v1149, %v1150
        %v1152 = vsel %vm572, %v937, 0.0
        %v1153 = vadd.f32 %v1151, %v1152
        %v1154 = vsel %vm572, %v938, 0.0
        %v1155 = vadd.f32 %v1153, %v1154
        %v1156 = vsel %vm572, %v939, 0.0
        %v1157 = vadd.f32 %v1155, %v1156
        %v1158 = vsel %vm572, %v940, 0.0
        %v1159 = vadd.f32 %v1157, %v1158
        %v1160 = vsel %vm572, %v941, 0.0
        %v1161 = vadd.f32 %v1159, %v1160
        %v1162 = vsel %vm572, %v942, 0.0
        %v1163 = vadd.f32 %v1161, %v1162
        %v1164 = vsel %vm572, %v943, 0.0
        %v1165 = vadd.f32 %v1163, %v1164
        %v1166 = vsel %vm572, %v944, 0.0
        %v1167 = vadd.f32 %v1165, %v1166
        %v1168 = vsel %vm572, %v945, 0.0
        %v1169 = vadd.f32 %v1167, %v1168
        %v1170 = vsel %vm572, %v946, 0.0
        %v1171 = vadd.f32 %v1169, %v1170
        %v1172 = vsel %vm572, %v947, 0.0
        %v1173 = vadd.f32 %v1171, %v1172
        %v1174 = vsel %vm572, %v948, 0.0
        %v1175 = vadd.f32 %v1173, %v1174
        %v1176 = vrot.slane %v1175, 4
        %v1177 = vadd.f32 %v1175, %v1176
        %v1178 = vrot.slane %v1177, 2
        %v1179 = vadd.f32 %v1177, %v1178
        %v1180 = vrot.slane %v1179, 1
        %v1181 = vadd.f32 %v1179, %v1180
        %v1182 = vsel %vm572, %v949, 0.0
        %v1183 = vsel %vm572, %v950, 0.0
        %v1184 = vadd.f32 %v1182, %v1183
        %v1185 = vsel %vm572, %v951, 0.0
        %v1186 = vadd.f32 %v1184, %v1185
        %v1187 = vsel %vm572, %v952, 0.0
        %v1188 = vadd.f32 %v1186, %v1187
        %v1189 = vsel %vm572, %v953, 0.0
        %v1190 = vadd.f32 %v1188, %v1189
        %v1191 = vsel %vm572, %v954, 0.0
        %v1192 = vadd.f32 %v1190, %v1191
        %v1193 = vsel %vm572, %v955, 0.0
        %v1194 = vadd.f32 %v1192, %v1193
        %v1195 = vsel %vm572, %v956, 0.0
        %v1196 = vadd.f32 %v1194, %v1195
        %v1197 = vsel %vm572, %v957, 0.0
        %v1198 = vadd.f32 %v1196, %v1197
        %v1199 = vsel %vm572, %v958, 0.0
        %v1200 = vadd.f32 %v1198, %v1199
        %v1201 = vsel %vm572, %v959, 0.0
        %v1202 = vadd.f32 %v1200, %v1201
        %v1203 = vsel %vm572, %v960, 0.0
        %v1204 = vadd.f32 %v1202, %v1203
        %v1205 = vsel %vm572, %v961, 0.0
        %v1206 = vadd.f32 %v1204, %v1205
        %v1207 = vsel %vm572, %v962, 0.0
        %v1208 = vadd.f32 %v1206, %v1207
        %v1209 = vsel %vm572, %v963, 0.0
        %v1210 = vadd.f32 %v1208, %v1209
        %v1211 = vsel %vm572, %v964, 0.0
        %v1212 = vadd.f32 %v1210, %v1211
        %v1213 = vrot.slane %v1212, 4
        %v1214 = vadd.f32 %v1212, %v1213
        %v1215 = vrot.slane %v1214, 2
        %v1216 = vadd.f32 %v1214, %v1215
        %v1217 = vrot.slane %v1216, 1
        %v1218 = vadd.f32 %v1216, %v1217
        %v1219 = vsel %vm572, %v965, 0.0
        %v1220 = vsel %vm572, %v966, 0.0
        %v1221 = vadd.f32 %v1219, %v1220
        %v1222 = vsel %vm572, %v967, 0.0
        %v1223 = vadd.f32 %v1221, %v1222
        %v1224 = vsel %vm572, %v968, 0.0
        %v1225 = vadd.f32 %v1223, %v1224
        %v1226 = vsel %vm572, %v969, 0.0
        %v1227 = vadd.f32 %v1225, %v1226
        %v1228 = vsel %vm572, %v970, 0.0
        %v1229 = vadd.f32 %v1227, %v1228
        %v1230 = vsel %vm572, %v971, 0.0
        %v1231 = vadd.f32 %v1229, %v1230
        %v1232 = vsel %vm572, %v972, 0.0
        %v1233 = vadd.f32 %v1231, %v1232
        %v1234 = vsel %vm572, %v973, 0.0
        %v1235 = vadd.f32 %v1233, %v1234
        %v1236 = vsel %vm572, %v974, 0.0
        %v1237 = vadd.f32 %v1235, %v1236
        %v1238 = vsel %vm572, %v975, 0.0
        %v1239 = vadd.f32 %v1237, %v1238
        %v1240 = vsel %vm572, %v976, 0.0
        %v1241 = vadd.f32 %v1239, %v1240
        %v1242 = vsel %vm572, %v977, 0.0
        %v1243 = vadd.f32 %v1241, %v1242
        %v1244 = vsel %vm572, %v978, 0.0
        %v1245 = vadd.f32 %v1243, %v1244
        %v1246 = vsel %vm572, %v979, 0.0
        %v1247 = vadd.f32 %v1245, %v1246
        %v1248 = vsel %vm572, %v980, 0.0
        %v1249 = vadd.f32 %v1247, %v1248
        %v1250 = vrot.slane %v1249, 4
        %v1251 = vadd.f32 %v1249, %v1250
        %v1252 = vrot.slane %v1251, 2
        %v1253 = vadd.f32 %v1251, %v1252
        %v1254 = vrot.slane %v1253, 1
        %v1255 = vadd.f32 %v1253, %v1254
        %v1256 = vsel %vm572, %v981, 0.0
        %v1257 = vsel %vm572, %v982, 0.0
        %v1258 = vadd.f32 %v1256, %v1257
        %v1259 = vsel %vm572, %v983, 0.0
        %v1260 = vadd.f32 %v1258, %v1259
        %v1261 = vsel %vm572, %v984, 0.0
        %v1262 = vadd.f32 %v1260, %v1261
        %v1263 = vsel %vm572, %v985, 0.0
        %v1264 = vadd.f32 %v1262, %v1263
        %v1265 = vsel %vm572, %v986, 0.0
        %v1266 = vadd.f32 %v1264, %v1265
        %v1267 = vsel %vm572, %v987, 0.0
        %v1268 = vadd.f32 %v1266, %v1267
        %v1269 = vsel %vm572, %v988, 0.0
        %v1270 = vadd.f32 %v1268, %v1269
        %v1271 = vsel %vm572, %v989, 0.0
        %v1272 = vadd.f32 %v1270, %v1271
        %v1273 = vsel %vm572, %v990, 0.0
        %v1274 = vadd.f32 %v1272, %v1273
        %v1275 = vsel %vm572, %v991, 0.0
        %v1276 = vadd.f32 %v1274, %v1275
        %v1277 = vsel %vm572, %v992, 0.0
        %v1278 = vadd.f32 %v1276, %v1277
        %v1279 = vsel %vm572, %v993, 0.0
        %v1280 = vadd.f32 %v1278, %v1279
        %v1281 = vsel %vm572, %v994, 0.0
        %v1282 = vadd.f32 %v1280, %v1281
        %v1283 = vsel %vm572, %v995, 0.0
        %v1284 = vadd.f32 %v1282, %v1283
        %v1285 = vsel %vm572, %v996, 0.0
        %v1286 = vadd.f32 %v1284, %v1285
        %v1287 = vrot.slane %v1286, 4
        %v1288 = vadd.f32 %v1286, %v1287
        %v1289 = vrot.slane %v1288, 2
        %v1290 = vadd.f32 %v1288, %v1289
        %v1291 = vrot.slane %v1290, 1
        %v1292 = vadd.f32 %v1290, %v1291
        %1301 = vrot.lane.b32.xlu0 %v609, 120
        %v1302 = vpop.permute.xlu0 %1301
        %1303 = vrot.lane.b32.xlu0 %v646, 120
        %v1304 = vpop.permute.xlu0 %1303
        %1305 = vrot.lane.b32.xlu0 %v683, 120
        %v1306 = vpop.permute.xlu0 %1305
        %1307 = vrot.lane.b32.xlu0 %v720, 120
        %v1308 = vpop.permute.xlu0 %1307
        %1309 = vrot.lane.b32.xlu0 %v757, 120
        %v1310 = vpop.permute.xlu0 %1309
        %1311 = vrot.lane.b32.xlu0 %v794, 120
        %v1312 = vpop.permute.xlu0 %1311
        %1313 = vrot.lane.b32.xlu0 %v831, 120
        %v1314 = vpop.permute.xlu0 %1313
        %1315 = vrot.lane.b32.xlu0 %v868, 120
        %v1316 = vpop.permute.xlu0 %1315
        %1317 = vrot.lane.b32.xlu0 %v609, 112
        %v1318 = vpop.permute.xlu0 %1317
        %1319 = vrot.lane.b32.xlu0 %v646, 112
        %v1320 = vpop.permute.xlu0 %1319
        %1321 = vrot.lane.b32.xlu0 %v683, 112
        %v1322 = vpop.permute.xlu0 %1321
        %1323 = vrot.lane.b32.xlu0 %v720, 112
        %v1324 = vpop.permute.xlu0 %1323
        %1325 = vrot.lane.b32.xlu0 %v757, 112
        %v1326 = vpop.permute.xlu0 %1325
        %1327 = vrot.lane.b32.xlu0 %v794, 112
        %v1328 = vpop.permute.xlu0 %1327
        %1329 = vrot.lane.b32.xlu0 %v831, 112
        %v1330 = vpop.permute.xlu0 %1329
        %1331 = vrot.lane.b32.xlu0 %v868, 112
        %v1332 = vpop.permute.xlu0 %1331
        %1333 = vrot.lane.b32.xlu0 %v609, 104
        %v1334 = vpop.permute.xlu0 %1333
        %1335 = vrot.lane.b32.xlu0 %v646, 104
        %v1336 = vpop.permute.xlu0 %1335
        %1337 = vrot.lane.b32.xlu0 %v683, 104
        %v1338 = vpop.permute.xlu0 %1337
        %1339 = vrot.lane.b32.xlu0 %v720, 104
        %v1340 = vpop.permute.xlu0 %1339
        %1341 = vrot.lane.b32.xlu0 %v757, 104
        %v1342 = vpop.permute.xlu0 %1341
        %1343 = vrot.lane.b32.xlu0 %v794, 104
        %v1344 = vpop.permute.xlu0 %1343
        %1345 = vrot.lane.b32.xlu0 %v831, 104
        %v1346 = vpop.permute.xlu0 %1345
        %1347 = vrot.lane.b32.xlu0 %v868, 104
        %v1348 = vpop.permute.xlu0 %1347
        %1349 = vrot.lane.b32.xlu0 %v609, 96
        %v1350 = vpop.permute.xlu0 %1349
        %1351 = vrot.lane.b32.xlu0 %v646, 96
        %v1352 = vpop.permute.xlu0 %1351
        %1353 = vrot.lane.b32.xlu0 %v683, 96
        %v1354 = vpop.permute.xlu0 %1353
        %1355 = vrot.lane.b32.xlu0 %v720, 96
        %v1356 = vpop.permute.xlu0 %1355
        %1357 = vrot.lane.b32.xlu0 %v757, 96
        %v1358 = vpop.permute.xlu0 %1357
        %1359 = vrot.lane.b32.xlu0 %v794, 96
        %v1360 = vpop.permute.xlu0 %1359
        %1361 = vrot.lane.b32.xlu0 %v831, 96
        %v1362 = vpop.permute.xlu0 %1361
        %1363 = vrot.lane.b32.xlu0 %v868, 96
        %v1364 = vpop.permute.xlu0 %1363
        %1365 = vrot.lane.b32.xlu0 %v609, 88
        %v1366 = vpop.permute.xlu0 %1365
        %1367 = vrot.lane.b32.xlu0 %v646, 88
        %v1368 = vpop.permute.xlu0 %1367
        %1369 = vrot.lane.b32.xlu0 %v683, 88
        %v1370 = vpop.permute.xlu0 %1369
        %1371 = vrot.lane.b32.xlu0 %v720, 88
        %v1372 = vpop.permute.xlu0 %1371
        %1373 = vrot.lane.b32.xlu0 %v757, 88
        %v1374 = vpop.permute.xlu0 %1373
        %1375 = vrot.lane.b32.xlu0 %v794, 88
        %v1376 = vpop.permute.xlu0 %1375
        %1377 = vrot.lane.b32.xlu0 %v831, 88
        %v1378 = vpop.permute.xlu0 %1377
        %1379 = vrot.lane.b32.xlu0 %v868, 88
        %v1380 = vpop.permute.xlu0 %1379
        %1381 = vrot.lane.b32.xlu0 %v609, 80
        %v1382 = vpop.permute.xlu0 %1381
        %1383 = vrot.lane.b32.xlu0 %v646, 80
        %v1384 = vpop.permute.xlu0 %1383
        %1385 = vrot.lane.b32.xlu0 %v683, 80
        %v1386 = vpop.permute.xlu0 %1385
        %1387 = vrot.lane.b32.xlu0 %v720, 80
        %v1388 = vpop.permute.xlu0 %1387
        %1389 = vrot.lane.b32.xlu0 %v757, 80
        %v1390 = vpop.permute.xlu0 %1389
        %1391 = vrot.lane.b32.xlu0 %v794, 80
        %v1392 = vpop.permute.xlu0 %1391
        %1393 = vrot.lane.b32.xlu0 %v831, 80
        %v1394 = vpop.permute.xlu0 %1393
        %1395 = vrot.lane.b32.xlu0 %v868, 80
        %v1396 = vpop.permute.xlu0 %1395
        %1397 = vrot.lane.b32.xlu0 %v609, 72
        %v1398 = vpop.permute.xlu0 %1397
        %1399 = vrot.lane.b32.xlu0 %v646, 72
        %v1400 = vpop.permute.xlu0 %1399
        %1401 = vrot.lane.b32.xlu0 %v683, 72
        %v1402 = vpop.permute.xlu0 %1401
        %1403 = vrot.lane.b32.xlu0 %v720, 72
        %v1404 = vpop.permute.xlu0 %1403
        %1405 = vrot.lane.b32.xlu0 %v757, 72
        %v1406 = vpop.permute.xlu0 %1405
        %1407 = vrot.lane.b32.xlu0 %v794, 72
        %v1408 = vpop.permute.xlu0 %1407
        %1409 = vrot.lane.b32.xlu0 %v831, 72
        %v1410 = vpop.permute.xlu0 %1409
        %1411 = vrot.lane.b32.xlu0 %v868, 72
        %v1412 = vpop.permute.xlu0 %1411
        %v1413 = vrot.slane %v646, 7
        %vm1414 = vcmask 1041409
        %v1415 = vsel %vm1414, %v1413, %v609
        %v1416 = vrot.slane %v683, 6
        %vm1417 = vcmask 1042434
        %v1418 = vsel %vm1417, %v1416, %v1415
        %v1419 = vrot.slane %v720, 5
        %vm1420 = vcmask 1043459
        %v1421 = vsel %vm1420, %v1419, %v1418
        %v1422 = vrot.slane %v757, 4
        %vm1423 = vcmask 1044484
        %v1424 = vsel %vm1423, %v1422, %v1421
        %v1425 = vrot.slane %v794, 3
        %vm1426 = vcmask 1045509
        %v1427 = vsel %vm1426, %v1425, %v1424
        %v1428 = vrot.slane %v831, 2
        %vm1429 = vcmask 1046534
        %v1430 = vsel %vm1429, %v1428, %v1427
        %v1431 = vrot.slane %v868, 1
        %vm1432 = vcmask 1047559
        %v1433 = vsel %vm1432, %v1431, %v1430
        %v1434 = vrot.slane %v1304, 7
        %v1435 = vsel %vm1414, %v1434, %v1302
        %v1436 = vrot.slane %v1306, 6
        %v1437 = vsel %vm1417, %v1436, %v1435
        %v1438 = vrot.slane %v1308, 5
        %v1439 = vsel %vm1420, %v1438, %v1437
        %v1440 = vrot.slane %v1310, 4
        %v1441 = vsel %vm1423, %v1440, %v1439
        %v1442 = vrot.slane %v1312, 3
        %v1443 = vsel %vm1426, %v1442, %v1441
        %v1444 = vrot.slane %v1314, 2
        %v1445 = vsel %vm1429, %v1444, %v1443
        %v1446 = vrot.slane %v1316, 1
        %v1447 = vsel %vm1432, %v1446, %v1445
        %v1448 = vrot.slane %v1320, 7
        %v1449 = vsel %vm1414, %v1448, %v1318
        %v1450 = vrot.slane %v1322, 6
        %v1451 = vsel %vm1417, %v1450, %v1449
        %v1452 = vrot.slane %v1324, 5
        %v1453 = vsel %vm1420, %v1452, %v1451
        %v1454 = vrot.slane %v1326, 4
        %v1455 = vsel %vm1423, %v1454, %v1453
        %v1456 = vrot.slane %v1328, 3
        %v1457 = vsel %vm1426, %v1456, %v1455
        %v1458 = vrot.slane %v1330, 2
        %v1459 = vsel %vm1429, %v1458, %v1457
        %v1460 = vrot.slane %v1332, 1
        %v1461 = vsel %vm1432, %v1460, %v1459
        %v1462 = vrot.slane %v1336, 7
        %v1463 = vsel %vm1414, %v1462, %v1334
        %v1464 = vrot.slane %v1338, 6
        %v1465 = vsel %vm1417, %v1464, %v1463
        %v1466 = vrot.slane %v1340, 5
        %v1467 = vsel %vm1420, %v1466, %v1465
        %v1468 = vrot.slane %v1342, 4
        %v1469 = vsel %vm1423, %v1468, %v1467
        %v1470 = vrot.slane %v1344, 3
        %v1471 = vsel %vm1426, %v1470, %v1469
        %v1472 = vrot.slane %v1346, 2
        %v1473 = vsel %vm1429, %v1472, %v1471
        %v1474 = vrot.slane %v1348, 1
        %v1475 = vsel %vm1432, %v1474, %v1473
        %v1476 = vrot.slane %v1352, 7
        %v1477 = vsel %vm1414, %v1476, %v1350
        %v1478 = vrot.slane %v1354, 6
        %v1479 = vsel %vm1417, %v1478, %v1477
        %v1480 = vrot.slane %v1356, 5
        %v1481 = vsel %vm1420, %v1480, %v1479
        %v1482 = vrot.slane %v1358, 4
        %v1483 = vsel %vm1423, %v1482, %v1481
        %v1484 = vrot.slane %v1360, 3
        %v1485 = vsel %vm1426, %v1484, %v1483
        %v1486 = vrot.slane %v1362, 2
        %v1487 = vsel %vm1429, %v1486, %v1485
        %v1488 = vrot.slane %v1364, 1
        %v1489 = vsel %vm1432, %v1488, %v1487
        %v1490 = vrot.slane %v1368, 7
        %v1491 = vsel %vm1414, %v1490, %v1366
        %v1492 = vrot.slane %v1370, 6
        %v1493 = vsel %vm1417, %v1492, %v1491
        %v1494 = vrot.slane %v1372, 5
        %v1495 = vsel %vm1420, %v1494, %v1493
        %v1496 = vrot.slane %v1374, 4
        %v1497 = vsel %vm1423, %v1496, %v1495
        %v1498 = vrot.slane %v1376, 3
        %v1499 = vsel %vm1426, %v1498, %v1497
        %v1500 = vrot.slane %v1378, 2
        %v1501 = vsel %vm1429, %v1500, %v1499
        %v1502 = vrot.slane %v1380, 1
        %v1503 = vsel %vm1432, %v1502, %v1501
        %v1504 = vrot.slane %v1384, 7
        %v1505 = vsel %vm1414, %v1504, %v1382
        %v1506 = vrot.slane %v1386, 6
        %v1507 = vsel %vm1417, %v1506, %v1505
        %v1508 = vrot.slane %v1388, 5
        %v1509 = vsel %vm1420, %v1508, %v1507
        %v1510 = vrot.slane %v1390, 4
        %v1511 = vsel %vm1423, %v1510, %v1509
        %v1512 = vrot.slane %v1392, 3
        %v1513 = vsel %vm1426, %v1512, %v1511
        %v1514 = vrot.slane %v1394, 2
        %v1515 = vsel %vm1429, %v1514, %v1513
        %v1516 = vrot.slane %v1396, 1
        %v1517 = vsel %vm1432, %v1516, %v1515
        %v1518 = vrot.slane %v1400, 7
        %v1519 = vsel %vm1414, %v1518, %v1398
        %v1520 = vrot.slane %v1402, 6
        %v1521 = vsel %vm1417, %v1520, %v1519
        %v1522 = vrot.slane %v1404, 5
        %v1523 = vsel %vm1420, %v1522, %v1521
        %v1524 = vrot.slane %v1406, 4
        %v1525 = vsel %vm1423, %v1524, %v1523
        %v1526 = vrot.slane %v1408, 3
        %v1527 = vsel %vm1426, %v1526, %v1525
        %v1528 = vrot.slane %v1410, 2
        %v1529 = vsel %vm1429, %v1528, %v1527
        %v1530 = vrot.slane %v1412, 1
        %v1531 = vsel %vm1432, %v1530, %v1529
        %v1540 = vcombine.low %v1433, %v1461
        %v1541 = vcombine.high %v1433, %v1461
        %v1543 = vunpack.c.l.s4 1983009808
        %v1544 = vunpack.c.0.s8 %v1543
        %v1545 = vlaneseq
        %v1546 = vshrl.u32 %v1545, 7
        %v1547 = vsub.s32 %v1544, %v1546
        %v1548 = vrot.slane %v1540, %v1547
        %v1550 = vunpack.c.l.s4 1983009808
        %v1551 = vunpack.c.0.s8 %v1550
        %v1552 = vlaneseq
        %v1553 = vshrl.u32 %v1552, 7
        %v1554 = vsub.s32 %v1551, %v1553
        %v1555 = vrot.slane %v1541, %v1554
        %v1556 = vcombine.low %v1447, %v1475
        %v1557 = vcombine.high %v1447, %v1475
        %v1559 = vunpack.c.l.s4 1983009808
        %v1560 = vunpack.c.0.s8 %v1559
        %v1561 = vlaneseq
        %v1562 = vshrl.u32 %v1561, 7
        %v1563 = vsub.s32 %v1560, %v1562
        %v1564 = vrot.slane %v1556, %v1563
        %v1566 = vunpack.c.l.s4 1983009808
        %v1567 = vunpack.c.0.s8 %v1566
        %v1568 = vlaneseq
        %v1569 = vshrl.u32 %v1568, 7
        %v1570 = vsub.s32 %v1567, %v1569
        %v1571 = vrot.slane %v1557, %v1570
        %v1572 = vcombine.low %v1489, %v1517
        %v1573 = vcombine.high %v1489, %v1517
        %v1575 = vunpack.c.l.s4 1983009808
        %v1576 = vunpack.c.0.s8 %v1575
        %v1577 = vlaneseq
        %v1578 = vshrl.u32 %v1577, 7
        %v1579 = vsub.s32 %v1576, %v1578
        %v1580 = vrot.slane %v1572, %v1579
        %v1582 = vunpack.c.l.s4 1983009808
        %v1583 = vunpack.c.0.s8 %v1582
        %v1584 = vlaneseq
        %v1585 = vshrl.u32 %v1584, 7
        %v1586 = vsub.s32 %v1583, %v1585
        %v1587 = vrot.slane %v1573, %v1586
        %v1588 = vcombine.low %v1503, %v1531
        %v1589 = vcombine.high %v1503, %v1531
        %v1591 = vunpack.c.l.s4 1983009808
        %v1592 = vunpack.c.0.s8 %v1591
        %v1593 = vlaneseq
        %v1594 = vshrl.u32 %v1593, 7
        %v1595 = vsub.s32 %v1592, %v1594
        %v1596 = vrot.slane %v1588, %v1595
        %v1598 = vunpack.c.l.s4 1983009808
        %v1599 = vunpack.c.0.s8 %v1598
        %v1600 = vlaneseq
        %v1601 = vshrl.u32 %v1600, 7
        %v1602 = vsub.s32 %v1599, %v1601
        %v1603 = vrot.slane %v1589, %v1602
        %v1604 = vcombine.low %v1548, %v1564
        %v1605 = vcombine.high %v1548, %v1564
        %v1607 = vunpack.c.l.s4 1934713408
        %v1608 = vunpack.c.0.s8 %v1607
        %v1609 = vlaneseq
        %v1610 = vshrl.u32 %v1609, 7
        %v1611 = vsub.s32 %v1608, %v1610
        %v1612 = vrot.slane %v1604, %v1611
        %v1614 = vunpack.c.l.s4 1934713408
        %v1615 = vunpack.c.0.s8 %v1614
        %v1616 = vlaneseq
        %v1617 = vshrl.u32 %v1616, 7
        %v1618 = vsub.s32 %v1615, %v1617
        %v1619 = vrot.slane %v1605, %v1618
        %v1620 = vcombine.low %v1555, %v1571
        %v1621 = vcombine.high %v1555, %v1571
        %v1623 = vunpack.c.l.s4 1934713408
        %v1624 = vunpack.c.0.s8 %v1623
        %v1625 = vlaneseq
        %v1626 = vshrl.u32 %v1625, 7
        %v1627 = vsub.s32 %v1624, %v1626
        %v1628 = vrot.slane %v1620, %v1627
        %v1630 = vunpack.c.l.s4 1934713408
        %v1631 = vunpack.c.0.s8 %v1630
        %v1632 = vlaneseq
        %v1633 = vshrl.u32 %v1632, 7
        %v1634 = vsub.s32 %v1631, %v1633
        %v1635 = vrot.slane %v1621, %v1634
        %v1636 = vcombine.low %v1580, %v1596
        %v1637 = vcombine.high %v1580, %v1596
        %v1639 = vunpack.c.l.s4 1934713408
        %v1640 = vunpack.c.0.s8 %v1639
        %v1641 = vlaneseq
        %v1642 = vshrl.u32 %v1641, 7
        %v1643 = vsub.s32 %v1640, %v1642
        %v1644 = vrot.slane %v1636, %v1643
        %v1646 = vunpack.c.l.s4 1934713408
        %v1647 = vunpack.c.0.s8 %v1646
        %v1648 = vlaneseq
        %v1649 = vshrl.u32 %v1648, 7
        %v1650 = vsub.s32 %v1647, %v1649
        %v1651 = vrot.slane %v1637, %v1650
        %v1652 = vcombine.low %v1587, %v1603
        %v1653 = vcombine.high %v1587, %v1603
        %v1655 = vunpack.c.l.s4 1934713408
        %v1656 = vunpack.c.0.s8 %v1655
        %v1657 = vlaneseq
        %v1658 = vshrl.u32 %v1657, 7
        %v1659 = vsub.s32 %v1656, %v1658
        %v1660 = vrot.slane %v1652, %v1659
        %v1662 = vunpack.c.l.s4 1934713408
        %v1663 = vunpack.c.0.s8 %v1662
        %v1664 = vlaneseq
        %v1665 = vshrl.u32 %v1664, 7
        %v1666 = vsub.s32 %v1663, %v1665
        %v1667 = vrot.slane %v1653, %v1666
        %v1668 = vcombine.low %v1612, %v1644
        %v1669 = vcombine.high %v1612, %v1644
        %v1670 = vcombine.low %v1619, %v1651
        %v1671 = vcombine.high %v1619, %v1651
        %v1672 = vcombine.low %v1628, %v1660
        %v1673 = vcombine.high %v1628, %v1660
        %v1674 = vcombine.low %v1635, %v1667
        %v1675 = vcombine.high %v1635, %v1667
        %vm1676 = vcmask 64512
        %v1677 = vsel %vm1676, %v1668, 0.0
        %1678 = vadd.xlane.f32.xlu0 %v1677
        %v1679 = vpop.xlane.xlu0 %1678
        %v1680 = vsel %vm1676, %v1669, 0.0
        %1681 = vadd.xlane.f32.xlu0 %v1680
        %v1682 = vpop.xlane.xlu0 %1681
        %v1683 = vsel %vm1676, %v1670, 0.0
        %1684 = vadd.xlane.f32.xlu0 %v1683
        %v1685 = vpop.xlane.xlu0 %1684
        %v1686 = vsel %vm1676, %v1671, 0.0
        %1687 = vadd.xlane.f32.xlu0 %v1686
        %v1688 = vpop.xlane.xlu0 %1687
        %v1689 = vsel %vm1676, %v1672, 0.0
        %1690 = vadd.xlane.f32.xlu0 %v1689
        %v1691 = vpop.xlane.xlu0 %1690
        %v1692 = vsel %vm1676, %v1673, 0.0
        %1693 = vadd.xlane.f32.xlu0 %v1692
        %v1694 = vpop.xlane.xlu0 %1693
        %v1695 = vsel %vm1676, %v1674, 0.0
        %1696 = vadd.xlane.f32.xlu0 %v1695
        %v1697 = vpop.xlane.xlu0 %1696
        %v1698 = vsel %vm1676, %v1675, 0.0
        %1699 = vadd.xlane.f32.xlu0 %v1698
        %v1700 = vpop.xlane.xlu0 %1699
        %1709 = vrot.lane.b32.xlu0 %v1033, 120
        %v1710 = vpop.permute.xlu0 %1709
        %1711 = vrot.lane.b32.xlu0 %v1070, 120
        %v1712 = vpop.permute.xlu0 %1711
        %1713 = vrot.lane.b32.xlu0 %v1107, 120
        %v1714 = vpop.permute.xlu0 %1713
        %1715 = vrot.lane.b32.xlu0 %v1144, 120
        %v1716 = vpop.permute.xlu0 %1715
        %1717 = vrot.lane.b32.xlu0 %v1181, 120
        %v1718 = vpop.permute.xlu0 %1717
        %1719 = vrot.lane.b32.xlu0 %v1218, 120
        %v1720 = vpop.permute.xlu0 %1719
        %1721 = vrot.lane.b32.xlu0 %v1255, 120
        %v1722 = vpop.permute.xlu0 %1721
        %1723 = vrot.lane.b32.xlu0 %v1292, 120
        %v1724 = vpop.permute.xlu0 %1723
        %1725 = vrot.lane.b32.xlu0 %v1033, 112
        %v1726 = vpop.permute.xlu0 %1725
        %1727 = vrot.lane.b32.xlu0 %v1070, 112
        %v1728 = vpop.permute.xlu0 %1727
        %1729 = vrot.lane.b32.xlu0 %v1107, 112
        %v1730 = vpop.permute.xlu0 %1729
        %1731 = vrot.lane.b32.xlu0 %v1144, 112
        %v1732 = vpop.permute.xlu0 %1731
        %1733 = vrot.lane.b32.xlu0 %v1181, 112
        %v1734 = vpop.permute.xlu0 %1733
        %1735 = vrot.lane.b32.xlu0 %v1218, 112
        %v1736 = vpop.permute.xlu0 %1735
        %1737 = vrot.lane.b32.xlu0 %v1255, 112
        %v1738 = vpop.permute.xlu0 %1737
        %1739 = vrot.lane.b32.xlu0 %v1292, 112
        %v1740 = vpop.permute.xlu0 %1739
        %1741 = vrot.lane.b32.xlu0 %v1033, 104
        %v1742 = vpop.permute.xlu0 %1741
        %1743 = vrot.lane.b32.xlu0 %v1070, 104
        %v1744 = vpop.permute.xlu0 %1743
        %1745 = vrot.lane.b32.xlu0 %v1107, 104
        %v1746 = vpop.permute.xlu0 %1745
        %1747 = vrot.lane.b32.xlu0 %v1144, 104
        %v1748 = vpop.permute.xlu0 %1747
        %1749 = vrot.lane.b32.xlu0 %v1181, 104
        %v1750 = vpop.permute.xlu0 %1749
        %1751 = vrot.lane.b32.xlu0 %v1218, 104
        %v1752 = vpop.permute.xlu0 %1751
        %1753 = vrot.lane.b32.xlu0 %v1255, 104
        %v1754 = vpop.permute.xlu0 %1753
        %1755 = vrot.lane.b32.xlu0 %v1292, 104
        %v1756 = vpop.permute.xlu0 %1755
        %1757 = vrot.lane.b32.xlu0 %v1033, 96
        %v1758 = vpop.permute.xlu0 %1757
        %1759 = vrot.lane.b32.xlu0 %v1070, 96
        %v1760 = vpop.permute.xlu0 %1759
        %1761 = vrot.lane.b32.xlu0 %v1107, 96
        %v1762 = vpop.permute.xlu0 %1761
        %1763 = vrot.lane.b32.xlu0 %v1144, 96
        %v1764 = vpop.permute.xlu0 %1763
        %1765 = vrot.lane.b32.xlu0 %v1181, 96
        %v1766 = vpop.permute.xlu0 %1765
        %1767 = vrot.lane.b32.xlu0 %v1218, 96
        %v1768 = vpop.permute.xlu0 %1767
        %1769 = vrot.lane.b32.xlu0 %v1255, 96
        %v1770 = vpop.permute.xlu0 %1769
        %1771 = vrot.lane.b32.xlu0 %v1292, 96
        %v1772 = vpop.permute.xlu0 %1771
        %1773 = vrot.lane.b32.xlu0 %v1033, 88
        %v1774 = vpop.permute.xlu0 %1773
        %1775 = vrot.lane.b32.xlu0 %v1070, 88
        %v1776 = vpop.permute.xlu0 %1775
        %1777 = vrot.lane.b32.xlu0 %v1107, 88
        %v1778 = vpop.permute.xlu0 %1777
        %1779 = vrot.lane.b32.xlu0 %v1144, 88
        %v1780 = vpop.permute.xlu0 %1779
        %1781 = vrot.lane.b32.xlu0 %v1181, 88
        %v1782 = vpop.permute.xlu0 %1781
        %1783 = vrot.lane.b32.xlu0 %v1218, 88
        %v1784 = vpop.permute.xlu0 %1783
        %1785 = vrot.lane.b32.xlu0 %v1255, 88
        %v1786 = vpop.permute.xlu0 %1785
        %1787 = vrot.lane.b32.xlu0 %v1292, 88
        %v1788 = vpop.permute.xlu0 %1787
        %1789 = vrot.lane.b32.xlu0 %v1033, 80
        %v1790 = vpop.permute.xlu0 %1789
        %1791 = vrot.lane.b32.xlu0 %v1070, 80
        %v1792 = vpop.permute.xlu0 %1791
        %1793 = vrot.lane.b32.xlu0 %v1107, 80
        %v1794 = vpop.permute.xlu0 %1793
        %1795 = vrot.lane.b32.xlu0 %v1144, 80
        %v1796 = vpop.permute.xlu0 %1795
        %1797 = vrot.lane.b32.xlu0 %v1181, 80
        %v1798 = vpop.permute.xlu0 %1797
        %1799 = vrot.lane.b32.xlu0 %v1218, 80
        %v1800 = vpop.permute.xlu0 %1799
        %1801 = vrot.lane.b32.xlu0 %v1255, 80
        %v1802 = vpop.permute.xlu0 %1801
        %1803 = vrot.lane.b32.xlu0 %v1292, 80
        %v1804 = vpop.permute.xlu0 %1803
        %1805 = vrot.lane.b32.xlu0 %v1033, 72
        %v1806 = vpop.permute.xlu0 %1805
        %1807 = vrot.lane.b32.xlu0 %v1070, 72
        %v1808 = vpop.permute.xlu0 %1807
        %1809 = vrot.lane.b32.xlu0 %v1107, 72
        %v1810 = vpop.permute.xlu0 %1809
        %1811 = vrot.lane.b32.xlu0 %v1144, 72
        %v1812 = vpop.permute.xlu0 %1811
        %1813 = vrot.lane.b32.xlu0 %v1181, 72
        %v1814 = vpop.permute.xlu0 %1813
        %1815 = vrot.lane.b32.xlu0 %v1218, 72
        %v1816 = vpop.permute.xlu0 %1815
        %1817 = vrot.lane.b32.xlu0 %v1255, 72
        %v1818 = vpop.permute.xlu0 %1817
        %1819 = vrot.lane.b32.xlu0 %v1292, 72
        %v1820 = vpop.permute.xlu0 %1819
        %v1821 = vrot.slane %v1070, 7
        %v1822 = vsel %vm1414, %v1821, %v1033
        %v1823 = vrot.slane %v1107, 6
        %v1824 = vsel %vm1417, %v1823, %v1822
        %v1825 = vrot.slane %v1144, 5
        %v1826 = vsel %vm1420, %v1825, %v1824
        %v1827 = vrot.slane %v1181, 4
        %v1828 = vsel %vm1423, %v1827, %v1826
        %v1829 = vrot.slane %v1218, 3
        %v1830 = vsel %vm1426, %v1829, %v1828
        %v1831 = vrot.slane %v1255, 2
        %v1832 = vsel %vm1429, %v1831, %v1830
        %v1833 = vrot.slane %v1292, 1
        %v1834 = vsel %vm1432, %v1833, %v1832
        %v1835 = vrot.slane %v1712, 7
        %v1836 = vsel %vm1414, %v1835, %v1710
        %v1837 = vrot.slane %v1714, 6
        %v1838 = vsel %vm1417, %v1837, %v1836
        %v1839 = vrot.slane %v1716, 5
        %v1840 = vsel %vm1420, %v1839, %v1838
        %v1841 = vrot.slane %v1718, 4
        %v1842 = vsel %vm1423, %v1841, %v1840
        %v1843 = vrot.slane %v1720, 3
        %v1844 = vsel %vm1426, %v1843, %v1842
        %v1845 = vrot.slane %v1722, 2
        %v1846 = vsel %vm1429, %v1845, %v1844
        %v1847 = vrot.slane %v1724, 1
        %v1848 = vsel %vm1432, %v1847, %v1846
        %v1849 = vrot.slane %v1728, 7
        %v1850 = vsel %vm1414, %v1849, %v1726
        %v1851 = vrot.slane %v1730, 6
        %v1852 = vsel %vm1417, %v1851, %v1850
        %v1853 = vrot.slane %v1732, 5
        %v1854 = vsel %vm1420, %v1853, %v1852
        %v1855 = vrot.slane %v1734, 4
        %v1856 = vsel %vm1423, %v1855, %v1854
        %v1857 = vrot.slane %v1736, 3
        %v1858 = vsel %vm1426, %v1857, %v1856
        %v1859 = vrot.slane %v1738, 2
        %v1860 = vsel %vm1429, %v1859, %v1858
        %v1861 = vrot.slane %v1740, 1
        %v1862 = vsel %vm1432, %v1861, %v1860
        %v1863 = vrot.slane %v1744, 7
        %v1864 = vsel %vm1414, %v1863, %v1742
        %v1865 = vrot.slane %v1746, 6
        %v1866 = vsel %vm1417, %v1865, %v1864
        %v1867 = vrot.slane %v1748, 5
        %v1868 = vsel %vm1420, %v1867, %v1866
        %v1869 = vrot.slane %v1750, 4
        %v1870 = vsel %vm1423, %v1869, %v1868
        %v1871 = vrot.slane %v1752, 3
        %v1872 = vsel %vm1426, %v1871, %v1870
        %v1873 = vrot.slane %v1754, 2
        %v1874 = vsel %vm1429, %v1873, %v1872
        %v1875 = vrot.slane %v1756, 1
        %v1876 = vsel %vm1432, %v1875, %v1874
        %v1877 = vrot.slane %v1760, 7
        %v1878 = vsel %vm1414, %v1877, %v1758
        %v1879 = vrot.slane %v1762, 6
        %v1880 = vsel %vm1417, %v1879, %v1878
        %v1881 = vrot.slane %v1764, 5
        %v1882 = vsel %vm1420, %v1881, %v1880
        %v1883 = vrot.slane %v1766, 4
        %v1884 = vsel %vm1423, %v1883, %v1882
        %v1885 = vrot.slane %v1768, 3
        %v1886 = vsel %vm1426, %v1885, %v1884
        %v1887 = vrot.slane %v1770, 2
        %v1888 = vsel %vm1429, %v1887, %v1886
        %v1889 = vrot.slane %v1772, 1
        %v1890 = vsel %vm1432, %v1889, %v1888
        %v1891 = vrot.slane %v1776, 7
        %v1892 = vsel %vm1414, %v1891, %v1774
        %v1893 = vrot.slane %v1778, 6
        %v1894 = vsel %vm1417, %v1893, %v1892
        %v1895 = vrot.slane %v1780, 5
        %v1896 = vsel %vm1420, %v1895, %v1894
        %v1897 = vrot.slane %v1782, 4
        %v1898 = vsel %vm1423, %v1897, %v1896
        %v1899 = vrot.slane %v1784, 3
        %v1900 = vsel %vm1426, %v1899, %v1898
        %v1901 = vrot.slane %v1786, 2
        %v1902 = vsel %vm1429, %v1901, %v1900
        %v1903 = vrot.slane %v1788, 1
        %v1904 = vsel %vm1432, %v1903, %v1902
        %v1905 = vrot.slane %v1792, 7
        %v1906 = vsel %vm1414, %v1905, %v1790
        %v1907 = vrot.slane %v1794, 6
        %v1908 = vsel %vm1417, %v1907, %v1906
        %v1909 = vrot.slane %v1796, 5
        %v1910 = vsel %vm1420, %v1909, %v1908
        %v1911 = vrot.slane %v1798, 4
        %v1912 = vsel %vm1423, %v1911, %v1910
        %v1913 = vrot.slane %v1800, 3
        %v1914 = vsel %vm1426, %v1913, %v1912
        %v1915 = vrot.slane %v1802, 2
        %v1916 = vsel %vm1429, %v1915, %v1914
        %v1917 = vrot.slane %v1804, 1
        %v1918 = vsel %vm1432, %v1917, %v1916
        %v1919 = vrot.slane %v1808, 7
        %v1920 = vsel %vm1414, %v1919, %v1806
        %v1921 = vrot.slane %v1810, 6
        %v1922 = vsel %vm1417, %v1921, %v1920
        %v1923 = vrot.slane %v1812, 5
        %v1924 = vsel %vm1420, %v1923, %v1922
        %v1925 = vrot.slane %v1814, 4
        %v1926 = vsel %vm1423, %v1925, %v1924
        %v1927 = vrot.slane %v1816, 3
        %v1928 = vsel %vm1426, %v1927, %v1926
        %v1929 = vrot.slane %v1818, 2
        %v1930 = vsel %vm1429, %v1929, %v1928
        %v1931 = vrot.slane %v1820, 1
        %v1932 = vsel %vm1432, %v1931, %v1930
        %v1941 = vcombine.low %v1834, %v1862
        %v1942 = vcombine.high %v1834, %v1862
        %v1944 = vunpack.c.l.s4 1983009808
        %v1945 = vunpack.c.0.s8 %v1944
        %v1946 = vlaneseq
        %v1947 = vshrl.u32 %v1946, 7
        %v1948 = vsub.s32 %v1945, %v1947
        %v1949 = vrot.slane %v1941, %v1948
        %v1951 = vunpack.c.l.s4 1983009808
        %v1952 = vunpack.c.0.s8 %v1951
        %v1953 = vlaneseq
        %v1954 = vshrl.u32 %v1953, 7
        %v1955 = vsub.s32 %v1952, %v1954
        %v1956 = vrot.slane %v1942, %v1955
        %v1957 = vcombine.low %v1848, %v1876
        %v1958 = vcombine.high %v1848, %v1876
        %v1960 = vunpack.c.l.s4 1983009808
        %v1961 = vunpack.c.0.s8 %v1960
        %v1962 = vlaneseq
        %v1963 = vshrl.u32 %v1962, 7
        %v1964 = vsub.s32 %v1961, %v1963
        %v1965 = vrot.slane %v1957, %v1964
        %v1967 = vunpack.c.l.s4 1983009808
        %v1968 = vunpack.c.0.s8 %v1967
        %v1969 = vlaneseq
        %v1970 = vshrl.u32 %v1969, 7
        %v1971 = vsub.s32 %v1968, %v1970
        %v1972 = vrot.slane %v1958, %v1971
        %v1973 = vcombine.low %v1890, %v1918
        %v1974 = vcombine.high %v1890, %v1918
        %v1976 = vunpack.c.l.s4 1983009808
        %v1977 = vunpack.c.0.s8 %v1976
        %v1978 = vlaneseq
        %v1979 = vshrl.u32 %v1978, 7
        %v1980 = vsub.s32 %v1977, %v1979
        %v1981 = vrot.slane %v1973, %v1980
        %v1983 = vunpack.c.l.s4 1983009808
        %v1984 = vunpack.c.0.s8 %v1983
        %v1985 = vlaneseq
        %v1986 = vshrl.u32 %v1985, 7
        %v1987 = vsub.s32 %v1984, %v1986
        %v1988 = vrot.slane %v1974, %v1987
        %v1989 = vcombine.low %v1904, %v1932
        %v1990 = vcombine.high %v1904, %v1932
        %v1992 = vunpack.c.l.s4 1983009808
        %v1993 = vunpack.c.0.s8 %v1992
        %v1994 = vlaneseq
        %v1995 = vshrl.u32 %v1994, 7
        %v1996 = vsub.s32 %v1993, %v1995
        %v1997 = vrot.slane %v1989, %v1996
        %v1999 = vunpack.c.l.s4 1983009808
        %v2000 = vunpack.c.0.s8 %v1999
        %v2001 = vlaneseq
        %v2002 = vshrl.u32 %v2001, 7
        %v2003 = vsub.s32 %v2000, %v2002
        %v2004 = vrot.slane %v1990, %v2003
        %v2005 = vcombine.low %v1949, %v1965
        %v2006 = vcombine.high %v1949, %v1965
        %v2008 = vunpack.c.l.s4 1934713408
        %v2009 = vunpack.c.0.s8 %v2008
        %v2010 = vlaneseq
        %v2011 = vshrl.u32 %v2010, 7
        %v2012 = vsub.s32 %v2009, %v2011
        %v2013 = vrot.slane %v2005, %v2012
        %v2015 = vunpack.c.l.s4 1934713408
        %v2016 = vunpack.c.0.s8 %v2015
        %v2017 = vlaneseq
        %v2018 = vshrl.u32 %v2017, 7
        %v2019 = vsub.s32 %v2016, %v2018
        %v2020 = vrot.slane %v2006, %v2019
        %v2021 = vcombine.low %v1956, %v1972
        %v2022 = vcombine.high %v1956, %v1972
        %v2024 = vunpack.c.l.s4 1934713408
        %v2025 = vunpack.c.0.s8 %v2024
        %v2026 = vlaneseq
        %v2027 = vshrl.u32 %v2026, 7
        %v2028 = vsub.s32 %v2025, %v2027
        %v2029 = vrot.slane %v2021, %v2028
        %v2031 = vunpack.c.l.s4 1934713408
        %v2032 = vunpack.c.0.s8 %v2031
        %v2033 = vlaneseq
        %v2034 = vshrl.u32 %v2033, 7
        %v2035 = vsub.s32 %v2032, %v2034
        %v2036 = vrot.slane %v2022, %v2035
        %v2037 = vcombine.low %v1981, %v1997
        %v2038 = vcombine.high %v1981, %v1997
        %v2040 = vunpack.c.l.s4 1934713408
        %v2041 = vunpack.c.0.s8 %v2040
        %v2042 = vlaneseq
        %v2043 = vshrl.u32 %v2042, 7
        %v2044 = vsub.s32 %v2041, %v2043
        %v2045 = vrot.slane %v2037, %v2044
        %v2047 = vunpack.c.l.s4 1934713408
        %v2048 = vunpack.c.0.s8 %v2047
        %v2049 = vlaneseq
        %v2050 = vshrl.u32 %v2049, 7
        %v2051 = vsub.s32 %v2048, %v2050
        %v2052 = vrot.slane %v2038, %v2051
        %v2053 = vcombine.low %v1988, %v2004
        %v2054 = vcombine.high %v1988, %v2004
        %v2056 = vunpack.c.l.s4 1934713408
        %v2057 = vunpack.c.0.s8 %v2056
        %v2058 = vlaneseq
        %v2059 = vshrl.u32 %v2058, 7
        %v2060 = vsub.s32 %v2057, %v2059
        %v2061 = vrot.slane %v2053, %v2060
        %v2063 = vunpack.c.l.s4 1934713408
        %v2064 = vunpack.c.0.s8 %v2063
        %v2065 = vlaneseq
        %v2066 = vshrl.u32 %v2065, 7
        %v2067 = vsub.s32 %v2064, %v2066
        %v2068 = vrot.slane %v2054, %v2067
        %v2069 = vcombine.low %v2013, %v2045
        %v2070 = vcombine.high %v2013, %v2045
        %v2071 = vcombine.low %v2020, %v2052
        %v2072 = vcombine.high %v2020, %v2052
        %v2073 = vcombine.low %v2029, %v2061
        %v2074 = vcombine.high %v2029, %v2061
        %v2075 = vcombine.low %v2036, %v2068
        %v2076 = vcombine.high %v2036, %v2068
        %v2077 = vsel %vm1676, %v2069, 0.0
        %2078 = vadd.xlane.f32.xlu0 %v2077
        %v2079 = vpop.xlane.xlu0 %2078
        %v2080 = vsel %vm1676, %v2070, 0.0
        %2081 = vadd.xlane.f32.xlu0 %v2080
        %v2082 = vpop.xlane.xlu0 %2081
        %v2083 = vsel %vm1676, %v2071, 0.0
        %2084 = vadd.xlane.f32.xlu0 %v2083
        %v2085 = vpop.xlane.xlu0 %2084
        %v2086 = vsel %vm1676, %v2072, 0.0
        %2087 = vadd.xlane.f32.xlu0 %v2086
        %v2088 = vpop.xlane.xlu0 %2087
        %v2089 = vsel %vm1676, %v2073, 0.0
        %2090 = vadd.xlane.f32.xlu0 %v2089
        %v2091 = vpop.xlane.xlu0 %2090
        %v2092 = vsel %vm1676, %v2074, 0.0
        %2093 = vadd.xlane.f32.xlu0 %v2092
        %v2094 = vpop.xlane.xlu0 %2093
        %v2095 = vsel %vm1676, %v2075, 0.0
        %2096 = vadd.xlane.f32.xlu0 %v2095
        %v2097 = vpop.xlane.xlu0 %2096
        %v2098 = vsel %vm1676, %v2076, 0.0
        %2099 = vadd.xlane.f32.xlu0 %v2098
        %v2100 = vpop.xlane.xlu0 %2099
        %v2101 = vrcp.pop 1024.0
        %v2102 = vmul.f32 %v1679, %v2101
        %v2103 = vmul.f32 %v1682, %v2101
        %v2104 = vmul.f32 %v1685, %v2101
        %v2105 = vmul.f32 %v1688, %v2101
        %v2106 = vmul.f32 %v1691, %v2101
        %v2107 = vmul.f32 %v1694, %v2101
        %v2108 = vmul.f32 %v1697, %v2101
        %v2109 = vmul.f32 %v1700, %v2101
        %v2110 = vmul.f32 %v2079, %v2101
        %v2111 = vmul.f32 %v2082, %v2101
        %v2112 = vmul.f32 %v2085, %v2101
        %v2113 = vmul.f32 %v2088, %v2101
        %v2114 = vmul.f32 %v2091, %v2101
        %v2115 = vmul.f32 %v2094, %v2101
        %v2116 = vmul.f32 %v2097, %v2101
        %v2117 = vmul.f32 %v2100, %v2101
        %v2118 = vmul.f32 %v2102, %v2102
        %v2119 = vmul.f32 %v2103, %v2103
        %v2120 = vmul.f32 %v2104, %v2104
        %v2121 = vmul.f32 %v2105, %v2105
        %v2122 = vmul.f32 %v2106, %v2106
        %v2123 = vmul.f32 %v2107, %v2107
        %v2124 = vmul.f32 %v2108, %v2108
        %v2125 = vmul.f32 %v2109, %v2109
        %v2126 = vsub.f32 %v2110, %v2118
        %v2127 = vsub.f32 %v2111, %v2119
        %v2128 = vsub.f32 %v2112, %v2120
        %v2129 = vsub.f32 %v2113, %v2121
        %v2130 = vsub.f32 %v2114, %v2122
        %v2131 = vsub.f32 %v2115, %v2123
        %v2132 = vsub.f32 %v2116, %v2124
        %v2133 = vsub.f32 %v2117, %v2125
        %v2134 = vmax.f32 %v2126, 0.0
        %v2135 = vmax.f32 %v2127, 0.0
        %v2136 = vmax.f32 %v2128, 0.0
        %v2137 = vmax.f32 %v2129, 0.0
        %v2138 = vmax.f32 %v2130, 0.0
        %v2139 = vmax.f32 %v2131, 0.0
        %v2140 = vmax.f32 %v2132, 0.0
        %v2141 = vmax.f32 %v2133, 0.0
        %v2142 = vadd.f32 %v2134, 1e-05
        %v2143 = vadd.f32 %v2135, 1e-05
        %v2144 = vadd.f32 %v2136, 1e-05
        %v2145 = vadd.f32 %v2137, 1e-05
        %v2146 = vadd.f32 %v2138, 1e-05
        %v2147 = vadd.f32 %v2139, 1e-05
        %v2148 = vadd.f32 %v2140, 1e-05
        %v2149 = vadd.f32 %v2141, 1e-05
        %v2150 = vrsqrt.pop %v2142
        %v2151 = vrsqrt.pop %v2143
        %v2152 = vrsqrt.pop %v2144
        %v2153 = vrsqrt.pop %v2145
        %v2154 = vrsqrt.pop %v2146
        %v2155 = vrsqrt.pop %v2147
        %v2156 = vrsqrt.pop %v2148
        %v2157 = vrsqrt.pop %v2149
        %v2158 = vcombine.low %v2102, %v2104
        %v2159 = vcombine.high %v2102, %v2104
        %v2161 = vunpack.c.l.s4 1983009808
        %v2162 = vunpack.c.0.s8 %v2161
        %v2163 = vlaneseq
        %v2164 = vshrl.u32 %v2163, 7
        %v2165 = vsub.s32 %v2162, %v2164
        %v2166 = vrot.slane %v2158, %v2165
        %v2168 = vunpack.c.l.s4 1983009808
        %v2169 = vunpack.c.0.s8 %v2168
        %v2170 = vlaneseq
        %v2171 = vshrl.u32 %v2170, 7
        %v2172 = vsub.s32 %v2169, %v2171
        %v2173 = vrot.slane %v2159, %v2172
        %v2174 = vcombine.low %v2103, %v2105
        %v2175 = vcombine.high %v2103, %v2105
        %v2177 = vunpack.c.l.s4 1983009808
        %v2178 = vunpack.c.0.s8 %v2177
        %v2179 = vlaneseq
        %v2180 = vshrl.u32 %v2179, 7
        %v2181 = vsub.s32 %v2178, %v2180
        %v2182 = vrot.slane %v2174, %v2181
        %v2184 = vunpack.c.l.s4 1983009808
        %v2185 = vunpack.c.0.s8 %v2184
        %v2186 = vlaneseq
        %v2187 = vshrl.u32 %v2186, 7
        %v2188 = vsub.s32 %v2185, %v2187
        %v2189 = vrot.slane %v2175, %v2188
        %v2190 = vcombine.low %v2106, %v2108
        %v2191 = vcombine.high %v2106, %v2108
        %v2193 = vunpack.c.l.s4 1983009808
        %v2194 = vunpack.c.0.s8 %v2193
        %v2195 = vlaneseq
        %v2196 = vshrl.u32 %v2195, 7
        %v2197 = vsub.s32 %v2194, %v2196
        %v2198 = vrot.slane %v2190, %v2197
        %v2200 = vunpack.c.l.s4 1983009808
        %v2201 = vunpack.c.0.s8 %v2200
        %v2202 = vlaneseq
        %v2203 = vshrl.u32 %v2202, 7
        %v2204 = vsub.s32 %v2201, %v2203
        %v2205 = vrot.slane %v2191, %v2204
        %v2206 = vcombine.low %v2107, %v2109
        %v2207 = vcombine.high %v2107, %v2109
        %v2209 = vunpack.c.l.s4 1983009808
        %v2210 = vunpack.c.0.s8 %v2209
        %v2211 = vlaneseq
        %v2212 = vshrl.u32 %v2211, 7
        %v2213 = vsub.s32 %v2210, %v2212
        %v2214 = vrot.slane %v2206, %v2213
        %v2216 = vunpack.c.l.s4 1983009808
        %v2217 = vunpack.c.0.s8 %v2216
        %v2218 = vlaneseq
        %v2219 = vshrl.u32 %v2218, 7
        %v2220 = vsub.s32 %v2217, %v2219
        %v2221 = vrot.slane %v2207, %v2220
        %v2222 = vcombine.low %v2166, %v2182
        %v2223 = vcombine.high %v2166, %v2182
        %v2225 = vunpack.c.l.s4 1934713408
        %v2226 = vunpack.c.0.s8 %v2225
        %v2227 = vlaneseq
        %v2228 = vshrl.u32 %v2227, 7
        %v2229 = vsub.s32 %v2226, %v2228
        %v2230 = vrot.slane %v2222, %v2229
        %v2232 = vunpack.c.l.s4 1934713408
        %v2233 = vunpack.c.0.s8 %v2232
        %v2234 = vlaneseq
        %v2235 = vshrl.u32 %v2234, 7
        %v2236 = vsub.s32 %v2233, %v2235
        %v2237 = vrot.slane %v2223, %v2236
        %v2238 = vcombine.low %v2173, %v2189
        %v2239 = vcombine.high %v2173, %v2189
        %v2241 = vunpack.c.l.s4 1934713408
        %v2242 = vunpack.c.0.s8 %v2241
        %v2243 = vlaneseq
        %v2244 = vshrl.u32 %v2243, 7
        %v2245 = vsub.s32 %v2242, %v2244
        %v2246 = vrot.slane %v2238, %v2245
        %v2248 = vunpack.c.l.s4 1934713408
        %v2249 = vunpack.c.0.s8 %v2248
        %v2250 = vlaneseq
        %v2251 = vshrl.u32 %v2250, 7
        %v2252 = vsub.s32 %v2249, %v2251
        %v2253 = vrot.slane %v2239, %v2252
        %v2254 = vcombine.low %v2198, %v2214
        %v2255 = vcombine.high %v2198, %v2214
        %v2257 = vunpack.c.l.s4 1934713408
        %v2258 = vunpack.c.0.s8 %v2257
        %v2259 = vlaneseq
        %v2260 = vshrl.u32 %v2259, 7
        %v2261 = vsub.s32 %v2258, %v2260
        %v2262 = vrot.slane %v2254, %v2261
        %v2264 = vunpack.c.l.s4 1934713408
        %v2265 = vunpack.c.0.s8 %v2264
        %v2266 = vlaneseq
        %v2267 = vshrl.u32 %v2266, 7
        %v2268 = vsub.s32 %v2265, %v2267
        %v2269 = vrot.slane %v2255, %v2268
        %v2270 = vcombine.low %v2205, %v2221
        %v2271 = vcombine.high %v2205, %v2221
        %v2273 = vunpack.c.l.s4 1934713408
        %v2274 = vunpack.c.0.s8 %v2273
        %v2275 = vlaneseq
        %v2276 = vshrl.u32 %v2275, 7
        %v2277 = vsub.s32 %v2274, %v2276
        %v2278 = vrot.slane %v2270, %v2277
        %v2280 = vunpack.c.l.s4 1934713408
        %v2281 = vunpack.c.0.s8 %v2280
        %v2282 = vlaneseq
        %v2283 = vshrl.u32 %v2282, 7
        %v2284 = vsub.s32 %v2281, %v2283
        %v2285 = vrot.slane %v2271, %v2284
        %v2286 = vcombine.low %v2230, %v2262
        %v2287 = vcombine.high %v2230, %v2262
        %v2288 = vcombine.low %v2237, %v2269
        %v2289 = vcombine.high %v2237, %v2269
        %v2290 = vcombine.low %v2246, %v2278
        %v2291 = vcombine.high %v2246, %v2278
        %v2292 = vcombine.low %v2253, %v2285
        %v2293 = vcombine.high %v2253, %v2285
        %2295 = vrot.lane.b32.xlu0 %v2287, 8
        %v2296 = vpop.permute.xlu0 %2295
        %2299 = vrot.lane.b32.xlu0 %v2288, 16
        %v2300 = vpop.permute.xlu0 %2299
        %2303 = vrot.lane.b32.xlu0 %v2289, 24
        %v2304 = vpop.permute.xlu0 %2303
        %2307 = vrot.lane.b32.xlu0 %v2290, 32
        %v2308 = vpop.permute.xlu0 %2307
        %2311 = vrot.lane.b32.xlu0 %v2291, 40
        %v2312 = vpop.permute.xlu0 %2311
        %2315 = vrot.lane.b32.xlu0 %v2292, 48
        %v2316 = vpop.permute.xlu0 %2315
        %2319 = vrot.lane.b32.xlu0 %v2293, 56
        %v2320 = vpop.permute.xlu0 %2319
        %v2322 = vsel %vm1676, %v2286, %v2296
        %vm2323 = vcmask 130048
        %v2324 = vsel %vm2323, %v2322, %v2300
        %vm2325 = vcmask 195584
        %v2326 = vsel %vm2325, %v2324, %v2304
        %vm2327 = vcmask 261120
        %v2328 = vsel %vm2327, %v2326, %v2308
        %vm2329 = vcmask 326656
        %v2330 = vsel %vm2329, %v2328, %v2312
        %vm2331 = vcmask 392192
        %v2332 = vsel %vm2331, %v2330, %v2316
        %vm2333 = vcmask 457728
        %v2334 = vsel %vm2333, %v2332, %v2320
        %v2335 = vcombine.low %v2150, %v2152
        %v2336 = vcombine.high %v2150, %v2152
        %v2338 = vunpack.c.l.s4 1983009808
        %v2339 = vunpack.c.0.s8 %v2338
        %v2340 = vlaneseq
        %v2341 = vshrl.u32 %v2340, 7
        %v2342 = vsub.s32 %v2339, %v2341
        %v2343 = vrot.slane %v2335, %v2342
        %v2345 = vunpack.c.l.s4 1983009808
        %v2346 = vunpack.c.0.s8 %v2345
        %v2347 = vlaneseq
        %v2348 = vshrl.u32 %v2347, 7
        %v2349 = vsub.s32 %v2346, %v2348
        %v2350 = vrot.slane %v2336, %v2349
        %v2351 = vcombine.low %v2151, %v2153
        %v2352 = vcombine.high %v2151, %v2153
        %v2354 = vunpack.c.l.s4 1983009808
        %v2355 = vunpack.c.0.s8 %v2354
        %v2356 = vlaneseq
        %v2357 = vshrl.u32 %v2356, 7
        %v2358 = vsub.s32 %v2355, %v2357
        %v2359 = vrot.slane %v2351, %v2358
        %v2361 = vunpack.c.l.s4 1983009808
        %v2362 = vunpack.c.0.s8 %v2361
        %v2363 = vlaneseq
        %v2364 = vshrl.u32 %v2363, 7
        %v2365 = vsub.s32 %v2362, %v2364
        %v2366 = vrot.slane %v2352, %v2365
        %v2367 = vcombine.low %v2154, %v2156
        %v2368 = vcombine.high %v2154, %v2156
        %v2370 = vunpack.c.l.s4 1983009808
        %v2371 = vunpack.c.0.s8 %v2370
        %v2372 = vlaneseq
        %v2373 = vshrl.u32 %v2372, 7
        %v2374 = vsub.s32 %v2371, %v2373
        %v2375 = vrot.slane %v2367, %v2374
        %v2377 = vunpack.c.l.s4 1983009808
        %v2378 = vunpack.c.0.s8 %v2377
        %v2379 = vlaneseq
        %v2380 = vshrl.u32 %v2379, 7
        %v2381 = vsub.s32 %v2378, %v2380
        %v2382 = vrot.slane %v2368, %v2381
        %v2383 = vcombine.low %v2155, %v2157
        %v2384 = vcombine.high %v2155, %v2157
        %v2386 = vunpack.c.l.s4 1983009808
        %v2387 = vunpack.c.0.s8 %v2386
        %v2388 = vlaneseq
        %v2389 = vshrl.u32 %v2388, 7
        %v2390 = vsub.s32 %v2387, %v2389
        %v2391 = vrot.slane %v2383, %v2390
        %v2393 = vunpack.c.l.s4 1983009808
        %v2394 = vunpack.c.0.s8 %v2393
        %v2395 = vlaneseq
        %v2396 = vshrl.u32 %v2395, 7
        %v2397 = vsub.s32 %v2394, %v2396
        %v2398 = vrot.slane %v2384, %v2397
        %v2399 = vcombine.low %v2343, %v2359
        %v2400 = vcombine.high %v2343, %v2359
        %v2402 = vunpack.c.l.s4 1934713408
        %v2403 = vunpack.c.0.s8 %v2402
        %v2404 = vlaneseq
        %v2405 = vshrl.u32 %v2404, 7
        %v2406 = vsub.s32 %v2403, %v2405
        %v2407 = vrot.slane %v2399, %v2406
        %v2409 = vunpack.c.l.s4 1934713408
        %v2410 = vunpack.c.0.s8 %v2409
        %v2411 = vlaneseq
        %v2412 = vshrl.u32 %v2411, 7
        %v2413 = vsub.s32 %v2410, %v2412
        %v2414 = vrot.slane %v2400, %v2413
        %v2415 = vcombine.low %v2350, %v2366
        %v2416 = vcombine.high %v2350, %v2366
        %v2418 = vunpack.c.l.s4 1934713408
        %v2419 = vunpack.c.0.s8 %v2418
        %v2420 = vlaneseq
        %v2421 = vshrl.u32 %v2420, 7
        %v2422 = vsub.s32 %v2419, %v2421
        %v2423 = vrot.slane %v2415, %v2422
        %v2425 = vunpack.c.l.s4 1934713408
        %v2426 = vunpack.c.0.s8 %v2425
        %v2427 = vlaneseq
        %v2428 = vshrl.u32 %v2427, 7
        %v2429 = vsub.s32 %v2426, %v2428
        %v2430 = vrot.slane %v2416, %v2429
        %v2431 = vcombine.low %v2375, %v2391
        %v2432 = vcombine.high %v2375, %v2391
        %v2434 = vunpack.c.l.s4 1934713408
        %v2435 = vunpack.c.0.s8 %v2434
        %v2436 = vlaneseq
        %v2437 = vshrl.u32 %v2436, 7
        %v2438 = vsub.s32 %v2435, %v2437
        %v2439 = vrot.slane %v2431, %v2438
        %v2441 = vunpack.c.l.s4 1934713408
        %v2442 = vunpack.c.0.s8 %v2441
        %v2443 = vlaneseq
        %v2444 = vshrl.u32 %v2443, 7
        %v2445 = vsub.s32 %v2442, %v2444
        %v2446 = vrot.slane %v2432, %v2445
        %v2447 = vcombine.low %v2382, %v2398
        %v2448 = vcombine.high %v2382, %v2398
        %v2450 = vunpack.c.l.s4 1934713408
        %v2451 = vunpack.c.0.s8 %v2450
        %v2452 = vlaneseq
        %v2453 = vshrl.u32 %v2452, 7
        %v2454 = vsub.s32 %v2451, %v2453
        %v2455 = vrot.slane %v2447, %v2454
        %v2457 = vunpack.c.l.s4 1934713408
        %v2458 = vunpack.c.0.s8 %v2457
        %v2459 = vlaneseq
        %v2460 = vshrl.u32 %v2459, 7
        %v2461 = vsub.s32 %v2458, %v2460
        %v2462 = vrot.slane %v2448, %v2461
        %v2463 = vcombine.low %v2407, %v2439
        %v2464 = vcombine.high %v2407, %v2439
        %v2465 = vcombine.low %v2414, %v2446
        %v2466 = vcombine.high %v2414, %v2446
        %v2467 = vcombine.low %v2423, %v2455
        %v2468 = vcombine.high %v2423, %v2455
        %v2469 = vcombine.low %v2430, %v2462
        %v2470 = vcombine.high %v2430, %v2462
        %2472 = vrot.lane.b32.xlu0 %v2464, 8
        %v2473 = vpop.permute.xlu0 %2472
        %2476 = vrot.lane.b32.xlu0 %v2465, 16
        %v2477 = vpop.permute.xlu0 %2476
        %2480 = vrot.lane.b32.xlu0 %v2466, 24
        %v2481 = vpop.permute.xlu0 %2480
        %2484 = vrot.lane.b32.xlu0 %v2467, 32
        %v2485 = vpop.permute.xlu0 %2484
        %2488 = vrot.lane.b32.xlu0 %v2468, 40
        %v2489 = vpop.permute.xlu0 %2488
        %2492 = vrot.lane.b32.xlu0 %v2469, 48
        %v2493 = vpop.permute.xlu0 %2492
        %2496 = vrot.lane.b32.xlu0 %v2470, 56
        %v2497 = vpop.permute.xlu0 %2496
        %v2499 = vsel %vm1676, %v2463, %v2473
        %v2500 = vsel %vm2323, %v2499, %v2477
        %v2501 = vsel %vm2325, %v2500, %v2481
        %v2502 = vsel %vm2327, %v2501, %v2485
        %v2503 = vsel %vm2329, %v2502, %v2489
        %v2504 = vsel %vm2331, %v2503, %v2493
        %v2505 = vsel %vm2333, %v2504, %v2497
        %v2507 = vlaneseq
        %v2508 = vshrl.u32 %v2507, 7
        %v2509 = vsub.s32 0, %v2508
        %v2510 = vrot.slane %v570, %v2509
        %v2512 = vmul.f32 %v2505, %v2510
        %v2513 = vmul.f32 %v2334, %v2512
        %v2515 = vlaneseq
        %v2516 = vshrl.u32 %v2515, 7
        %v2517 = vsub.s32 0, %v2516
        %v2518 = vrot.slane %v571, %v2517
        %v2520 = vsub.f32 %v2518, %v2513
        %v2522 = vcombine.high %v2512, %v2512
        %v2524 = vunpack.c.l.s4 1966171168
        %v2525 = vunpack.c.0.s8 %v2524
        %v2526 = vlaneseq
        %v2527 = vshrl.u32 %v2526, 7
        %v2528 = vsub.s32 %v2525, %v2527
        %v2529 = vrot.slane %v2512, %v2528
        %v2531 = vunpack.c.l.s4 1966171168
        %v2532 = vunpack.c.0.s8 %v2531
        %v2533 = vlaneseq
        %v2534 = vshrl.u32 %v2533, 7
        %v2535 = vsub.s32 %v2532, %v2534
        %v2536 = vrot.slane %v2522, %v2535
        %v2537 = vcombine.high %v2529, %v2529
        %v2538 = vcombine.high %v2536, %v2536
        %v2540 = vunpack.c.l.s4 1966171168
        %v2541 = vunpack.c.0.s8 %v2540
        %v2542 = vlaneseq
        %v2543 = vshrl.u32 %v2542, 7
        %v2544 = vsub.s32 %v2541, %v2543
        %v2545 = vrot.slane %v2529, %v2544
        %v2547 = vunpack.c.l.s4 1966171168
        %v2548 = vunpack.c.0.s8 %v2547
        %v2549 = vlaneseq
        %v2550 = vshrl.u32 %v2549, 7
        %v2551 = vsub.s32 %v2548, %v2550
        %v2552 = vrot.slane %v2536, %v2551
        %v2554 = vunpack.c.l.s4 1966171168
        %v2555 = vunpack.c.0.s8 %v2554
        %v2556 = vlaneseq
        %v2557 = vshrl.u32 %v2556, 7
        %v2558 = vsub.s32 %v2555, %v2557
        %v2559 = vrot.slane %v2537, %v2558
        %v2561 = vunpack.c.l.s4 1966171168
        %v2562 = vunpack.c.0.s8 %v2561
        %v2563 = vlaneseq
        %v2564 = vshrl.u32 %v2563, 7
        %v2565 = vsub.s32 %v2562, %v2564
        %v2566 = vrot.slane %v2538, %v2565
        %v2567 = vcombine.high %v2545, %v2545
        %v2568 = vcombine.high %v2552, %v2552
        %v2569 = vcombine.high %v2559, %v2559
        %v2570 = vcombine.high %v2566, %v2566
        %v2571 = vlaneseq
        %v2572 = vshrl.u32 %v2571, 7
        %v2573 = vsub.s32 0, %v2572
        %v2574 = vrot.slane %v2545, %v2573
        %v2575 = vlaneseq
        %v2576 = vshrl.u32 %v2575, 7
        %v2577 = vsub.s32 0, %v2576
        %v2578 = vrot.slane %v2559, %v2577
        %v2579 = vlaneseq
        %v2580 = vshrl.u32 %v2579, 7
        %v2581 = vsub.s32 0, %v2580
        %v2582 = vrot.slane %v2567, %v2581
        %v2583 = vlaneseq
        %v2584 = vshrl.u32 %v2583, 7
        %v2585 = vsub.s32 0, %v2584
        %v2586 = vrot.slane %v2569, %v2585
        %v2587 = vlaneseq
        %v2588 = vshrl.u32 %v2587, 7
        %v2589 = vsub.s32 0, %v2588
        %v2590 = vrot.slane %v2552, %v2589
        %v2591 = vlaneseq
        %v2592 = vshrl.u32 %v2591, 7
        %v2593 = vsub.s32 0, %v2592
        %v2594 = vrot.slane %v2566, %v2593
        %v2595 = vlaneseq
        %v2596 = vshrl.u32 %v2595, 7
        %v2597 = vsub.s32 0, %v2596
        %v2598 = vrot.slane %v2568, %v2597
        %v2599 = vlaneseq
        %v2600 = vshrl.u32 %v2599, 7
        %v2601 = vsub.s32 0, %v2600
        %v2602 = vrot.slane %v2570, %v2601
        %v2611 = vmul.f32 %v442, %v2574
        %v2612 = vmul.f32 %v443, %v2574
        %v2613 = vmul.f32 %v444, %v2574
        %v2614 = vmul.f32 %v445, %v2574
        %v2615 = vmul.f32 %v446, %v2574
        %v2616 = vmul.f32 %v447, %v2574
        %v2617 = vmul.f32 %v448, %v2574
        %v2618 = vmul.f32 %v449, %v2574
        %v2619 = vmul.f32 %v450, %v2574
        %v2620 = vmul.f32 %v451, %v2574
        %v2621 = vmul.f32 %v452, %v2574
        %v2622 = vmul.f32 %v453, %v2574
        %v2623 = vmul.f32 %v454, %v2574
        %v2624 = vmul.f32 %v455, %v2574
        %v2625 = vmul.f32 %v456, %v2574
        %v2626 = vmul.f32 %v457, %v2574
        %v2627 = vmul.f32 %v458, %v2578
        %v2628 = vmul.f32 %v459, %v2578
        %v2629 = vmul.f32 %v460, %v2578
        %v2630 = vmul.f32 %v461, %v2578
        %v2631 = vmul.f32 %v462, %v2578
        %v2632 = vmul.f32 %v463, %v2578
        %v2633 = vmul.f32 %v464, %v2578
        %v2634 = vmul.f32 %v465, %v2578
        %v2635 = vmul.f32 %v466, %v2578
        %v2636 = vmul.f32 %v467, %v2578
        %v2637 = vmul.f32 %v468, %v2578
        %v2638 = vmul.f32 %v469, %v2578
        %v2639 = vmul.f32 %v470, %v2578
        %v2640 = vmul.f32 %v471, %v2578
        %v2641 = vmul.f32 %v472, %v2578
        %v2642 = vmul.f32 %v473, %v2578
        %v2643 = vmul.f32 %v474, %v2582
        %v2644 = vmul.f32 %v475, %v2582
        %v2645 = vmul.f32 %v476, %v2582
        %v2646 = vmul.f32 %v477, %v2582
        %v2647 = vmul.f32 %v478, %v2582
        %v2648 = vmul.f32 %v479, %v2582
        %v2649 = vmul.f32 %v480, %v2582
        %v2650 = vmul.f32 %v481, %v2582
        %v2651 = vmul.f32 %v482, %v2582
        %v2652 = vmul.f32 %v483, %v2582
        %v2653 = vmul.f32 %v484, %v2582
        %v2654 = vmul.f32 %v485, %v2582
        %v2655 = vmul.f32 %v486, %v2582
        %v2656 = vmul.f32 %v487, %v2582
        %v2657 = vmul.f32 %v488, %v2582
        %v2658 = vmul.f32 %v489, %v2582
        %v2659 = vmul.f32 %v490, %v2586
        %v2660 = vmul.f32 %v491, %v2586
        %v2661 = vmul.f32 %v492, %v2586
        %v2662 = vmul.f32 %v493, %v2586
        %v2663 = vmul.f32 %v494, %v2586
        %v2664 = vmul.f32 %v495, %v2586
        %v2665 = vmul.f32 %v496, %v2586
        %v2666 = vmul.f32 %v497, %v2586
        %v2667 = vmul.f32 %v498, %v2586
        %v2668 = vmul.f32 %v499, %v2586
        %v2669 = vmul.f32 %v500, %v2586
        %v2670 = vmul.f32 %v501, %v2586
        %v2671 = vmul.f32 %v502, %v2586
        %v2672 = vmul.f32 %v503, %v2586
        %v2673 = vmul.f32 %v504, %v2586
        %v2674 = vmul.f32 %v505, %v2586
        %v2675 = vmul.f32 %v506, %v2590
        %v2676 = vmul.f32 %v507, %v2590
        %v2677 = vmul.f32 %v508, %v2590
        %v2678 = vmul.f32 %v509, %v2590
        %v2679 = vmul.f32 %v510, %v2590
        %v2680 = vmul.f32 %v511, %v2590
        %v2681 = vmul.f32 %v512, %v2590
        %v2682 = vmul.f32 %v513, %v2590
        %v2683 = vmul.f32 %v514, %v2590
        %v2684 = vmul.f32 %v515, %v2590
        %v2685 = vmul.f32 %v516, %v2590
        %v2686 = vmul.f32 %v517, %v2590
        %v2687 = vmul.f32 %v518, %v2590
        %v2688 = vmul.f32 %v519, %v2590
        %v2689 = vmul.f32 %v520, %v2590
        %v2690 = vmul.f32 %v521, %v2590
        %v2691 = vmul.f32 %v522, %v2594
        %v2692 = vmul.f32 %v523, %v2594
        %v2693 = vmul.f32 %v524, %v2594
        %v2694 = vmul.f32 %v525, %v2594
        %v2695 = vmul.f32 %v526, %v2594
        %v2696 = vmul.f32 %v527, %v2594
        %v2697 = vmul.f32 %v528, %v2594
        %v2698 = vmul.f32 %v529, %v2594
        %v2699 = vmul.f32 %v530, %v2594
        %v2700 = vmul.f32 %v531, %v2594
        %v2701 = vmul.f32 %v532, %v2594
        %v2702 = vmul.f32 %v533, %v2594
        %v2703 = vmul.f32 %v534, %v2594
        %v2704 = vmul.f32 %v535, %v2594
        %v2705 = vmul.f32 %v536, %v2594
        %v2706 = vmul.f32 %v537, %v2594
        %v2707 = vmul.f32 %v538, %v2598
        %v2708 = vmul.f32 %v539, %v2598
        %v2709 = vmul.f32 %v540, %v2598
        %v2710 = vmul.f32 %v541, %v2598
        %v2711 = vmul.f32 %v542, %v2598
        %v2712 = vmul.f32 %v543, %v2598
        %v2713 = vmul.f32 %v544, %v2598
        %v2714 = vmul.f32 %v545, %v2598
        %v2715 = vmul.f32 %v546, %v2598
        %v2716 = vmul.f32 %v547, %v2598
        %v2717 = vmul.f32 %v548, %v2598
        %v2718 = vmul.f32 %v549, %v2598
        %v2719 = vmul.f32 %v550, %v2598
        %v2720 = vmul.f32 %v551, %v2598
        %v2721 = vmul.f32 %v552, %v2598
        %v2722 = vmul.f32 %v553, %v2598
        %v2723 = vmul.f32 %v554, %v2602
        %v2724 = vmul.f32 %v555, %v2602
        %v2725 = vmul.f32 %v556, %v2602
        %v2726 = vmul.f32 %v557, %v2602
        %v2727 = vmul.f32 %v558, %v2602
        %v2728 = vmul.f32 %v559, %v2602
        %v2729 = vmul.f32 %v560, %v2602
        %v2730 = vmul.f32 %v561, %v2602
        %v2731 = vmul.f32 %v562, %v2602
        %v2732 = vmul.f32 %v563, %v2602
        %v2733 = vmul.f32 %v564, %v2602
        %v2734 = vmul.f32 %v565, %v2602
        %v2735 = vmul.f32 %v566, %v2602
        %v2736 = vmul.f32 %v567, %v2602
        %v2737 = vmul.f32 %v568, %v2602
        %v2738 = vmul.f32 %v569, %v2602
        %v2740 = vcombine.high %v2520, %v2520
        %v2742 = vunpack.c.l.s4 1966171168
        %v2743 = vunpack.c.0.s8 %v2742
        %v2744 = vlaneseq
        %v2745 = vshrl.u32 %v2744, 7
        %v2746 = vsub.s32 %v2743, %v2745
        %v2747 = vrot.slane %v2520, %v2746
        %v2749 = vunpack.c.l.s4 1966171168
        %v2750 = vunpack.c.0.s8 %v2749
        %v2751 = vlaneseq
        %v2752 = vshrl.u32 %v2751, 7
        %v2753 = vsub.s32 %v2750, %v2752
        %v2754 = vrot.slane %v2740, %v2753
        %v2755 = vcombine.high %v2747, %v2747
        %v2756 = vcombine.high %v2754, %v2754
        %v2758 = vunpack.c.l.s4 1966171168
        %v2759 = vunpack.c.0.s8 %v2758
        %v2760 = vlaneseq
        %v2761 = vshrl.u32 %v2760, 7
        %v2762 = vsub.s32 %v2759, %v2761
        %v2763 = vrot.slane %v2747, %v2762
        %v2765 = vunpack.c.l.s4 1966171168
        %v2766 = vunpack.c.0.s8 %v2765
        %v2767 = vlaneseq
        %v2768 = vshrl.u32 %v2767, 7
        %v2769 = vsub.s32 %v2766, %v2768
        %v2770 = vrot.slane %v2754, %v2769
        %v2772 = vunpack.c.l.s4 1966171168
        %v2773 = vunpack.c.0.s8 %v2772
        %v2774 = vlaneseq
        %v2775 = vshrl.u32 %v2774, 7
        %v2776 = vsub.s32 %v2773, %v2775
        %v2777 = vrot.slane %v2755, %v2776
        %v2779 = vunpack.c.l.s4 1966171168
        %v2780 = vunpack.c.0.s8 %v2779
        %v2781 = vlaneseq
        %v2782 = vshrl.u32 %v2781, 7
        %v2783 = vsub.s32 %v2780, %v2782
        %v2784 = vrot.slane %v2756, %v2783
        %v2785 = vcombine.high %v2763, %v2763
        %v2786 = vcombine.high %v2770, %v2770
        %v2787 = vcombine.high %v2777, %v2777
        %v2788 = vcombine.high %v2784, %v2784
        %v2789 = vlaneseq
        %v2790 = vshrl.u32 %v2789, 7
        %v2791 = vsub.s32 0, %v2790
        %v2792 = vrot.slane %v2763, %v2791
        %v2793 = vlaneseq
        %v2794 = vshrl.u32 %v2793, 7
        %v2795 = vsub.s32 0, %v2794
        %v2796 = vrot.slane %v2777, %v2795
        %v2797 = vlaneseq
        %v2798 = vshrl.u32 %v2797, 7
        %v2799 = vsub.s32 0, %v2798
        %v2800 = vrot.slane %v2785, %v2799
        %v2801 = vlaneseq
        %v2802 = vshrl.u32 %v2801, 7
        %v2803 = vsub.s32 0, %v2802
        %v2804 = vrot.slane %v2787, %v2803
        %v2805 = vlaneseq
        %v2806 = vshrl.u32 %v2805, 7
        %v2807 = vsub.s32 0, %v2806
        %v2808 = vrot.slane %v2770, %v2807
        %v2809 = vlaneseq
        %v2810 = vshrl.u32 %v2809, 7
        %v2811 = vsub.s32 0, %v2810
        %v2812 = vrot.slane %v2784, %v2811
        %v2813 = vlaneseq
        %v2814 = vshrl.u32 %v2813, 7
        %v2815 = vsub.s32 0, %v2814
        %v2816 = vrot.slane %v2786, %v2815
        %v2817 = vlaneseq
        %v2818 = vshrl.u32 %v2817, 7
        %v2819 = vsub.s32 0, %v2818
        %v2820 = vrot.slane %v2788, %v2819
        %v2829 = vadd.f32 %v2611, %v2792
        %v2830 = vadd.f32 %v2612, %v2792
        %v2831 = vadd.f32 %v2613, %v2792
        %v2832 = vadd.f32 %v2614, %v2792
        %v2833 = vadd.f32 %v2615, %v2792
        %v2834 = vadd.f32 %v2616, %v2792
        %v2835 = vadd.f32 %v2617, %v2792
        %v2836 = vadd.f32 %v2618, %v2792
        %v2837 = vadd.f32 %v2619, %v2792
        %v2838 = vadd.f32 %v2620, %v2792
        %v2839 = vadd.f32 %v2621, %v2792
        %v2840 = vadd.f32 %v2622, %v2792
        %v2841 = vadd.f32 %v2623, %v2792
        %v2842 = vadd.f32 %v2624, %v2792
        %v2843 = vadd.f32 %v2625, %v2792
        %v2844 = vadd.f32 %v2626, %v2792
        %v2845 = vadd.f32 %v2627, %v2796
        %v2846 = vadd.f32 %v2628, %v2796
        %v2847 = vadd.f32 %v2629, %v2796
        %v2848 = vadd.f32 %v2630, %v2796
        %v2849 = vadd.f32 %v2631, %v2796
        %v2850 = vadd.f32 %v2632, %v2796
        %v2851 = vadd.f32 %v2633, %v2796
        %v2852 = vadd.f32 %v2634, %v2796
        %v2853 = vadd.f32 %v2635, %v2796
        %v2854 = vadd.f32 %v2636, %v2796
        %v2855 = vadd.f32 %v2637, %v2796
        %v2856 = vadd.f32 %v2638, %v2796
        %v2857 = vadd.f32 %v2639, %v2796
        %v2858 = vadd.f32 %v2640, %v2796
        %v2859 = vadd.f32 %v2641, %v2796
        %v2860 = vadd.f32 %v2642, %v2796
        %v2861 = vadd.f32 %v2643, %v2800
        %v2862 = vadd.f32 %v2644, %v2800
        %v2863 = vadd.f32 %v2645, %v2800
        %v2864 = vadd.f32 %v2646, %v2800
        %v2865 = vadd.f32 %v2647, %v2800
        %v2866 = vadd.f32 %v2648, %v2800
        %v2867 = vadd.f32 %v2649, %v2800
        %v2868 = vadd.f32 %v2650, %v2800
        %v2869 = vadd.f32 %v2651, %v2800
        %v2870 = vadd.f32 %v2652, %v2800
        %v2871 = vadd.f32 %v2653, %v2800
        %v2872 = vadd.f32 %v2654, %v2800
        %v2873 = vadd.f32 %v2655, %v2800
        %v2874 = vadd.f32 %v2656, %v2800
        %v2875 = vadd.f32 %v2657, %v2800
        %v2876 = vadd.f32 %v2658, %v2800
        %v2877 = vadd.f32 %v2659, %v2804
        %v2878 = vadd.f32 %v2660, %v2804
        %v2879 = vadd.f32 %v2661, %v2804
        %v2880 = vadd.f32 %v2662, %v2804
        %v2881 = vadd.f32 %v2663, %v2804
        %v2882 = vadd.f32 %v2664, %v2804
        %v2883 = vadd.f32 %v2665, %v2804
        %v2884 = vadd.f32 %v2666, %v2804
        %v2885 = vadd.f32 %v2667, %v2804
        %v2886 = vadd.f32 %v2668, %v2804
        %v2887 = vadd.f32 %v2669, %v2804
        %v2888 = vadd.f32 %v2670, %v2804
        %v2889 = vadd.f32 %v2671, %v2804
        %v2890 = vadd.f32 %v2672, %v2804
        %v2891 = vadd.f32 %v2673, %v2804
        %v2892 = vadd.f32 %v2674, %v2804
        %v2893 = vadd.f32 %v2675, %v2808
        %v2894 = vadd.f32 %v2676, %v2808
        %v2895 = vadd.f32 %v2677, %v2808
        %v2896 = vadd.f32 %v2678, %v2808
        %v2897 = vadd.f32 %v2679, %v2808
        %v2898 = vadd.f32 %v2680, %v2808
        %v2899 = vadd.f32 %v2681, %v2808
        %v2900 = vadd.f32 %v2682, %v2808
        %v2901 = vadd.f32 %v2683, %v2808
        %v2902 = vadd.f32 %v2684, %v2808
        %v2903 = vadd.f32 %v2685, %v2808
        %v2904 = vadd.f32 %v2686, %v2808
        %v2905 = vadd.f32 %v2687, %v2808
        %v2906 = vadd.f32 %v2688, %v2808
        %v2907 = vadd.f32 %v2689, %v2808
        %v2908 = vadd.f32 %v2690, %v2808
        %v2909 = vadd.f32 %v2691, %v2812
        %v2910 = vadd.f32 %v2692, %v2812
        %v2911 = vadd.f32 %v2693, %v2812
        %v2912 = vadd.f32 %v2694, %v2812
        %v2913 = vadd.f32 %v2695, %v2812
        %v2914 = vadd.f32 %v2696, %v2812
        %v2915 = vadd.f32 %v2697, %v2812
        %v2916 = vadd.f32 %v2698, %v2812
        %v2917 = vadd.f32 %v2699, %v2812
        %v2918 = vadd.f32 %v2700, %v2812
        %v2919 = vadd.f32 %v2701, %v2812
        %v2920 = vadd.f32 %v2702, %v2812
        %v2921 = vadd.f32 %v2703, %v2812
        %v2922 = vadd.f32 %v2704, %v2812
        %v2923 = vadd.f32 %v2705, %v2812
        %v2924 = vadd.f32 %v2706, %v2812
        %v2925 = vadd.f32 %v2707, %v2816
        %v2926 = vadd.f32 %v2708, %v2816
        %v2927 = vadd.f32 %v2709, %v2816
        %v2928 = vadd.f32 %v2710, %v2816
        %v2929 = vadd.f32 %v2711, %v2816
        %v2930 = vadd.f32 %v2712, %v2816
        %v2931 = vadd.f32 %v2713, %v2816
        %v2932 = vadd.f32 %v2714, %v2816
        %v2933 = vadd.f32 %v2715, %v2816
        %v2934 = vadd.f32 %v2716, %v2816
        %v2935 = vadd.f32 %v2717, %v2816
        %v2936 = vadd.f32 %v2718, %v2816
        %v2937 = vadd.f32 %v2719, %v2816
        %v2938 = vadd.f32 %v2720, %v2816
        %v2939 = vadd.f32 %v2721, %v2816
        %v2940 = vadd.f32 %v2722, %v2816
        %v2941 = vadd.f32 %v2723, %v2820
        %v2942 = vadd.f32 %v2724, %v2820
        %v2943 = vadd.f32 %v2725, %v2820
        %v2944 = vadd.f32 %v2726, %v2820
        %v2945 = vadd.f32 %v2727, %v2820
        %v2946 = vadd.f32 %v2728, %v2820
        %v2947 = vadd.f32 %v2729, %v2820
        %v2948 = vadd.f32 %v2730, %v2820
        %v2949 = vadd.f32 %v2731, %v2820
        %v2950 = vadd.f32 %v2732, %v2820
        %v2951 = vadd.f32 %v2733, %v2820
        %v2952 = vadd.f32 %v2734, %v2820
        %v2953 = vadd.f32 %v2735, %v2820
        %v2954 = vadd.f32 %v2736, %v2820
        %v2955 = vadd.f32 %v2737, %v2820
        %v2956 = vadd.f32 %v2738, %v2820
        %v2957 = vmul.f32 %v2829, 0.01
        %v2958 = vmul.f32 %v2830, 0.01
        %v2959 = vmul.f32 %v2831, 0.01
        %v2960 = vmul.f32 %v2832, 0.01
        %v2961 = vmul.f32 %v2833, 0.01
        %v2962 = vmul.f32 %v2834, 0.01
        %v2963 = vmul.f32 %v2835, 0.01
        %v2964 = vmul.f32 %v2836, 0.01
        %v2965 = vmul.f32 %v2837, 0.01
        %v2966 = vmul.f32 %v2838, 0.01
        %v2967 = vmul.f32 %v2839, 0.01
        %v2968 = vmul.f32 %v2840, 0.01
        %v2969 = vmul.f32 %v2841, 0.01
        %v2970 = vmul.f32 %v2842, 0.01
        %v2971 = vmul.f32 %v2843, 0.01
        %v2972 = vmul.f32 %v2844, 0.01
        %v2973 = vmul.f32 %v2845, 0.01
        %v2974 = vmul.f32 %v2846, 0.01
        %v2975 = vmul.f32 %v2847, 0.01
        %v2976 = vmul.f32 %v2848, 0.01
        %v2977 = vmul.f32 %v2849, 0.01
        %v2978 = vmul.f32 %v2850, 0.01
        %v2979 = vmul.f32 %v2851, 0.01
        %v2980 = vmul.f32 %v2852, 0.01
        %v2981 = vmul.f32 %v2853, 0.01
        %v2982 = vmul.f32 %v2854, 0.01
        %v2983 = vmul.f32 %v2855, 0.01
        %v2984 = vmul.f32 %v2856, 0.01
        %v2985 = vmul.f32 %v2857, 0.01
        %v2986 = vmul.f32 %v2858, 0.01
        %v2987 = vmul.f32 %v2859, 0.01
        %v2988 = vmul.f32 %v2860, 0.01
        %v2989 = vmul.f32 %v2861, 0.01
        %v2990 = vmul.f32 %v2862, 0.01
        %v2991 = vmul.f32 %v2863, 0.01
        %v2992 = vmul.f32 %v2864, 0.01
        %v2993 = vmul.f32 %v2865, 0.01
        %v2994 = vmul.f32 %v2866, 0.01
        %v2995 = vmul.f32 %v2867, 0.01
        %v2996 = vmul.f32 %v2868, 0.01
        %v2997 = vmul.f32 %v2869, 0.01
        %v2998 = vmul.f32 %v2870, 0.01
        %v2999 = vmul.f32 %v2871, 0.01
        %v3000 = vmul.f32 %v2872, 0.01
        %v3001 = vmul.f32 %v2873, 0.01
        %v3002 = vmul.f32 %v2874, 0.01
        %v3003 = vmul.f32 %v2875, 0.01
        %v3004 = vmul.f32 %v2876, 0.01
        %v3005 = vmul.f32 %v2877, 0.01
        %v3006 = vmul.f32 %v2878, 0.01
        %v3007 = vmul.f32 %v2879, 0.01
        %v3008 = vmul.f32 %v2880, 0.01
        %v3009 = vmul.f32 %v2881, 0.01
        %v3010 = vmul.f32 %v2882, 0.01
        %v3011 = vmul.f32 %v2883, 0.01
        %v3012 = vmul.f32 %v2884, 0.01
        %v3013 = vmul.f32 %v2885, 0.01
        %v3014 = vmul.f32 %v2886, 0.01
        %v3015 = vmul.f32 %v2887, 0.01
        %v3016 = vmul.f32 %v2888, 0.01
        %v3017 = vmul.f32 %v2889, 0.01
        %v3018 = vmul.f32 %v2890, 0.01
        %v3019 = vmul.f32 %v2891, 0.01
        %v3020 = vmul.f32 %v2892, 0.01
        %v3021 = vmul.f32 %v2893, 0.01
        %v3022 = vmul.f32 %v2894, 0.01
        %v3023 = vmul.f32 %v2895, 0.01
        %v3024 = vmul.f32 %v2896, 0.01
        %v3025 = vmul.f32 %v2897, 0.01
        %v3026 = vmul.f32 %v2898, 0.01
        %v3027 = vmul.f32 %v2899, 0.01
        %v3028 = vmul.f32 %v2900, 0.01
        %v3029 = vmul.f32 %v2901, 0.01
        %v3030 = vmul.f32 %v2902, 0.01
        %v3031 = vmul.f32 %v2903, 0.01
        %v3032 = vmul.f32 %v2904, 0.01
        %v3033 = vmul.f32 %v2905, 0.01
        %v3034 = vmul.f32 %v2906, 0.01
        %v3035 = vmul.f32 %v2907, 0.01
        %v3036 = vmul.f32 %v2908, 0.01
        %v3037 = vmul.f32 %v2909, 0.01
        %v3038 = vmul.f32 %v2910, 0.01
        %v3039 = vmul.f32 %v2911, 0.01
        %v3040 = vmul.f32 %v2912, 0.01
        %v3041 = vmul.f32 %v2913, 0.01
        %v3042 = vmul.f32 %v2914, 0.01
        %v3043 = vmul.f32 %v2915, 0.01
        %v3044 = vmul.f32 %v2916, 0.01
        %v3045 = vmul.f32 %v2917, 0.01
        %v3046 = vmul.f32 %v2918, 0.01
        %v3047 = vmul.f32 %v2919, 0.01
        %v3048 = vmul.f32 %v2920, 0.01
        %v3049 = vmul.f32 %v2921, 0.01
        %v3050 = vmul.f32 %v2922, 0.01
        %v3051 = vmul.f32 %v2923, 0.01
        %v3052 = vmul.f32 %v2924, 0.01
        %v3053 = vmul.f32 %v2925, 0.01
        %v3054 = vmul.f32 %v2926, 0.01
        %v3055 = vmul.f32 %v2927, 0.01
        %v3056 = vmul.f32 %v2928, 0.01
        %v3057 = vmul.f32 %v2929, 0.01
        %v3058 = vmul.f32 %v2930, 0.01
        %v3059 = vmul.f32 %v2931, 0.01
        %v3060 = vmul.f32 %v2932, 0.01
        %v3061 = vmul.f32 %v2933, 0.01
        %v3062 = vmul.f32 %v2934, 0.01
        %v3063 = vmul.f32 %v2935, 0.01
        %v3064 = vmul.f32 %v2936, 0.01
        %v3065 = vmul.f32 %v2937, 0.01
        %v3066 = vmul.f32 %v2938, 0.01
        %v3067 = vmul.f32 %v2939, 0.01
        %v3068 = vmul.f32 %v2940, 0.01
        %v3069 = vmul.f32 %v2941, 0.01
        %v3070 = vmul.f32 %v2942, 0.01
        %v3071 = vmul.f32 %v2943, 0.01
        %v3072 = vmul.f32 %v2944, 0.01
        %v3073 = vmul.f32 %v2945, 0.01
        %v3074 = vmul.f32 %v2946, 0.01
        %v3075 = vmul.f32 %v2947, 0.01
        %v3076 = vmul.f32 %v2948, 0.01
        %v3077 = vmul.f32 %v2949, 0.01
        %v3078 = vmul.f32 %v2950, 0.01
        %v3079 = vmul.f32 %v2951, 0.01
        %v3080 = vmul.f32 %v2952, 0.01
        %v3081 = vmul.f32 %v2953, 0.01
        %v3082 = vmul.f32 %v2954, 0.01
        %v3083 = vmul.f32 %v2955, 0.01
        %v3084 = vmul.f32 %v2956, 0.01
        %v3085 = vmax.f32 %v2829, %v2957
        %v3086 = vmax.f32 %v2830, %v2958
        %v3087 = vmax.f32 %v2831, %v2959
        %v3088 = vmax.f32 %v2832, %v2960
        %v3089 = vmax.f32 %v2833, %v2961
        %v3090 = vmax.f32 %v2834, %v2962
        %v3091 = vmax.f32 %v2835, %v2963
        %v3092 = vmax.f32 %v2836, %v2964
        %v3093 = vmax.f32 %v2837, %v2965
        %v3094 = vmax.f32 %v2838, %v2966
        %v3095 = vmax.f32 %v2839, %v2967
        %v3096 = vmax.f32 %v2840, %v2968
        %v3097 = vmax.f32 %v2841, %v2969
        %v3098 = vmax.f32 %v2842, %v2970
        %v3099 = vmax.f32 %v2843, %v2971
        %v3100 = vmax.f32 %v2844, %v2972
        %v3101 = vmax.f32 %v2845, %v2973
        %v3102 = vmax.f32 %v2846, %v2974
        %v3103 = vmax.f32 %v2847, %v2975
        %v3104 = vmax.f32 %v2848, %v2976
        %v3105 = vmax.f32 %v2849, %v2977
        %v3106 = vmax.f32 %v2850, %v2978
        %v3107 = vmax.f32 %v2851, %v2979
        %v3108 = vmax.f32 %v2852, %v2980
        %v3109 = vmax.f32 %v2853, %v2981
        %v3110 = vmax.f32 %v2854, %v2982
        %v3111 = vmax.f32 %v2855, %v2983
        %v3112 = vmax.f32 %v2856, %v2984
        %v3113 = vmax.f32 %v2857, %v2985
        %v3114 = vmax.f32 %v2858, %v2986
        %v3115 = vmax.f32 %v2859, %v2987
        %v3116 = vmax.f32 %v2860, %v2988
        %v3117 = vmax.f32 %v2861, %v2989
        %v3118 = vmax.f32 %v2862, %v2990
        %v3119 = vmax.f32 %v2863, %v2991
        %v3120 = vmax.f32 %v2864, %v2992
        %v3121 = vmax.f32 %v2865, %v2993
        %v3122 = vmax.f32 %v2866, %v2994
        %v3123 = vmax.f32 %v2867, %v2995
        %v3124 = vmax.f32 %v2868, %v2996
        %v3125 = vmax.f32 %v2869, %v2997
        %v3126 = vmax.f32 %v2870, %v2998
        %v3127 = vmax.f32 %v2871, %v2999
        %v3128 = vmax.f32 %v2872, %v3000
        %v3129 = vmax.f32 %v2873, %v3001
        %v3130 = vmax.f32 %v2874, %v3002
        %v3131 = vmax.f32 %v2875, %v3003
        %v3132 = vmax.f32 %v2876, %v3004
        %v3133 = vmax.f32 %v2877, %v3005
        %v3134 = vmax.f32 %v2878, %v3006
        %v3135 = vmax.f32 %v2879, %v3007
        %v3136 = vmax.f32 %v2880, %v3008
        %v3137 = vmax.f32 %v2881, %v3009
        %v3138 = vmax.f32 %v2882, %v3010
        %v3139 = vmax.f32 %v2883, %v3011
        %v3140 = vmax.f32 %v2884, %v3012
        %v3141 = vmax.f32 %v2885, %v3013
        %v3142 = vmax.f32 %v2886, %v3014
        %v3143 = vmax.f32 %v2887, %v3015
        %v3144 = vmax.f32 %v2888, %v3016
        %v3145 = vmax.f32 %v2889, %v3017
        %v3146 = vmax.f32 %v2890, %v3018
        %v3147 = vmax.f32 %v2891, %v3019
        %v3148 = vmax.f32 %v2892, %v3020
        %v3149 = vmax.f32 %v2893, %v3021
        %v3150 = vmax.f32 %v2894, %v3022
        %v3151 = vmax.f32 %v2895, %v3023
        %v3152 = vmax.f32 %v2896, %v3024
        %v3153 = vmax.f32 %v2897, %v3025
        %v3154 = vmax.f32 %v2898, %v3026
        %v3155 = vmax.f32 %v2899, %v3027
        %v3156 = vmax.f32 %v2900, %v3028
        %v3157 = vmax.f32 %v2901, %v3029
        %v3158 = vmax.f32 %v2902, %v3030
        %v3159 = vmax.f32 %v2903, %v3031
        %v3160 = vmax.f32 %v2904, %v3032
        %v3161 = vmax.f32 %v2905, %v3033
        %v3162 = vmax.f32 %v2906, %v3034
        %v3163 = vmax.f32 %v2907, %v3035
        %v3164 = vmax.f32 %v2908, %v3036
        %v3165 = vmax.f32 %v2909, %v3037
        %v3166 = vmax.f32 %v2910, %v3038
        %v3167 = vmax.f32 %v2911, %v3039
        %v3168 = vmax.f32 %v2912, %v3040
        %v3169 = vmax.f32 %v2913, %v3041
        %v3170 = vmax.f32 %v2914, %v3042
        %v3171 = vmax.f32 %v2915, %v3043
        %v3172 = vmax.f32 %v2916, %v3044
        %v3173 = vmax.f32 %v2917, %v3045
        %v3174 = vmax.f32 %v2918, %v3046
        %v3175 = vmax.f32 %v2919, %v3047
        %v3176 = vmax.f32 %v2920, %v3048
        %v3177 = vmax.f32 %v2921, %v3049
        %v3178 = vmax.f32 %v2922, %v3050
        %v3179 = vmax.f32 %v2923, %v3051
        %v3180 = vmax.f32 %v2924, %v3052
        %v3181 = vmax.f32 %v2925, %v3053
        %v3182 = vmax.f32 %v2926, %v3054
        %v3183 = vmax.f32 %v2927, %v3055
        %v3184 = vmax.f32 %v2928, %v3056
        %v3185 = vmax.f32 %v2929, %v3057
        %v3186 = vmax.f32 %v2930, %v3058
        %v3187 = vmax.f32 %v2931, %v3059
        %v3188 = vmax.f32 %v2932, %v3060
        %v3189 = vmax.f32 %v2933, %v3061
        %v3190 = vmax.f32 %v2934, %v3062
        %v3191 = vmax.f32 %v2935, %v3063
        %v3192 = vmax.f32 %v2936, %v3064
        %v3193 = vmax.f32 %v2937, %v3065
        %v3194 = vmax.f32 %v2938, %v3066
        %v3195 = vmax.f32 %v2939, %v3067
        %v3196 = vmax.f32 %v2940, %v3068
        %v3197 = vmax.f32 %v2941, %v3069
        %v3198 = vmax.f32 %v2942, %v3070
        %v3199 = vmax.f32 %v2943, %v3071
        %v3200 = vmax.f32 %v2944, %v3072
        %v3201 = vmax.f32 %v2945, %v3073
        %v3202 = vmax.f32 %v2946, %v3074
        %v3203 = vmax.f32 %v2947, %v3075
        %v3204 = vmax.f32 %v2948, %v3076
        %v3205 = vmax.f32 %v2949, %v3077
        %v3206 = vmax.f32 %v2950, %v3078
        %v3207 = vmax.f32 %v2951, %v3079
        %v3208 = vmax.f32 %v2952, %v3080
        %v3209 = vmax.f32 %v2953, %v3081
        %v3210 = vmax.f32 %v2954, %v3082
        %v3211 = vmax.f32 %v2955, %v3083
        %v3212 = vmax.f32 %v2956, %v3084
        %v3213 = vpack.c.bf16 %v3086, %v3085
        %v3214 = vpack.c.bf16 %v3088, %v3087
        %v3215 = vpack.c.bf16 %v3090, %v3089
        %v3216 = vpack.c.bf16 %v3092, %v3091
        %v3217 = vpack.c.bf16 %v3094, %v3093
        %v3218 = vpack.c.bf16 %v3096, %v3095
        %v3219 = vpack.c.bf16 %v3098, %v3097
        %v3220 = vpack.c.bf16 %v3100, %v3099
        %v3221 = vpack.c.bf16 %v3102, %v3101
        %v3222 = vpack.c.bf16 %v3104, %v3103
        %v3223 = vpack.c.bf16 %v3106, %v3105
        %v3224 = vpack.c.bf16 %v3108, %v3107
        %v3225 = vpack.c.bf16 %v3110, %v3109
        %v3226 = vpack.c.bf16 %v3112, %v3111
        %v3227 = vpack.c.bf16 %v3114, %v3113
        %v3228 = vpack.c.bf16 %v3116, %v3115
        %v3229 = vpack.c.bf16 %v3118, %v3117
        %v3230 = vpack.c.bf16 %v3120, %v3119
        %v3231 = vpack.c.bf16 %v3122, %v3121
        %v3232 = vpack.c.bf16 %v3124, %v3123
        %v3233 = vpack.c.bf16 %v3126, %v3125
        %v3234 = vpack.c.bf16 %v3128, %v3127
        %v3235 = vpack.c.bf16 %v3130, %v3129
        %v3236 = vpack.c.bf16 %v3132, %v3131
        %v3237 = vpack.c.bf16 %v3134, %v3133
        %v3238 = vpack.c.bf16 %v3136, %v3135
        %v3239 = vpack.c.bf16 %v3138, %v3137
        %v3240 = vpack.c.bf16 %v3140, %v3139
        %v3241 = vpack.c.bf16 %v3142, %v3141
        %v3242 = vpack.c.bf16 %v3144, %v3143
        %v3243 = vpack.c.bf16 %v3146, %v3145
        %v3244 = vpack.c.bf16 %v3148, %v3147
        %v3245 = vpack.c.bf16 %v3150, %v3149
        %v3246 = vpack.c.bf16 %v3152, %v3151
        %v3247 = vpack.c.bf16 %v3154, %v3153
        %v3248 = vpack.c.bf16 %v3156, %v3155
        %v3249 = vpack.c.bf16 %v3158, %v3157
        %v3250 = vpack.c.bf16 %v3160, %v3159
        %v3251 = vpack.c.bf16 %v3162, %v3161
        %v3252 = vpack.c.bf16 %v3164, %v3163
        %v3253 = vpack.c.bf16 %v3166, %v3165
        %v3254 = vpack.c.bf16 %v3168, %v3167
        %v3255 = vpack.c.bf16 %v3170, %v3169
        %v3256 = vpack.c.bf16 %v3172, %v3171
        %v3257 = vpack.c.bf16 %v3174, %v3173
        %v3258 = vpack.c.bf16 %v3176, %v3175
        %v3259 = vpack.c.bf16 %v3178, %v3177
        %v3260 = vpack.c.bf16 %v3180, %v3179
        %v3261 = vpack.c.bf16 %v3182, %v3181
        %v3262 = vpack.c.bf16 %v3184, %v3183
        %v3263 = vpack.c.bf16 %v3186, %v3185
        %v3264 = vpack.c.bf16 %v3188, %v3187
        %v3265 = vpack.c.bf16 %v3190, %v3189
        %v3266 = vpack.c.bf16 %v3192, %v3191
        %v3267 = vpack.c.bf16 %v3194, %v3193
        %v3268 = vpack.c.bf16 %v3196, %v3195
        %v3269 = vpack.c.bf16 %v3198, %v3197
        %v3270 = vpack.c.bf16 %v3200, %v3199
        %v3271 = vpack.c.bf16 %v3202, %v3201
        %v3272 = vpack.c.bf16 %v3204, %v3203
        %v3273 = vpack.c.bf16 %v3206, %v3205
        %v3274 = vpack.c.bf16 %v3208, %v3207
        %v3275 = vpack.c.bf16 %v3210, %v3209
        %v3276 = vpack.c.bf16 %v3212, %v3211
        %v3277 = vld [vmem:[%s3] sm:$0xf]
        %v3278 = vld [vmem:[%s3 + $0x4] sm:$0xf]
        %v3279 = vld [vmem:[%s3 + $0x8] sm:$0xf]
        %v3280 = vld [vmem:[%s3 + $0xc] sm:$0xf]
        %v3281 = vld [vmem:[%s3 + $0x10] sm:$0xf]
        %v3282 = vld [vmem:[%s3 + $0x14] sm:$0xf]
        %v3283 = vld [vmem:[%s3 + $0x18] sm:$0xf]
        %v3284 = vld [vmem:[%s3 + $0x1c] sm:$0xf]
        %v3285 = vld [vmem:[%s4] sm:$0x1]
        %v3287 = vlaneseq
        %v3288 = vshrl.u32 %v3287, 7
        %v3289 = vsub.s32 0, %v3288
        %v3290 = vrot.slane %v3285, %v3289
        %v3300 = vunpack.c.l.b16 %v3277
        %v3301 = vunpack.c.l.b16 %v3278
        %v3302 = vunpack.c.l.b16 %v3279
        %v3303 = vunpack.c.l.b16 %v3280
        %v3304 = vunpack.c.l.b16 %v3281
        %v3305 = vunpack.c.l.b16 %v3282
        %v3306 = vunpack.c.l.b16 %v3283
        %v3307 = vunpack.c.l.b16 %v3284
        %v3308 = vpack.c.b16 %v3301, %v3300
        %v3309 = vpack.c.b16 %v3303, %v3302
        %v3310 = vpack.c.b16 %v3305, %v3304
        %v3311 = vpack.c.b16 %v3307, %v3306
        %v3317 = vsel %vm572, %v3213, 0
        %v3320 = vsel %vm572, %v3214, 0
        %v3323 = vsel %vm572, %v3215, 0
        %v3326 = vsel %vm572, %v3216, 0
        %v3329 = vsel %vm572, %v3217, 0
        %v3332 = vsel %vm572, %v3218, 0
        %v3335 = vsel %vm572, %v3219, 0
        %v3338 = vsel %vm572, %v3220, 0
        %v3341 = vsel %vm572, %v3221, 0
        %v3344 = vsel %vm572, %v3222, 0
        %v3347 = vsel %vm572, %v3223, 0
        %v3350 = vsel %vm572, %v3224, 0
        %v3353 = vsel %vm572, %v3225, 0
        %v3356 = vsel %vm572, %v3226, 0
        %v3359 = vsel %vm572, %v3227, 0
        %v3362 = vsel %vm572, %v3228, 0
        %v3365 = vsel %vm572, %v3229, 0
        %v3368 = vsel %vm572, %v3230, 0
        %v3371 = vsel %vm572, %v3231, 0
        %v3374 = vsel %vm572, %v3232, 0
        %v3377 = vsel %vm572, %v3233, 0
        %v3380 = vsel %vm572, %v3234, 0
        %v3383 = vsel %vm572, %v3235, 0
        %v3386 = vsel %vm572, %v3236, 0
        %v3389 = vsel %vm572, %v3237, 0
        %v3392 = vsel %vm572, %v3238, 0
        %v3395 = vsel %vm572, %v3239, 0
        %v3398 = vsel %vm572, %v3240, 0
        %v3401 = vsel %vm572, %v3241, 0
        %v3404 = vsel %vm572, %v3242, 0
        %v3407 = vsel %vm572, %v3243, 0
        %v3410 = vsel %vm572, %v3244, 0
        %v3413 = vsel %vm572, %v3245, 0
        %v3416 = vsel %vm572, %v3246, 0
        %v3419 = vsel %vm572, %v3247, 0
        %v3422 = vsel %vm572, %v3248, 0
        %v3425 = vsel %vm572, %v3249, 0
        %v3428 = vsel %vm572, %v3250, 0
        %v3431 = vsel %vm572, %v3251, 0
        %v3434 = vsel %vm572, %v3252, 0
        %v3437 = vsel %vm572, %v3253, 0
        %v3440 = vsel %vm572, %v3254, 0
        %v3443 = vsel %vm572, %v3255, 0
        %v3446 = vsel %vm572, %v3256, 0
        %v3449 = vsel %vm572, %v3257, 0
        %v3452 = vsel %vm572, %v3258, 0
        %v3455 = vsel %vm572, %v3259, 0
        %v3458 = vsel %vm572, %v3260, 0
        %v3461 = vsel %vm572, %v3261, 0
        %v3464 = vsel %vm572, %v3262, 0
        %v3467 = vsel %vm572, %v3263, 0
        %v3470 = vsel %vm572, %v3264, 0
        %v3473 = vsel %vm572, %v3265, 0
        %v3476 = vsel %vm572, %v3266, 0
        %v3479 = vsel %vm572, %v3267, 0
        %v3482 = vsel %vm572, %v3268, 0
        %v3485 = vsel %vm572, %v3269, 0
        %v3488 = vsel %vm572, %v3270, 0
        %v3491 = vsel %vm572, %v3271, 0
        %v3494 = vsel %vm572, %v3272, 0
        %v3497 = vsel %vm572, %v3273, 0
        %v3500 = vsel %vm572, %v3274, 0
        %v3503 = vsel %vm572, %v3275, 0
        %v3506 = vsel %vm572, %v3276, 0
        %3508 = vmatprep.subr.bf16.mxu0 0
        %3509 = vmatpush1.bf16.msra.mxu0 %v3308
        %3510 = vmatprep.subr.bf16.mxu0 0
        %3511 = vmatpush1.bf16.msra.mxu0 %v3309
        %3512 = vmatprep.subr.bf16.mxu0 0
        %3513 = vmatpush1.bf16.msra.mxu0 %v3310
        %3514 = vmatprep.subr.bf16.mxu0 0
        %3515 = vmatpush1.bf16.msra.mxu0 %v3311
        %3516 = vmatprep.subr.bf16.mxu0 0
        %3517 = vmatpush1.bf16.msra.mxu0 0
        %3518 = vmatprep.subr.bf16.mxu0 0
        %3519 = vmatpush1.bf16.msra.mxu0 0
        %3520 = vmatprep.subr.bf16.mxu0 0
        %3521 = vmatpush1.bf16.msra.mxu0 0
        %3522 = vmatprep.subr.bf16.mxu0 0
        %3523 = vmatpush1.bf16.msra.mxu0 0
        %3524 = vmatprep.subr.bf16.mxu0 0
        %3525 = vmatpush1.bf16.msra.mxu0 0
        %3526 = vmatprep.subr.bf16.mxu0 0
        %3527 = vmatpush1.bf16.msra.mxu0 0
        %3528 = vmatprep.subr.bf16.mxu0 0
        %3529 = vmatpush1.bf16.msra.mxu0 0
        %3530 = vmatprep.subr.bf16.mxu0 0
        %3531 = vmatpush1.bf16.msra.mxu0 0
        %3532 = vmatprep.subr.bf16.mxu0 0
        %3533 = vmatpush1.bf16.msra.mxu0 0
        %3534 = vmatprep.subr.bf16.mxu0 0
        %3535 = vmatpush1.bf16.msra.mxu0 0
        %3536 = vmatprep.subr.bf16.mxu0 0
        %3537 = vmatpush1.bf16.msra.mxu0 0
        %3538 = vmatprep.subr.bf16.mxu0 0
        %3539 = vmatpush1.bf16.msra.mxu0 0
        %3540 = vmatprep.mubr.bf16.mxu0 0
        %3541 = vmatmul.mubr.bf16.gmra.mrb[0].mxu0 %v3317
        %v3542 = vpop.f32.mrb[0].mxu0
        %v3543 = vadd.f32 %v3290, %v3542
        %v3544 = vpop.f32.mrb[0].mxu0
        %v3545 = vpop.f32.mrb[0].mxu0
        %v3546 = vadd.f32 %v3290, %v3545
        %v3547 = vpop.f32.mrb[0].mxu0
        %3548 = vmatprep.mubr.bf16.mxu0 0
        %3549 = vmatmul.mubr.bf16.gmra.mrb[0].mxu0 %v3320
        %v3550 = vpop.f32.mrb[0].mxu0
        %v3551 = vadd.f32 %v3290, %v3550
        %v3552 = vpop.f32.mrb[0].mxu0
        %v3553 = vpop.f32.mrb[0].mxu0
        %v3554 = vadd.f32 %v3290, %v3553
        %v3555 = vpop.f32.mrb[0].mxu0
        %3556 = vmatprep.mubr.bf16.mxu0 0
        %3557 = vmatmul.mubr.bf16.gmra.mrb[0].mxu0 %v3323
        %v3558 = vpop.f32.mrb[0].mxu0
        %v3559 = vadd.f32 %v3290, %v3558
        %v3560 = vpop.f32.mrb[0].mxu0
        %v3561 = vpop.f32.mrb[0].mxu0
        %v3562 = vadd.f32 %v3290, %v3561
        %v3563 = vpop.f32.mrb[0].mxu0
        %3564 = vmatprep.mubr.bf16.mxu0 0
        %3565 = vmatmul.mubr.bf16.gmra.mrb[0].mxu0 %v3326
        %v3566 = vpop.f32.mrb[0].mxu0
        %v3567 = vadd.f32 %v3290, %v3566
        %v3568 = vpop.f32.mrb[0].mxu0
        %v3569 = vpop.f32.mrb[0].mxu0
        %v3570 = vadd.f32 %v3290, %v3569
        %v3571 = vpop.f32.mrb[0].mxu0
        %3572 = vmatprep.mubr.bf16.mxu0 0
        %3573 = vmatmul.mubr.bf16.gmra.mrb[0].mxu0 %v3329
        %v3574 = vpop.f32.mrb[0].mxu0
        %v3575 = vadd.f32 %v3290, %v3574
        %v3576 = vpop.f32.mrb[0].mxu0
        %v3577 = vpop.f32.mrb[0].mxu0
        %v3578 = vadd.f32 %v3290, %v3577
        %v3579 = vpop.f32.mrb[0].mxu0
        %3580 = vmatprep.mubr.bf16.mxu0 0
        %3581 = vmatmul.mubr.bf16.gmra.mrb[0].mxu0 %v3332
        %v3582 = vpop.f32.mrb[0].mxu0
        %v3583 = vadd.f32 %v3290, %v3582
        %v3584 = vpop.f32.mrb[0].mxu0
        %v3585 = vpop.f32.mrb[0].mxu0
        %v3586 = vadd.f32 %v3290, %v3585
        %v3587 = vpop.f32.mrb[0].mxu0
        %3588 = vmatprep.mubr.bf16.mxu0 0
        %3589 = vmatmul.mubr.bf16.gmra.mrb[0].mxu0 %v3335
        %v3590 = vpop.f32.mrb[0].mxu0
        %v3591 = vadd.f32 %v3290, %v3590
        %v3592 = vpop.f32.mrb[0].mxu0
        %v3593 = vpop.f32.mrb[0].mxu0
        %v3594 = vadd.f32 %v3290, %v3593
        %v3595 = vpop.f32.mrb[0].mxu0
        %3596 = vmatprep.mubr.bf16.mxu0 0
        %3597 = vmatmul.mubr.bf16.gmra.mrb[0].mxu0 %v3338
        %v3598 = vpop.f32.mrb[0].mxu0
        %v3599 = vadd.f32 %v3290, %v3598
        %v3600 = vpop.f32.mrb[0].mxu0
        %v3601 = vpop.f32.mrb[0].mxu0
        %v3602 = vadd.f32 %v3290, %v3601
        %v3603 = vpop.f32.mrb[0].mxu0
        %3604 = vmatprep.mubr.bf16.mxu0 0
        %3605 = vmatmul.mubr.bf16.gmra.mrb[0].mxu0 %v3341
        %v3606 = vpop.f32.mrb[0].mxu0
        %v3607 = vadd.f32 %v3290, %v3606
        %v3608 = vpop.f32.mrb[0].mxu0
        %v3609 = vpop.f32.mrb[0].mxu0
        %v3610 = vadd.f32 %v3290, %v3609
        %v3611 = vpop.f32.mrb[0].mxu0
        %3612 = vmatprep.mubr.bf16.mxu0 0
        %3613 = vmatmul.mubr.bf16.gmra.mrb[0].mxu0 %v3344
        %v3614 = vpop.f32.mrb[0].mxu0
        %v3615 = vadd.f32 %v3290, %v3614
        %v3616 = vpop.f32.mrb[0].mxu0
        %v3617 = vpop.f32.mrb[0].mxu0
        %v3618 = vadd.f32 %v3290, %v3617
        %v3619 = vpop.f32.mrb[0].mxu0
        %3620 = vmatprep.mubr.bf16.mxu0 0
        %3621 = vmatmul.mubr.bf16.gmra.mrb[0].mxu0 %v3347
        %v3622 = vpop.f32.mrb[0].mxu0
        %v3623 = vadd.f32 %v3290, %v3622
        %v3624 = vpop.f32.mrb[0].mxu0
        %v3625 = vpop.f32.mrb[0].mxu0
        %v3626 = vadd.f32 %v3290, %v3625
        %v3627 = vpop.f32.mrb[0].mxu0
        %3628 = vmatprep.mubr.bf16.mxu0 0
        %3629 = vmatmul.mubr.bf16.gmra.mrb[0].mxu0 %v3350
        %v3630 = vpop.f32.mrb[0].mxu0
        %v3631 = vadd.f32 %v3290, %v3630
        %v3632 = vpop.f32.mrb[0].mxu0
        %v3633 = vpop.f32.mrb[0].mxu0
        %v3634 = vadd.f32 %v3290, %v3633
        %v3635 = vpop.f32.mrb[0].mxu0
        %3636 = vmatprep.mubr.bf16.mxu0 0
        %3637 = vmatmul.mubr.bf16.gmra.mrb[0].mxu0 %v3353
        %v3638 = vpop.f32.mrb[0].mxu0
        %v3639 = vadd.f32 %v3290, %v3638
        %v3640 = vpop.f32.mrb[0].mxu0
        %v3641 = vpop.f32.mrb[0].mxu0
        %v3642 = vadd.f32 %v3290, %v3641
        %v3643 = vpop.f32.mrb[0].mxu0
        %3644 = vmatprep.mubr.bf16.mxu0 0
        %3645 = vmatmul.mubr.bf16.gmra.mrb[0].mxu0 %v3356
        %v3646 = vpop.f32.mrb[0].mxu0
        %v3647 = vadd.f32 %v3290, %v3646
        %v3648 = vpop.f32.mrb[0].mxu0
        %v3649 = vpop.f32.mrb[0].mxu0
        %v3650 = vadd.f32 %v3290, %v3649
        %v3651 = vpop.f32.mrb[0].mxu0
        %3652 = vmatprep.mubr.bf16.mxu0 0
        %3653 = vmatmul.mubr.bf16.gmra.mrb[0].mxu0 %v3359
        %v3654 = vpop.f32.mrb[0].mxu0
        %v3655 = vadd.f32 %v3290, %v3654
        %v3656 = vpop.f32.mrb[0].mxu0
        %v3657 = vpop.f32.mrb[0].mxu0
        %v3658 = vadd.f32 %v3290, %v3657
        %v3659 = vpop.f32.mrb[0].mxu0
        %3660 = vmatprep.mubr.bf16.mxu0 0
        %3661 = vmatmul.mubr.bf16.gmra.mrb[0].mxu0 %v3362
        %v3662 = vpop.f32.mrb[0].mxu0
        %v3663 = vadd.f32 %v3290, %v3662
        %v3664 = vpop.f32.mrb[0].mxu0
        %v3665 = vpop.f32.mrb[0].mxu0
        %v3666 = vadd.f32 %v3290, %v3665
        %v3667 = vpop.f32.mrb[0].mxu0
        %3668 = vmatprep.mubr.bf16.mxu0 0
        %3669 = vmatmul.mubr.bf16.gmra.mrb[0].mxu0 %v3365
        %v3670 = vpop.f32.mrb[0].mxu0
        %v3671 = vadd.f32 %v3290, %v3670
        %v3672 = vpop.f32.mrb[0].mxu0
        %v3673 = vpop.f32.mrb[0].mxu0
        %v3674 = vadd.f32 %v3290, %v3673
        %v3675 = vpop.f32.mrb[0].mxu0
        %3676 = vmatprep.mubr.bf16.mxu0 0
        %3677 = vmatmul.mubr.bf16.gmra.mrb[0].mxu0 %v3368
        %v3678 = vpop.f32.mrb[0].mxu0
        %v3679 = vadd.f32 %v3290, %v3678
        %v3680 = vpop.f32.mrb[0].mxu0
        %v3681 = vpop.f32.mrb[0].mxu0
        %v3682 = vadd.f32 %v3290, %v3681
        %v3683 = vpop.f32.mrb[0].mxu0
        %3684 = vmatprep.mubr.bf16.mxu0 0
        %3685 = vmatmul.mubr.bf16.gmra.mrb[0].mxu0 %v3371
        %v3686 = vpop.f32.mrb[0].mxu0
        %v3687 = vadd.f32 %v3290, %v3686
        %v3688 = vpop.f32.mrb[0].mxu0
        %v3689 = vpop.f32.mrb[0].mxu0
        %v3690 = vadd.f32 %v3290, %v3689
        %v3691 = vpop.f32.mrb[0].mxu0
        %3692 = vmatprep.mubr.bf16.mxu0 0
        %3693 = vmatmul.mubr.bf16.gmra.mrb[0].mxu0 %v3374
        %v3694 = vpop.f32.mrb[0].mxu0
        %v3695 = vadd.f32 %v3290, %v3694
        %v3696 = vpop.f32.mrb[0].mxu0
        %v3697 = vpop.f32.mrb[0].mxu0
        %v3698 = vadd.f32 %v3290, %v3697
        %v3699 = vpop.f32.mrb[0].mxu0
        %3700 = vmatprep.mubr.bf16.mxu0 0
        %3701 = vmatmul.mubr.bf16.gmra.mrb[0].mxu0 %v3377
        %v3702 = vpop.f32.mrb[0].mxu0
        %v3703 = vadd.f32 %v3290, %v3702
        %v3704 = vpop.f32.mrb[0].mxu0
        %v3705 = vpop.f32.mrb[0].mxu0
        %v3706 = vadd.f32 %v3290, %v3705
        %v3707 = vpop.f32.mrb[0].mxu0
        %3708 = vmatprep.mubr.bf16.mxu0 0
        %3709 = vmatmul.mubr.bf16.gmra.mrb[0].mxu0 %v3380
        %v3710 = vpop.f32.mrb[0].mxu0
        %v3711 = vadd.f32 %v3290, %v3710
        %v3712 = vpop.f32.mrb[0].mxu0
        %v3713 = vpop.f32.mrb[0].mxu0
        %v3714 = vadd.f32 %v3290, %v3713
        %v3715 = vpop.f32.mrb[0].mxu0
        %3716 = vmatprep.mubr.bf16.mxu0 0
        %3717 = vmatmul.mubr.bf16.gmra.mrb[0].mxu0 %v3383
        %v3718 = vpop.f32.mrb[0].mxu0
        %v3719 = vadd.f32 %v3290, %v3718
        %v3720 = vpop.f32.mrb[0].mxu0
        %v3721 = vpop.f32.mrb[0].mxu0
        %v3722 = vadd.f32 %v3290, %v3721
        %v3723 = vpop.f32.mrb[0].mxu0
        %3724 = vmatprep.mubr.bf16.mxu0 0
        %3725 = vmatmul.mubr.bf16.gmra.mrb[0].mxu0 %v3386
        %v3726 = vpop.f32.mrb[0].mxu0
        %v3727 = vadd.f32 %v3290, %v3726
        %v3728 = vpop.f32.mrb[0].mxu0
        %v3729 = vpop.f32.mrb[0].mxu0
        %v3730 = vadd.f32 %v3290, %v3729
        %v3731 = vpop.f32.mrb[0].mxu0
        %3732 = vmatprep.mubr.bf16.mxu0 0
        %3733 = vmatmul.mubr.bf16.gmra.mrb[0].mxu0 %v3389
        %v3734 = vpop.f32.mrb[0].mxu0
        %v3735 = vadd.f32 %v3290, %v3734
        %v3736 = vpop.f32.mrb[0].mxu0
        %v3737 = vpop.f32.mrb[0].mxu0
        %v3738 = vadd.f32 %v3290, %v3737
        %v3739 = vpop.f32.mrb[0].mxu0
        %3740 = vmatprep.mubr.bf16.mxu0 0
        %3741 = vmatmul.mubr.bf16.gmra.mrb[0].mxu0 %v3392
        %v3742 = vpop.f32.mrb[0].mxu0
        %v3743 = vadd.f32 %v3290, %v3742
        %v3744 = vpop.f32.mrb[0].mxu0
        %v3745 = vpop.f32.mrb[0].mxu0
        %v3746 = vadd.f32 %v3290, %v3745
        %v3747 = vpop.f32.mrb[0].mxu0
        %3748 = vmatprep.mubr.bf16.mxu0 0
        %3749 = vmatmul.mubr.bf16.gmra.mrb[0].mxu0 %v3395
        %v3750 = vpop.f32.mrb[0].mxu0
        %v3751 = vadd.f32 %v3290, %v3750
        %v3752 = vpop.f32.mrb[0].mxu0
        %v3753 = vpop.f32.mrb[0].mxu0
        %v3754 = vadd.f32 %v3290, %v3753
        %v3755 = vpop.f32.mrb[0].mxu0
        %3756 = vmatprep.mubr.bf16.mxu0 0
        %3757 = vmatmul.mubr.bf16.gmra.mrb[0].mxu0 %v3398
        %v3758 = vpop.f32.mrb[0].mxu0
        %v3759 = vadd.f32 %v3290, %v3758
        %v3760 = vpop.f32.mrb[0].mxu0
        %v3761 = vpop.f32.mrb[0].mxu0
        %v3762 = vadd.f32 %v3290, %v3761
        %v3763 = vpop.f32.mrb[0].mxu0
        %3764 = vmatprep.mubr.bf16.mxu0 0
        %3765 = vmatmul.mubr.bf16.gmra.mrb[0].mxu0 %v3401
        %v3766 = vpop.f32.mrb[0].mxu0
        %v3767 = vadd.f32 %v3290, %v3766
        %v3768 = vpop.f32.mrb[0].mxu0
        %v3769 = vpop.f32.mrb[0].mxu0
        %v3770 = vadd.f32 %v3290, %v3769
        %v3771 = vpop.f32.mrb[0].mxu0
        %3772 = vmatprep.mubr.bf16.mxu0 0
        %3773 = vmatmul.mubr.bf16.gmra.mrb[0].mxu0 %v3404
        %v3774 = vpop.f32.mrb[0].mxu0
        %v3775 = vadd.f32 %v3290, %v3774
        %v3776 = vpop.f32.mrb[0].mxu0
        %v3777 = vpop.f32.mrb[0].mxu0
        %v3778 = vadd.f32 %v3290, %v3777
        %v3779 = vpop.f32.mrb[0].mxu0
        %3780 = vmatprep.mubr.bf16.mxu0 0
        %3781 = vmatmul.mubr.bf16.gmra.mrb[0].mxu0 %v3407
        %v3782 = vpop.f32.mrb[0].mxu0
        %v3783 = vadd.f32 %v3290, %v3782
        %v3784 = vpop.f32.mrb[0].mxu0
        %v3785 = vpop.f32.mrb[0].mxu0
        %v3786 = vadd.f32 %v3290, %v3785
        %v3787 = vpop.f32.mrb[0].mxu0
        %3788 = vmatprep.mubr.bf16.mxu0 0
        %3789 = vmatmul.mubr.bf16.gmra.mrb[0].mxu0 %v3410
        %v3790 = vpop.f32.mrb[0].mxu0
        %v3791 = vadd.f32 %v3290, %v3790
        %v3792 = vpop.f32.mrb[0].mxu0
        %v3793 = vpop.f32.mrb[0].mxu0
        %v3794 = vadd.f32 %v3290, %v3793
        %v3795 = vpop.f32.mrb[0].mxu0
        %3796 = vmatprep.mubr.bf16.mxu0 0
        %3797 = vmatmul.mubr.bf16.gmra.mrb[0].mxu0 %v3413
        %v3798 = vpop.f32.mrb[0].mxu0
        %v3799 = vadd.f32 %v3290, %v3798
        %v3800 = vpop.f32.mrb[0].mxu0
        %v3801 = vpop.f32.mrb[0].mxu0
        %v3802 = vadd.f32 %v3290, %v3801
        %v3803 = vpop.f32.mrb[0].mxu0
        %3804 = vmatprep.mubr.bf16.mxu0 0
        %3805 = vmatmul.mubr.bf16.gmra.mrb[0].mxu0 %v3416
        %v3806 = vpop.f32.mrb[0].mxu0
        %v3807 = vadd.f32 %v3290, %v3806
        %v3808 = vpop.f32.mrb[0].mxu0
        %v3809 = vpop.f32.mrb[0].mxu0
        %v3810 = vadd.f32 %v3290, %v3809
        %v3811 = vpop.f32.mrb[0].mxu0
        %3812 = vmatprep.mubr.bf16.mxu0 0
        %3813 = vmatmul.mubr.bf16.gmra.mrb[0].mxu0 %v3419
        %v3814 = vpop.f32.mrb[0].mxu0
        %v3815 = vadd.f32 %v3290, %v3814
        %v3816 = vpop.f32.mrb[0].mxu0
        %v3817 = vpop.f32.mrb[0].mxu0
        %v3818 = vadd.f32 %v3290, %v3817
        %v3819 = vpop.f32.mrb[0].mxu0
        %3820 = vmatprep.mubr.bf16.mxu0 0
        %3821 = vmatmul.mubr.bf16.gmra.mrb[0].mxu0 %v3422
        %v3822 = vpop.f32.mrb[0].mxu0
        %v3823 = vadd.f32 %v3290, %v3822
        %v3824 = vpop.f32.mrb[0].mxu0
        %v3825 = vpop.f32.mrb[0].mxu0
        %v3826 = vadd.f32 %v3290, %v3825
        %v3827 = vpop.f32.mrb[0].mxu0
        %3828 = vmatprep.mubr.bf16.mxu0 0
        %3829 = vmatmul.mubr.bf16.gmra.mrb[0].mxu0 %v3425
        %v3830 = vpop.f32.mrb[0].mxu0
        %v3831 = vadd.f32 %v3290, %v3830
        %v3832 = vpop.f32.mrb[0].mxu0
        %v3833 = vpop.f32.mrb[0].mxu0
        %v3834 = vadd.f32 %v3290, %v3833
        %v3835 = vpop.f32.mrb[0].mxu0
        %3836 = vmatprep.mubr.bf16.mxu0 0
        %3837 = vmatmul.mubr.bf16.gmra.mrb[0].mxu0 %v3428
        %v3838 = vpop.f32.mrb[0].mxu0
        %v3839 = vadd.f32 %v3290, %v3838
        %v3840 = vpop.f32.mrb[0].mxu0
        %v3841 = vpop.f32.mrb[0].mxu0
        %v3842 = vadd.f32 %v3290, %v3841
        %v3843 = vpop.f32.mrb[0].mxu0
        %3844 = vmatprep.mubr.bf16.mxu0 0
        %3845 = vmatmul.mubr.bf16.gmra.mrb[0].mxu0 %v3431
        %v3846 = vpop.f32.mrb[0].mxu0
        %v3847 = vadd.f32 %v3290, %v3846
        %v3848 = vpop.f32.mrb[0].mxu0
        %v3849 = vpop.f32.mrb[0].mxu0
        %v3850 = vadd.f32 %v3290, %v3849
        %v3851 = vpop.f32.mrb[0].mxu0
        %3852 = vmatprep.mubr.bf16.mxu0 0
        %3853 = vmatmul.mubr.bf16.gmra.mrb[0].mxu0 %v3434
        %v3854 = vpop.f32.mrb[0].mxu0
        %v3855 = vadd.f32 %v3290, %v3854
        %v3856 = vpop.f32.mrb[0].mxu0
        %v3857 = vpop.f32.mrb[0].mxu0
        %v3858 = vadd.f32 %v3290, %v3857
        %v3859 = vpop.f32.mrb[0].mxu0
        %3860 = vmatprep.mubr.bf16.mxu0 0
        %3861 = vmatmul.mubr.bf16.gmra.mrb[0].mxu0 %v3437
        %v3862 = vpop.f32.mrb[0].mxu0
        %v3863 = vadd.f32 %v3290, %v3862
        %v3864 = vpop.f32.mrb[0].mxu0
        %v3865 = vpop.f32.mrb[0].mxu0
        %v3866 = vadd.f32 %v3290, %v3865
        %v3867 = vpop.f32.mrb[0].mxu0
        %3868 = vmatprep.mubr.bf16.mxu0 0
        %3869 = vmatmul.mubr.bf16.gmra.mrb[0].mxu0 %v3440
        %v3870 = vpop.f32.mrb[0].mxu0
        %v3871 = vadd.f32 %v3290, %v3870
        %v3872 = vpop.f32.mrb[0].mxu0
        %v3873 = vpop.f32.mrb[0].mxu0
        %v3874 = vadd.f32 %v3290, %v3873
        %v3875 = vpop.f32.mrb[0].mxu0
        %3876 = vmatprep.mubr.bf16.mxu0 0
        %3877 = vmatmul.mubr.bf16.gmra.mrb[0].mxu0 %v3443
        %v3878 = vpop.f32.mrb[0].mxu0
        %v3879 = vadd.f32 %v3290, %v3878
        %v3880 = vpop.f32.mrb[0].mxu0
        %v3881 = vpop.f32.mrb[0].mxu0
        %v3882 = vadd.f32 %v3290, %v3881
        %v3883 = vpop.f32.mrb[0].mxu0
        %3884 = vmatprep.mubr.bf16.mxu0 0
        %3885 = vmatmul.mubr.bf16.gmra.mrb[0].mxu0 %v3446
        %v3886 = vpop.f32.mrb[0].mxu0
        %v3887 = vadd.f32 %v3290, %v3886
        %v3888 = vpop.f32.mrb[0].mxu0
        %v3889 = vpop.f32.mrb[0].mxu0
        %v3890 = vadd.f32 %v3290, %v3889
        %v3891 = vpop.f32.mrb[0].mxu0
        %3892 = vmatprep.mubr.bf16.mxu0 0
        %3893 = vmatmul.mubr.bf16.gmra.mrb[0].mxu0 %v3449
        %v3894 = vpop.f32.mrb[0].mxu0
        %v3895 = vadd.f32 %v3290, %v3894
        %v3896 = vpop.f32.mrb[0].mxu0
        %v3897 = vpop.f32.mrb[0].mxu0
        %v3898 = vadd.f32 %v3290, %v3897
        %v3899 = vpop.f32.mrb[0].mxu0
        %3900 = vmatprep.mubr.bf16.mxu0 0
        %3901 = vmatmul.mubr.bf16.gmra.mrb[0].mxu0 %v3452
        %v3902 = vpop.f32.mrb[0].mxu0
        %v3903 = vadd.f32 %v3290, %v3902
        %v3904 = vpop.f32.mrb[0].mxu0
        %v3905 = vpop.f32.mrb[0].mxu0
        %v3906 = vadd.f32 %v3290, %v3905
        %v3907 = vpop.f32.mrb[0].mxu0
        %3908 = vmatprep.mubr.bf16.mxu0 0
        %3909 = vmatmul.mubr.bf16.gmra.mrb[0].mxu0 %v3455
        %v3910 = vpop.f32.mrb[0].mxu0
        %v3911 = vadd.f32 %v3290, %v3910
        %v3912 = vpop.f32.mrb[0].mxu0
        %v3913 = vpop.f32.mrb[0].mxu0
        %v3914 = vadd.f32 %v3290, %v3913
        %v3915 = vpop.f32.mrb[0].mxu0
        %3916 = vmatprep.mubr.bf16.mxu0 0
        %3917 = vmatmul.mubr.bf16.gmra.mrb[0].mxu0 %v3458
        %v3918 = vpop.f32.mrb[0].mxu0
        %v3919 = vadd.f32 %v3290, %v3918
        %v3920 = vpop.f32.mrb[0].mxu0
        %v3921 = vpop.f32.mrb[0].mxu0
        %v3922 = vadd.f32 %v3290, %v3921
        %v3923 = vpop.f32.mrb[0].mxu0
        %3924 = vmatprep.mubr.bf16.mxu0 0
        %3925 = vmatmul.mubr.bf16.gmra.mrb[0].mxu0 %v3461
        %v3926 = vpop.f32.mrb[0].mxu0
        %v3927 = vadd.f32 %v3290, %v3926
        %v3928 = vpop.f32.mrb[0].mxu0
        %v3929 = vpop.f32.mrb[0].mxu0
        %v3930 = vadd.f32 %v3290, %v3929
        %v3931 = vpop.f32.mrb[0].mxu0
        %3932 = vmatprep.mubr.bf16.mxu0 0
        %3933 = vmatmul.mubr.bf16.gmra.mrb[0].mxu0 %v3464
        %v3934 = vpop.f32.mrb[0].mxu0
        %v3935 = vadd.f32 %v3290, %v3934
        %v3936 = vpop.f32.mrb[0].mxu0
        %v3937 = vpop.f32.mrb[0].mxu0
        %v3938 = vadd.f32 %v3290, %v3937
        %v3939 = vpop.f32.mrb[0].mxu0
        %3940 = vmatprep.mubr.bf16.mxu0 0
        %3941 = vmatmul.mubr.bf16.gmra.mrb[0].mxu0 %v3467
        %v3942 = vpop.f32.mrb[0].mxu0
        %v3943 = vadd.f32 %v3290, %v3942
        %v3944 = vpop.f32.mrb[0].mxu0
        %v3945 = vpop.f32.mrb[0].mxu0
        %v3946 = vadd.f32 %v3290, %v3945
        %v3947 = vpop.f32.mrb[0].mxu0
        %3948 = vmatprep.mubr.bf16.mxu0 0
        %3949 = vmatmul.mubr.bf16.gmra.mrb[0].mxu0 %v3470
        %v3950 = vpop.f32.mrb[0].mxu0
        %v3951 = vadd.f32 %v3290, %v3950
        %v3952 = vpop.f32.mrb[0].mxu0
        %v3953 = vpop.f32.mrb[0].mxu0
        %v3954 = vadd.f32 %v3290, %v3953
        %v3955 = vpop.f32.mrb[0].mxu0
        %3956 = vmatprep.mubr.bf16.mxu0 0
        %3957 = vmatmul.mubr.bf16.gmra.mrb[0].mxu0 %v3473
        %v3958 = vpop.f32.mrb[0].mxu0
        %v3959 = vadd.f32 %v3290, %v3958
        %v3960 = vpop.f32.mrb[0].mxu0
        %v3961 = vpop.f32.mrb[0].mxu0
        %v3962 = vadd.f32 %v3290, %v3961
        %v3963 = vpop.f32.mrb[0].mxu0
        %3964 = vmatprep.mubr.bf16.mxu0 0
        %3965 = vmatmul.mubr.bf16.gmra.mrb[0].mxu0 %v3476
        %v3966 = vpop.f32.mrb[0].mxu0
        %v3967 = vadd.f32 %v3290, %v3966
        %v3968 = vpop.f32.mrb[0].mxu0
        %v3969 = vpop.f32.mrb[0].mxu0
        %v3970 = vadd.f32 %v3290, %v3969
        %v3971 = vpop.f32.mrb[0].mxu0
        %3972 = vmatprep.mubr.bf16.mxu0 0
        %3973 = vmatmul.mubr.bf16.gmra.mrb[0].mxu0 %v3479
        %v3974 = vpop.f32.mrb[0].mxu0
        %v3975 = vadd.f32 %v3290, %v3974
        %v3976 = vpop.f32.mrb[0].mxu0
        %v3977 = vpop.f32.mrb[0].mxu0
        %v3978 = vadd.f32 %v3290, %v3977
        %v3979 = vpop.f32.mrb[0].mxu0
        %3980 = vmatprep.mubr.bf16.mxu0 0
        %3981 = vmatmul.mubr.bf16.gmra.mrb[0].mxu0 %v3482
        %v3982 = vpop.f32.mrb[0].mxu0
        %v3983 = vadd.f32 %v3290, %v3982
        %v3984 = vpop.f32.mrb[0].mxu0
        %v3985 = vpop.f32.mrb[0].mxu0
        %v3986 = vadd.f32 %v3290, %v3985
        %v3987 = vpop.f32.mrb[0].mxu0
        %3988 = vmatprep.mubr.bf16.mxu0 0
        %3989 = vmatmul.mubr.bf16.gmra.mrb[0].mxu0 %v3485
        %v3990 = vpop.f32.mrb[0].mxu0
        %v3991 = vadd.f32 %v3290, %v3990
        %v3992 = vpop.f32.mrb[0].mxu0
        %v3993 = vpop.f32.mrb[0].mxu0
        %v3994 = vadd.f32 %v3290, %v3993
        %v3995 = vpop.f32.mrb[0].mxu0
        %3996 = vmatprep.mubr.bf16.mxu0 0
        %3997 = vmatmul.mubr.bf16.gmra.mrb[0].mxu0 %v3488
        %v3998 = vpop.f32.mrb[0].mxu0
        %v3999 = vadd.f32 %v3290, %v3998
        %v4000 = vpop.f32.mrb[0].mxu0
        %v4001 = vpop.f32.mrb[0].mxu0
        %v4002 = vadd.f32 %v3290, %v4001
        %v4003 = vpop.f32.mrb[0].mxu0
        %4004 = vmatprep.mubr.bf16.mxu0 0
        %4005 = vmatmul.mubr.bf16.gmra.mrb[0].mxu0 %v3491
        %v4006 = vpop.f32.mrb[0].mxu0
        %v4007 = vadd.f32 %v3290, %v4006
        %v4008 = vpop.f32.mrb[0].mxu0
        %v4009 = vpop.f32.mrb[0].mxu0
        %v4010 = vadd.f32 %v3290, %v4009
        %v4011 = vpop.f32.mrb[0].mxu0
        %4012 = vmatprep.mubr.bf16.mxu0 0
        %4013 = vmatmul.mubr.bf16.gmra.mrb[0].mxu0 %v3494
        %v4014 = vpop.f32.mrb[0].mxu0
        %v4015 = vadd.f32 %v3290, %v4014
        %v4016 = vpop.f32.mrb[0].mxu0
        %v4017 = vpop.f32.mrb[0].mxu0
        %v4018 = vadd.f32 %v3290, %v4017
        %v4019 = vpop.f32.mrb[0].mxu0
        %4020 = vmatprep.mubr.bf16.mxu0 0
        %4021 = vmatmul.mubr.bf16.gmra.mrb[0].mxu0 %v3497
        %v4022 = vpop.f32.mrb[0].mxu0
        %v4023 = vadd.f32 %v3290, %v4022
        %v4024 = vpop.f32.mrb[0].mxu0
        %v4025 = vpop.f32.mrb[0].mxu0
        %v4026 = vadd.f32 %v3290, %v4025
        %v4027 = vpop.f32.mrb[0].mxu0
        %4028 = vmatprep.mubr.bf16.mxu0 0
        %4029 = vmatmul.mubr.bf16.gmra.mrb[0].mxu0 %v3500
        %v4030 = vpop.f32.mrb[0].mxu0
        %v4031 = vadd.f32 %v3290, %v4030
        %v4032 = vpop.f32.mrb[0].mxu0
        %v4033 = vpop.f32.mrb[0].mxu0
        %v4034 = vadd.f32 %v3290, %v4033
        %v4035 = vpop.f32.mrb[0].mxu0
        %4036 = vmatprep.mubr.bf16.mxu0 0
        %4037 = vmatmul.mubr.bf16.gmra.mrb[0].mxu0 %v3503
        %v4038 = vpop.f32.mrb[0].mxu0
        %v4039 = vadd.f32 %v3290, %v4038
        %v4040 = vpop.f32.mrb[0].mxu0
        %v4041 = vpop.f32.mrb[0].mxu0
        %v4042 = vadd.f32 %v3290, %v4041
        %v4043 = vpop.f32.mrb[0].mxu0
        %4044 = vmatprep.mubr.bf16.mxu0 0
        %4045 = vmatmul.mubr.bf16.gmra.mrb[0].mxu0 %v3506
        %v4046 = vpop.f32.mrb[0].mxu0
        %v4047 = vadd.f32 %v3290, %v4046
        %v4048 = vpop.f32.mrb[0].mxu0
        %v4049 = vpop.f32.mrb[0].mxu0
        %v4050 = vadd.f32 %v3290, %v4049
        %v4051 = vpop.f32.mrb[0].mxu0
        %4052 = vdwg.mxu0
        %v4053 = vld [vmem:[%s5] sm:$0x1]
        %v4054 = vld [vmem:[%s6] sm:$0x1]
        %v4055 = vadd.f32 %v3543, %v3546
        %v4056 = vadd.f32 %v4055, %v3551
        %v4057 = vadd.f32 %v4056, %v3554
        %v4058 = vadd.f32 %v4057, %v3559
        %v4059 = vadd.f32 %v4058, %v3562
        %v4060 = vadd.f32 %v4059, %v3567
        %v4061 = vadd.f32 %v4060, %v3570
        %v4062 = vadd.f32 %v4061, %v3575
        %v4063 = vadd.f32 %v4062, %v3578
        %v4064 = vadd.f32 %v4063, %v3583
        %v4065 = vadd.f32 %v4064, %v3586
        %v4066 = vadd.f32 %v4065, %v3591
        %v4067 = vadd.f32 %v4066, %v3594
        %v4068 = vadd.f32 %v4067, %v3599
        %v4069 = vadd.f32 %v4068, %v3602
        %v4070 = vrot.slane %v4069, 4
        %v4071 = vadd.f32 %v4069, %v4070
        %v4072 = vrot.slane %v4071, 2
        %v4073 = vadd.f32 %v4071, %v4072
        %v4074 = vrot.slane %v4073, 1
        %v4075 = vadd.f32 %v4073, %v4074
        %v4076 = vadd.f32 %v3607, %v3610
        %v4077 = vadd.f32 %v4076, %v3615
        %v4078 = vadd.f32 %v4077, %v3618
        %v4079 = vadd.f32 %v4078, %v3623
        %v4080 = vadd.f32 %v4079, %v3626
        %v4081 = vadd.f32 %v4080, %v3631
        %v4082 = vadd.f32 %v4081, %v3634
        %v4083 = vadd.f32 %v4082, %v3639
        %v4084 = vadd.f32 %v4083, %v3642
        %v4085 = vadd.f32 %v4084, %v3647
        %v4086 = vadd.f32 %v4085, %v3650
        %v4087 = vadd.f32 %v4086, %v3655
        %v4088 = vadd.f32 %v4087, %v3658
        %v4089 = vadd.f32 %v4088, %v3663
        %v4090 = vadd.f32 %v4089, %v3666
        %v4091 = vrot.slane %v4090, 4
        %v4092 = vadd.f32 %v4090, %v4091
        %v4093 = vrot.slane %v4092, 2
        %v4094 = vadd.f32 %v4092, %v4093
        %v4095 = vrot.slane %v4094, 1
        %v4096 = vadd.f32 %v4094, %v4095
        %v4097 = vadd.f32 %v3671, %v3674
        %v4098 = vadd.f32 %v4097, %v3679
        %v4099 = vadd.f32 %v4098, %v3682
        %v4100 = vadd.f32 %v4099, %v3687
        %v4101 = vadd.f32 %v4100, %v3690
        %v4102 = vadd.f32 %v4101, %v3695
        %v4103 = vadd.f32 %v4102, %v3698
        %v4104 = vadd.f32 %v4103, %v3703
        %v4105 = vadd.f32 %v4104, %v3706
        %v4106 = vadd.f32 %v4105, %v3711
        %v4107 = vadd.f32 %v4106, %v3714
        %v4108 = vadd.f32 %v4107, %v3719
        %v4109 = vadd.f32 %v4108, %v3722
        %v4110 = vadd.f32 %v4109, %v3727
        %v4111 = vadd.f32 %v4110, %v3730
        %v4112 = vrot.slane %v4111, 4
        %v4113 = vadd.f32 %v4111, %v4112
        %v4114 = vrot.slane %v4113, 2
        %v4115 = vadd.f32 %v4113, %v4114
        %v4116 = vrot.slane %v4115, 1
        %v4117 = vadd.f32 %v4115, %v4116
        %v4118 = vadd.f32 %v3735, %v3738
        %v4119 = vadd.f32 %v4118, %v3743
        %v4120 = vadd.f32 %v4119, %v3746
        %v4121 = vadd.f32 %v4120, %v3751
        %v4122 = vadd.f32 %v4121, %v3754
        %v4123 = vadd.f32 %v4122, %v3759
        %v4124 = vadd.f32 %v4123, %v3762
        %v4125 = vadd.f32 %v4124, %v3767
        %v4126 = vadd.f32 %v4125, %v3770
        %v4127 = vadd.f32 %v4126, %v3775
        %v4128 = vadd.f32 %v4127, %v3778
        %v4129 = vadd.f32 %v4128, %v3783
        %v4130 = vadd.f32 %v4129, %v3786
        %v4131 = vadd.f32 %v4130, %v3791
        %v4132 = vadd.f32 %v4131, %v3794
        %v4133 = vrot.slane %v4132, 4
        %v4134 = vadd.f32 %v4132, %v4133
        %v4135 = vrot.slane %v4134, 2
        %v4136 = vadd.f32 %v4134, %v4135
        %v4137 = vrot.slane %v4136, 1
        %v4138 = vadd.f32 %v4136, %v4137
        %v4139 = vadd.f32 %v3799, %v3802
        %v4140 = vadd.f32 %v4139, %v3807
        %v4141 = vadd.f32 %v4140, %v3810
        %v4142 = vadd.f32 %v4141, %v3815
        %v4143 = vadd.f32 %v4142, %v3818
        %v4144 = vadd.f32 %v4143, %v3823
        %v4145 = vadd.f32 %v4144, %v3826
        %v4146 = vadd.f32 %v4145, %v3831
        %v4147 = vadd.f32 %v4146, %v3834
        %v4148 = vadd.f32 %v4147, %v3839
        %v4149 = vadd.f32 %v4148, %v3842
        %v4150 = vadd.f32 %v4149, %v3847
        %v4151 = vadd.f32 %v4150, %v3850
        %v4152 = vadd.f32 %v4151, %v3855
        %v4153 = vadd.f32 %v4152, %v3858
        %v4154 = vrot.slane %v4153, 4
        %v4155 = vadd.f32 %v4153, %v4154
        %v4156 = vrot.slane %v4155, 2
        %v4157 = vadd.f32 %v4155, %v4156
        %v4158 = vrot.slane %v4157, 1
        %v4159 = vadd.f32 %v4157, %v4158
        %v4160 = vadd.f32 %v3863, %v3866
        %v4161 = vadd.f32 %v4160, %v3871
        %v4162 = vadd.f32 %v4161, %v3874
        %v4163 = vadd.f32 %v4162, %v3879
        %v4164 = vadd.f32 %v4163, %v3882
        %v4165 = vadd.f32 %v4164, %v3887
        %v4166 = vadd.f32 %v4165, %v3890
        %v4167 = vadd.f32 %v4166, %v3895
        %v4168 = vadd.f32 %v4167, %v3898
        %v4169 = vadd.f32 %v4168, %v3903
        %v4170 = vadd.f32 %v4169, %v3906
        %v4171 = vadd.f32 %v4170, %v3911
        %v4172 = vadd.f32 %v4171, %v3914
        %v4173 = vadd.f32 %v4172, %v3919
        %v4174 = vadd.f32 %v4173, %v3922
        %v4175 = vrot.slane %v4174, 4
        %v4176 = vadd.f32 %v4174, %v4175
        %v4177 = vrot.slane %v4176, 2
        %v4178 = vadd.f32 %v4176, %v4177
        %v4179 = vrot.slane %v4178, 1
        %v4180 = vadd.f32 %v4178, %v4179
        %v4181 = vadd.f32 %v3927, %v3930
        %v4182 = vadd.f32 %v4181, %v3935
        %v4183 = vadd.f32 %v4182, %v3938
        %v4184 = vadd.f32 %v4183, %v3943
        %v4185 = vadd.f32 %v4184, %v3946
        %v4186 = vadd.f32 %v4185, %v3951
        %v4187 = vadd.f32 %v4186, %v3954
        %v4188 = vadd.f32 %v4187, %v3959
        %v4189 = vadd.f32 %v4188, %v3962
        %v4190 = vadd.f32 %v4189, %v3967
        %v4191 = vadd.f32 %v4190, %v3970
        %v4192 = vadd.f32 %v4191, %v3975
        %v4193 = vadd.f32 %v4192, %v3978
        %v4194 = vadd.f32 %v4193, %v3983
        %v4195 = vadd.f32 %v4194, %v3986
        %v4196 = vrot.slane %v4195, 4
        %v4197 = vadd.f32 %v4195, %v4196
        %v4198 = vrot.slane %v4197, 2
        %v4199 = vadd.f32 %v4197, %v4198
        %v4200 = vrot.slane %v4199, 1
        %v4201 = vadd.f32 %v4199, %v4200
        %v4202 = vadd.f32 %v3991, %v3994
        %v4203 = vadd.f32 %v4202, %v3999
        %v4204 = vadd.f32 %v4203, %v4002
        %v4205 = vadd.f32 %v4204, %v4007
        %v4206 = vadd.f32 %v4205, %v4010
        %v4207 = vadd.f32 %v4206, %v4015
        %v4208 = vadd.f32 %v4207, %v4018
        %v4209 = vadd.f32 %v4208, %v4023
        %v4210 = vadd.f32 %v4209, %v4026
        %v4211 = vadd.f32 %v4210, %v4031
        %v4212 = vadd.f32 %v4211, %v4034
        %v4213 = vadd.f32 %v4212, %v4039
        %v4214 = vadd.f32 %v4213, %v4042
        %v4215 = vadd.f32 %v4214, %v4047
        %v4216 = vadd.f32 %v4215, %v4050
        %v4217 = vrot.slane %v4216, 4
        %v4218 = vadd.f32 %v4216, %v4217
        %v4219 = vrot.slane %v4218, 2
        %v4220 = vadd.f32 %v4218, %v4219
        %v4221 = vrot.slane %v4220, 1
        %v4222 = vadd.f32 %v4220, %v4221
        %v4223 = vmul.f32 %v3543, %v3543
        %v4224 = vmul.f32 %v3546, %v3546
        %v4225 = vmul.f32 %v3551, %v3551
        %v4226 = vmul.f32 %v3554, %v3554
        %v4227 = vmul.f32 %v3559, %v3559
        %v4228 = vmul.f32 %v3562, %v3562
        %v4229 = vmul.f32 %v3567, %v3567
        %v4230 = vmul.f32 %v3570, %v3570
        %v4231 = vmul.f32 %v3575, %v3575
        %v4232 = vmul.f32 %v3578, %v3578
        %v4233 = vmul.f32 %v3583, %v3583
        %v4234 = vmul.f32 %v3586, %v3586
        %v4235 = vmul.f32 %v3591, %v3591
        %v4236 = vmul.f32 %v3594, %v3594
        %v4237 = vmul.f32 %v3599, %v3599
        %v4238 = vmul.f32 %v3602, %v3602
        %v4239 = vmul.f32 %v3607, %v3607
        %v4240 = vmul.f32 %v3610, %v3610
        %v4241 = vmul.f32 %v3615, %v3615
        %v4242 = vmul.f32 %v3618, %v3618
        %v4243 = vmul.f32 %v3623, %v3623
        %v4244 = vmul.f32 %v3626, %v3626
        %v4245 = vmul.f32 %v3631, %v3631
        %v4246 = vmul.f32 %v3634, %v3634
        %v4247 = vmul.f32 %v3639, %v3639
        %v4248 = vmul.f32 %v3642, %v3642
        %v4249 = vmul.f32 %v3647, %v3647
        %v4250 = vmul.f32 %v3650, %v3650
        %v4251 = vmul.f32 %v3655, %v3655
        %v4252 = vmul.f32 %v3658, %v3658
        %v4253 = vmul.f32 %v3663, %v3663
        %v4254 = vmul.f32 %v3666, %v3666
        %v4255 = vmul.f32 %v3671, %v3671
        %v4256 = vmul.f32 %v3674, %v3674
        %v4257 = vmul.f32 %v3679, %v3679
        %v4258 = vmul.f32 %v3682, %v3682
        %v4259 = vmul.f32 %v3687, %v3687
        %v4260 = vmul.f32 %v3690, %v3690
        %v4261 = vmul.f32 %v3695, %v3695
        %v4262 = vmul.f32 %v3698, %v3698
        %v4263 = vmul.f32 %v3703, %v3703
        %v4264 = vmul.f32 %v3706, %v3706
        %v4265 = vmul.f32 %v3711, %v3711
        %v4266 = vmul.f32 %v3714, %v3714
        %v4267 = vmul.f32 %v3719, %v3719
        %v4268 = vmul.f32 %v3722, %v3722
        %v4269 = vmul.f32 %v3727, %v3727
        %v4270 = vmul.f32 %v3730, %v3730
        %v4271 = vmul.f32 %v3735, %v3735
        %v4272 = vmul.f32 %v3738, %v3738
        %v4273 = vmul.f32 %v3743, %v3743
        %v4274 = vmul.f32 %v3746, %v3746
        %v4275 = vmul.f32 %v3751, %v3751
        %v4276 = vmul.f32 %v3754, %v3754
        %v4277 = vmul.f32 %v3759, %v3759
        %v4278 = vmul.f32 %v3762, %v3762
        %v4279 = vmul.f32 %v3767, %v3767
        %v4280 = vmul.f32 %v3770, %v3770
        %v4281 = vmul.f32 %v3775, %v3775
        %v4282 = vmul.f32 %v3778, %v3778
        %v4283 = vmul.f32 %v3783, %v3783
        %v4284 = vmul.f32 %v3786, %v3786
        %v4285 = vmul.f32 %v3791, %v3791
        %v4286 = vmul.f32 %v3794, %v3794
        %v4287 = vmul.f32 %v3799, %v3799
        %v4288 = vmul.f32 %v3802, %v3802
        %v4289 = vmul.f32 %v3807, %v3807
        %v4290 = vmul.f32 %v3810, %v3810
        %v4291 = vmul.f32 %v3815, %v3815
        %v4292 = vmul.f32 %v3818, %v3818
        %v4293 = vmul.f32 %v3823, %v3823
        %v4294 = vmul.f32 %v3826, %v3826
        %v4295 = vmul.f32 %v3831, %v3831
        %v4296 = vmul.f32 %v3834, %v3834
        %v4297 = vmul.f32 %v3839, %v3839
        %v4298 = vmul.f32 %v3842, %v3842
        %v4299 = vmul.f32 %v3847, %v3847
        %v4300 = vmul.f32 %v3850, %v3850
        %v4301 = vmul.f32 %v3855, %v3855
        %v4302 = vmul.f32 %v3858, %v3858
        %v4303 = vmul.f32 %v3863, %v3863
        %v4304 = vmul.f32 %v3866, %v3866
        %v4305 = vmul.f32 %v3871, %v3871
        %v4306 = vmul.f32 %v3874, %v3874
        %v4307 = vmul.f32 %v3879, %v3879
        %v4308 = vmul.f32 %v3882, %v3882
        %v4309 = vmul.f32 %v3887, %v3887
        %v4310 = vmul.f32 %v3890, %v3890
        %v4311 = vmul.f32 %v3895, %v3895
        %v4312 = vmul.f32 %v3898, %v3898
        %v4313 = vmul.f32 %v3903, %v3903
        %v4314 = vmul.f32 %v3906, %v3906
        %v4315 = vmul.f32 %v3911, %v3911
        %v4316 = vmul.f32 %v3914, %v3914
        %v4317 = vmul.f32 %v3919, %v3919
        %v4318 = vmul.f32 %v3922, %v3922
        %v4319 = vmul.f32 %v3927, %v3927
        %v4320 = vmul.f32 %v3930, %v3930
        %v4321 = vmul.f32 %v3935, %v3935
        %v4322 = vmul.f32 %v3938, %v3938
        %v4323 = vmul.f32 %v3943, %v3943
        %v4324 = vmul.f32 %v3946, %v3946
        %v4325 = vmul.f32 %v3951, %v3951
        %v4326 = vmul.f32 %v3954, %v3954
        %v4327 = vmul.f32 %v3959, %v3959
        %v4328 = vmul.f32 %v3962, %v3962
        %v4329 = vmul.f32 %v3967, %v3967
        %v4330 = vmul.f32 %v3970, %v3970
        %v4331 = vmul.f32 %v3975, %v3975
        %v4332 = vmul.f32 %v3978, %v3978
        %v4333 = vmul.f32 %v3983, %v3983
        %v4334 = vmul.f32 %v3986, %v3986
        %v4335 = vmul.f32 %v3991, %v3991
        %v4336 = vmul.f32 %v3994, %v3994
        %v4337 = vmul.f32 %v3999, %v3999
        %v4338 = vmul.f32 %v4002, %v4002
        %v4339 = vmul.f32 %v4007, %v4007
        %v4340 = vmul.f32 %v4010, %v4010
        %v4341 = vmul.f32 %v4015, %v4015
        %v4342 = vmul.f32 %v4018, %v4018
        %v4343 = vmul.f32 %v4023, %v4023
        %v4344 = vmul.f32 %v4026, %v4026
        %v4345 = vmul.f32 %v4031, %v4031
        %v4346 = vmul.f32 %v4034, %v4034
        %v4347 = vmul.f32 %v4039, %v4039
        %v4348 = vmul.f32 %v4042, %v4042
        %v4349 = vmul.f32 %v4047, %v4047
        %v4350 = vmul.f32 %v4050, %v4050
        %v4351 = vadd.f32 %v4223, %v4224
        %v4352 = vadd.f32 %v4351, %v4225
        %v4353 = vadd.f32 %v4352, %v4226
        %v4354 = vadd.f32 %v4353, %v4227
        %v4355 = vadd.f32 %v4354, %v4228
        %v4356 = vadd.f32 %v4355, %v4229
        %v4357 = vadd.f32 %v4356, %v4230
        %v4358 = vadd.f32 %v4357, %v4231
        %v4359 = vadd.f32 %v4358, %v4232
        %v4360 = vadd.f32 %v4359, %v4233
        %v4361 = vadd.f32 %v4360, %v4234
        %v4362 = vadd.f32 %v4361, %v4235
        %v4363 = vadd.f32 %v4362, %v4236
        %v4364 = vadd.f32 %v4363, %v4237
        %v4365 = vadd.f32 %v4364, %v4238
        %v4366 = vrot.slane %v4365, 4
        %v4367 = vadd.f32 %v4365, %v4366
        %v4368 = vrot.slane %v4367, 2
        %v4369 = vadd.f32 %v4367, %v4368
        %v4370 = vrot.slane %v4369, 1
        %v4371 = vadd.f32 %v4369, %v4370
        %v4372 = vadd.f32 %v4239, %v4240
        %v4373 = vadd.f32 %v4372, %v4241
        %v4374 = vadd.f32 %v4373, %v4242
        %v4375 = vadd.f32 %v4374, %v4243
        %v4376 = vadd.f32 %v4375, %v4244
        %v4377 = vadd.f32 %v4376, %v4245
        %v4378 = vadd.f32 %v4377, %v4246
        %v4379 = vadd.f32 %v4378, %v4247
        %v4380 = vadd.f32 %v4379, %v4248
        %v4381 = vadd.f32 %v4380, %v4249
        %v4382 = vadd.f32 %v4381, %v4250
        %v4383 = vadd.f32 %v4382, %v4251
        %v4384 = vadd.f32 %v4383, %v4252
        %v4385 = vadd.f32 %v4384, %v4253
        %v4386 = vadd.f32 %v4385, %v4254
        %v4387 = vrot.slane %v4386, 4
        %v4388 = vadd.f32 %v4386, %v4387
        %v4389 = vrot.slane %v4388, 2
        %v4390 = vadd.f32 %v4388, %v4389
        %v4391 = vrot.slane %v4390, 1
        %v4392 = vadd.f32 %v4390, %v4391
        %v4393 = vadd.f32 %v4255, %v4256
        %v4394 = vadd.f32 %v4393, %v4257
        %v4395 = vadd.f32 %v4394, %v4258
        %v4396 = vadd.f32 %v4395, %v4259
        %v4397 = vadd.f32 %v4396, %v4260
        %v4398 = vadd.f32 %v4397, %v4261
        %v4399 = vadd.f32 %v4398, %v4262
        %v4400 = vadd.f32 %v4399, %v4263
        %v4401 = vadd.f32 %v4400, %v4264
        %v4402 = vadd.f32 %v4401, %v4265
        %v4403 = vadd.f32 %v4402, %v4266
        %v4404 = vadd.f32 %v4403, %v4267
        %v4405 = vadd.f32 %v4404, %v4268
        %v4406 = vadd.f32 %v4405, %v4269
        %v4407 = vadd.f32 %v4406, %v4270
        %v4408 = vrot.slane %v4407, 4
        %v4409 = vadd.f32 %v4407, %v4408
        %v4410 = vrot.slane %v4409, 2
        %v4411 = vadd.f32 %v4409, %v4410
        %v4412 = vrot.slane %v4411, 1
        %v4413 = vadd.f32 %v4411, %v4412
        %v4414 = vadd.f32 %v4271, %v4272
        %v4415 = vadd.f32 %v4414, %v4273
        %v4416 = vadd.f32 %v4415, %v4274
        %v4417 = vadd.f32 %v4416, %v4275
        %v4418 = vadd.f32 %v4417, %v4276
        %v4419 = vadd.f32 %v4418, %v4277
        %v4420 = vadd.f32 %v4419, %v4278
        %v4421 = vadd.f32 %v4420, %v4279
        %v4422 = vadd.f32 %v4421, %v4280
        %v4423 = vadd.f32 %v4422, %v4281
        %v4424 = vadd.f32 %v4423, %v4282
        %v4425 = vadd.f32 %v4424, %v4283
        %v4426 = vadd.f32 %v4425, %v4284
        %v4427 = vadd.f32 %v4426, %v4285
        %v4428 = vadd.f32 %v4427, %v4286
        %v4429 = vrot.slane %v4428, 4
        %v4430 = vadd.f32 %v4428, %v4429
        %v4431 = vrot.slane %v4430, 2
        %v4432 = vadd.f32 %v4430, %v4431
        %v4433 = vrot.slane %v4432, 1
        %v4434 = vadd.f32 %v4432, %v4433
        %v4435 = vadd.f32 %v4287, %v4288
        %v4436 = vadd.f32 %v4435, %v4289
        %v4437 = vadd.f32 %v4436, %v4290
        %v4438 = vadd.f32 %v4437, %v4291
        %v4439 = vadd.f32 %v4438, %v4292
        %v4440 = vadd.f32 %v4439, %v4293
        %v4441 = vadd.f32 %v4440, %v4294
        %v4442 = vadd.f32 %v4441, %v4295
        %v4443 = vadd.f32 %v4442, %v4296
        %v4444 = vadd.f32 %v4443, %v4297
        %v4445 = vadd.f32 %v4444, %v4298
        %v4446 = vadd.f32 %v4445, %v4299
        %v4447 = vadd.f32 %v4446, %v4300
        %v4448 = vadd.f32 %v4447, %v4301
        %v4449 = vadd.f32 %v4448, %v4302
        %v4450 = vrot.slane %v4449, 4
        %v4451 = vadd.f32 %v4449, %v4450
        %v4452 = vrot.slane %v4451, 2
        %v4453 = vadd.f32 %v4451, %v4452
        %v4454 = vrot.slane %v4453, 1
        %v4455 = vadd.f32 %v4453, %v4454
        %v4456 = vadd.f32 %v4303, %v4304
        %v4457 = vadd.f32 %v4456, %v4305
        %v4458 = vadd.f32 %v4457, %v4306
        %v4459 = vadd.f32 %v4458, %v4307
        %v4460 = vadd.f32 %v4459, %v4308
        %v4461 = vadd.f32 %v4460, %v4309
        %v4462 = vadd.f32 %v4461, %v4310
        %v4463 = vadd.f32 %v4462, %v4311
        %v4464 = vadd.f32 %v4463, %v4312
        %v4465 = vadd.f32 %v4464, %v4313
        %v4466 = vadd.f32 %v4465, %v4314
        %v4467 = vadd.f32 %v4466, %v4315
        %v4468 = vadd.f32 %v4467, %v4316
        %v4469 = vadd.f32 %v4468, %v4317
        %v4470 = vadd.f32 %v4469, %v4318
        %v4471 = vrot.slane %v4470, 4
        %v4472 = vadd.f32 %v4470, %v4471
        %v4473 = vrot.slane %v4472, 2
        %v4474 = vadd.f32 %v4472, %v4473
        %v4475 = vrot.slane %v4474, 1
        %v4476 = vadd.f32 %v4474, %v4475
        %v4477 = vadd.f32 %v4319, %v4320
        %v4478 = vadd.f32 %v4477, %v4321
        %v4479 = vadd.f32 %v4478, %v4322
        %v4480 = vadd.f32 %v4479, %v4323
        %v4481 = vadd.f32 %v4480, %v4324
        %v4482 = vadd.f32 %v4481, %v4325
        %v4483 = vadd.f32 %v4482, %v4326
        %v4484 = vadd.f32 %v4483, %v4327
        %v4485 = vadd.f32 %v4484, %v4328
        %v4486 = vadd.f32 %v4485, %v4329
        %v4487 = vadd.f32 %v4486, %v4330
        %v4488 = vadd.f32 %v4487, %v4331
        %v4489 = vadd.f32 %v4488, %v4332
        %v4490 = vadd.f32 %v4489, %v4333
        %v4491 = vadd.f32 %v4490, %v4334
        %v4492 = vrot.slane %v4491, 4
        %v4493 = vadd.f32 %v4491, %v4492
        %v4494 = vrot.slane %v4493, 2
        %v4495 = vadd.f32 %v4493, %v4494
        %v4496 = vrot.slane %v4495, 1
        %v4497 = vadd.f32 %v4495, %v4496
        %v4498 = vadd.f32 %v4335, %v4336
        %v4499 = vadd.f32 %v4498, %v4337
        %v4500 = vadd.f32 %v4499, %v4338
        %v4501 = vadd.f32 %v4500, %v4339
        %v4502 = vadd.f32 %v4501, %v4340
        %v4503 = vadd.f32 %v4502, %v4341
        %v4504 = vadd.f32 %v4503, %v4342
        %v4505 = vadd.f32 %v4504, %v4343
        %v4506 = vadd.f32 %v4505, %v4344
        %v4507 = vadd.f32 %v4506, %v4345
        %v4508 = vadd.f32 %v4507, %v4346
        %v4509 = vadd.f32 %v4508, %v4347
        %v4510 = vadd.f32 %v4509, %v4348
        %v4511 = vadd.f32 %v4510, %v4349
        %v4512 = vadd.f32 %v4511, %v4350
        %v4513 = vrot.slane %v4512, 4
        %v4514 = vadd.f32 %v4512, %v4513
        %v4515 = vrot.slane %v4514, 2
        %v4516 = vadd.f32 %v4514, %v4515
        %v4517 = vrot.slane %v4516, 1
        %v4518 = vadd.f32 %v4516, %v4517
        %4527 = vrot.lane.b32.xlu0 %v4075, 112
        %v4528 = vpop.permute.xlu0 %4527
        %4529 = vrot.lane.b32.xlu0 %v4096, 112
        %v4530 = vpop.permute.xlu0 %4529
        %4531 = vrot.lane.b32.xlu0 %v4117, 112
        %v4532 = vpop.permute.xlu0 %4531
        %4533 = vrot.lane.b32.xlu0 %v4138, 112
        %v4534 = vpop.permute.xlu0 %4533
        %4535 = vrot.lane.b32.xlu0 %v4159, 112
        %v4536 = vpop.permute.xlu0 %4535
        %4537 = vrot.lane.b32.xlu0 %v4180, 112
        %v4538 = vpop.permute.xlu0 %4537
        %4539 = vrot.lane.b32.xlu0 %v4201, 112
        %v4540 = vpop.permute.xlu0 %4539
        %4541 = vrot.lane.b32.xlu0 %v4222, 112
        %v4542 = vpop.permute.xlu0 %4541
        %4543 = vrot.lane.b32.xlu0 %v4075, 96
        %v4544 = vpop.permute.xlu0 %4543
        %4545 = vrot.lane.b32.xlu0 %v4096, 96
        %v4546 = vpop.permute.xlu0 %4545
        %4547 = vrot.lane.b32.xlu0 %v4117, 96
        %v4548 = vpop.permute.xlu0 %4547
        %4549 = vrot.lane.b32.xlu0 %v4138, 96
        %v4550 = vpop.permute.xlu0 %4549
        %4551 = vrot.lane.b32.xlu0 %v4159, 96
        %v4552 = vpop.permute.xlu0 %4551
        %4553 = vrot.lane.b32.xlu0 %v4180, 96
        %v4554 = vpop.permute.xlu0 %4553
        %4555 = vrot.lane.b32.xlu0 %v4201, 96
        %v4556 = vpop.permute.xlu0 %4555
        %4557 = vrot.lane.b32.xlu0 %v4222, 96
        %v4558 = vpop.permute.xlu0 %4557
        %4559 = vrot.lane.b32.xlu0 %v4075, 80
        %v4560 = vpop.permute.xlu0 %4559
        %4561 = vrot.lane.b32.xlu0 %v4096, 80
        %v4562 = vpop.permute.xlu0 %4561
        %4563 = vrot.lane.b32.xlu0 %v4117, 80
        %v4564 = vpop.permute.xlu0 %4563
        %4565 = vrot.lane.b32.xlu0 %v4138, 80
        %v4566 = vpop.permute.xlu0 %4565
        %4567 = vrot.lane.b32.xlu0 %v4159, 80
        %v4568 = vpop.permute.xlu0 %4567
        %4569 = vrot.lane.b32.xlu0 %v4180, 80
        %v4570 = vpop.permute.xlu0 %4569
        %4571 = vrot.lane.b32.xlu0 %v4201, 80
        %v4572 = vpop.permute.xlu0 %4571
        %4573 = vrot.lane.b32.xlu0 %v4222, 80
        %v4574 = vpop.permute.xlu0 %4573
        %4575 = vrot.lane.b32.xlu0 %v4075, 64
        %v4576 = vpop.permute.xlu0 %4575
        %4577 = vrot.lane.b32.xlu0 %v4096, 64
        %v4578 = vpop.permute.xlu0 %4577
        %4579 = vrot.lane.b32.xlu0 %v4117, 64
        %v4580 = vpop.permute.xlu0 %4579
        %4581 = vrot.lane.b32.xlu0 %v4138, 64
        %v4582 = vpop.permute.xlu0 %4581
        %4583 = vrot.lane.b32.xlu0 %v4159, 64
        %v4584 = vpop.permute.xlu0 %4583
        %4585 = vrot.lane.b32.xlu0 %v4180, 64
        %v4586 = vpop.permute.xlu0 %4585
        %4587 = vrot.lane.b32.xlu0 %v4201, 64
        %v4588 = vpop.permute.xlu0 %4587
        %4589 = vrot.lane.b32.xlu0 %v4222, 64
        %v4590 = vpop.permute.xlu0 %4589
        %4591 = vrot.lane.b32.xlu0 %v4075, 48
        %v4592 = vpop.permute.xlu0 %4591
        %4593 = vrot.lane.b32.xlu0 %v4096, 48
        %v4594 = vpop.permute.xlu0 %4593
        %4595 = vrot.lane.b32.xlu0 %v4117, 48
        %v4596 = vpop.permute.xlu0 %4595
        %4597 = vrot.lane.b32.xlu0 %v4138, 48
        %v4598 = vpop.permute.xlu0 %4597
        %4599 = vrot.lane.b32.xlu0 %v4159, 48
        %v4600 = vpop.permute.xlu0 %4599
        %4601 = vrot.lane.b32.xlu0 %v4180, 48
        %v4602 = vpop.permute.xlu0 %4601
        %4603 = vrot.lane.b32.xlu0 %v4201, 48
        %v4604 = vpop.permute.xlu0 %4603
        %4605 = vrot.lane.b32.xlu0 %v4222, 48
        %v4606 = vpop.permute.xlu0 %4605
        %4607 = vrot.lane.b32.xlu0 %v4075, 32
        %v4608 = vpop.permute.xlu0 %4607
        %4609 = vrot.lane.b32.xlu0 %v4096, 32
        %v4610 = vpop.permute.xlu0 %4609
        %4611 = vrot.lane.b32.xlu0 %v4117, 32
        %v4612 = vpop.permute.xlu0 %4611
        %4613 = vrot.lane.b32.xlu0 %v4138, 32
        %v4614 = vpop.permute.xlu0 %4613
        %4615 = vrot.lane.b32.xlu0 %v4159, 32
        %v4616 = vpop.permute.xlu0 %4615
        %4617 = vrot.lane.b32.xlu0 %v4180, 32
        %v4618 = vpop.permute.xlu0 %4617
        %4619 = vrot.lane.b32.xlu0 %v4201, 32
        %v4620 = vpop.permute.xlu0 %4619
        %4621 = vrot.lane.b32.xlu0 %v4222, 32
        %v4622 = vpop.permute.xlu0 %4621
        %4623 = vrot.lane.b32.xlu0 %v4075, 16
        %v4624 = vpop.permute.xlu0 %4623
        %4625 = vrot.lane.b32.xlu0 %v4096, 16
        %v4626 = vpop.permute.xlu0 %4625
        %4627 = vrot.lane.b32.xlu0 %v4117, 16
        %v4628 = vpop.permute.xlu0 %4627
        %4629 = vrot.lane.b32.xlu0 %v4138, 16
        %v4630 = vpop.permute.xlu0 %4629
        %4631 = vrot.lane.b32.xlu0 %v4159, 16
        %v4632 = vpop.permute.xlu0 %4631
        %4633 = vrot.lane.b32.xlu0 %v4180, 16
        %v4634 = vpop.permute.xlu0 %4633
        %4635 = vrot.lane.b32.xlu0 %v4201, 16
        %v4636 = vpop.permute.xlu0 %4635
        %4637 = vrot.lane.b32.xlu0 %v4222, 16
        %v4638 = vpop.permute.xlu0 %4637
        %v4639 = vrot.slane %v4096, 7
        %v4640 = vsel %vm1414, %v4639, %v4075
        %v4641 = vrot.slane %v4117, 6
        %v4642 = vsel %vm1417, %v4641, %v4640
        %v4643 = vrot.slane %v4138, 5
        %v4644 = vsel %vm1420, %v4643, %v4642
        %v4645 = vrot.slane %v4159, 4
        %v4646 = vsel %vm1423, %v4645, %v4644
        %v4647 = vrot.slane %v4180, 3
        %v4648 = vsel %vm1426, %v4647, %v4646
        %v4649 = vrot.slane %v4201, 2
        %v4650 = vsel %vm1429, %v4649, %v4648
        %v4651 = vrot.slane %v4222, 1
        %v4652 = vsel %vm1432, %v4651, %v4650
        %v4653 = vrot.slane %v4530, 7
        %v4654 = vsel %vm1414, %v4653, %v4528
        %v4655 = vrot.slane %v4532, 6
        %v4656 = vsel %vm1417, %v4655, %v4654
        %v4657 = vrot.slane %v4534, 5
        %v4658 = vsel %vm1420, %v4657, %v4656
        %v4659 = vrot.slane %v4536, 4
        %v4660 = vsel %vm1423, %v4659, %v4658
        %v4661 = vrot.slane %v4538, 3
        %v4662 = vsel %vm1426, %v4661, %v4660
        %v4663 = vrot.slane %v4540, 2
        %v4664 = vsel %vm1429, %v4663, %v4662
        %v4665 = vrot.slane %v4542, 1
        %v4666 = vsel %vm1432, %v4665, %v4664
        %v4667 = vrot.slane %v4546, 7
        %v4668 = vsel %vm1414, %v4667, %v4544
        %v4669 = vrot.slane %v4548, 6
        %v4670 = vsel %vm1417, %v4669, %v4668
        %v4671 = vrot.slane %v4550, 5
        %v4672 = vsel %vm1420, %v4671, %v4670
        %v4673 = vrot.slane %v4552, 4
        %v4674 = vsel %vm1423, %v4673, %v4672
        %v4675 = vrot.slane %v4554, 3
        %v4676 = vsel %vm1426, %v4675, %v4674
        %v4677 = vrot.slane %v4556, 2
        %v4678 = vsel %vm1429, %v4677, %v4676
        %v4679 = vrot.slane %v4558, 1
        %v4680 = vsel %vm1432, %v4679, %v4678
        %v4681 = vrot.slane %v4562, 7
        %v4682 = vsel %vm1414, %v4681, %v4560
        %v4683 = vrot.slane %v4564, 6
        %v4684 = vsel %vm1417, %v4683, %v4682
        %v4685 = vrot.slane %v4566, 5
        %v4686 = vsel %vm1420, %v4685, %v4684
        %v4687 = vrot.slane %v4568, 4
        %v4688 = vsel %vm1423, %v4687, %v4686
        %v4689 = vrot.slane %v4570, 3
        %v4690 = vsel %vm1426, %v4689, %v4688
        %v4691 = vrot.slane %v4572, 2
        %v4692 = vsel %vm1429, %v4691, %v4690
        %v4693 = vrot.slane %v4574, 1
        %v4694 = vsel %vm1432, %v4693, %v4692
        %v4695 = vrot.slane %v4578, 7
        %v4696 = vsel %vm1414, %v4695, %v4576
        %v4697 = vrot.slane %v4580, 6
        %v4698 = vsel %vm1417, %v4697, %v4696
        %v4699 = vrot.slane %v4582, 5
        %v4700 = vsel %vm1420, %v4699, %v4698
        %v4701 = vrot.slane %v4584, 4
        %v4702 = vsel %vm1423, %v4701, %v4700
        %v4703 = vrot.slane %v4586, 3
        %v4704 = vsel %vm1426, %v4703, %v4702
        %v4705 = vrot.slane %v4588, 2
        %v4706 = vsel %vm1429, %v4705, %v4704
        %v4707 = vrot.slane %v4590, 1
        %v4708 = vsel %vm1432, %v4707, %v4706
        %v4709 = vrot.slane %v4594, 7
        %v4710 = vsel %vm1414, %v4709, %v4592
        %v4711 = vrot.slane %v4596, 6
        %v4712 = vsel %vm1417, %v4711, %v4710
        %v4713 = vrot.slane %v4598, 5
        %v4714 = vsel %vm1420, %v4713, %v4712
        %v4715 = vrot.slane %v4600, 4
        %v4716 = vsel %vm1423, %v4715, %v4714
        %v4717 = vrot.slane %v4602, 3
        %v4718 = vsel %vm1426, %v4717, %v4716
        %v4719 = vrot.slane %v4604, 2
        %v4720 = vsel %vm1429, %v4719, %v4718
        %v4721 = vrot.slane %v4606, 1
        %v4722 = vsel %vm1432, %v4721, %v4720
        %v4723 = vrot.slane %v4610, 7
        %v4724 = vsel %vm1414, %v4723, %v4608
        %v4725 = vrot.slane %v4612, 6
        %v4726 = vsel %vm1417, %v4725, %v4724
        %v4727 = vrot.slane %v4614, 5
        %v4728 = vsel %vm1420, %v4727, %v4726
        %v4729 = vrot.slane %v4616, 4
        %v4730 = vsel %vm1423, %v4729, %v4728
        %v4731 = vrot.slane %v4618, 3
        %v4732 = vsel %vm1426, %v4731, %v4730
        %v4733 = vrot.slane %v4620, 2
        %v4734 = vsel %vm1429, %v4733, %v4732
        %v4735 = vrot.slane %v4622, 1
        %v4736 = vsel %vm1432, %v4735, %v4734
        %v4737 = vrot.slane %v4626, 7
        %v4738 = vsel %vm1414, %v4737, %v4624
        %v4739 = vrot.slane %v4628, 6
        %v4740 = vsel %vm1417, %v4739, %v4738
        %v4741 = vrot.slane %v4630, 5
        %v4742 = vsel %vm1420, %v4741, %v4740
        %v4743 = vrot.slane %v4632, 4
        %v4744 = vsel %vm1423, %v4743, %v4742
        %v4745 = vrot.slane %v4634, 3
        %v4746 = vsel %vm1426, %v4745, %v4744
        %v4747 = vrot.slane %v4636, 2
        %v4748 = vsel %vm1429, %v4747, %v4746
        %v4749 = vrot.slane %v4638, 1
        %v4750 = vsel %vm1432, %v4749, %v4748
        %v4759 = vcombine.low %v4652, %v4680
        %v4760 = vcombine.high %v4652, %v4680
        %v4762 = vunpack.c.l.s4 1983009808
        %v4763 = vunpack.c.0.s8 %v4762
        %v4764 = vlaneseq
        %v4765 = vshrl.u32 %v4764, 7
        %v4766 = vsub.s32 %v4763, %v4765
        %v4767 = vrot.slane %v4759, %v4766
        %v4769 = vunpack.c.l.s4 1983009808
        %v4770 = vunpack.c.0.s8 %v4769
        %v4771 = vlaneseq
        %v4772 = vshrl.u32 %v4771, 7
        %v4773 = vsub.s32 %v4770, %v4772
        %v4774 = vrot.slane %v4760, %v4773
        %v4775 = vcombine.low %v4666, %v4694
        %v4776 = vcombine.high %v4666, %v4694
        %v4778 = vunpack.c.l.s4 1983009808
        %v4779 = vunpack.c.0.s8 %v4778
        %v4780 = vlaneseq
        %v4781 = vshrl.u32 %v4780, 7
        %v4782 = vsub.s32 %v4779, %v4781
        %v4783 = vrot.slane %v4775, %v4782
        %v4785 = vunpack.c.l.s4 1983009808
        %v4786 = vunpack.c.0.s8 %v4785
        %v4787 = vlaneseq
        %v4788 = vshrl.u32 %v4787, 7
        %v4789 = vsub.s32 %v4786, %v4788
        %v4790 = vrot.slane %v4776, %v4789
        %v4791 = vcombine.low %v4708, %v4736
        %v4792 = vcombine.high %v4708, %v4736
        %v4794 = vunpack.c.l.s4 1983009808
        %v4795 = vunpack.c.0.s8 %v4794
        %v4796 = vlaneseq
        %v4797 = vshrl.u32 %v4796, 7
        %v4798 = vsub.s32 %v4795, %v4797
        %v4799 = vrot.slane %v4791, %v4798
        %v4801 = vunpack.c.l.s4 1983009808
        %v4802 = vunpack.c.0.s8 %v4801
        %v4803 = vlaneseq
        %v4804 = vshrl.u32 %v4803, 7
        %v4805 = vsub.s32 %v4802, %v4804
        %v4806 = vrot.slane %v4792, %v4805
        %v4807 = vcombine.low %v4722, %v4750
        %v4808 = vcombine.high %v4722, %v4750
        %v4810 = vunpack.c.l.s4 1983009808
        %v4811 = vunpack.c.0.s8 %v4810
        %v4812 = vlaneseq
        %v4813 = vshrl.u32 %v4812, 7
        %v4814 = vsub.s32 %v4811, %v4813
        %v4815 = vrot.slane %v4807, %v4814
        %v4817 = vunpack.c.l.s4 1983009808
        %v4818 = vunpack.c.0.s8 %v4817
        %v4819 = vlaneseq
        %v4820 = vshrl.u32 %v4819, 7
        %v4821 = vsub.s32 %v4818, %v4820
        %v4822 = vrot.slane %v4808, %v4821
        %v4823 = vcombine.low %v4767, %v4783
        %v4824 = vcombine.high %v4767, %v4783
        %v4826 = vunpack.c.l.s4 1934713408
        %v4827 = vunpack.c.0.s8 %v4826
        %v4828 = vlaneseq
        %v4829 = vshrl.u32 %v4828, 7
        %v4830 = vsub.s32 %v4827, %v4829
        %v4831 = vrot.slane %v4823, %v4830
        %v4833 = vunpack.c.l.s4 1934713408
        %v4834 = vunpack.c.0.s8 %v4833
        %v4835 = vlaneseq
        %v4836 = vshrl.u32 %v4835, 7
        %v4837 = vsub.s32 %v4834, %v4836
        %v4838 = vrot.slane %v4824, %v4837
        %v4839 = vcombine.low %v4774, %v4790
        %v4840 = vcombine.high %v4774, %v4790
        %v4842 = vunpack.c.l.s4 1934713408
        %v4843 = vunpack.c.0.s8 %v4842
        %v4844 = vlaneseq
        %v4845 = vshrl.u32 %v4844, 7
        %v4846 = vsub.s32 %v4843, %v4845
        %v4847 = vrot.slane %v4839, %v4846
        %v4849 = vunpack.c.l.s4 1934713408
        %v4850 = vunpack.c.0.s8 %v4849
        %v4851 = vlaneseq
        %v4852 = vshrl.u32 %v4851, 7
        %v4853 = vsub.s32 %v4850, %v4852
        %v4854 = vrot.slane %v4840, %v4853
        %v4855 = vcombine.low %v4799, %v4815
        %v4856 = vcombine.high %v4799, %v4815
        %v4858 = vunpack.c.l.s4 1934713408
        %v4859 = vunpack.c.0.s8 %v4858
        %v4860 = vlaneseq
        %v4861 = vshrl.u32 %v4860, 7
        %v4862 = vsub.s32 %v4859, %v4861
        %v4863 = vrot.slane %v4855, %v4862
        %v4865 = vunpack.c.l.s4 1934713408
        %v4866 = vunpack.c.0.s8 %v4865
        %v4867 = vlaneseq
        %v4868 = vshrl.u32 %v4867, 7
        %v4869 = vsub.s32 %v4866, %v4868
        %v4870 = vrot.slane %v4856, %v4869
        %v4871 = vcombine.low %v4806, %v4822
        %v4872 = vcombine.high %v4806, %v4822
        %v4874 = vunpack.c.l.s4 1934713408
        %v4875 = vunpack.c.0.s8 %v4874
        %v4876 = vlaneseq
        %v4877 = vshrl.u32 %v4876, 7
        %v4878 = vsub.s32 %v4875, %v4877
        %v4879 = vrot.slane %v4871, %v4878
        %v4881 = vunpack.c.l.s4 1934713408
        %v4882 = vunpack.c.0.s8 %v4881
        %v4883 = vlaneseq
        %v4884 = vshrl.u32 %v4883, 7
        %v4885 = vsub.s32 %v4882, %v4884
        %v4886 = vrot.slane %v4872, %v4885
        %v4887 = vcombine.low %v4831, %v4863
        %v4888 = vcombine.high %v4831, %v4863
        %v4889 = vcombine.low %v4838, %v4870
        %v4890 = vcombine.high %v4838, %v4870
        %v4891 = vcombine.low %v4847, %v4879
        %v4892 = vcombine.high %v4847, %v4879
        %v4893 = vcombine.low %v4854, %v4886
        %v4894 = vcombine.high %v4854, %v4886
        %v4895 = vsel %vm2323, %v4887, 0.0
        %4896 = vadd.xlane.f32.xlu0 %v4895
        %v4897 = vpop.xlane.xlu0 %4896
        %v4898 = vsel %vm2323, %v4888, 0.0
        %4899 = vadd.xlane.f32.xlu0 %v4898
        %v4900 = vpop.xlane.xlu0 %4899
        %v4901 = vsel %vm2323, %v4889, 0.0
        %4902 = vadd.xlane.f32.xlu0 %v4901
        %v4903 = vpop.xlane.xlu0 %4902
        %v4904 = vsel %vm2323, %v4890, 0.0
        %4905 = vadd.xlane.f32.xlu0 %v4904
        %v4906 = vpop.xlane.xlu0 %4905
        %v4907 = vsel %vm2323, %v4891, 0.0
        %4908 = vadd.xlane.f32.xlu0 %v4907
        %v4909 = vpop.xlane.xlu0 %4908
        %v4910 = vsel %vm2323, %v4892, 0.0
        %4911 = vadd.xlane.f32.xlu0 %v4910
        %v4912 = vpop.xlane.xlu0 %4911
        %v4913 = vsel %vm2323, %v4893, 0.0
        %4914 = vadd.xlane.f32.xlu0 %v4913
        %v4915 = vpop.xlane.xlu0 %4914
        %v4916 = vsel %vm2323, %v4894, 0.0
        %4917 = vadd.xlane.f32.xlu0 %v4916
        %v4918 = vpop.xlane.xlu0 %4917
        %4927 = vrot.lane.b32.xlu0 %v4371, 112
        %v4928 = vpop.permute.xlu0 %4927
        %4929 = vrot.lane.b32.xlu0 %v4392, 112
        %v4930 = vpop.permute.xlu0 %4929
        %4931 = vrot.lane.b32.xlu0 %v4413, 112
        %v4932 = vpop.permute.xlu0 %4931
        %4933 = vrot.lane.b32.xlu0 %v4434, 112
        %v4934 = vpop.permute.xlu0 %4933
        %4935 = vrot.lane.b32.xlu0 %v4455, 112
        %v4936 = vpop.permute.xlu0 %4935
        %4937 = vrot.lane.b32.xlu0 %v4476, 112
        %v4938 = vpop.permute.xlu0 %4937
        %4939 = vrot.lane.b32.xlu0 %v4497, 112
        %v4940 = vpop.permute.xlu0 %4939
        %4941 = vrot.lane.b32.xlu0 %v4518, 112
        %v4942 = vpop.permute.xlu0 %4941
        %4943 = vrot.lane.b32.xlu0 %v4371, 96
        %v4944 = vpop.permute.xlu0 %4943
        %4945 = vrot.lane.b32.xlu0 %v4392, 96
        %v4946 = vpop.permute.xlu0 %4945
        %4947 = vrot.lane.b32.xlu0 %v4413, 96
        %v4948 = vpop.permute.xlu0 %4947
        %4949 = vrot.lane.b32.xlu0 %v4434, 96
        %v4950 = vpop.permute.xlu0 %4949
        %4951 = vrot.lane.b32.xlu0 %v4455, 96
        %v4952 = vpop.permute.xlu0 %4951
        %4953 = vrot.lane.b32.xlu0 %v4476, 96
        %v4954 = vpop.permute.xlu0 %4953
        %4955 = vrot.lane.b32.xlu0 %v4497, 96
        %v4956 = vpop.permute.xlu0 %4955
        %4957 = vrot.lane.b32.xlu0 %v4518, 96
        %v4958 = vpop.permute.xlu0 %4957
        %4959 = vrot.lane.b32.xlu0 %v4371, 80
        %v4960 = vpop.permute.xlu0 %4959
        %4961 = vrot.lane.b32.xlu0 %v4392, 80
        %v4962 = vpop.permute.xlu0 %4961
        %4963 = vrot.lane.b32.xlu0 %v4413, 80
        %v4964 = vpop.permute.xlu0 %4963
        %4965 = vrot.lane.b32.xlu0 %v4434, 80
        %v4966 = vpop.permute.xlu0 %4965
        %4967 = vrot.lane.b32.xlu0 %v4455, 80
        %v4968 = vpop.permute.xlu0 %4967
        %4969 = vrot.lane.b32.xlu0 %v4476, 80
        %v4970 = vpop.permute.xlu0 %4969
        %4971 = vrot.lane.b32.xlu0 %v4497, 80
        %v4972 = vpop.permute.xlu0 %4971
        %4973 = vrot.lane.b32.xlu0 %v4518, 80
        %v4974 = vpop.permute.xlu0 %4973
        %4975 = vrot.lane.b32.xlu0 %v4371, 64
        %v4976 = vpop.permute.xlu0 %4975
        %4977 = vrot.lane.b32.xlu0 %v4392, 64
        %v4978 = vpop.permute.xlu0 %4977
        %4979 = vrot.lane.b32.xlu0 %v4413, 64
        %v4980 = vpop.permute.xlu0 %4979
        %4981 = vrot.lane.b32.xlu0 %v4434, 64
        %v4982 = vpop.permute.xlu0 %4981
        %4983 = vrot.lane.b32.xlu0 %v4455, 64
        %v4984 = vpop.permute.xlu0 %4983
        %4985 = vrot.lane.b32.xlu0 %v4476, 64
        %v4986 = vpop.permute.xlu0 %4985
        %4987 = vrot.lane.b32.xlu0 %v4497, 64
        %v4988 = vpop.permute.xlu0 %4987
        %4989 = vrot.lane.b32.xlu0 %v4518, 64
        %v4990 = vpop.permute.xlu0 %4989
        %4991 = vrot.lane.b32.xlu0 %v4371, 48
        %v4992 = vpop.permute.xlu0 %4991
        %4993 = vrot.lane.b32.xlu0 %v4392, 48
        %v4994 = vpop.permute.xlu0 %4993
        %4995 = vrot.lane.b32.xlu0 %v4413, 48
        %v4996 = vpop.permute.xlu0 %4995
        %4997 = vrot.lane.b32.xlu0 %v4434, 48
        %v4998 = vpop.permute.xlu0 %4997
        %4999 = vrot.lane.b32.xlu0 %v4455, 48
        %v5000 = vpop.permute.xlu0 %4999
        %5001 = vrot.lane.b32.xlu0 %v4476, 48
        %v5002 = vpop.permute.xlu0 %5001
        %5003 = vrot.lane.b32.xlu0 %v4497, 48
        %v5004 = vpop.permute.xlu0 %5003
        %5005 = vrot.lane.b32.xlu0 %v4518, 48
        %v5006 = vpop.permute.xlu0 %5005
        %5007 = vrot.lane.b32.xlu0 %v4371, 32
        %v5008 = vpop.permute.xlu0 %5007
        %5009 = vrot.lane.b32.xlu0 %v4392, 32
        %v5010 = vpop.permute.xlu0 %5009
        %5011 = vrot.lane.b32.xlu0 %v4413, 32
        %v5012 = vpop.permute.xlu0 %5011
        %5013 = vrot.lane.b32.xlu0 %v4434, 32
        %v5014 = vpop.permute.xlu0 %5013
        %5015 = vrot.lane.b32.xlu0 %v4455, 32
        %v5016 = vpop.permute.xlu0 %5015
        %5017 = vrot.lane.b32.xlu0 %v4476, 32
        %v5018 = vpop.permute.xlu0 %5017
        %5019 = vrot.lane.b32.xlu0 %v4497, 32
        %v5020 = vpop.permute.xlu0 %5019
        %5021 = vrot.lane.b32.xlu0 %v4518, 32
        %v5022 = vpop.permute.xlu0 %5021
        %5023 = vrot.lane.b32.xlu0 %v4371, 16
        %v5024 = vpop.permute.xlu0 %5023
        %5025 = vrot.lane.b32.xlu0 %v4392, 16
        %v5026 = vpop.permute.xlu0 %5025
        %5027 = vrot.lane.b32.xlu0 %v4413, 16
        %v5028 = vpop.permute.xlu0 %5027
        %5029 = vrot.lane.b32.xlu0 %v4434, 16
        %v5030 = vpop.permute.xlu0 %5029
        %5031 = vrot.lane.b32.xlu0 %v4455, 16
        %v5032 = vpop.permute.xlu0 %5031
        %5033 = vrot.lane.b32.xlu0 %v4476, 16
        %v5034 = vpop.permute.xlu0 %5033
        %5035 = vrot.lane.b32.xlu0 %v4497, 16
        %v5036 = vpop.permute.xlu0 %5035
        %5037 = vrot.lane.b32.xlu0 %v4518, 16
        %v5038 = vpop.permute.xlu0 %5037
        %v5039 = vrot.slane %v4392, 7
        %v5040 = vsel %vm1414, %v5039, %v4371
        %v5041 = vrot.slane %v4413, 6
        %v5042 = vsel %vm1417, %v5041, %v5040
        %v5043 = vrot.slane %v4434, 5
        %v5044 = vsel %vm1420, %v5043, %v5042
        %v5045 = vrot.slane %v4455, 4
        %v5046 = vsel %vm1423, %v5045, %v5044
        %v5047 = vrot.slane %v4476, 3
        %v5048 = vsel %vm1426, %v5047, %v5046
        %v5049 = vrot.slane %v4497, 2
        %v5050 = vsel %vm1429, %v5049, %v5048
        %v5051 = vrot.slane %v4518, 1
        %v5052 = vsel %vm1432, %v5051, %v5050
        %v5053 = vrot.slane %v4930, 7
        %v5054 = vsel %vm1414, %v5053, %v4928
        %v5055 = vrot.slane %v4932, 6
        %v5056 = vsel %vm1417, %v5055, %v5054
        %v5057 = vrot.slane %v4934, 5
        %v5058 = vsel %vm1420, %v5057, %v5056
        %v5059 = vrot.slane %v4936, 4
        %v5060 = vsel %vm1423, %v5059, %v5058
        %v5061 = vrot.slane %v4938, 3
        %v5062 = vsel %vm1426, %v5061, %v5060
        %v5063 = vrot.slane %v4940, 2
        %v5064 = vsel %vm1429, %v5063, %v5062
        %v5065 = vrot.slane %v4942, 1
        %v5066 = vsel %vm1432, %v5065, %v5064
        %v5067 = vrot.slane %v4946, 7
        %v5068 = vsel %vm1414, %v5067, %v4944
        %v5069 = vrot.slane %v4948, 6
        %v5070 = vsel %vm1417, %v5069, %v5068
        %v5071 = vrot.slane %v4950, 5
        %v5072 = vsel %vm1420, %v5071, %v5070
        %v5073 = vrot.slane %v4952, 4
        %v5074 = vsel %vm1423, %v5073, %v5072
        %v5075 = vrot.slane %v4954, 3
        %v5076 = vsel %vm1426, %v5075, %v5074
        %v5077 = vrot.slane %v4956, 2
        %v5078 = vsel %vm1429, %v5077, %v5076
        %v5079 = vrot.slane %v4958, 1
        %v5080 = vsel %vm1432, %v5079, %v5078
        %v5081 = vrot.slane %v4962, 7
        %v5082 = vsel %vm1414, %v5081, %v4960
        %v5083 = vrot.slane %v4964, 6
        %v5084 = vsel %vm1417, %v5083, %v5082
        %v5085 = vrot.slane %v4966, 5
        %v5086 = vsel %vm1420, %v5085, %v5084
        %v5087 = vrot.slane %v4968, 4
        %v5088 = vsel %vm1423, %v5087, %v5086
        %v5089 = vrot.slane %v4970, 3
        %v5090 = vsel %vm1426, %v5089, %v5088
        %v5091 = vrot.slane %v4972, 2
        %v5092 = vsel %vm1429, %v5091, %v5090
        %v5093 = vrot.slane %v4974, 1
        %v5094 = vsel %vm1432, %v5093, %v5092
        %v5095 = vrot.slane %v4978, 7
        %v5096 = vsel %vm1414, %v5095, %v4976
        %v5097 = vrot.slane %v4980, 6
        %v5098 = vsel %vm1417, %v5097, %v5096
        %v5099 = vrot.slane %v4982, 5
        %v5100 = vsel %vm1420, %v5099, %v5098
        %v5101 = vrot.slane %v4984, 4
        %v5102 = vsel %vm1423, %v5101, %v5100
        %v5103 = vrot.slane %v4986, 3
        %v5104 = vsel %vm1426, %v5103, %v5102
        %v5105 = vrot.slane %v4988, 2
        %v5106 = vsel %vm1429, %v5105, %v5104
        %v5107 = vrot.slane %v4990, 1
        %v5108 = vsel %vm1432, %v5107, %v5106
        %v5109 = vrot.slane %v4994, 7
        %v5110 = vsel %vm1414, %v5109, %v4992
        %v5111 = vrot.slane %v4996, 6
        %v5112 = vsel %vm1417, %v5111, %v5110
        %v5113 = vrot.slane %v4998, 5
        %v5114 = vsel %vm1420, %v5113, %v5112
        %v5115 = vrot.slane %v5000, 4
        %v5116 = vsel %vm1423, %v5115, %v5114
        %v5117 = vrot.slane %v5002, 3
        %v5118 = vsel %vm1426, %v5117, %v5116
        %v5119 = vrot.slane %v5004, 2
        %v5120 = vsel %vm1429, %v5119, %v5118
        %v5121 = vrot.slane %v5006, 1
        %v5122 = vsel %vm1432, %v5121, %v5120
        %v5123 = vrot.slane %v5010, 7
        %v5124 = vsel %vm1414, %v5123, %v5008
        %v5125 = vrot.slane %v5012, 6
        %v5126 = vsel %vm1417, %v5125, %v5124
        %v5127 = vrot.slane %v5014, 5
        %v5128 = vsel %vm1420, %v5127, %v5126
        %v5129 = vrot.slane %v5016, 4
        %v5130 = vsel %vm1423, %v5129, %v5128
        %v5131 = vrot.slane %v5018, 3
        %v5132 = vsel %vm1426, %v5131, %v5130
        %v5133 = vrot.slane %v5020, 2
        %v5134 = vsel %vm1429, %v5133, %v5132
        %v5135 = vrot.slane %v5022, 1
        %v5136 = vsel %vm1432, %v5135, %v5134
        %v5137 = vrot.slane %v5026, 7
        %v5138 = vsel %vm1414, %v5137, %v5024
        %v5139 = vrot.slane %v5028, 6
        %v5140 = vsel %vm1417, %v5139, %v5138
        %v5141 = vrot.slane %v5030, 5
        %v5142 = vsel %vm1420, %v5141, %v5140
        %v5143 = vrot.slane %v5032, 4
        %v5144 = vsel %vm1423, %v5143, %v5142
        %v5145 = vrot.slane %v5034, 3
        %v5146 = vsel %vm1426, %v5145, %v5144
        %v5147 = vrot.slane %v5036, 2
        %v5148 = vsel %vm1429, %v5147, %v5146
        %v5149 = vrot.slane %v5038, 1
        %v5150 = vsel %vm1432, %v5149, %v5148
        %v5159 = vcombine.low %v5052, %v5080
        %v5160 = vcombine.high %v5052, %v5080
        %v5162 = vunpack.c.l.s4 1983009808
        %v5163 = vunpack.c.0.s8 %v5162
        %v5164 = vlaneseq
        %v5165 = vshrl.u32 %v5164, 7
        %v5166 = vsub.s32 %v5163, %v5165
        %v5167 = vrot.slane %v5159, %v5166
        %v5169 = vunpack.c.l.s4 1983009808
        %v5170 = vunpack.c.0.s8 %v5169
        %v5171 = vlaneseq
        %v5172 = vshrl.u32 %v5171, 7
        %v5173 = vsub.s32 %v5170, %v5172
        %v5174 = vrot.slane %v5160, %v5173
        %v5175 = vcombine.low %v5066, %v5094
        %v5176 = vcombine.high %v5066, %v5094
        %v5178 = vunpack.c.l.s4 1983009808
        %v5179 = vunpack.c.0.s8 %v5178
        %v5180 = vlaneseq
        %v5181 = vshrl.u32 %v5180, 7
        %v5182 = vsub.s32 %v5179, %v5181
        %v5183 = vrot.slane %v5175, %v5182
        %v5185 = vunpack.c.l.s4 1983009808
        %v5186 = vunpack.c.0.s8 %v5185
        %v5187 = vlaneseq
        %v5188 = vshrl.u32 %v5187, 7
        %v5189 = vsub.s32 %v5186, %v5188
        %v5190 = vrot.slane %v5176, %v5189
        %v5191 = vcombine.low %v5108, %v5136
        %v5192 = vcombine.high %v5108, %v5136
        %v5194 = vunpack.c.l.s4 1983009808
        %v5195 = vunpack.c.0.s8 %v5194
        %v5196 = vlaneseq
        %v5197 = vshrl.u32 %v5196, 7
        %v5198 = vsub.s32 %v5195, %v5197
        %v5199 = vrot.slane %v5191, %v5198
        %v5201 = vunpack.c.l.s4 1983009808
        %v5202 = vunpack.c.0.s8 %v5201
        %v5203 = vlaneseq
        %v5204 = vshrl.u32 %v5203, 7
        %v5205 = vsub.s32 %v5202, %v5204
        %v5206 = vrot.slane %v5192, %v5205
        %v5207 = vcombine.low %v5122, %v5150
        %v5208 = vcombine.high %v5122, %v5150
        %v5210 = vunpack.c.l.s4 1983009808
        %v5211 = vunpack.c.0.s8 %v5210
        %v5212 = vlaneseq
        %v5213 = vshrl.u32 %v5212, 7
        %v5214 = vsub.s32 %v5211, %v5213
        %v5215 = vrot.slane %v5207, %v5214
        %v5217 = vunpack.c.l.s4 1983009808
        %v5218 = vunpack.c.0.s8 %v5217
        %v5219 = vlaneseq
        %v5220 = vshrl.u32 %v5219, 7
        %v5221 = vsub.s32 %v5218, %v5220
        %v5222 = vrot.slane %v5208, %v5221
        %v5223 = vcombine.low %v5167, %v5183
        %v5224 = vcombine.high %v5167, %v5183
        %v5226 = vunpack.c.l.s4 1934713408
        %v5227 = vunpack.c.0.s8 %v5226
        %v5228 = vlaneseq
        %v5229 = vshrl.u32 %v5228, 7
        %v5230 = vsub.s32 %v5227, %v5229
        %v5231 = vrot.slane %v5223, %v5230
        %v5233 = vunpack.c.l.s4 1934713408
        %v5234 = vunpack.c.0.s8 %v5233
        %v5235 = vlaneseq
        %v5236 = vshrl.u32 %v5235, 7
        %v5237 = vsub.s32 %v5234, %v5236
        %v5238 = vrot.slane %v5224, %v5237
        %v5239 = vcombine.low %v5174, %v5190
        %v5240 = vcombine.high %v5174, %v5190
        %v5242 = vunpack.c.l.s4 1934713408
        %v5243 = vunpack.c.0.s8 %v5242
        %v5244 = vlaneseq
        %v5245 = vshrl.u32 %v5244, 7
        %v5246 = vsub.s32 %v5243, %v5245
        %v5247 = vrot.slane %v5239, %v5246
        %v5249 = vunpack.c.l.s4 1934713408
        %v5250 = vunpack.c.0.s8 %v5249
        %v5251 = vlaneseq
        %v5252 = vshrl.u32 %v5251, 7
        %v5253 = vsub.s32 %v5250, %v5252
        %v5254 = vrot.slane %v5240, %v5253
        %v5255 = vcombine.low %v5199, %v5215
        %v5256 = vcombine.high %v5199, %v5215
        %v5258 = vunpack.c.l.s4 1934713408
        %v5259 = vunpack.c.0.s8 %v5258
        %v5260 = vlaneseq
        %v5261 = vshrl.u32 %v5260, 7
        %v5262 = vsub.s32 %v5259, %v5261
        %v5263 = vrot.slane %v5255, %v5262
        %v5265 = vunpack.c.l.s4 1934713408
        %v5266 = vunpack.c.0.s8 %v5265
        %v5267 = vlaneseq
        %v5268 = vshrl.u32 %v5267, 7
        %v5269 = vsub.s32 %v5266, %v5268
        %v5270 = vrot.slane %v5256, %v5269
        %v5271 = vcombine.low %v5206, %v5222
        %v5272 = vcombine.high %v5206, %v5222
        %v5274 = vunpack.c.l.s4 1934713408
        %v5275 = vunpack.c.0.s8 %v5274
        %v5276 = vlaneseq
        %v5277 = vshrl.u32 %v5276, 7
        %v5278 = vsub.s32 %v5275, %v5277
        %v5279 = vrot.slane %v5271, %v5278
        %v5281 = vunpack.c.l.s4 1934713408
        %v5282 = vunpack.c.0.s8 %v5281
        %v5283 = vlaneseq
        %v5284 = vshrl.u32 %v5283, 7
        %v5285 = vsub.s32 %v5282, %v5284
        %v5286 = vrot.slane %v5272, %v5285
        %v5287 = vcombine.low %v5231, %v5263
        %v5288 = vcombine.high %v5231, %v5263
        %v5289 = vcombine.low %v5238, %v5270
        %v5290 = vcombine.high %v5238, %v5270
        %v5291 = vcombine.low %v5247, %v5279
        %v5292 = vcombine.high %v5247, %v5279
        %v5293 = vcombine.low %v5254, %v5286
        %v5294 = vcombine.high %v5254, %v5286
        %v5295 = vsel %vm2323, %v5287, 0.0
        %5296 = vadd.xlane.f32.xlu0 %v5295
        %v5297 = vpop.xlane.xlu0 %5296
        %v5298 = vsel %vm2323, %v5288, 0.0
        %5299 = vadd.xlane.f32.xlu0 %v5298
        %v5300 = vpop.xlane.xlu0 %5299
        %v5301 = vsel %vm2323, %v5289, 0.0
        %5302 = vadd.xlane.f32.xlu0 %v5301
        %v5303 = vpop.xlane.xlu0 %5302
        %v5304 = vsel %vm2323, %v5290, 0.0
        %5305 = vadd.xlane.f32.xlu0 %v5304
        %v5306 = vpop.xlane.xlu0 %5305
        %v5307 = vsel %vm2323, %v5291, 0.0
        %5308 = vadd.xlane.f32.xlu0 %v5307
        %v5309 = vpop.xlane.xlu0 %5308
        %v5310 = vsel %vm2323, %v5292, 0.0
        %5311 = vadd.xlane.f32.xlu0 %v5310
        %v5312 = vpop.xlane.xlu0 %5311
        %v5313 = vsel %vm2323, %v5293, 0.0
        %5314 = vadd.xlane.f32.xlu0 %v5313
        %v5315 = vpop.xlane.xlu0 %5314
        %v5316 = vsel %vm2323, %v5294, 0.0
        %5317 = vadd.xlane.f32.xlu0 %v5316
        %v5318 = vpop.xlane.xlu0 %5317
        %v5319 = vrcp.pop 2048.0
        %v5320 = vmul.f32 %v4897, %v5319
        %v5321 = vmul.f32 %v4900, %v5319
        %v5322 = vmul.f32 %v4903, %v5319
        %v5323 = vmul.f32 %v4906, %v5319
        %v5324 = vmul.f32 %v4909, %v5319
        %v5325 = vmul.f32 %v4912, %v5319
        %v5326 = vmul.f32 %v4915, %v5319
        %v5327 = vmul.f32 %v4918, %v5319
        %v5328 = vmul.f32 %v5297, %v5319
        %v5329 = vmul.f32 %v5300, %v5319
        %v5330 = vmul.f32 %v5303, %v5319
        %v5331 = vmul.f32 %v5306, %v5319
        %v5332 = vmul.f32 %v5309, %v5319
        %v5333 = vmul.f32 %v5312, %v5319
        %v5334 = vmul.f32 %v5315, %v5319
        %v5335 = vmul.f32 %v5318, %v5319
        %v5336 = vmul.f32 %v5320, %v5320
        %v5337 = vmul.f32 %v5321, %v5321
        %v5338 = vmul.f32 %v5322, %v5322
        %v5339 = vmul.f32 %v5323, %v5323
        %v5340 = vmul.f32 %v5324, %v5324
        %v5341 = vmul.f32 %v5325, %v5325
        %v5342 = vmul.f32 %v5326, %v5326
        %v5343 = vmul.f32 %v5327, %v5327
        %v5344 = vsub.f32 %v5328, %v5336
        %v5345 = vsub.f32 %v5329, %v5337
        %v5346 = vsub.f32 %v5330, %v5338
        %v5347 = vsub.f32 %v5331, %v5339
        %v5348 = vsub.f32 %v5332, %v5340
        %v5349 = vsub.f32 %v5333, %v5341
        %v5350 = vsub.f32 %v5334, %v5342
        %v5351 = vsub.f32 %v5335, %v5343
        %v5352 = vmax.f32 %v5344, 0.0
        %v5353 = vmax.f32 %v5345, 0.0
        %v5354 = vmax.f32 %v5346, 0.0
        %v5355 = vmax.f32 %v5347, 0.0
        %v5356 = vmax.f32 %v5348, 0.0
        %v5357 = vmax.f32 %v5349, 0.0
        %v5358 = vmax.f32 %v5350, 0.0
        %v5359 = vmax.f32 %v5351, 0.0
        %v5360 = vadd.f32 %v5352, 1e-05
        %v5361 = vadd.f32 %v5353, 1e-05
        %v5362 = vadd.f32 %v5354, 1e-05
        %v5363 = vadd.f32 %v5355, 1e-05
        %v5364 = vadd.f32 %v5356, 1e-05
        %v5365 = vadd.f32 %v5357, 1e-05
        %v5366 = vadd.f32 %v5358, 1e-05
        %v5367 = vadd.f32 %v5359, 1e-05
        %v5368 = vrsqrt.pop %v5360
        %v5369 = vrsqrt.pop %v5361
        %v5370 = vrsqrt.pop %v5362
        %v5371 = vrsqrt.pop %v5363
        %v5372 = vrsqrt.pop %v5364
        %v5373 = vrsqrt.pop %v5365
        %v5374 = vrsqrt.pop %v5366
        %v5375 = vrsqrt.pop %v5367
        %v5376 = vcombine.low %v5320, %v5322
        %v5377 = vcombine.high %v5320, %v5322
        %v5379 = vunpack.c.l.s4 1983009808
        %v5380 = vunpack.c.0.s8 %v5379
        %v5381 = vlaneseq
        %v5382 = vshrl.u32 %v5381, 7
        %v5383 = vsub.s32 %v5380, %v5382
        %v5384 = vrot.slane %v5376, %v5383
        %v5386 = vunpack.c.l.s4 1983009808
        %v5387 = vunpack.c.0.s8 %v5386
        %v5388 = vlaneseq
        %v5389 = vshrl.u32 %v5388, 7
        %v5390 = vsub.s32 %v5387, %v5389
        %v5391 = vrot.slane %v5377, %v5390
        %v5392 = vcombine.low %v5321, %v5323
        %v5393 = vcombine.high %v5321, %v5323
        %v5395 = vunpack.c.l.s4 1983009808
        %v5396 = vunpack.c.0.s8 %v5395
        %v5397 = vlaneseq
        %v5398 = vshrl.u32 %v5397, 7
        %v5399 = vsub.s32 %v5396, %v5398
        %v5400 = vrot.slane %v5392, %v5399
        %v5402 = vunpack.c.l.s4 1983009808
        %v5403 = vunpack.c.0.s8 %v5402
        %v5404 = vlaneseq
        %v5405 = vshrl.u32 %v5404, 7
        %v5406 = vsub.s32 %v5403, %v5405
        %v5407 = vrot.slane %v5393, %v5406
        %v5408 = vcombine.low %v5324, %v5326
        %v5409 = vcombine.high %v5324, %v5326
        %v5411 = vunpack.c.l.s4 1983009808
        %v5412 = vunpack.c.0.s8 %v5411
        %v5413 = vlaneseq
        %v5414 = vshrl.u32 %v5413, 7
        %v5415 = vsub.s32 %v5412, %v5414
        %v5416 = vrot.slane %v5408, %v5415
        %v5418 = vunpack.c.l.s4 1983009808
        %v5419 = vunpack.c.0.s8 %v5418
        %v5420 = vlaneseq
        %v5421 = vshrl.u32 %v5420, 7
        %v5422 = vsub.s32 %v5419, %v5421
        %v5423 = vrot.slane %v5409, %v5422
        %v5424 = vcombine.low %v5325, %v5327
        %v5425 = vcombine.high %v5325, %v5327
        %v5427 = vunpack.c.l.s4 1983009808
        %v5428 = vunpack.c.0.s8 %v5427
        %v5429 = vlaneseq
        %v5430 = vshrl.u32 %v5429, 7
        %v5431 = vsub.s32 %v5428, %v5430
        %v5432 = vrot.slane %v5424, %v5431
        %v5434 = vunpack.c.l.s4 1983009808
        %v5435 = vunpack.c.0.s8 %v5434
        %v5436 = vlaneseq
        %v5437 = vshrl.u32 %v5436, 7
        %v5438 = vsub.s32 %v5435, %v5437
        %v5439 = vrot.slane %v5425, %v5438
        %v5440 = vcombine.low %v5384, %v5400
        %v5441 = vcombine.high %v5384, %v5400
        %v5443 = vunpack.c.l.s4 1934713408
        %v5444 = vunpack.c.0.s8 %v5443
        %v5445 = vlaneseq
        %v5446 = vshrl.u32 %v5445, 7
        %v5447 = vsub.s32 %v5444, %v5446
        %v5448 = vrot.slane %v5440, %v5447
        %v5450 = vunpack.c.l.s4 1934713408
        %v5451 = vunpack.c.0.s8 %v5450
        %v5452 = vlaneseq
        %v5453 = vshrl.u32 %v5452, 7
        %v5454 = vsub.s32 %v5451, %v5453
        %v5455 = vrot.slane %v5441, %v5454
        %v5456 = vcombine.low %v5391, %v5407
        %v5457 = vcombine.high %v5391, %v5407
        %v5459 = vunpack.c.l.s4 1934713408
        %v5460 = vunpack.c.0.s8 %v5459
        %v5461 = vlaneseq
        %v5462 = vshrl.u32 %v5461, 7
        %v5463 = vsub.s32 %v5460, %v5462
        %v5464 = vrot.slane %v5456, %v5463
        %v5466 = vunpack.c.l.s4 1934713408
        %v5467 = vunpack.c.0.s8 %v5466
        %v5468 = vlaneseq
        %v5469 = vshrl.u32 %v5468, 7
        %v5470 = vsub.s32 %v5467, %v5469
        %v5471 = vrot.slane %v5457, %v5470
        %v5472 = vcombine.low %v5416, %v5432
        %v5473 = vcombine.high %v5416, %v5432
        %v5475 = vunpack.c.l.s4 1934713408
        %v5476 = vunpack.c.0.s8 %v5475
        %v5477 = vlaneseq
        %v5478 = vshrl.u32 %v5477, 7
        %v5479 = vsub.s32 %v5476, %v5478
        %v5480 = vrot.slane %v5472, %v5479
        %v5482 = vunpack.c.l.s4 1934713408
        %v5483 = vunpack.c.0.s8 %v5482
        %v5484 = vlaneseq
        %v5485 = vshrl.u32 %v5484, 7
        %v5486 = vsub.s32 %v5483, %v5485
        %v5487 = vrot.slane %v5473, %v5486
        %v5488 = vcombine.low %v5423, %v5439
        %v5489 = vcombine.high %v5423, %v5439
        %v5491 = vunpack.c.l.s4 1934713408
        %v5492 = vunpack.c.0.s8 %v5491
        %v5493 = vlaneseq
        %v5494 = vshrl.u32 %v5493, 7
        %v5495 = vsub.s32 %v5492, %v5494
        %v5496 = vrot.slane %v5488, %v5495
        %v5498 = vunpack.c.l.s4 1934713408
        %v5499 = vunpack.c.0.s8 %v5498
        %v5500 = vlaneseq
        %v5501 = vshrl.u32 %v5500, 7
        %v5502 = vsub.s32 %v5499, %v5501
        %v5503 = vrot.slane %v5489, %v5502
        %v5504 = vcombine.low %v5448, %v5480
        %v5505 = vcombine.high %v5448, %v5480
        %v5506 = vcombine.low %v5455, %v5487
        %v5507 = vcombine.high %v5455, %v5487
        %v5508 = vcombine.low %v5464, %v5496
        %v5509 = vcombine.high %v5464, %v5496
        %v5510 = vcombine.low %v5471, %v5503
        %v5511 = vcombine.high %v5471, %v5503
        %5513 = vrot.lane.b32.xlu0 %v5505, 16
        %v5514 = vpop.permute.xlu0 %5513
        %5517 = vrot.lane.b32.xlu0 %v5506, 32
        %v5518 = vpop.permute.xlu0 %5517
        %5521 = vrot.lane.b32.xlu0 %v5507, 48
        %v5522 = vpop.permute.xlu0 %5521
        %5525 = vrot.lane.b32.xlu0 %v5508, 64
        %v5526 = vpop.permute.xlu0 %5525
        %5529 = vrot.lane.b32.xlu0 %v5509, 80
        %v5530 = vpop.permute.xlu0 %5529
        %5533 = vrot.lane.b32.xlu0 %v5510, 96
        %v5534 = vpop.permute.xlu0 %5533
        %5537 = vrot.lane.b32.xlu0 %v5511, 112
        %v5538 = vpop.permute.xlu0 %5537
        %v5540 = vsel %vm2323, %v5504, %v5514
        %v5541 = vsel %vm2327, %v5540, %v5518
        %v5542 = vsel %vm2331, %v5541, %v5522
        %v5543 = vsel %vm572, %v5542, %v5526
        %vm5544 = vcmask 654336
        %v5545 = vsel %vm5544, %v5543, %v5530
        %vm5546 = vcmask 785408
        %v5547 = vsel %vm5546, %v5545, %v5534
        %vm5548 = vcmask 916480
        %v5549 = vsel %vm5548, %v5547, %v5538
        %v5550 = vcombine.low %v5368, %v5370
        %v5551 = vcombine.high %v5368, %v5370
        %v5553 = vunpack.c.l.s4 1983009808
        %v5554 = vunpack.c.0.s8 %v5553
        %v5555 = vlaneseq
        %v5556 = vshrl.u32 %v5555, 7
        %v5557 = vsub.s32 %v5554, %v5556
        %v5558 = vrot.slane %v5550, %v5557
        %v5560 = vunpack.c.l.s4 1983009808
        %v5561 = vunpack.c.0.s8 %v5560
        %v5562 = vlaneseq
        %v5563 = vshrl.u32 %v5562, 7
        %v5564 = vsub.s32 %v5561, %v5563
        %v5565 = vrot.slane %v5551, %v5564
        %v5566 = vcombine.low %v5369, %v5371
        %v5567 = vcombine.high %v5369, %v5371
        %v5569 = vunpack.c.l.s4 1983009808
        %v5570 = vunpack.c.0.s8 %v5569
        %v5571 = vlaneseq
        %v5572 = vshrl.u32 %v5571, 7
        %v5573 = vsub.s32 %v5570, %v5572
        %v5574 = vrot.slane %v5566, %v5573
        %v5576 = vunpack.c.l.s4 1983009808
        %v5577 = vunpack.c.0.s8 %v5576
        %v5578 = vlaneseq
        %v5579 = vshrl.u32 %v5578, 7
        %v5580 = vsub.s32 %v5577, %v5579
        %v5581 = vrot.slane %v5567, %v5580
        %v5582 = vcombine.low %v5372, %v5374
        %v5583 = vcombine.high %v5372, %v5374
        %v5585 = vunpack.c.l.s4 1983009808
        %v5586 = vunpack.c.0.s8 %v5585
        %v5587 = vlaneseq
        %v5588 = vshrl.u32 %v5587, 7
        %v5589 = vsub.s32 %v5586, %v5588
        %v5590 = vrot.slane %v5582, %v5589
        %v5592 = vunpack.c.l.s4 1983009808
        %v5593 = vunpack.c.0.s8 %v5592
        %v5594 = vlaneseq
        %v5595 = vshrl.u32 %v5594, 7
        %v5596 = vsub.s32 %v5593, %v5595
        %v5597 = vrot.slane %v5583, %v5596
        %v5598 = vcombine.low %v5373, %v5375
        %v5599 = vcombine.high %v5373, %v5375
        %v5601 = vunpack.c.l.s4 1983009808
        %v5602 = vunpack.c.0.s8 %v5601
        %v5603 = vlaneseq
        %v5604 = vshrl.u32 %v5603, 7
        %v5605 = vsub.s32 %v5602, %v5604
        %v5606 = vrot.slane %v5598, %v5605
        %v5608 = vunpack.c.l.s4 1983009808
        %v5609 = vunpack.c.0.s8 %v5608
        %v5610 = vlaneseq
        %v5611 = vshrl.u32 %v5610, 7
        %v5612 = vsub.s32 %v5609, %v5611
        %v5613 = vrot.slane %v5599, %v5612
        %v5614 = vcombine.low %v5558, %v5574
        %v5615 = vcombine.high %v5558, %v5574
        %v5617 = vunpack.c.l.s4 1934713408
        %v5618 = vunpack.c.0.s8 %v5617
        %v5619 = vlaneseq
        %v5620 = vshrl.u32 %v5619, 7
        %v5621 = vsub.s32 %v5618, %v5620
        %v5622 = vrot.slane %v5614, %v5621
        %v5624 = vunpack.c.l.s4 1934713408
        %v5625 = vunpack.c.0.s8 %v5624
        %v5626 = vlaneseq
        %v5627 = vshrl.u32 %v5626, 7
        %v5628 = vsub.s32 %v5625, %v5627
        %v5629 = vrot.slane %v5615, %v5628
        %v5630 = vcombine.low %v5565, %v5581
        %v5631 = vcombine.high %v5565, %v5581
        %v5633 = vunpack.c.l.s4 1934713408
        %v5634 = vunpack.c.0.s8 %v5633
        %v5635 = vlaneseq
        %v5636 = vshrl.u32 %v5635, 7
        %v5637 = vsub.s32 %v5634, %v5636
        %v5638 = vrot.slane %v5630, %v5637
        %v5640 = vunpack.c.l.s4 1934713408
        %v5641 = vunpack.c.0.s8 %v5640
        %v5642 = vlaneseq
        %v5643 = vshrl.u32 %v5642, 7
        %v5644 = vsub.s32 %v5641, %v5643
        %v5645 = vrot.slane %v5631, %v5644
        %v5646 = vcombine.low %v5590, %v5606
        %v5647 = vcombine.high %v5590, %v5606
        %v5649 = vunpack.c.l.s4 1934713408
        %v5650 = vunpack.c.0.s8 %v5649
        %v5651 = vlaneseq
        %v5652 = vshrl.u32 %v5651, 7
        %v5653 = vsub.s32 %v5650, %v5652
        %v5654 = vrot.slane %v5646, %v5653
        %v5656 = vunpack.c.l.s4 1934713408
        %v5657 = vunpack.c.0.s8 %v5656
        %v5658 = vlaneseq
        %v5659 = vshrl.u32 %v5658, 7
        %v5660 = vsub.s32 %v5657, %v5659
        %v5661 = vrot.slane %v5647, %v5660
        %v5662 = vcombine.low %v5597, %v5613
        %v5663 = vcombine.high %v5597, %v5613
        %v5665 = vunpack.c.l.s4 1934713408
        %v5666 = vunpack.c.0.s8 %v5665
        %v5667 = vlaneseq
        %v5668 = vshrl.u32 %v5667, 7
        %v5669 = vsub.s32 %v5666, %v5668
        %v5670 = vrot.slane %v5662, %v5669
        %v5672 = vunpack.c.l.s4 1934713408
        %v5673 = vunpack.c.0.s8 %v5672
        %v5674 = vlaneseq
        %v5675 = vshrl.u32 %v5674, 7
        %v5676 = vsub.s32 %v5673, %v5675
        %v5677 = vrot.slane %v5663, %v5676
        %v5678 = vcombine.low %v5622, %v5654
        %v5679 = vcombine.high %v5622, %v5654
        %v5680 = vcombine.low %v5629, %v5661
        %v5681 = vcombine.high %v5629, %v5661
        %v5682 = vcombine.low %v5638, %v5670
        %v5683 = vcombine.high %v5638, %v5670
        %v5684 = vcombine.low %v5645, %v5677
        %v5685 = vcombine.high %v5645, %v5677
        %5687 = vrot.lane.b32.xlu0 %v5679, 16
        %v5688 = vpop.permute.xlu0 %5687
        %5691 = vrot.lane.b32.xlu0 %v5680, 32
        %v5692 = vpop.permute.xlu0 %5691
        %5695 = vrot.lane.b32.xlu0 %v5681, 48
        %v5696 = vpop.permute.xlu0 %5695
        %5699 = vrot.lane.b32.xlu0 %v5682, 64
        %v5700 = vpop.permute.xlu0 %5699
        %5703 = vrot.lane.b32.xlu0 %v5683, 80
        %v5704 = vpop.permute.xlu0 %5703
        %5707 = vrot.lane.b32.xlu0 %v5684, 96
        %v5708 = vpop.permute.xlu0 %5707
        %5711 = vrot.lane.b32.xlu0 %v5685, 112
        %v5712 = vpop.permute.xlu0 %5711
        %v5714 = vsel %vm2323, %v5678, %v5688
        %v5715 = vsel %vm2327, %v5714, %v5692
        %v5716 = vsel %vm2331, %v5715, %v5696
        %v5717 = vsel %vm572, %v5716, %v5700
        %v5718 = vsel %vm5544, %v5717, %v5704
        %v5719 = vsel %vm5546, %v5718, %v5708
        %v5720 = vsel %vm5548, %v5719, %v5712
        %v5722 = vlaneseq
        %v5723 = vshrl.u32 %v5722, 7
        %v5724 = vsub.s32 0, %v5723
        %v5725 = vrot.slane %v4053, %v5724
        %v5727 = vmul.f32 %v5720, %v5725
        %v5728 = vmul.f32 %v5549, %v5727
        %v5730 = vlaneseq
        %v5731 = vshrl.u32 %v5730, 7
        %v5732 = vsub.s32 0, %v5731
        %v5733 = vrot.slane %v4054, %v5732
        %v5735 = vsub.f32 %v5733, %v5728
        %v5737 = vcombine.high %v5727, %v5727
        %v5739 = vunpack.c.l.s4 1966171168
        %v5740 = vunpack.c.0.s8 %v5739
        %v5741 = vlaneseq
        %v5742 = vshrl.u32 %v5741, 7
        %v5743 = vsub.s32 %v5740, %v5742
        %v5744 = vrot.slane %v5727, %v5743
        %v5746 = vunpack.c.l.s4 1966171168
        %v5747 = vunpack.c.0.s8 %v5746
        %v5748 = vlaneseq
        %v5749 = vshrl.u32 %v5748, 7
        %v5750 = vsub.s32 %v5747, %v5749
        %v5751 = vrot.slane %v5737, %v5750
        %v5752 = vcombine.high %v5744, %v5744
        %v5753 = vcombine.high %v5751, %v5751
        %v5755 = vunpack.c.l.s4 1966171168
        %v5756 = vunpack.c.0.s8 %v5755
        %v5757 = vlaneseq
        %v5758 = vshrl.u32 %v5757, 7
        %v5759 = vsub.s32 %v5756, %v5758
        %v5760 = vrot.slane %v5744, %v5759
        %v5762 = vunpack.c.l.s4 1966171168
        %v5763 = vunpack.c.0.s8 %v5762
        %v5764 = vlaneseq
        %v5765 = vshrl.u32 %v5764, 7
        %v5766 = vsub.s32 %v5763, %v5765
        %v5767 = vrot.slane %v5751, %v5766
        %v5769 = vunpack.c.l.s4 1966171168
        %v5770 = vunpack.c.0.s8 %v5769
        %v5771 = vlaneseq
        %v5772 = vshrl.u32 %v5771, 7
        %v5773 = vsub.s32 %v5770, %v5772
        %v5774 = vrot.slane %v5752, %v5773
        %v5776 = vunpack.c.l.s4 1966171168
        %v5777 = vunpack.c.0.s8 %v5776
        %v5778 = vlaneseq
        %v5779 = vshrl.u32 %v5778, 7
        %v5780 = vsub.s32 %v5777, %v5779
        %v5781 = vrot.slane %v5753, %v5780
        %v5782 = vcombine.high %v5760, %v5760
        %v5783 = vcombine.high %v5767, %v5767
        %v5784 = vcombine.high %v5774, %v5774
        %v5785 = vcombine.high %v5781, %v5781
        %v5786 = vlaneseq
        %v5787 = vshrl.u32 %v5786, 7
        %v5788 = vsub.s32 0, %v5787
        %v5789 = vrot.slane %v5760, %v5788
        %v5790 = vlaneseq
        %v5791 = vshrl.u32 %v5790, 7
        %v5792 = vsub.s32 0, %v5791
        %v5793 = vrot.slane %v5774, %v5792
        %v5794 = vlaneseq
        %v5795 = vshrl.u32 %v5794, 7
        %v5796 = vsub.s32 0, %v5795
        %v5797 = vrot.slane %v5782, %v5796
        %v5798 = vlaneseq
        %v5799 = vshrl.u32 %v5798, 7
        %v5800 = vsub.s32 0, %v5799
        %v5801 = vrot.slane %v5784, %v5800
        %v5802 = vlaneseq
        %v5803 = vshrl.u32 %v5802, 7
        %v5804 = vsub.s32 0, %v5803
        %v5805 = vrot.slane %v5767, %v5804
        %v5806 = vlaneseq
        %v5807 = vshrl.u32 %v5806, 7
        %v5808 = vsub.s32 0, %v5807
        %v5809 = vrot.slane %v5781, %v5808
        %v5810 = vlaneseq
        %v5811 = vshrl.u32 %v5810, 7
        %v5812 = vsub.s32 0, %v5811
        %v5813 = vrot.slane %v5783, %v5812
        %v5814 = vlaneseq
        %v5815 = vshrl.u32 %v5814, 7
        %v5816 = vsub.s32 0, %v5815
        %v5817 = vrot.slane %v5785, %v5816
        %v5826 = vmul.f32 %v3543, %v5789
        %v5827 = vmul.f32 %v3546, %v5789
        %v5828 = vmul.f32 %v3551, %v5789
        %v5829 = vmul.f32 %v3554, %v5789
        %v5830 = vmul.f32 %v3559, %v5789
        %v5831 = vmul.f32 %v3562, %v5789
        %v5832 = vmul.f32 %v3567, %v5789
        %v5833 = vmul.f32 %v3570, %v5789
        %v5834 = vmul.f32 %v3575, %v5789
        %v5835 = vmul.f32 %v3578, %v5789
        %v5836 = vmul.f32 %v3583, %v5789
        %v5837 = vmul.f32 %v3586, %v5789
        %v5838 = vmul.f32 %v3591, %v5789
        %v5839 = vmul.f32 %v3594, %v5789
        %v5840 = vmul.f32 %v3599, %v5789
        %v5841 = vmul.f32 %v3602, %v5789
        %v5842 = vmul.f32 %v3607, %v5793
        %v5843 = vmul.f32 %v3610, %v5793
        %v5844 = vmul.f32 %v3615, %v5793
        %v5845 = vmul.f32 %v3618, %v5793
        %v5846 = vmul.f32 %v3623, %v5793
        %v5847 = vmul.f32 %v3626, %v5793
        %v5848 = vmul.f32 %v3631, %v5793
        %v5849 = vmul.f32 %v3634, %v5793
        %v5850 = vmul.f32 %v3639, %v5793
        %v5851 = vmul.f32 %v3642, %v5793
        %v5852 = vmul.f32 %v3647, %v5793
        %v5853 = vmul.f32 %v3650, %v5793
        %v5854 = vmul.f32 %v3655, %v5793
        %v5855 = vmul.f32 %v3658, %v5793
        %v5856 = vmul.f32 %v3663, %v5793
        %v5857 = vmul.f32 %v3666, %v5793
        %v5858 = vmul.f32 %v3671, %v5797
        %v5859 = vmul.f32 %v3674, %v5797
        %v5860 = vmul.f32 %v3679, %v5797
        %v5861 = vmul.f32 %v3682, %v5797
        %v5862 = vmul.f32 %v3687, %v5797
        %v5863 = vmul.f32 %v3690, %v5797
        %v5864 = vmul.f32 %v3695, %v5797
        %v5865 = vmul.f32 %v3698, %v5797
        %v5866 = vmul.f32 %v3703, %v5797
        %v5867 = vmul.f32 %v3706, %v5797
        %v5868 = vmul.f32 %v3711, %v5797
        %v5869 = vmul.f32 %v3714, %v5797
        %v5870 = vmul.f32 %v3719, %v5797
        %v5871 = vmul.f32 %v3722, %v5797
        %v5872 = vmul.f32 %v3727, %v5797
        %v5873 = vmul.f32 %v3730, %v5797
        %v5874 = vmul.f32 %v3735, %v5801
        %v5875 = vmul.f32 %v3738, %v5801
        %v5876 = vmul.f32 %v3743, %v5801
        %v5877 = vmul.f32 %v3746, %v5801
        %v5878 = vmul.f32 %v3751, %v5801
        %v5879 = vmul.f32 %v3754, %v5801
        %v5880 = vmul.f32 %v3759, %v5801
        %v5881 = vmul.f32 %v3762, %v5801
        %v5882 = vmul.f32 %v3767, %v5801
        %v5883 = vmul.f32 %v3770, %v5801
        %v5884 = vmul.f32 %v3775, %v5801
        %v5885 = vmul.f32 %v3778, %v5801
        %v5886 = vmul.f32 %v3783, %v5801
        %v5887 = vmul.f32 %v3786, %v5801
        %v5888 = vmul.f32 %v3791, %v5801
        %v5889 = vmul.f32 %v3794, %v5801
        %v5890 = vmul.f32 %v3799, %v5805
        %v5891 = vmul.f32 %v3802, %v5805
        %v5892 = vmul.f32 %v3807, %v5805
        %v5893 = vmul.f32 %v3810, %v5805
        %v5894 = vmul.f32 %v3815, %v5805
        %v5895 = vmul.f32 %v3818, %v5805
        %v5896 = vmul.f32 %v3823, %v5805
        %v5897 = vmul.f32 %v3826, %v5805
        %v5898 = vmul.f32 %v3831, %v5805
        %v5899 = vmul.f32 %v3834, %v5805
        %v5900 = vmul.f32 %v3839, %v5805
        %v5901 = vmul.f32 %v3842, %v5805
        %v5902 = vmul.f32 %v3847, %v5805
        %v5903 = vmul.f32 %v3850, %v5805
        %v5904 = vmul.f32 %v3855, %v5805
        %v5905 = vmul.f32 %v3858, %v5805
        %v5906 = vmul.f32 %v3863, %v5809
        %v5907 = vmul.f32 %v3866, %v5809
        %v5908 = vmul.f32 %v3871, %v5809
        %v5909 = vmul.f32 %v3874, %v5809
        %v5910 = vmul.f32 %v3879, %v5809
        %v5911 = vmul.f32 %v3882, %v5809
        %v5912 = vmul.f32 %v3887, %v5809
        %v5913 = vmul.f32 %v3890, %v5809
        %v5914 = vmul.f32 %v3895, %v5809
        %v5915 = vmul.f32 %v3898, %v5809
        %v5916 = vmul.f32 %v3903, %v5809
        %v5917 = vmul.f32 %v3906, %v5809
        %v5918 = vmul.f32 %v3911, %v5809
        %v5919 = vmul.f32 %v3914, %v5809
        %v5920 = vmul.f32 %v3919, %v5809
        %v5921 = vmul.f32 %v3922, %v5809
        %v5922 = vmul.f32 %v3927, %v5813
        %v5923 = vmul.f32 %v3930, %v5813
        %v5924 = vmul.f32 %v3935, %v5813
        %v5925 = vmul.f32 %v3938, %v5813
        %v5926 = vmul.f32 %v3943, %v5813
        %v5927 = vmul.f32 %v3946, %v5813
        %v5928 = vmul.f32 %v3951, %v5813
        %v5929 = vmul.f32 %v3954, %v5813
        %v5930 = vmul.f32 %v3959, %v5813
        %v5931 = vmul.f32 %v3962, %v5813
        %v5932 = vmul.f32 %v3967, %v5813
        %v5933 = vmul.f32 %v3970, %v5813
        %v5934 = vmul.f32 %v3975, %v5813
        %v5935 = vmul.f32 %v3978, %v5813
        %v5936 = vmul.f32 %v3983, %v5813
        %v5937 = vmul.f32 %v3986, %v5813
        %v5938 = vmul.f32 %v3991, %v5817
        %v5939 = vmul.f32 %v3994, %v5817
        %v5940 = vmul.f32 %v3999, %v5817
        %v5941 = vmul.f32 %v4002, %v5817
        %v5942 = vmul.f32 %v4007, %v5817
        %v5943 = vmul.f32 %v4010, %v5817
        %v5944 = vmul.f32 %v4015, %v5817
        %v5945 = vmul.f32 %v4018, %v5817
        %v5946 = vmul.f32 %v4023, %v5817
        %v5947 = vmul.f32 %v4026, %v5817
        %v5948 = vmul.f32 %v4031, %v5817
        %v5949 = vmul.f32 %v4034, %v5817
        %v5950 = vmul.f32 %v4039, %v5817
        %v5951 = vmul.f32 %v4042, %v5817
        %v5952 = vmul.f32 %v4047, %v5817
        %v5953 = vmul.f32 %v4050, %v5817
        %v5955 = vcombine.high %v5735, %v5735
        %v5957 = vunpack.c.l.s4 1966171168
        %v5958 = vunpack.c.0.s8 %v5957
        %v5959 = vlaneseq
        %v5960 = vshrl.u32 %v5959, 7
        %v5961 = vsub.s32 %v5958, %v5960
        %v5962 = vrot.slane %v5735, %v5961
        %v5964 = vunpack.c.l.s4 1966171168
        %v5965 = vunpack.c.0.s8 %v5964
        %v5966 = vlaneseq
        %v5967 = vshrl.u32 %v5966, 7
        %v5968 = vsub.s32 %v5965, %v5967
        %v5969 = vrot.slane %v5955, %v5968
        %v5970 = vcombine.high %v5962, %v5962
        %v5971 = vcombine.high %v5969, %v5969
        %v5973 = vunpack.c.l.s4 1966171168
        %v5974 = vunpack.c.0.s8 %v5973
        %v5975 = vlaneseq
        %v5976 = vshrl.u32 %v5975, 7
        %v5977 = vsub.s32 %v5974, %v5976
        %v5978 = vrot.slane %v5962, %v5977
        %v5980 = vunpack.c.l.s4 1966171168
        %v5981 = vunpack.c.0.s8 %v5980
        %v5982 = vlaneseq
        %v5983 = vshrl.u32 %v5982, 7
        %v5984 = vsub.s32 %v5981, %v5983
        %v5985 = vrot.slane %v5969, %v5984
        %v5987 = vunpack.c.l.s4 1966171168
        %v5988 = vunpack.c.0.s8 %v5987
        %v5989 = vlaneseq
        %v5990 = vshrl.u32 %v5989, 7
        %v5991 = vsub.s32 %v5988, %v5990
        %v5992 = vrot.slane %v5970, %v5991
        %v5994 = vunpack.c.l.s4 1966171168
        %v5995 = vunpack.c.0.s8 %v5994
        %v5996 = vlaneseq
        %v5997 = vshrl.u32 %v5996, 7
        %v5998 = vsub.s32 %v5995, %v5997
        %v5999 = vrot.slane %v5971, %v5998
        %v6000 = vcombine.high %v5978, %v5978
        %v6001 = vcombine.high %v5985, %v5985
        %v6002 = vcombine.high %v5992, %v5992
        %v6003 = vcombine.high %v5999, %v5999
        %v6004 = vlaneseq
        %v6005 = vshrl.u32 %v6004, 7
        %v6006 = vsub.s32 0, %v6005
        %v6007 = vrot.slane %v5978, %v6006
        %v6008 = vlaneseq
        %v6009 = vshrl.u32 %v6008, 7
        %v6010 = vsub.s32 0, %v6009
        %v6011 = vrot.slane %v5992, %v6010
        %v6012 = vlaneseq
        %v6013 = vshrl.u32 %v6012, 7
        %v6014 = vsub.s32 0, %v6013
        %v6015 = vrot.slane %v6000, %v6014
        %v6016 = vlaneseq
        %v6017 = vshrl.u32 %v6016, 7
        %v6018 = vsub.s32 0, %v6017
        %v6019 = vrot.slane %v6002, %v6018
        %v6020 = vlaneseq
        %v6021 = vshrl.u32 %v6020, 7
        %v6022 = vsub.s32 0, %v6021
        %v6023 = vrot.slane %v5985, %v6022
        %v6024 = vlaneseq
        %v6025 = vshrl.u32 %v6024, 7
        %v6026 = vsub.s32 0, %v6025
        %v6027 = vrot.slane %v5999, %v6026
        %v6028 = vlaneseq
        %v6029 = vshrl.u32 %v6028, 7
        %v6030 = vsub.s32 0, %v6029
        %v6031 = vrot.slane %v6001, %v6030
        %v6032 = vlaneseq
        %v6033 = vshrl.u32 %v6032, 7
        %v6034 = vsub.s32 0, %v6033
        %v6035 = vrot.slane %v6003, %v6034
        %v6044 = vadd.f32 %v5826, %v6007
        %v6045 = vadd.f32 %v5827, %v6007
        %v6046 = vadd.f32 %v5828, %v6007
        %v6047 = vadd.f32 %v5829, %v6007
        %v6048 = vadd.f32 %v5830, %v6007
        %v6049 = vadd.f32 %v5831, %v6007
        %v6050 = vadd.f32 %v5832, %v6007
        %v6051 = vadd.f32 %v5833, %v6007
        %v6052 = vadd.f32 %v5834, %v6007
        %v6053 = vadd.f32 %v5835, %v6007
        %v6054 = vadd.f32 %v5836, %v6007
        %v6055 = vadd.f32 %v5837, %v6007
        %v6056 = vadd.f32 %v5838, %v6007
        %v6057 = vadd.f32 %v5839, %v6007
        %v6058 = vadd.f32 %v5840, %v6007
        %v6059 = vadd.f32 %v5841, %v6007
        %v6060 = vadd.f32 %v5842, %v6011
        %v6061 = vadd.f32 %v5843, %v6011
        %v6062 = vadd.f32 %v5844, %v6011
        %v6063 = vadd.f32 %v5845, %v6011
        %v6064 = vadd.f32 %v5846, %v6011
        %v6065 = vadd.f32 %v5847, %v6011
        %v6066 = vadd.f32 %v5848, %v6011
        %v6067 = vadd.f32 %v5849, %v6011
        %v6068 = vadd.f32 %v5850, %v6011
        %v6069 = vadd.f32 %v5851, %v6011
        %v6070 = vadd.f32 %v5852, %v6011
        %v6071 = vadd.f32 %v5853, %v6011
        %v6072 = vadd.f32 %v5854, %v6011
        %v6073 = vadd.f32 %v5855, %v6011
        %v6074 = vadd.f32 %v5856, %v6011
        %v6075 = vadd.f32 %v5857, %v6011
        %v6076 = vadd.f32 %v5858, %v6015
        %v6077 = vadd.f32 %v5859, %v6015
        %v6078 = vadd.f32 %v5860, %v6015
        %v6079 = vadd.f32 %v5861, %v6015
        %v6080 = vadd.f32 %v5862, %v6015
        %v6081 = vadd.f32 %v5863, %v6015
        %v6082 = vadd.f32 %v5864, %v6015
        %v6083 = vadd.f32 %v5865, %v6015
        %v6084 = vadd.f32 %v5866, %v6015
        %v6085 = vadd.f32 %v5867, %v6015
        %v6086 = vadd.f32 %v5868, %v6015
        %v6087 = vadd.f32 %v5869, %v6015
        %v6088 = vadd.f32 %v5870, %v6015
        %v6089 = vadd.f32 %v5871, %v6015
        %v6090 = vadd.f32 %v5872, %v6015
        %v6091 = vadd.f32 %v5873, %v6015
        %v6092 = vadd.f32 %v5874, %v6019
        %v6093 = vadd.f32 %v5875, %v6019
        %v6094 = vadd.f32 %v5876, %v6019
        %v6095 = vadd.f32 %v5877, %v6019
        %v6096 = vadd.f32 %v5878, %v6019
        %v6097 = vadd.f32 %v5879, %v6019
        %v6098 = vadd.f32 %v5880, %v6019
        %v6099 = vadd.f32 %v5881, %v6019
        %v6100 = vadd.f32 %v5882, %v6019
        %v6101 = vadd.f32 %v5883, %v6019
        %v6102 = vadd.f32 %v5884, %v6019
        %v6103 = vadd.f32 %v5885, %v6019
        %v6104 = vadd.f32 %v5886, %v6019
        %v6105 = vadd.f32 %v5887, %v6019
        %v6106 = vadd.f32 %v5888, %v6019
        %v6107 = vadd.f32 %v5889, %v6019
        %v6108 = vadd.f32 %v5890, %v6023
        %v6109 = vadd.f32 %v5891, %v6023
        %v6110 = vadd.f32 %v5892, %v6023
        %v6111 = vadd.f32 %v5893, %v6023
        %v6112 = vadd.f32 %v5894, %v6023
        %v6113 = vadd.f32 %v5895, %v6023
        %v6114 = vadd.f32 %v5896, %v6023
        %v6115 = vadd.f32 %v5897, %v6023
        %v6116 = vadd.f32 %v5898, %v6023
        %v6117 = vadd.f32 %v5899, %v6023
        %v6118 = vadd.f32 %v5900, %v6023
        %v6119 = vadd.f32 %v5901, %v6023
        %v6120 = vadd.f32 %v5902, %v6023
        %v6121 = vadd.f32 %v5903, %v6023
        %v6122 = vadd.f32 %v5904, %v6023
        %v6123 = vadd.f32 %v5905, %v6023
        %v6124 = vadd.f32 %v5906, %v6027
        %v6125 = vadd.f32 %v5907, %v6027
        %v6126 = vadd.f32 %v5908, %v6027
        %v6127 = vadd.f32 %v5909, %v6027
        %v6128 = vadd.f32 %v5910, %v6027
        %v6129 = vadd.f32 %v5911, %v6027
        %v6130 = vadd.f32 %v5912, %v6027
        %v6131 = vadd.f32 %v5913, %v6027
        %v6132 = vadd.f32 %v5914, %v6027
        %v6133 = vadd.f32 %v5915, %v6027
        %v6134 = vadd.f32 %v5916, %v6027
        %v6135 = vadd.f32 %v5917, %v6027
        %v6136 = vadd.f32 %v5918, %v6027
        %v6137 = vadd.f32 %v5919, %v6027
        %v6138 = vadd.f32 %v5920, %v6027
        %v6139 = vadd.f32 %v5921, %v6027
        %v6140 = vadd.f32 %v5922, %v6031
        %v6141 = vadd.f32 %v5923, %v6031
        %v6142 = vadd.f32 %v5924, %v6031
        %v6143 = vadd.f32 %v5925, %v6031
        %v6144 = vadd.f32 %v5926, %v6031
        %v6145 = vadd.f32 %v5927, %v6031
        %v6146 = vadd.f32 %v5928, %v6031
        %v6147 = vadd.f32 %v5929, %v6031
        %v6148 = vadd.f32 %v5930, %v6031
        %v6149 = vadd.f32 %v5931, %v6031
        %v6150 = vadd.f32 %v5932, %v6031
        %v6151 = vadd.f32 %v5933, %v6031
        %v6152 = vadd.f32 %v5934, %v6031
        %v6153 = vadd.f32 %v5935, %v6031
        %v6154 = vadd.f32 %v5936, %v6031
        %v6155 = vadd.f32 %v5937, %v6031
        %v6156 = vadd.f32 %v5938, %v6035
        %v6157 = vadd.f32 %v5939, %v6035
        %v6158 = vadd.f32 %v5940, %v6035
        %v6159 = vadd.f32 %v5941, %v6035
        %v6160 = vadd.f32 %v5942, %v6035
        %v6161 = vadd.f32 %v5943, %v6035
        %v6162 = vadd.f32 %v5944, %v6035
        %v6163 = vadd.f32 %v5945, %v6035
        %v6164 = vadd.f32 %v5946, %v6035
        %v6165 = vadd.f32 %v5947, %v6035
        %v6166 = vadd.f32 %v5948, %v6035
        %v6167 = vadd.f32 %v5949, %v6035
        %v6168 = vadd.f32 %v5950, %v6035
        %v6169 = vadd.f32 %v5951, %v6035
        %v6170 = vadd.f32 %v5952, %v6035
        %v6171 = vadd.f32 %v5953, %v6035
        %v6172 = vmul.f32 %v6044, 0.01
        %v6173 = vmul.f32 %v6045, 0.01
        %v6174 = vmul.f32 %v6046, 0.01
        %v6175 = vmul.f32 %v6047, 0.01
        %v6176 = vmul.f32 %v6048, 0.01
        %v6177 = vmul.f32 %v6049, 0.01
        %v6178 = vmul.f32 %v6050, 0.01
        %v6179 = vmul.f32 %v6051, 0.01
        %v6180 = vmul.f32 %v6052, 0.01
        %v6181 = vmul.f32 %v6053, 0.01
        %v6182 = vmul.f32 %v6054, 0.01
        %v6183 = vmul.f32 %v6055, 0.01
        %v6184 = vmul.f32 %v6056, 0.01
        %v6185 = vmul.f32 %v6057, 0.01
        %v6186 = vmul.f32 %v6058, 0.01
        %v6187 = vmul.f32 %v6059, 0.01
        %v6188 = vmul.f32 %v6060, 0.01
        %v6189 = vmul.f32 %v6061, 0.01
        %v6190 = vmul.f32 %v6062, 0.01
        %v6191 = vmul.f32 %v6063, 0.01
        %v6192 = vmul.f32 %v6064, 0.01
        %v6193 = vmul.f32 %v6065, 0.01
        %v6194 = vmul.f32 %v6066, 0.01
        %v6195 = vmul.f32 %v6067, 0.01
        %v6196 = vmul.f32 %v6068, 0.01
        %v6197 = vmul.f32 %v6069, 0.01
        %v6198 = vmul.f32 %v6070, 0.01
        %v6199 = vmul.f32 %v6071, 0.01
        %v6200 = vmul.f32 %v6072, 0.01
        %v6201 = vmul.f32 %v6073, 0.01
        %v6202 = vmul.f32 %v6074, 0.01
        %v6203 = vmul.f32 %v6075, 0.01
        %v6204 = vmul.f32 %v6076, 0.01
        %v6205 = vmul.f32 %v6077, 0.01
        %v6206 = vmul.f32 %v6078, 0.01
        %v6207 = vmul.f32 %v6079, 0.01
        %v6208 = vmul.f32 %v6080, 0.01
        %v6209 = vmul.f32 %v6081, 0.01
        %v6210 = vmul.f32 %v6082, 0.01
        %v6211 = vmul.f32 %v6083, 0.01
        %v6212 = vmul.f32 %v6084, 0.01
        %v6213 = vmul.f32 %v6085, 0.01
        %v6214 = vmul.f32 %v6086, 0.01
        %v6215 = vmul.f32 %v6087, 0.01
        %v6216 = vmul.f32 %v6088, 0.01
        %v6217 = vmul.f32 %v6089, 0.01
        %v6218 = vmul.f32 %v6090, 0.01
        %v6219 = vmul.f32 %v6091, 0.01
        %v6220 = vmul.f32 %v6092, 0.01
        %v6221 = vmul.f32 %v6093, 0.01
        %v6222 = vmul.f32 %v6094, 0.01
        %v6223 = vmul.f32 %v6095, 0.01
        %v6224 = vmul.f32 %v6096, 0.01
        %v6225 = vmul.f32 %v6097, 0.01
        %v6226 = vmul.f32 %v6098, 0.01
        %v6227 = vmul.f32 %v6099, 0.01
        %v6228 = vmul.f32 %v6100, 0.01
        %v6229 = vmul.f32 %v6101, 0.01
        %v6230 = vmul.f32 %v6102, 0.01
        %v6231 = vmul.f32 %v6103, 0.01
        %v6232 = vmul.f32 %v6104, 0.01
        %v6233 = vmul.f32 %v6105, 0.01
        %v6234 = vmul.f32 %v6106, 0.01
        %v6235 = vmul.f32 %v6107, 0.01
        %v6236 = vmul.f32 %v6108, 0.01
        %v6237 = vmul.f32 %v6109, 0.01
        %v6238 = vmul.f32 %v6110, 0.01
        %v6239 = vmul.f32 %v6111, 0.01
        %v6240 = vmul.f32 %v6112, 0.01
        %v6241 = vmul.f32 %v6113, 0.01
        %v6242 = vmul.f32 %v6114, 0.01
        %v6243 = vmul.f32 %v6115, 0.01
        %v6244 = vmul.f32 %v6116, 0.01
        %v6245 = vmul.f32 %v6117, 0.01
        %v6246 = vmul.f32 %v6118, 0.01
        %v6247 = vmul.f32 %v6119, 0.01
        %v6248 = vmul.f32 %v6120, 0.01
        %v6249 = vmul.f32 %v6121, 0.01
        %v6250 = vmul.f32 %v6122, 0.01
        %v6251 = vmul.f32 %v6123, 0.01
        %v6252 = vmul.f32 %v6124, 0.01
        %v6253 = vmul.f32 %v6125, 0.01
        %v6254 = vmul.f32 %v6126, 0.01
        %v6255 = vmul.f32 %v6127, 0.01
        %v6256 = vmul.f32 %v6128, 0.01
        %v6257 = vmul.f32 %v6129, 0.01
        %v6258 = vmul.f32 %v6130, 0.01
        %v6259 = vmul.f32 %v6131, 0.01
        %v6260 = vmul.f32 %v6132, 0.01
        %v6261 = vmul.f32 %v6133, 0.01
        %v6262 = vmul.f32 %v6134, 0.01
        %v6263 = vmul.f32 %v6135, 0.01
        %v6264 = vmul.f32 %v6136, 0.01
        %v6265 = vmul.f32 %v6137, 0.01
        %v6266 = vmul.f32 %v6138, 0.01
        %v6267 = vmul.f32 %v6139, 0.01
        %v6268 = vmul.f32 %v6140, 0.01
        %v6269 = vmul.f32 %v6141, 0.01
        %v6270 = vmul.f32 %v6142, 0.01
        %v6271 = vmul.f32 %v6143, 0.01
        %v6272 = vmul.f32 %v6144, 0.01
        %v6273 = vmul.f32 %v6145, 0.01
        %v6274 = vmul.f32 %v6146, 0.01
        %v6275 = vmul.f32 %v6147, 0.01
        %v6276 = vmul.f32 %v6148, 0.01
        %v6277 = vmul.f32 %v6149, 0.01
        %v6278 = vmul.f32 %v6150, 0.01
        %v6279 = vmul.f32 %v6151, 0.01
        %v6280 = vmul.f32 %v6152, 0.01
        %v6281 = vmul.f32 %v6153, 0.01
        %v6282 = vmul.f32 %v6154, 0.01
        %v6283 = vmul.f32 %v6155, 0.01
        %v6284 = vmul.f32 %v6156, 0.01
        %v6285 = vmul.f32 %v6157, 0.01
        %v6286 = vmul.f32 %v6158, 0.01
        %v6287 = vmul.f32 %v6159, 0.01
        %v6288 = vmul.f32 %v6160, 0.01
        %v6289 = vmul.f32 %v6161, 0.01
        %v6290 = vmul.f32 %v6162, 0.01
        %v6291 = vmul.f32 %v6163, 0.01
        %v6292 = vmul.f32 %v6164, 0.01
        %v6293 = vmul.f32 %v6165, 0.01
        %v6294 = vmul.f32 %v6166, 0.01
        %v6295 = vmul.f32 %v6167, 0.01
        %v6296 = vmul.f32 %v6168, 0.01
        %v6297 = vmul.f32 %v6169, 0.01
        %v6298 = vmul.f32 %v6170, 0.01
        %v6299 = vmul.f32 %v6171, 0.01
        %v6300 = vmax.f32 %v6044, %v6172
        %v6301 = vmax.f32 %v6045, %v6173
        %v6302 = vmax.f32 %v6046, %v6174
        %v6303 = vmax.f32 %v6047, %v6175
        %v6304 = vmax.f32 %v6048, %v6176
        %v6305 = vmax.f32 %v6049, %v6177
        %v6306 = vmax.f32 %v6050, %v6178
        %v6307 = vmax.f32 %v6051, %v6179
        %v6308 = vmax.f32 %v6052, %v6180
        %v6309 = vmax.f32 %v6053, %v6181
        %v6310 = vmax.f32 %v6054, %v6182
        %v6311 = vmax.f32 %v6055, %v6183
        %v6312 = vmax.f32 %v6056, %v6184
        %v6313 = vmax.f32 %v6057, %v6185
        %v6314 = vmax.f32 %v6058, %v6186
        %v6315 = vmax.f32 %v6059, %v6187
        %v6316 = vmax.f32 %v6060, %v6188
        %v6317 = vmax.f32 %v6061, %v6189
        %v6318 = vmax.f32 %v6062, %v6190
        %v6319 = vmax.f32 %v6063, %v6191
        %v6320 = vmax.f32 %v6064, %v6192
        %v6321 = vmax.f32 %v6065, %v6193
        %v6322 = vmax.f32 %v6066, %v6194
        %v6323 = vmax.f32 %v6067, %v6195
        %v6324 = vmax.f32 %v6068, %v6196
        %v6325 = vmax.f32 %v6069, %v6197
        %v6326 = vmax.f32 %v6070, %v6198
        %v6327 = vmax.f32 %v6071, %v6199
        %v6328 = vmax.f32 %v6072, %v6200
        %v6329 = vmax.f32 %v6073, %v6201
        %v6330 = vmax.f32 %v6074, %v6202
        %v6331 = vmax.f32 %v6075, %v6203
        %v6332 = vmax.f32 %v6076, %v6204
        %v6333 = vmax.f32 %v6077, %v6205
        %v6334 = vmax.f32 %v6078, %v6206
        %v6335 = vmax.f32 %v6079, %v6207
        %v6336 = vmax.f32 %v6080, %v6208
        %v6337 = vmax.f32 %v6081, %v6209
        %v6338 = vmax.f32 %v6082, %v6210
        %v6339 = vmax.f32 %v6083, %v6211
        %v6340 = vmax.f32 %v6084, %v6212
        %v6341 = vmax.f32 %v6085, %v6213
        %v6342 = vmax.f32 %v6086, %v6214
        %v6343 = vmax.f32 %v6087, %v6215
        %v6344 = vmax.f32 %v6088, %v6216
        %v6345 = vmax.f32 %v6089, %v6217
        %v6346 = vmax.f32 %v6090, %v6218
        %v6347 = vmax.f32 %v6091, %v6219
        %v6348 = vmax.f32 %v6092, %v6220
        %v6349 = vmax.f32 %v6093, %v6221
        %v6350 = vmax.f32 %v6094, %v6222
        %v6351 = vmax.f32 %v6095, %v6223
        %v6352 = vmax.f32 %v6096, %v6224
        %v6353 = vmax.f32 %v6097, %v6225
        %v6354 = vmax.f32 %v6098, %v6226
        %v6355 = vmax.f32 %v6099, %v6227
        %v6356 = vmax.f32 %v6100, %v6228
        %v6357 = vmax.f32 %v6101, %v6229
        %v6358 = vmax.f32 %v6102, %v6230
        %v6359 = vmax.f32 %v6103, %v6231
        %v6360 = vmax.f32 %v6104, %v6232
        %v6361 = vmax.f32 %v6105, %v6233
        %v6362 = vmax.f32 %v6106, %v6234
        %v6363 = vmax.f32 %v6107, %v6235
        %v6364 = vmax.f32 %v6108, %v6236
        %v6365 = vmax.f32 %v6109, %v6237
        %v6366 = vmax.f32 %v6110, %v6238
        %v6367 = vmax.f32 %v6111, %v6239
        %v6368 = vmax.f32 %v6112, %v6240
        %v6369 = vmax.f32 %v6113, %v6241
        %v6370 = vmax.f32 %v6114, %v6242
        %v6371 = vmax.f32 %v6115, %v6243
        %v6372 = vmax.f32 %v6116, %v6244
        %v6373 = vmax.f32 %v6117, %v6245
        %v6374 = vmax.f32 %v6118, %v6246
        %v6375 = vmax.f32 %v6119, %v6247
        %v6376 = vmax.f32 %v6120, %v6248
        %v6377 = vmax.f32 %v6121, %v6249
        %v6378 = vmax.f32 %v6122, %v6250
        %v6379 = vmax.f32 %v6123, %v6251
        %v6380 = vmax.f32 %v6124, %v6252
        %v6381 = vmax.f32 %v6125, %v6253
        %v6382 = vmax.f32 %v6126, %v6254
        %v6383 = vmax.f32 %v6127, %v6255
        %v6384 = vmax.f32 %v6128, %v6256
        %v6385 = vmax.f32 %v6129, %v6257
        %v6386 = vmax.f32 %v6130, %v6258
        %v6387 = vmax.f32 %v6131, %v6259
        %v6388 = vmax.f32 %v6132, %v6260
        %v6389 = vmax.f32 %v6133, %v6261
        %v6390 = vmax.f32 %v6134, %v6262
        %v6391 = vmax.f32 %v6135, %v6263
        %v6392 = vmax.f32 %v6136, %v6264
        %v6393 = vmax.f32 %v6137, %v6265
        %v6394 = vmax.f32 %v6138, %v6266
        %v6395 = vmax.f32 %v6139, %v6267
        %v6396 = vmax.f32 %v6140, %v6268
        %v6397 = vmax.f32 %v6141, %v6269
        %v6398 = vmax.f32 %v6142, %v6270
        %v6399 = vmax.f32 %v6143, %v6271
        %v6400 = vmax.f32 %v6144, %v6272
        %v6401 = vmax.f32 %v6145, %v6273
        %v6402 = vmax.f32 %v6146, %v6274
        %v6403 = vmax.f32 %v6147, %v6275
        %v6404 = vmax.f32 %v6148, %v6276
        %v6405 = vmax.f32 %v6149, %v6277
        %v6406 = vmax.f32 %v6150, %v6278
        %v6407 = vmax.f32 %v6151, %v6279
        %v6408 = vmax.f32 %v6152, %v6280
        %v6409 = vmax.f32 %v6153, %v6281
        %v6410 = vmax.f32 %v6154, %v6282
        %v6411 = vmax.f32 %v6155, %v6283
        %v6412 = vmax.f32 %v6156, %v6284
        %v6413 = vmax.f32 %v6157, %v6285
        %v6414 = vmax.f32 %v6158, %v6286
        %v6415 = vmax.f32 %v6159, %v6287
        %v6416 = vmax.f32 %v6160, %v6288
        %v6417 = vmax.f32 %v6161, %v6289
        %v6418 = vmax.f32 %v6162, %v6290
        %v6419 = vmax.f32 %v6163, %v6291
        %v6420 = vmax.f32 %v6164, %v6292
        %v6421 = vmax.f32 %v6165, %v6293
        %v6422 = vmax.f32 %v6166, %v6294
        %v6423 = vmax.f32 %v6167, %v6295
        %v6424 = vmax.f32 %v6168, %v6296
        %v6425 = vmax.f32 %v6169, %v6297
        %v6426 = vmax.f32 %v6170, %v6298
        %v6427 = vmax.f32 %v6171, %v6299
        %v6428 = vpack.c.bf16 %v6301, %v6300
        %v6429 = vpack.c.bf16 %v6303, %v6302
        %v6430 = vpack.c.bf16 %v6305, %v6304
        %v6431 = vpack.c.bf16 %v6307, %v6306
        %v6432 = vpack.c.bf16 %v6309, %v6308
        %v6433 = vpack.c.bf16 %v6311, %v6310
        %v6434 = vpack.c.bf16 %v6313, %v6312
        %v6435 = vpack.c.bf16 %v6315, %v6314
        %v6436 = vpack.c.bf16 %v6317, %v6316
        %v6437 = vpack.c.bf16 %v6319, %v6318
        %v6438 = vpack.c.bf16 %v6321, %v6320
        %v6439 = vpack.c.bf16 %v6323, %v6322
        %v6440 = vpack.c.bf16 %v6325, %v6324
        %v6441 = vpack.c.bf16 %v6327, %v6326
        %v6442 = vpack.c.bf16 %v6329, %v6328
        %v6443 = vpack.c.bf16 %v6331, %v6330
        %v6444 = vpack.c.bf16 %v6333, %v6332
        %v6445 = vpack.c.bf16 %v6335, %v6334
        %v6446 = vpack.c.bf16 %v6337, %v6336
        %v6447 = vpack.c.bf16 %v6339, %v6338
        %v6448 = vpack.c.bf16 %v6341, %v6340
        %v6449 = vpack.c.bf16 %v6343, %v6342
        %v6450 = vpack.c.bf16 %v6345, %v6344
        %v6451 = vpack.c.bf16 %v6347, %v6346
        %v6452 = vpack.c.bf16 %v6349, %v6348
        %v6453 = vpack.c.bf16 %v6351, %v6350
        %v6454 = vpack.c.bf16 %v6353, %v6352
        %v6455 = vpack.c.bf16 %v6355, %v6354
        %v6456 = vpack.c.bf16 %v6357, %v6356
        %v6457 = vpack.c.bf16 %v6359, %v6358
        %v6458 = vpack.c.bf16 %v6361, %v6360
        %v6459 = vpack.c.bf16 %v6363, %v6362
        %v6460 = vpack.c.bf16 %v6365, %v6364
        %v6461 = vpack.c.bf16 %v6367, %v6366
        %v6462 = vpack.c.bf16 %v6369, %v6368
        %v6463 = vpack.c.bf16 %v6371, %v6370
        %v6464 = vpack.c.bf16 %v6373, %v6372
        %v6465 = vpack.c.bf16 %v6375, %v6374
        %v6466 = vpack.c.bf16 %v6377, %v6376
        %v6467 = vpack.c.bf16 %v6379, %v6378
        %v6468 = vpack.c.bf16 %v6381, %v6380
        %v6469 = vpack.c.bf16 %v6383, %v6382
        %v6470 = vpack.c.bf16 %v6385, %v6384
        %v6471 = vpack.c.bf16 %v6387, %v6386
        %v6472 = vpack.c.bf16 %v6389, %v6388
        %v6473 = vpack.c.bf16 %v6391, %v6390
        %v6474 = vpack.c.bf16 %v6393, %v6392
        %v6475 = vpack.c.bf16 %v6395, %v6394
        %v6476 = vpack.c.bf16 %v6397, %v6396
        %v6477 = vpack.c.bf16 %v6399, %v6398
        %v6478 = vpack.c.bf16 %v6401, %v6400
        %v6479 = vpack.c.bf16 %v6403, %v6402
        %v6480 = vpack.c.bf16 %v6405, %v6404
        %v6481 = vpack.c.bf16 %v6407, %v6406
        %v6482 = vpack.c.bf16 %v6409, %v6408
        %v6483 = vpack.c.bf16 %v6411, %v6410
        %v6484 = vpack.c.bf16 %v6413, %v6412
        %v6485 = vpack.c.bf16 %v6415, %v6414
        %v6486 = vpack.c.bf16 %v6417, %v6416
        %v6487 = vpack.c.bf16 %v6419, %v6418
        %v6488 = vpack.c.bf16 %v6421, %v6420
        %v6489 = vpack.c.bf16 %v6423, %v6422
        %v6490 = vpack.c.bf16 %v6425, %v6424
        %v6491 = vpack.c.bf16 %v6427, %v6426
        %v6492 = vld [vmem:[%s7] sm:$0xff]
        %v6493 = vld [vmem:[%s7 + $0x8] sm:$0xff]
        %v6494 = vld [vmem:[%s7 + $0x10] sm:$0xff]
        %v6495 = vld [vmem:[%s7 + $0x18] sm:$0xff]
        %v6496 = vld [vmem:[%s7 + $0x20] sm:$0xff]
        %v6497 = vld [vmem:[%s7 + $0x28] sm:$0xff]
        %v6498 = vld [vmem:[%s7 + $0x30] sm:$0xff]
        %v6499 = vld [vmem:[%s7 + $0x38] sm:$0xff]
        %v6500 = vld [vmem:[%s7 + $0x40] sm:$0xff]
        %v6501 = vld [vmem:[%s7 + $0x48] sm:$0xff]
        %v6502 = vld [vmem:[%s7 + $0x50] sm:$0xff]
        %v6503 = vld [vmem:[%s7 + $0x58] sm:$0xff]
        %v6504 = vld [vmem:[%s7 + $0x60] sm:$0xff]
        %v6505 = vld [vmem:[%s7 + $0x68] sm:$0xff]
        %v6506 = vld [vmem:[%s7 + $0x70] sm:$0xff]
        %v6507 = vld [vmem:[%s7 + $0x78] sm:$0xff]
        %v6508 = vld [vmem:[%s8] sm:$0x3]
        %v6510 = vlaneseq
        %v6511 = vshrl.u32 %v6510, 7
        %v6512 = vsub.s32 0, %v6511
        %v6513 = vrot.slane %v6508, %v6512
        %v6514 = vlaneseq
        %v6515 = vshrl.u32 %v6514, 7
        %v6516 = vsub.s32 1, %v6515
        %v6517 = vrot.slane %v6508, %v6516
        %v6536 = vunpack.c.l.b16 %v6492
        %v6537 = vunpack.c.h.b16 %v6492
        %v6538 = vunpack.c.l.b16 %v6493
        %v6539 = vunpack.c.h.b16 %v6493
        %v6540 = vunpack.c.l.b16 %v6494
        %v6541 = vunpack.c.h.b16 %v6494
        %v6542 = vunpack.c.l.b16 %v6495
        %v6543 = vunpack.c.h.b16 %v6495
        %v6544 = vunpack.c.l.b16 %v6496
        %v6545 = vunpack.c.h.b16 %v6496
        %v6546 = vunpack.c.l.b16 %v6497
        %v6547 = vunpack.c.h.b16 %v6497
        %v6548 = vunpack.c.l.b16 %v6498
        %v6549 = vunpack.c.h.b16 %v6498
        %v6550 = vunpack.c.l.b16 %v6499
        %v6551 = vunpack.c.h.b16 %v6499
        %v6552 = vunpack.c.l.b16 %v6500
        %v6553 = vunpack.c.h.b16 %v6500
        %v6554 = vunpack.c.l.b16 %v6501
        %v6555 = vunpack.c.h.b16 %v6501
        %v6556 = vunpack.c.l.b16 %v6502
        %v6557 = vunpack.c.h.b16 %v6502
        %v6558 = vunpack.c.l.b16 %v6503
        %v6559 = vunpack.c.h.b16 %v6503
        %v6560 = vunpack.c.l.b16 %v6504
        %v6561 = vunpack.c.h.b16 %v6504
        %v6562 = vunpack.c.l.b16 %v6505
        %v6563 = vunpack.c.h.b16 %v6505
        %v6564 = vunpack.c.l.b16 %v6506
        %v6565 = vunpack.c.h.b16 %v6506
        %v6566 = vunpack.c.l.b16 %v6507
        %v6567 = vunpack.c.h.b16 %v6507
        %v6568 = vpack.c.b16 %v6538, %v6536
        %v6569 = vpack.c.b16 %v6539, %v6537
        %v6570 = vpack.c.b16 %v6542, %v6540
        %v6571 = vpack.c.b16 %v6543, %v6541
        %v6572 = vpack.c.b16 %v6546, %v6544
        %v6573 = vpack.c.b16 %v6547, %v6545
        %v6574 = vpack.c.b16 %v6550, %v6548
        %v6575 = vpack.c.b16 %v6551, %v6549
        %v6576 = vpack.c.b16 %v6554, %v6552
        %v6577 = vpack.c.b16 %v6555, %v6553
        %v6578 = vpack.c.b16 %v6558, %v6556
        %v6579 = vpack.c.b16 %v6559, %v6557
        %v6580 = vpack.c.b16 %v6562, %v6560
        %v6581 = vpack.c.b16 %v6563, %v6561
        %v6582 = vpack.c.b16 %v6566, %v6564
        %v6583 = vpack.c.b16 %v6567, %v6565
        %6600 = vmatprep.subr.bf16.mxu0 %v6569
        %6601 = vmatpush1.bf16.msra.mxu0 %v6568
        %6602 = vmatprep.subr.bf16.mxu0 %v6571
        %6603 = vmatpush1.bf16.msra.mxu0 %v6570
        %6604 = vmatprep.subr.bf16.mxu0 %v6573
        %6605 = vmatpush1.bf16.msra.mxu0 %v6572
        %6606 = vmatprep.subr.bf16.mxu0 %v6575
        %6607 = vmatpush1.bf16.msra.mxu0 %v6574
        %6608 = vmatprep.subr.bf16.mxu0 %v6577
        %6609 = vmatpush1.bf16.msra.mxu0 %v6576
        %6610 = vmatprep.subr.bf16.mxu0 %v6579
        %6611 = vmatpush1.bf16.msra.mxu0 %v6578
        %6612 = vmatprep.subr.bf16.mxu0 %v6581
        %6613 = vmatpush1.bf16.msra.mxu0 %v6580
        %6614 = vmatprep.subr.bf16.mxu0 %v6583
        %6615 = vmatpush1.bf16.msra.mxu0 %v6582
        %6616 = vmatprep.subr.bf16.mxu0 0
        %6617 = vmatpush1.bf16.msra.mxu0 0
        %6618 = vmatprep.subr.bf16.mxu0 0
        %6619 = vmatpush1.bf16.msra.mxu0 0
        %6620 = vmatprep.subr.bf16.mxu0 0
        %6621 = vmatpush1.bf16.msra.mxu0 0
        %6622 = vmatprep.subr.bf16.mxu0 0
        %6623 = vmatpush1.bf16.msra.mxu0 0
        %6624 = vmatprep.subr.bf16.mxu0 0
        %6625 = vmatpush1.bf16.msra.mxu0 0
        %6626 = vmatprep.subr.bf16.mxu0 0
        %6627 = vmatpush1.bf16.msra.mxu0 0
        %6628 = vmatprep.subr.bf16.mxu0 0
        %6629 = vmatpush1.bf16.msra.mxu0 0
        %6630 = vmatprep.subr.bf16.mxu0 0
        %6631 = vmatpush1.bf16.msra.mxu0 0
        %6632 = vmatprep.mubr.bf16.mxu0 0
        %6633 = vmatmul.mubr.bf16.gmra.mrb[0].mxu0 %v6428
        %v6634 = vpop.f32.mrb[0].mxu0
        %v6635 = vadd.f32 %v6513, %v6634
        %v6636 = vpop.f32.mrb[0].mxu0
        %v6637 = vadd.f32 %v6517, %v6636
        %v6638 = vpop.f32.mrb[0].mxu0
        %v6639 = vadd.f32 %v6513, %v6638
        %v6640 = vpop.f32.mrb[0].mxu0
        %v6641 = vadd.f32 %v6517, %v6640
        %6642 = vmatprep.mubr.bf16.mxu0 0
        %6643 = vmatmul.mubr.bf16.gmra.mrb[0].mxu0 %v6429
        %v6644 = vpop.f32.mrb[0].mxu0
        %v6645 = vadd.f32 %v6513, %v6644
        %v6646 = vpop.f32.mrb[0].mxu0
        %v6647 = vadd.f32 %v6517, %v6646
        %v6648 = vpop.f32.mrb[0].mxu0
        %v6649 = vadd.f32 %v6513, %v6648
        %v6650 = vpop.f32.mrb[0].mxu0
        %v6651 = vadd.f32 %v6517, %v6650
        %6652 = vmatprep.mubr.bf16.mxu0 0
        %6653 = vmatmul.mubr.bf16.gmra.mrb[0].mxu0 %v6430
        %v6654 = vpop.f32.mrb[0].mxu0
        %v6655 = vadd.f32 %v6513, %v6654
        %v6656 = vpop.f32.mrb[0].mxu0
        %v6657 = vadd.f32 %v6517, %v6656
        %v6658 = vpop.f32.mrb[0].mxu0
        %v6659 = vadd.f32 %v6513, %v6658
        %v6660 = vpop.f32.mrb[0].mxu0
        %v6661 = vadd.f32 %v6517, %v6660
        %6662 = vmatprep.mubr.bf16.mxu0 0
        %6663 = vmatmul.mubr.bf16.gmra.mrb[0].mxu0 %v6431
        %v6664 = vpop.f32.mrb[0].mxu0
        %v6665 = vadd.f32 %v6513, %v6664
        %v6666 = vpop.f32.mrb[0].mxu0
        %v6667 = vadd.f32 %v6517, %v6666
        %v6668 = vpop.f32.mrb[0].mxu0
        %v6669 = vadd.f32 %v6513, %v6668
        %v6670 = vpop.f32.mrb[0].mxu0
        %v6671 = vadd.f32 %v6517, %v6670
        %6672 = vmatprep.mubr.bf16.mxu0 0
        %6673 = vmatmul.mubr.bf16.gmra.mrb[0].mxu0 %v6432
        %v6674 = vpop.f32.mrb[0].mxu0
        %v6675 = vadd.f32 %v6513, %v6674
        %v6676 = vpop.f32.mrb[0].mxu0
        %v6677 = vadd.f32 %v6517, %v6676
        %v6678 = vpop.f32.mrb[0].mxu0
        %v6679 = vadd.f32 %v6513, %v6678
        %v6680 = vpop.f32.mrb[0].mxu0
        %v6681 = vadd.f32 %v6517, %v6680
        %6682 = vmatprep.mubr.bf16.mxu0 0
        %6683 = vmatmul.mubr.bf16.gmra.mrb[0].mxu0 %v6433
        %v6684 = vpop.f32.mrb[0].mxu0
        %v6685 = vadd.f32 %v6513, %v6684
        %v6686 = vpop.f32.mrb[0].mxu0
        %v6687 = vadd.f32 %v6517, %v6686
        %v6688 = vpop.f32.mrb[0].mxu0
        %v6689 = vadd.f32 %v6513, %v6688
        %v6690 = vpop.f32.mrb[0].mxu0
        %v6691 = vadd.f32 %v6517, %v6690
        %6692 = vmatprep.mubr.bf16.mxu0 0
        %6693 = vmatmul.mubr.bf16.gmra.mrb[0].mxu0 %v6434
        %v6694 = vpop.f32.mrb[0].mxu0
        %v6695 = vadd.f32 %v6513, %v6694
        %v6696 = vpop.f32.mrb[0].mxu0
        %v6697 = vadd.f32 %v6517, %v6696
        %v6698 = vpop.f32.mrb[0].mxu0
        %v6699 = vadd.f32 %v6513, %v6698
        %v6700 = vpop.f32.mrb[0].mxu0
        %v6701 = vadd.f32 %v6517, %v6700
        %6702 = vmatprep.mubr.bf16.mxu0 0
        %6703 = vmatmul.mubr.bf16.gmra.mrb[0].mxu0 %v6435
        %v6704 = vpop.f32.mrb[0].mxu0
        %v6705 = vadd.f32 %v6513, %v6704
        %v6706 = vpop.f32.mrb[0].mxu0
        %v6707 = vadd.f32 %v6517, %v6706
        %v6708 = vpop.f32.mrb[0].mxu0
        %v6709 = vadd.f32 %v6513, %v6708
        %v6710 = vpop.f32.mrb[0].mxu0
        %v6711 = vadd.f32 %v6517, %v6710
        %6712 = vmatprep.mubr.bf16.mxu0 0
        %6713 = vmatmul.mubr.bf16.gmra.mrb[0].mxu0 %v6436
        %v6714 = vpop.f32.mrb[0].mxu0
        %v6715 = vadd.f32 %v6513, %v6714
        %v6716 = vpop.f32.mrb[0].mxu0
        %v6717 = vadd.f32 %v6517, %v6716
        %v6718 = vpop.f32.mrb[0].mxu0
        %v6719 = vadd.f32 %v6513, %v6718
        %v6720 = vpop.f32.mrb[0].mxu0
        %v6721 = vadd.f32 %v6517, %v6720
        %6722 = vmatprep.mubr.bf16.mxu0 0
        %6723 = vmatmul.mubr.bf16.gmra.mrb[0].mxu0 %v6437
        %v6724 = vpop.f32.mrb[0].mxu0
        %v6725 = vadd.f32 %v6513, %v6724
        %v6726 = vpop.f32.mrb[0].mxu0
        %v6727 = vadd.f32 %v6517, %v6726
        %v6728 = vpop.f32.mrb[0].mxu0
        %v6729 = vadd.f32 %v6513, %v6728
        %v6730 = vpop.f32.mrb[0].mxu0
        %v6731 = vadd.f32 %v6517, %v6730
        %6732 = vmatprep.mubr.bf16.mxu0 0
        %6733 = vmatmul.mubr.bf16.gmra.mrb[0].mxu0 %v6438
        %v6734 = vpop.f32.mrb[0].mxu0
        %v6735 = vadd.f32 %v6513, %v6734
        %v6736 = vpop.f32.mrb[0].mxu0
        %v6737 = vadd.f32 %v6517, %v6736
        %v6738 = vpop.f32.mrb[0].mxu0
        %v6739 = vadd.f32 %v6513, %v6738
        %v6740 = vpop.f32.mrb[0].mxu0
        %v6741 = vadd.f32 %v6517, %v6740
        %6742 = vmatprep.mubr.bf16.mxu0 0
        %6743 = vmatmul.mubr.bf16.gmra.mrb[0].mxu0 %v6439
        %v6744 = vpop.f32.mrb[0].mxu0
        %v6745 = vadd.f32 %v6513, %v6744
        %v6746 = vpop.f32.mrb[0].mxu0
        %v6747 = vadd.f32 %v6517, %v6746
        %v6748 = vpop.f32.mrb[0].mxu0
        %v6749 = vadd.f32 %v6513, %v6748
        %v6750 = vpop.f32.mrb[0].mxu0
        %v6751 = vadd.f32 %v6517, %v6750
        %6752 = vmatprep.mubr.bf16.mxu0 0
        %6753 = vmatmul.mubr.bf16.gmra.mrb[0].mxu0 %v6440
        %v6754 = vpop.f32.mrb[0].mxu0
        %v6755 = vadd.f32 %v6513, %v6754
        %v6756 = vpop.f32.mrb[0].mxu0
        %v6757 = vadd.f32 %v6517, %v6756
        %v6758 = vpop.f32.mrb[0].mxu0
        %v6759 = vadd.f32 %v6513, %v6758
        %v6760 = vpop.f32.mrb[0].mxu0
        %v6761 = vadd.f32 %v6517, %v6760
        %6762 = vmatprep.mubr.bf16.mxu0 0
        %6763 = vmatmul.mubr.bf16.gmra.mrb[0].mxu0 %v6441
        %v6764 = vpop.f32.mrb[0].mxu0
        %v6765 = vadd.f32 %v6513, %v6764
        %v6766 = vpop.f32.mrb[0].mxu0
        %v6767 = vadd.f32 %v6517, %v6766
        %v6768 = vpop.f32.mrb[0].mxu0
        %v6769 = vadd.f32 %v6513, %v6768
        %v6770 = vpop.f32.mrb[0].mxu0
        %v6771 = vadd.f32 %v6517, %v6770
        %6772 = vmatprep.mubr.bf16.mxu0 0
        %6773 = vmatmul.mubr.bf16.gmra.mrb[0].mxu0 %v6442
        %v6774 = vpop.f32.mrb[0].mxu0
        %v6775 = vadd.f32 %v6513, %v6774
        %v6776 = vpop.f32.mrb[0].mxu0
        %v6777 = vadd.f32 %v6517, %v6776
        %v6778 = vpop.f32.mrb[0].mxu0
        %v6779 = vadd.f32 %v6513, %v6778
        %v6780 = vpop.f32.mrb[0].mxu0
        %v6781 = vadd.f32 %v6517, %v6780
        %6782 = vmatprep.mubr.bf16.mxu0 0
        %6783 = vmatmul.mubr.bf16.gmra.mrb[0].mxu0 %v6443
        %v6784 = vpop.f32.mrb[0].mxu0
        %v6785 = vadd.f32 %v6513, %v6784
        %v6786 = vpop.f32.mrb[0].mxu0
        %v6787 = vadd.f32 %v6517, %v6786
        %v6788 = vpop.f32.mrb[0].mxu0
        %v6789 = vadd.f32 %v6513, %v6788
        %v6790 = vpop.f32.mrb[0].mxu0
        %v6791 = vadd.f32 %v6517, %v6790
        %6792 = vmatprep.mubr.bf16.mxu0 0
        %6793 = vmatmul.mubr.bf16.gmra.mrb[0].mxu0 %v6444
        %v6794 = vpop.f32.mrb[0].mxu0
        %v6795 = vadd.f32 %v6513, %v6794
        %v6796 = vpop.f32.mrb[0].mxu0
        %v6797 = vadd.f32 %v6517, %v6796
        %v6798 = vpop.f32.mrb[0].mxu0
        %v6799 = vadd.f32 %v6513, %v6798
        %v6800 = vpop.f32.mrb[0].mxu0
        %v6801 = vadd.f32 %v6517, %v6800
        %6802 = vmatprep.mubr.bf16.mxu0 0
        %6803 = vmatmul.mubr.bf16.gmra.mrb[0].mxu0 %v6445
        %v6804 = vpop.f32.mrb[0].mxu0
        %v6805 = vadd.f32 %v6513, %v6804
        %v6806 = vpop.f32.mrb[0].mxu0
        %v6807 = vadd.f32 %v6517, %v6806
        %v6808 = vpop.f32.mrb[0].mxu0
        %v6809 = vadd.f32 %v6513, %v6808
        %v6810 = vpop.f32.mrb[0].mxu0
        %v6811 = vadd.f32 %v6517, %v6810
        %6812 = vmatprep.mubr.bf16.mxu0 0
        %6813 = vmatmul.mubr.bf16.gmra.mrb[0].mxu0 %v6446
        %v6814 = vpop.f32.mrb[0].mxu0
        %v6815 = vadd.f32 %v6513, %v6814
        %v6816 = vpop.f32.mrb[0].mxu0
        %v6817 = vadd.f32 %v6517, %v6816
        %v6818 = vpop.f32.mrb[0].mxu0
        %v6819 = vadd.f32 %v6513, %v6818
        %v6820 = vpop.f32.mrb[0].mxu0
        %v6821 = vadd.f32 %v6517, %v6820
        %6822 = vmatprep.mubr.bf16.mxu0 0
        %6823 = vmatmul.mubr.bf16.gmra.mrb[0].mxu0 %v6447
        %v6824 = vpop.f32.mrb[0].mxu0
        %v6825 = vadd.f32 %v6513, %v6824
        %v6826 = vpop.f32.mrb[0].mxu0
        %v6827 = vadd.f32 %v6517, %v6826
        %v6828 = vpop.f32.mrb[0].mxu0
        %v6829 = vadd.f32 %v6513, %v6828
        %v6830 = vpop.f32.mrb[0].mxu0
        %v6831 = vadd.f32 %v6517, %v6830
        %6832 = vmatprep.mubr.bf16.mxu0 0
        %6833 = vmatmul.mubr.bf16.gmra.mrb[0].mxu0 %v6448
        %v6834 = vpop.f32.mrb[0].mxu0
        %v6835 = vadd.f32 %v6513, %v6834
        %v6836 = vpop.f32.mrb[0].mxu0
        %v6837 = vadd.f32 %v6517, %v6836
        %v6838 = vpop.f32.mrb[0].mxu0
        %v6839 = vadd.f32 %v6513, %v6838
        %v6840 = vpop.f32.mrb[0].mxu0
        %v6841 = vadd.f32 %v6517, %v6840
        %6842 = vmatprep.mubr.bf16.mxu0 0
        %6843 = vmatmul.mubr.bf16.gmra.mrb[0].mxu0 %v6449
        %v6844 = vpop.f32.mrb[0].mxu0
        %v6845 = vadd.f32 %v6513, %v6844
        %v6846 = vpop.f32.mrb[0].mxu0
        %v6847 = vadd.f32 %v6517, %v6846
        %v6848 = vpop.f32.mrb[0].mxu0
        %v6849 = vadd.f32 %v6513, %v6848
        %v6850 = vpop.f32.mrb[0].mxu0
        %v6851 = vadd.f32 %v6517, %v6850
        %6852 = vmatprep.mubr.bf16.mxu0 0
        %6853 = vmatmul.mubr.bf16.gmra.mrb[0].mxu0 %v6450
        %v6854 = vpop.f32.mrb[0].mxu0
        %v6855 = vadd.f32 %v6513, %v6854
        %v6856 = vpop.f32.mrb[0].mxu0
        %v6857 = vadd.f32 %v6517, %v6856
        %v6858 = vpop.f32.mrb[0].mxu0
        %v6859 = vadd.f32 %v6513, %v6858
        %v6860 = vpop.f32.mrb[0].mxu0
        %v6861 = vadd.f32 %v6517, %v6860
        %6862 = vmatprep.mubr.bf16.mxu0 0
        %6863 = vmatmul.mubr.bf16.gmra.mrb[0].mxu0 %v6451
        %v6864 = vpop.f32.mrb[0].mxu0
        %v6865 = vadd.f32 %v6513, %v6864
        %v6866 = vpop.f32.mrb[0].mxu0
        %v6867 = vadd.f32 %v6517, %v6866
        %v6868 = vpop.f32.mrb[0].mxu0
        %v6869 = vadd.f32 %v6513, %v6868
        %v6870 = vpop.f32.mrb[0].mxu0
        %v6871 = vadd.f32 %v6517, %v6870
        %6872 = vmatprep.mubr.bf16.mxu0 0
        %6873 = vmatmul.mubr.bf16.gmra.mrb[0].mxu0 %v6452
        %v6874 = vpop.f32.mrb[0].mxu0
        %v6875 = vadd.f32 %v6513, %v6874
        %v6876 = vpop.f32.mrb[0].mxu0
        %v6877 = vadd.f32 %v6517, %v6876
        %v6878 = vpop.f32.mrb[0].mxu0
        %v6879 = vadd.f32 %v6513, %v6878
        %v6880 = vpop.f32.mrb[0].mxu0
        %v6881 = vadd.f32 %v6517, %v6880
        %6882 = vmatprep.mubr.bf16.mxu0 0
        %6883 = vmatmul.mubr.bf16.gmra.mrb[0].mxu0 %v6453
        %v6884 = vpop.f32.mrb[0].mxu0
        %v6885 = vadd.f32 %v6513, %v6884
        %v6886 = vpop.f32.mrb[0].mxu0
        %v6887 = vadd.f32 %v6517, %v6886
        %v6888 = vpop.f32.mrb[0].mxu0
        %v6889 = vadd.f32 %v6513, %v6888
        %v6890 = vpop.f32.mrb[0].mxu0
        %v6891 = vadd.f32 %v6517, %v6890
        %6892 = vmatprep.mubr.bf16.mxu0 0
        %6893 = vmatmul.mubr.bf16.gmra.mrb[0].mxu0 %v6454
        %v6894 = vpop.f32.mrb[0].mxu0
        %v6895 = vadd.f32 %v6513, %v6894
        %v6896 = vpop.f32.mrb[0].mxu0
        %v6897 = vadd.f32 %v6517, %v6896
        %v6898 = vpop.f32.mrb[0].mxu0
        %v6899 = vadd.f32 %v6513, %v6898
        %v6900 = vpop.f32.mrb[0].mxu0
        %v6901 = vadd.f32 %v6517, %v6900
        %6902 = vmatprep.mubr.bf16.mxu0 0
        %6903 = vmatmul.mubr.bf16.gmra.mrb[0].mxu0 %v6455
        %v6904 = vpop.f32.mrb[0].mxu0
        %v6905 = vadd.f32 %v6513, %v6904
        %v6906 = vpop.f32.mrb[0].mxu0
        %v6907 = vadd.f32 %v6517, %v6906
        %v6908 = vpop.f32.mrb[0].mxu0
        %v6909 = vadd.f32 %v6513, %v6908
        %v6910 = vpop.f32.mrb[0].mxu0
        %v6911 = vadd.f32 %v6517, %v6910
        %6912 = vmatprep.mubr.bf16.mxu0 0
        %6913 = vmatmul.mubr.bf16.gmra.mrb[0].mxu0 %v6456
        %v6914 = vpop.f32.mrb[0].mxu0
        %v6915 = vadd.f32 %v6513, %v6914
        %v6916 = vpop.f32.mrb[0].mxu0
        %v6917 = vadd.f32 %v6517, %v6916
        %v6918 = vpop.f32.mrb[0].mxu0
        %v6919 = vadd.f32 %v6513, %v6918
        %v6920 = vpop.f32.mrb[0].mxu0
        %v6921 = vadd.f32 %v6517, %v6920
        %6922 = vmatprep.mubr.bf16.mxu0 0
        %6923 = vmatmul.mubr.bf16.gmra.mrb[0].mxu0 %v6457
        %v6924 = vpop.f32.mrb[0].mxu0
        %v6925 = vadd.f32 %v6513, %v6924
        %v6926 = vpop.f32.mrb[0].mxu0
        %v6927 = vadd.f32 %v6517, %v6926
        %v6928 = vpop.f32.mrb[0].mxu0
        %v6929 = vadd.f32 %v6513, %v6928
        %v6930 = vpop.f32.mrb[0].mxu0
        %v6931 = vadd.f32 %v6517, %v6930
        %6932 = vmatprep.mubr.bf16.mxu0 0
        %6933 = vmatmul.mubr.bf16.gmra.mrb[0].mxu0 %v6458
        %v6934 = vpop.f32.mrb[0].mxu0
        %v6935 = vadd.f32 %v6513, %v6934
        %v6936 = vpop.f32.mrb[0].mxu0
        %v6937 = vadd.f32 %v6517, %v6936
        %v6938 = vpop.f32.mrb[0].mxu0
        %v6939 = vadd.f32 %v6513, %v6938
        %v6940 = vpop.f32.mrb[0].mxu0
        %v6941 = vadd.f32 %v6517, %v6940
        %6942 = vmatprep.mubr.bf16.mxu0 0
        %6943 = vmatmul.mubr.bf16.gmra.mrb[0].mxu0 %v6459
        %v6944 = vpop.f32.mrb[0].mxu0
        %v6945 = vadd.f32 %v6513, %v6944
        %v6946 = vpop.f32.mrb[0].mxu0
        %v6947 = vadd.f32 %v6517, %v6946
        %v6948 = vpop.f32.mrb[0].mxu0
        %v6949 = vadd.f32 %v6513, %v6948
        %v6950 = vpop.f32.mrb[0].mxu0
        %v6951 = vadd.f32 %v6517, %v6950
        %6952 = vmatprep.mubr.bf16.mxu0 0
        %6953 = vmatmul.mubr.bf16.gmra.mrb[0].mxu0 %v6460
        %v6954 = vpop.f32.mrb[0].mxu0
        %v6955 = vadd.f32 %v6513, %v6954
        %v6956 = vpop.f32.mrb[0].mxu0
        %v6957 = vadd.f32 %v6517, %v6956
        %v6958 = vpop.f32.mrb[0].mxu0
        %v6959 = vadd.f32 %v6513, %v6958
        %v6960 = vpop.f32.mrb[0].mxu0
        %v6961 = vadd.f32 %v6517, %v6960
        %6962 = vmatprep.mubr.bf16.mxu0 0
        %6963 = vmatmul.mubr.bf16.gmra.mrb[0].mxu0 %v6461
        %v6964 = vpop.f32.mrb[0].mxu0
        %v6965 = vadd.f32 %v6513, %v6964
        %v6966 = vpop.f32.mrb[0].mxu0
        %v6967 = vadd.f32 %v6517, %v6966
        %v6968 = vpop.f32.mrb[0].mxu0
        %v6969 = vadd.f32 %v6513, %v6968
        %v6970 = vpop.f32.mrb[0].mxu0
        %v6971 = vadd.f32 %v6517, %v6970
        %6972 = vmatprep.mubr.bf16.mxu0 0
        %6973 = vmatmul.mubr.bf16.gmra.mrb[0].mxu0 %v6462
        %v6974 = vpop.f32.mrb[0].mxu0
        %v6975 = vadd.f32 %v6513, %v6974
        %v6976 = vpop.f32.mrb[0].mxu0
        %v6977 = vadd.f32 %v6517, %v6976
        %v6978 = vpop.f32.mrb[0].mxu0
        %v6979 = vadd.f32 %v6513, %v6978
        %v6980 = vpop.f32.mrb[0].mxu0
        %v6981 = vadd.f32 %v6517, %v6980
        %6982 = vmatprep.mubr.bf16.mxu0 0
        %6983 = vmatmul.mubr.bf16.gmra.mrb[0].mxu0 %v6463
        %v6984 = vpop.f32.mrb[0].mxu0
        %v6985 = vadd.f32 %v6513, %v6984
        %v6986 = vpop.f32.mrb[0].mxu0
        %v6987 = vadd.f32 %v6517, %v6986
        %v6988 = vpop.f32.mrb[0].mxu0
        %v6989 = vadd.f32 %v6513, %v6988
        %v6990 = vpop.f32.mrb[0].mxu0
        %v6991 = vadd.f32 %v6517, %v6990
        %6992 = vmatprep.mubr.bf16.mxu0 0
        %6993 = vmatmul.mubr.bf16.gmra.mrb[0].mxu0 %v6464
        %v6994 = vpop.f32.mrb[0].mxu0
        %v6995 = vadd.f32 %v6513, %v6994
        %v6996 = vpop.f32.mrb[0].mxu0
        %v6997 = vadd.f32 %v6517, %v6996
        %v6998 = vpop.f32.mrb[0].mxu0
        %v6999 = vadd.f32 %v6513, %v6998
        %v7000 = vpop.f32.mrb[0].mxu0
        %v7001 = vadd.f32 %v6517, %v7000
        %7002 = vmatprep.mubr.bf16.mxu0 0
        %7003 = vmatmul.mubr.bf16.gmra.mrb[0].mxu0 %v6465
        %v7004 = vpop.f32.mrb[0].mxu0
        %v7005 = vadd.f32 %v6513, %v7004
        %v7006 = vpop.f32.mrb[0].mxu0
        %v7007 = vadd.f32 %v6517, %v7006
        %v7008 = vpop.f32.mrb[0].mxu0
        %v7009 = vadd.f32 %v6513, %v7008
        %v7010 = vpop.f32.mrb[0].mxu0
        %v7011 = vadd.f32 %v6517, %v7010
        %7012 = vmatprep.mubr.bf16.mxu0 0
        %7013 = vmatmul.mubr.bf16.gmra.mrb[0].mxu0 %v6466
        %v7014 = vpop.f32.mrb[0].mxu0
        %v7015 = vadd.f32 %v6513, %v7014
        %v7016 = vpop.f32.mrb[0].mxu0
        %v7017 = vadd.f32 %v6517, %v7016
        %v7018 = vpop.f32.mrb[0].mxu0
        %v7019 = vadd.f32 %v6513, %v7018
        %v7020 = vpop.f32.mrb[0].mxu0
        %v7021 = vadd.f32 %v6517, %v7020
        %7022 = vmatprep.mubr.bf16.mxu0 0
        %7023 = vmatmul.mubr.bf16.gmra.mrb[0].mxu0 %v6467
        %v7024 = vpop.f32.mrb[0].mxu0
        %v7025 = vadd.f32 %v6513, %v7024
        %v7026 = vpop.f32.mrb[0].mxu0
        %v7027 = vadd.f32 %v6517, %v7026
        %v7028 = vpop.f32.mrb[0].mxu0
        %v7029 = vadd.f32 %v6513, %v7028
        %v7030 = vpop.f32.mrb[0].mxu0
        %v7031 = vadd.f32 %v6517, %v7030
        %7032 = vmatprep.mubr.bf16.mxu0 0
        %7033 = vmatmul.mubr.bf16.gmra.mrb[0].mxu0 %v6468
        %v7034 = vpop.f32.mrb[0].mxu0
        %v7035 = vadd.f32 %v6513, %v7034
        %v7036 = vpop.f32.mrb[0].mxu0
        %v7037 = vadd.f32 %v6517, %v7036
        %v7038 = vpop.f32.mrb[0].mxu0
        %v7039 = vadd.f32 %v6513, %v7038
        %v7040 = vpop.f32.mrb[0].mxu0
        %v7041 = vadd.f32 %v6517, %v7040
        %7042 = vmatprep.mubr.bf16.mxu0 0
        %7043 = vmatmul.mubr.bf16.gmra.mrb[0].mxu0 %v6469
        %v7044 = vpop.f32.mrb[0].mxu0
        %v7045 = vadd.f32 %v6513, %v7044
        %v7046 = vpop.f32.mrb[0].mxu0
        %v7047 = vadd.f32 %v6517, %v7046
        %v7048 = vpop.f32.mrb[0].mxu0
        %v7049 = vadd.f32 %v6513, %v7048
        %v7050 = vpop.f32.mrb[0].mxu0
        %v7051 = vadd.f32 %v6517, %v7050
        %7052 = vmatprep.mubr.bf16.mxu0 0
        %7053 = vmatmul.mubr.bf16.gmra.mrb[0].mxu0 %v6470
        %v7054 = vpop.f32.mrb[0].mxu0
        %v7055 = vadd.f32 %v6513, %v7054
        %v7056 = vpop.f32.mrb[0].mxu0
        %v7057 = vadd.f32 %v6517, %v7056
        %v7058 = vpop.f32.mrb[0].mxu0
        %v7059 = vadd.f32 %v6513, %v7058
        %v7060 = vpop.f32.mrb[0].mxu0
        %v7061 = vadd.f32 %v6517, %v7060
        %7062 = vmatprep.mubr.bf16.mxu0 0
        %7063 = vmatmul.mubr.bf16.gmra.mrb[0].mxu0 %v6471
        %v7064 = vpop.f32.mrb[0].mxu0
        %v7065 = vadd.f32 %v6513, %v7064
        %v7066 = vpop.f32.mrb[0].mxu0
        %v7067 = vadd.f32 %v6517, %v7066
        %v7068 = vpop.f32.mrb[0].mxu0
        %v7069 = vadd.f32 %v6513, %v7068
        %v7070 = vpop.f32.mrb[0].mxu0
        %v7071 = vadd.f32 %v6517, %v7070
        %7072 = vmatprep.mubr.bf16.mxu0 0
        %7073 = vmatmul.mubr.bf16.gmra.mrb[0].mxu0 %v6472
        %v7074 = vpop.f32.mrb[0].mxu0
        %v7075 = vadd.f32 %v6513, %v7074
        %v7076 = vpop.f32.mrb[0].mxu0
        %v7077 = vadd.f32 %v6517, %v7076
        %v7078 = vpop.f32.mrb[0].mxu0
        %v7079 = vadd.f32 %v6513, %v7078
        %v7080 = vpop.f32.mrb[0].mxu0
        %v7081 = vadd.f32 %v6517, %v7080
        %7082 = vmatprep.mubr.bf16.mxu0 0
        %7083 = vmatmul.mubr.bf16.gmra.mrb[0].mxu0 %v6473
        %v7084 = vpop.f32.mrb[0].mxu0
        %v7085 = vadd.f32 %v6513, %v7084
        %v7086 = vpop.f32.mrb[0].mxu0
        %v7087 = vadd.f32 %v6517, %v7086
        %v7088 = vpop.f32.mrb[0].mxu0
        %v7089 = vadd.f32 %v6513, %v7088
        %v7090 = vpop.f32.mrb[0].mxu0
        %v7091 = vadd.f32 %v6517, %v7090
        %7092 = vmatprep.mubr.bf16.mxu0 0
        %7093 = vmatmul.mubr.bf16.gmra.mrb[0].mxu0 %v6474
        %v7094 = vpop.f32.mrb[0].mxu0
        %v7095 = vadd.f32 %v6513, %v7094
        %v7096 = vpop.f32.mrb[0].mxu0
        %v7097 = vadd.f32 %v6517, %v7096
        %v7098 = vpop.f32.mrb[0].mxu0
        %v7099 = vadd.f32 %v6513, %v7098
        %v7100 = vpop.f32.mrb[0].mxu0
        %v7101 = vadd.f32 %v6517, %v7100
        %7102 = vmatprep.mubr.bf16.mxu0 0
        %7103 = vmatmul.mubr.bf16.gmra.mrb[0].mxu0 %v6475
        %v7104 = vpop.f32.mrb[0].mxu0
        %v7105 = vadd.f32 %v6513, %v7104
        %v7106 = vpop.f32.mrb[0].mxu0
        %v7107 = vadd.f32 %v6517, %v7106
        %v7108 = vpop.f32.mrb[0].mxu0
        %v7109 = vadd.f32 %v6513, %v7108
        %v7110 = vpop.f32.mrb[0].mxu0
        %v7111 = vadd.f32 %v6517, %v7110
        %7112 = vmatprep.mubr.bf16.mxu0 0
        %7113 = vmatmul.mubr.bf16.gmra.mrb[0].mxu0 %v6476
        %v7114 = vpop.f32.mrb[0].mxu0
        %v7115 = vadd.f32 %v6513, %v7114
        %v7116 = vpop.f32.mrb[0].mxu0
        %v7117 = vadd.f32 %v6517, %v7116
        %v7118 = vpop.f32.mrb[0].mxu0
        %v7119 = vadd.f32 %v6513, %v7118
        %v7120 = vpop.f32.mrb[0].mxu0
        %v7121 = vadd.f32 %v6517, %v7120
        %7122 = vmatprep.mubr.bf16.mxu0 0
        %7123 = vmatmul.mubr.bf16.gmra.mrb[0].mxu0 %v6477
        %v7124 = vpop.f32.mrb[0].mxu0
        %v7125 = vadd.f32 %v6513, %v7124
        %v7126 = vpop.f32.mrb[0].mxu0
        %v7127 = vadd.f32 %v6517, %v7126
        %v7128 = vpop.f32.mrb[0].mxu0
        %v7129 = vadd.f32 %v6513, %v7128
        %v7130 = vpop.f32.mrb[0].mxu0
        %v7131 = vadd.f32 %v6517, %v7130
        %7132 = vmatprep.mubr.bf16.mxu0 0
        %7133 = vmatmul.mubr.bf16.gmra.mrb[0].mxu0 %v6478
        %v7134 = vpop.f32.mrb[0].mxu0
        %v7135 = vadd.f32 %v6513, %v7134
        %v7136 = vpop.f32.mrb[0].mxu0
        %v7137 = vadd.f32 %v6517, %v7136
        %v7138 = vpop.f32.mrb[0].mxu0
        %v7139 = vadd.f32 %v6513, %v7138
        %v7140 = vpop.f32.mrb[0].mxu0
        %v7141 = vadd.f32 %v6517, %v7140
        %7142 = vmatprep.mubr.bf16.mxu0 0
        %7143 = vmatmul.mubr.bf16.gmra.mrb[0].mxu0 %v6479
        %v7144 = vpop.f32.mrb[0].mxu0
        %v7145 = vadd.f32 %v6513, %v7144
        %v7146 = vpop.f32.mrb[0].mxu0
        %v7147 = vadd.f32 %v6517, %v7146
        %v7148 = vpop.f32.mrb[0].mxu0
        %v7149 = vadd.f32 %v6513, %v7148
        %v7150 = vpop.f32.mrb[0].mxu0
        %v7151 = vadd.f32 %v6517, %v7150
        %7152 = vmatprep.mubr.bf16.mxu0 0
        %7153 = vmatmul.mubr.bf16.gmra.mrb[0].mxu0 %v6480
        %v7154 = vpop.f32.mrb[0].mxu0
        %v7155 = vadd.f32 %v6513, %v7154
        %v7156 = vpop.f32.mrb[0].mxu0
        %v7157 = vadd.f32 %v6517, %v7156
        %v7158 = vpop.f32.mrb[0].mxu0
        %v7159 = vadd.f32 %v6513, %v7158
        %v7160 = vpop.f32.mrb[0].mxu0
        %v7161 = vadd.f32 %v6517, %v7160
        %7162 = vmatprep.mubr.bf16.mxu0 0
        %7163 = vmatmul.mubr.bf16.gmra.mrb[0].mxu0 %v6481
        %v7164 = vpop.f32.mrb[0].mxu0
        %v7165 = vadd.f32 %v6513, %v7164
        %v7166 = vpop.f32.mrb[0].mxu0
        %v7167 = vadd.f32 %v6517, %v7166
        %v7168 = vpop.f32.mrb[0].mxu0
        %v7169 = vadd.f32 %v6513, %v7168
        %v7170 = vpop.f32.mrb[0].mxu0
        %v7171 = vadd.f32 %v6517, %v7170
        %7172 = vmatprep.mubr.bf16.mxu0 0
        %7173 = vmatmul.mubr.bf16.gmra.mrb[0].mxu0 %v6482
        %v7174 = vpop.f32.mrb[0].mxu0
        %v7175 = vadd.f32 %v6513, %v7174
        %v7176 = vpop.f32.mrb[0].mxu0
        %v7177 = vadd.f32 %v6517, %v7176
        %v7178 = vpop.f32.mrb[0].mxu0
        %v7179 = vadd.f32 %v6513, %v7178
        %v7180 = vpop.f32.mrb[0].mxu0
        %v7181 = vadd.f32 %v6517, %v7180
        %7182 = vmatprep.mubr.bf16.mxu0 0
        %7183 = vmatmul.mubr.bf16.gmra.mrb[0].mxu0 %v6483
        %v7184 = vpop.f32.mrb[0].mxu0
        %v7185 = vadd.f32 %v6513, %v7184
        %v7186 = vpop.f32.mrb[0].mxu0
        %v7187 = vadd.f32 %v6517, %v7186
        %v7188 = vpop.f32.mrb[0].mxu0
        %v7189 = vadd.f32 %v6513, %v7188
        %v7190 = vpop.f32.mrb[0].mxu0
        %v7191 = vadd.f32 %v6517, %v7190
        %7192 = vmatprep.mubr.bf16.mxu0 0
        %7193 = vmatmul.mubr.bf16.gmra.mrb[0].mxu0 %v6484
        %v7194 = vpop.f32.mrb[0].mxu0
        %v7195 = vadd.f32 %v6513, %v7194
        %v7196 = vpop.f32.mrb[0].mxu0
        %v7197 = vadd.f32 %v6517, %v7196
        %v7198 = vpop.f32.mrb[0].mxu0
        %v7199 = vadd.f32 %v6513, %v7198
        %v7200 = vpop.f32.mrb[0].mxu0
        %v7201 = vadd.f32 %v6517, %v7200
        %7202 = vmatprep.mubr.bf16.mxu0 0
        %7203 = vmatmul.mubr.bf16.gmra.mrb[0].mxu0 %v6485
        %v7204 = vpop.f32.mrb[0].mxu0
        %v7205 = vadd.f32 %v6513, %v7204
        %v7206 = vpop.f32.mrb[0].mxu0
        %v7207 = vadd.f32 %v6517, %v7206
        %v7208 = vpop.f32.mrb[0].mxu0
        %v7209 = vadd.f32 %v6513, %v7208
        %v7210 = vpop.f32.mrb[0].mxu0
        %v7211 = vadd.f32 %v6517, %v7210
        %7212 = vmatprep.mubr.bf16.mxu0 0
        %7213 = vmatmul.mubr.bf16.gmra.mrb[0].mxu0 %v6486
        %v7214 = vpop.f32.mrb[0].mxu0
        %v7215 = vadd.f32 %v6513, %v7214
        %v7216 = vpop.f32.mrb[0].mxu0
        %v7217 = vadd.f32 %v6517, %v7216
        %v7218 = vpop.f32.mrb[0].mxu0
        %v7219 = vadd.f32 %v6513, %v7218
        %v7220 = vpop.f32.mrb[0].mxu0
        %v7221 = vadd.f32 %v6517, %v7220
        %7222 = vmatprep.mubr.bf16.mxu0 0
        %7223 = vmatmul.mubr.bf16.gmra.mrb[0].mxu0 %v6487
        %v7224 = vpop.f32.mrb[0].mxu0
        %v7225 = vadd.f32 %v6513, %v7224
        %v7226 = vpop.f32.mrb[0].mxu0
        %v7227 = vadd.f32 %v6517, %v7226
        %v7228 = vpop.f32.mrb[0].mxu0
        %v7229 = vadd.f32 %v6513, %v7228
        %v7230 = vpop.f32.mrb[0].mxu0
        %v7231 = vadd.f32 %v6517, %v7230
        %7232 = vmatprep.mubr.bf16.mxu0 0
        %7233 = vmatmul.mubr.bf16.gmra.mrb[0].mxu0 %v6488
        %v7234 = vpop.f32.mrb[0].mxu0
        %v7235 = vadd.f32 %v6513, %v7234
        %v7236 = vpop.f32.mrb[0].mxu0
        %v7237 = vadd.f32 %v6517, %v7236
        %v7238 = vpop.f32.mrb[0].mxu0
        %v7239 = vadd.f32 %v6513, %v7238
        %v7240 = vpop.f32.mrb[0].mxu0
        %v7241 = vadd.f32 %v6517, %v7240
        %7242 = vmatprep.mubr.bf16.mxu0 0
        %7243 = vmatmul.mubr.bf16.gmra.mrb[0].mxu0 %v6489
        %v7244 = vpop.f32.mrb[0].mxu0
        %v7245 = vadd.f32 %v6513, %v7244
        %v7246 = vpop.f32.mrb[0].mxu0
        %v7247 = vadd.f32 %v6517, %v7246
        %v7248 = vpop.f32.mrb[0].mxu0
        %v7249 = vadd.f32 %v6513, %v7248
        %v7250 = vpop.f32.mrb[0].mxu0
        %v7251 = vadd.f32 %v6517, %v7250
        %7252 = vmatprep.mubr.bf16.mxu0 0
        %7253 = vmatmul.mubr.bf16.gmra.mrb[0].mxu0 %v6490
        %v7254 = vpop.f32.mrb[0].mxu0
        %v7255 = vadd.f32 %v6513, %v7254
        %v7256 = vpop.f32.mrb[0].mxu0
        %v7257 = vadd.f32 %v6517, %v7256
        %v7258 = vpop.f32.mrb[0].mxu0
        %v7259 = vadd.f32 %v6513, %v7258
        %v7260 = vpop.f32.mrb[0].mxu0
        %v7261 = vadd.f32 %v6517, %v7260
        %7262 = vmatprep.mubr.bf16.mxu0 0
        %7263 = vmatmul.mubr.bf16.gmra.mrb[0].mxu0 %v6491
        %v7264 = vpop.f32.mrb[0].mxu0
        %v7265 = vadd.f32 %v6513, %v7264
        %v7266 = vpop.f32.mrb[0].mxu0
        %v7267 = vadd.f32 %v6517, %v7266
        %v7268 = vpop.f32.mrb[0].mxu0
        %v7269 = vadd.f32 %v6513, %v7268
        %v7270 = vpop.f32.mrb[0].mxu0
        %v7271 = vadd.f32 %v6517, %v7270
        %7272 = vdwg.mxu0
        %v7273 = vld [vmem:[%s9] sm:$0x3]
        %v7274 = vld [vmem:[%s10] sm:$0x3]
        %v7275 = vadd.f32 %v6635, %v6639
        %v7276 = vadd.f32 %v7275, %v6645
        %v7277 = vadd.f32 %v7276, %v6649
        %v7278 = vadd.f32 %v7277, %v6655
        %v7279 = vadd.f32 %v7278, %v6659
        %v7280 = vadd.f32 %v7279, %v6665
        %v7281 = vadd.f32 %v7280, %v6669
        %v7282 = vadd.f32 %v7281, %v6675
        %v7283 = vadd.f32 %v7282, %v6679
        %v7284 = vadd.f32 %v7283, %v6685
        %v7285 = vadd.f32 %v7284, %v6689
        %v7286 = vadd.f32 %v7285, %v6695
        %v7287 = vadd.f32 %v7286, %v6699
        %v7288 = vadd.f32 %v7287, %v6705
        %v7289 = vadd.f32 %v7288, %v6709
        %v7290 = vrot.slane %v7289, 4
        %v7291 = vadd.f32 %v7289, %v7290
        %v7292 = vrot.slane %v7291, 2
        %v7293 = vadd.f32 %v7291, %v7292
        %v7294 = vrot.slane %v7293, 1
        %v7295 = vadd.f32 %v7293, %v7294
        %v7296 = vadd.f32 %v6637, %v6641
        %v7297 = vadd.f32 %v7296, %v6647
        %v7298 = vadd.f32 %v7297, %v6651
        %v7299 = vadd.f32 %v7298, %v6657
        %v7300 = vadd.f32 %v7299, %v6661
        %v7301 = vadd.f32 %v7300, %v6667
        %v7302 = vadd.f32 %v7301, %v6671
        %v7303 = vadd.f32 %v7302, %v6677
        %v7304 = vadd.f32 %v7303, %v6681
        %v7305 = vadd.f32 %v7304, %v6687
        %v7306 = vadd.f32 %v7305, %v6691
        %v7307 = vadd.f32 %v7306, %v6697
        %v7308 = vadd.f32 %v7307, %v6701
        %v7309 = vadd.f32 %v7308, %v6707
        %v7310 = vadd.f32 %v7309, %v6711
        %v7311 = vrot.slane %v7310, 4
        %v7312 = vadd.f32 %v7310, %v7311
        %v7313 = vrot.slane %v7312, 2
        %v7314 = vadd.f32 %v7312, %v7313
        %v7315 = vrot.slane %v7314, 1
        %v7316 = vadd.f32 %v7314, %v7315
        %v7317 = vadd.f32 %v6715, %v6719
        %v7318 = vadd.f32 %v7317, %v6725
        %v7319 = vadd.f32 %v7318, %v6729
        %v7320 = vadd.f32 %v7319, %v6735
        %v7321 = vadd.f32 %v7320, %v6739
        %v7322 = vadd.f32 %v7321, %v6745
        %v7323 = vadd.f32 %v7322, %v6749
        %v7324 = vadd.f32 %v7323, %v6755
        %v7325 = vadd.f32 %v7324, %v6759
        %v7326 = vadd.f32 %v7325, %v6765
        %v7327 = vadd.f32 %v7326, %v6769
        %v7328 = vadd.f32 %v7327, %v6775
        %v7329 = vadd.f32 %v7328, %v6779
        %v7330 = vadd.f32 %v7329, %v6785
        %v7331 = vadd.f32 %v7330, %v6789
        %v7332 = vrot.slane %v7331, 4
        %v7333 = vadd.f32 %v7331, %v7332
        %v7334 = vrot.slane %v7333, 2
        %v7335 = vadd.f32 %v7333, %v7334
        %v7336 = vrot.slane %v7335, 1
        %v7337 = vadd.f32 %v7335, %v7336
        %v7338 = vadd.f32 %v6717, %v6721
        %v7339 = vadd.f32 %v7338, %v6727
        %v7340 = vadd.f32 %v7339, %v6731
        %v7341 = vadd.f32 %v7340, %v6737
        %v7342 = vadd.f32 %v7341, %v6741
        %v7343 = vadd.f32 %v7342, %v6747
        %v7344 = vadd.f32 %v7343, %v6751
        %v7345 = vadd.f32 %v7344, %v6757
        %v7346 = vadd.f32 %v7345, %v6761
        %v7347 = vadd.f32 %v7346, %v6767
        %v7348 = vadd.f32 %v7347, %v6771
        %v7349 = vadd.f32 %v7348, %v6777
        %v7350 = vadd.f32 %v7349, %v6781
        %v7351 = vadd.f32 %v7350, %v6787
        %v7352 = vadd.f32 %v7351, %v6791
        %v7353 = vrot.slane %v7352, 4
        %v7354 = vadd.f32 %v7352, %v7353
        %v7355 = vrot.slane %v7354, 2
        %v7356 = vadd.f32 %v7354, %v7355
        %v7357 = vrot.slane %v7356, 1
        %v7358 = vadd.f32 %v7356, %v7357
        %v7359 = vadd.f32 %v6795, %v6799
        %v7360 = vadd.f32 %v7359, %v6805
        %v7361 = vadd.f32 %v7360, %v6809
        %v7362 = vadd.f32 %v7361, %v6815
        %v7363 = vadd.f32 %v7362, %v6819
        %v7364 = vadd.f32 %v7363, %v6825
        %v7365 = vadd.f32 %v7364, %v6829
        %v7366 = vadd.f32 %v7365, %v6835
        %v7367 = vadd.f32 %v7366, %v6839
        %v7368 = vadd.f32 %v7367, %v6845
        %v7369 = vadd.f32 %v7368, %v6849
        %v7370 = vadd.f32 %v7369, %v6855
        %v7371 = vadd.f32 %v7370, %v6859
        %v7372 = vadd.f32 %v7371, %v6865
        %v7373 = vadd.f32 %v7372, %v6869
        %v7374 = vrot.slane %v7373, 4
        %v7375 = vadd.f32 %v7373, %v7374
        %v7376 = vrot.slane %v7375, 2
        %v7377 = vadd.f32 %v7375, %v7376
        %v7378 = vrot.slane %v7377, 1
        %v7379 = vadd.f32 %v7377, %v7378
        %v7380 = vadd.f32 %v6797, %v6801
        %v7381 = vadd.f32 %v7380, %v6807
        %v7382 = vadd.f32 %v7381, %v6811
        %v7383 = vadd.f32 %v7382, %v6817
        %v7384 = vadd.f32 %v7383, %v6821
        %v7385 = vadd.f32 %v7384, %v6827
        %v7386 = vadd.f32 %v7385, %v6831
        %v7387 = vadd.f32 %v7386, %v6837
        %v7388 = vadd.f32 %v7387, %v6841
        %v7389 = vadd.f32 %v7388, %v6847
        %v7390 = vadd.f32 %v7389, %v6851
        %v7391 = vadd.f32 %v7390, %v6857
        %v7392 = vadd.f32 %v7391, %v6861
        %v7393 = vadd.f32 %v7392, %v6867
        %v7394 = vadd.f32 %v7393, %v6871
        %v7395 = vrot.slane %v7394, 4
        %v7396 = vadd.f32 %v7394, %v7395
        %v7397 = vrot.slane %v7396, 2
        %v7398 = vadd.f32 %v7396, %v7397
        %v7399 = vrot.slane %v7398, 1
        %v7400 = vadd.f32 %v7398, %v7399
        %v7401 = vadd.f32 %v6875, %v6879
        %v7402 = vadd.f32 %v7401, %v6885
        %v7403 = vadd.f32 %v7402, %v6889
        %v7404 = vadd.f32 %v7403, %v6895
        %v7405 = vadd.f32 %v7404, %v6899
        %v7406 = vadd.f32 %v7405, %v6905
        %v7407 = vadd.f32 %v7406, %v6909
        %v7408 = vadd.f32 %v7407, %v6915
        %v7409 = vadd.f32 %v7408, %v6919
        %v7410 = vadd.f32 %v7409, %v6925
        %v7411 = vadd.f32 %v7410, %v6929
        %v7412 = vadd.f32 %v7411, %v6935
        %v7413 = vadd.f32 %v7412, %v6939
        %v7414 = vadd.f32 %v7413, %v6945
        %v7415 = vadd.f32 %v7414, %v6949
        %v7416 = vrot.slane %v7415, 4
        %v7417 = vadd.f32 %v7415, %v7416
        %v7418 = vrot.slane %v7417, 2
        %v7419 = vadd.f32 %v7417, %v7418
        %v7420 = vrot.slane %v7419, 1
        %v7421 = vadd.f32 %v7419, %v7420
        %v7422 = vadd.f32 %v6877, %v6881
        %v7423 = vadd.f32 %v7422, %v6887
        %v7424 = vadd.f32 %v7423, %v6891
        %v7425 = vadd.f32 %v7424, %v6897
        %v7426 = vadd.f32 %v7425, %v6901
        %v7427 = vadd.f32 %v7426, %v6907
        %v7428 = vadd.f32 %v7427, %v6911
        %v7429 = vadd.f32 %v7428, %v6917
        %v7430 = vadd.f32 %v7429, %v6921
        %v7431 = vadd.f32 %v7430, %v6927
        %v7432 = vadd.f32 %v7431, %v6931
        %v7433 = vadd.f32 %v7432, %v6937
        %v7434 = vadd.f32 %v7433, %v6941
        %v7435 = vadd.f32 %v7434, %v6947
        %v7436 = vadd.f32 %v7435, %v6951
        %v7437 = vrot.slane %v7436, 4
        %v7438 = vadd.f32 %v7436, %v7437
        %v7439 = vrot.slane %v7438, 2
        %v7440 = vadd.f32 %v7438, %v7439
        %v7441 = vrot.slane %v7440, 1
        %v7442 = vadd.f32 %v7440, %v7441
        %v7443 = vadd.f32 %v6955, %v6959
        %v7444 = vadd.f32 %v7443, %v6965
        %v7445 = vadd.f32 %v7444, %v6969
        %v7446 = vadd.f32 %v7445, %v6975
        %v7447 = vadd.f32 %v7446, %v6979
        %v7448 = vadd.f32 %v7447, %v6985
        %v7449 = vadd.f32 %v7448, %v6989
        %v7450 = vadd.f32 %v7449, %v6995
        %v7451 = vadd.f32 %v7450, %v6999
        %v7452 = vadd.f32 %v7451, %v7005
        %v7453 = vadd.f32 %v7452, %v7009
        %v7454 = vadd.f32 %v7453, %v7015
        %v7455 = vadd.f32 %v7454, %v7019
        %v7456 = vadd.f32 %v7455, %v7025
        %v7457 = vadd.f32 %v7456, %v7029
        %v7458 = vrot.slane %v7457, 4
        %v7459 = vadd.f32 %v7457, %v7458
        %v7460 = vrot.slane %v7459, 2
        %v7461 = vadd.f32 %v7459, %v7460
        %v7462 = vrot.slane %v7461, 1
        %v7463 = vadd.f32 %v7461, %v7462
        %v7464 = vadd.f32 %v6957, %v6961
        %v7465 = vadd.f32 %v7464, %v6967
        %v7466 = vadd.f32 %v7465, %v6971
        %v7467 = vadd.f32 %v7466, %v6977
        %v7468 = vadd.f32 %v7467, %v6981
        %v7469 = vadd.f32 %v7468, %v6987
        %v7470 = vadd.f32 %v7469, %v6991
        %v7471 = vadd.f32 %v7470, %v6997
        %v7472 = vadd.f32 %v7471, %v7001
        %v7473 = vadd.f32 %v7472, %v7007
        %v7474 = vadd.f32 %v7473, %v7011
        %v7475 = vadd.f32 %v7474, %v7017
        %v7476 = vadd.f32 %v7475, %v7021
        %v7477 = vadd.f32 %v7476, %v7027
        %v7478 = vadd.f32 %v7477, %v7031
        %v7479 = vrot.slane %v7478, 4
        %v7480 = vadd.f32 %v7478, %v7479
        %v7481 = vrot.slane %v7480, 2
        %v7482 = vadd.f32 %v7480, %v7481
        %v7483 = vrot.slane %v7482, 1
        %v7484 = vadd.f32 %v7482, %v7483
        %v7485 = vadd.f32 %v7035, %v7039
        %v7486 = vadd.f32 %v7485, %v7045
        %v7487 = vadd.f32 %v7486, %v7049
        %v7488 = vadd.f32 %v7487, %v7055
        %v7489 = vadd.f32 %v7488, %v7059
        %v7490 = vadd.f32 %v7489, %v7065
        %v7491 = vadd.f32 %v7490, %v7069
        %v7492 = vadd.f32 %v7491, %v7075
        %v7493 = vadd.f32 %v7492, %v7079
        %v7494 = vadd.f32 %v7493, %v7085
        %v7495 = vadd.f32 %v7494, %v7089
        %v7496 = vadd.f32 %v7495, %v7095
        %v7497 = vadd.f32 %v7496, %v7099
        %v7498 = vadd.f32 %v7497, %v7105
        %v7499 = vadd.f32 %v7498, %v7109
        %v7500 = vrot.slane %v7499, 4
        %v7501 = vadd.f32 %v7499, %v7500
        %v7502 = vrot.slane %v7501, 2
        %v7503 = vadd.f32 %v7501, %v7502
        %v7504 = vrot.slane %v7503, 1
        %v7505 = vadd.f32 %v7503, %v7504
        %v7506 = vadd.f32 %v7037, %v7041
        %v7507 = vadd.f32 %v7506, %v7047
        %v7508 = vadd.f32 %v7507, %v7051
        %v7509 = vadd.f32 %v7508, %v7057
        %v7510 = vadd.f32 %v7509, %v7061
        %v7511 = vadd.f32 %v7510, %v7067
        %v7512 = vadd.f32 %v7511, %v7071
        %v7513 = vadd.f32 %v7512, %v7077
        %v7514 = vadd.f32 %v7513, %v7081
        %v7515 = vadd.f32 %v7514, %v7087
        %v7516 = vadd.f32 %v7515, %v7091
        %v7517 = vadd.f32 %v7516, %v7097
        %v7518 = vadd.f32 %v7517, %v7101
        %v7519 = vadd.f32 %v7518, %v7107
        %v7520 = vadd.f32 %v7519, %v7111
        %v7521 = vrot.slane %v7520, 4
        %v7522 = vadd.f32 %v7520, %v7521
        %v7523 = vrot.slane %v7522, 2
        %v7524 = vadd.f32 %v7522, %v7523
        %v7525 = vrot.slane %v7524, 1
        %v7526 = vadd.f32 %v7524, %v7525
        %v7527 = vadd.f32 %v7115, %v7119
        %v7528 = vadd.f32 %v7527, %v7125
        %v7529 = vadd.f32 %v7528, %v7129
        %v7530 = vadd.f32 %v7529, %v7135
        %v7531 = vadd.f32 %v7530, %v7139
        %v7532 = vadd.f32 %v7531, %v7145
        %v7533 = vadd.f32 %v7532, %v7149
        %v7534 = vadd.f32 %v7533, %v7155
        %v7535 = vadd.f32 %v7534, %v7159
        %v7536 = vadd.f32 %v7535, %v7165
        %v7537 = vadd.f32 %v7536, %v7169
        %v7538 = vadd.f32 %v7537, %v7175
        %v7539 = vadd.f32 %v7538, %v7179
        %v7540 = vadd.f32 %v7539, %v7185
        %v7541 = vadd.f32 %v7540, %v7189
        %v7542 = vrot.slane %v7541, 4
        %v7543 = vadd.f32 %v7541, %v7542
        %v7544 = vrot.slane %v7543, 2
        %v7545 = vadd.f32 %v7543, %v7544
        %v7546 = vrot.slane %v7545, 1
        %v7547 = vadd.f32 %v7545, %v7546
        %v7548 = vadd.f32 %v7117, %v7121
        %v7549 = vadd.f32 %v7548, %v7127
        %v7550 = vadd.f32 %v7549, %v7131
        %v7551 = vadd.f32 %v7550, %v7137
        %v7552 = vadd.f32 %v7551, %v7141
        %v7553 = vadd.f32 %v7552, %v7147
        %v7554 = vadd.f32 %v7553, %v7151
        %v7555 = vadd.f32 %v7554, %v7157
        %v7556 = vadd.f32 %v7555, %v7161
        %v7557 = vadd.f32 %v7556, %v7167
        %v7558 = vadd.f32 %v7557, %v7171
        %v7559 = vadd.f32 %v7558, %v7177
        %v7560 = vadd.f32 %v7559, %v7181
        %v7561 = vadd.f32 %v7560, %v7187
        %v7562 = vadd.f32 %v7561, %v7191
        %v7563 = vrot.slane %v7562, 4
        %v7564 = vadd.f32 %v7562, %v7563
        %v7565 = vrot.slane %v7564, 2
        %v7566 = vadd.f32 %v7564, %v7565
        %v7567 = vrot.slane %v7566, 1
        %v7568 = vadd.f32 %v7566, %v7567
        %v7569 = vadd.f32 %v7195, %v7199
        %v7570 = vadd.f32 %v7569, %v7205
        %v7571 = vadd.f32 %v7570, %v7209
        %v7572 = vadd.f32 %v7571, %v7215
        %v7573 = vadd.f32 %v7572, %v7219
        %v7574 = vadd.f32 %v7573, %v7225
        %v7575 = vadd.f32 %v7574, %v7229
        %v7576 = vadd.f32 %v7575, %v7235
        %v7577 = vadd.f32 %v7576, %v7239
        %v7578 = vadd.f32 %v7577, %v7245
        %v7579 = vadd.f32 %v7578, %v7249
        %v7580 = vadd.f32 %v7579, %v7255
        %v7581 = vadd.f32 %v7580, %v7259
        %v7582 = vadd.f32 %v7581, %v7265
        %v7583 = vadd.f32 %v7582, %v7269
        %v7584 = vrot.slane %v7583, 4
        %v7585 = vadd.f32 %v7583, %v7584
        %v7586 = vrot.slane %v7585, 2
        %v7587 = vadd.f32 %v7585, %v7586
        %v7588 = vrot.slane %v7587, 1
        %v7589 = vadd.f32 %v7587, %v7588
        %v7590 = vadd.f32 %v7197, %v7201
        %v7591 = vadd.f32 %v7590, %v7207
        %v7592 = vadd.f32 %v7591, %v7211
        %v7593 = vadd.f32 %v7592, %v7217
        %v7594 = vadd.f32 %v7593, %v7221
        %v7595 = vadd.f32 %v7594, %v7227
        %v7596 = vadd.f32 %v7595, %v7231
        %v7597 = vadd.f32 %v7596, %v7237
        %v7598 = vadd.f32 %v7597, %v7241
        %v7599 = vadd.f32 %v7598, %v7247
        %v7600 = vadd.f32 %v7599, %v7251
        %v7601 = vadd.f32 %v7600, %v7257
        %v7602 = vadd.f32 %v7601, %v7261
        %v7603 = vadd.f32 %v7602, %v7267
        %v7604 = vadd.f32 %v7603, %v7271
        %v7605 = vrot.slane %v7604, 4
        %v7606 = vadd.f32 %v7604, %v7605
        %v7607 = vrot.slane %v7606, 2
        %v7608 = vadd.f32 %v7606, %v7607
        %v7609 = vrot.slane %v7608, 1
        %v7610 = vadd.f32 %v7608, %v7609
        %v7611 = vmul.f32 %v6635, %v6635
        %v7612 = vmul.f32 %v6637, %v6637
        %v7613 = vmul.f32 %v6639, %v6639
        %v7614 = vmul.f32 %v6641, %v6641
        %v7615 = vmul.f32 %v6645, %v6645
        %v7616 = vmul.f32 %v6647, %v6647
        %v7617 = vmul.f32 %v6649, %v6649
        %v7618 = vmul.f32 %v6651, %v6651
        %v7619 = vmul.f32 %v6655, %v6655
        %v7620 = vmul.f32 %v6657, %v6657
        %v7621 = vmul.f32 %v6659, %v6659
        %v7622 = vmul.f32 %v6661, %v6661
        %v7623 = vmul.f32 %v6665, %v6665
        %v7624 = vmul.f32 %v6667, %v6667
        %v7625 = vmul.f32 %v6669, %v6669
        %v7626 = vmul.f32 %v6671, %v6671
        %v7627 = vmul.f32 %v6675, %v6675
        %v7628 = vmul.f32 %v6677, %v6677
        %v7629 = vmul.f32 %v6679, %v6679
        %v7630 = vmul.f32 %v6681, %v6681
        %v7631 = vmul.f32 %v6685, %v6685
        %v7632 = vmul.f32 %v6687, %v6687
        %v7633 = vmul.f32 %v6689, %v6689
        %v7634 = vmul.f32 %v6691, %v6691
        %v7635 = vmul.f32 %v6695, %v6695
        %v7636 = vmul.f32 %v6697, %v6697
        %v7637 = vmul.f32 %v6699, %v6699
        %v7638 = vmul.f32 %v6701, %v6701
        %v7639 = vmul.f32 %v6705, %v6705
        %v7640 = vmul.f32 %v6707, %v6707
        %v7641 = vmul.f32 %v6709, %v6709
        %v7642 = vmul.f32 %v6711, %v6711
        %v7643 = vmul.f32 %v6715, %v6715
        %v7644 = vmul.f32 %v6717, %v6717
        %v7645 = vmul.f32 %v6719, %v6719
        %v7646 = vmul.f32 %v6721, %v6721
        %v7647 = vmul.f32 %v6725, %v6725
        %v7648 = vmul.f32 %v6727, %v6727
        %v7649 = vmul.f32 %v6729, %v6729
        %v7650 = vmul.f32 %v6731, %v6731
        %v7651 = vmul.f32 %v6735, %v6735
        %v7652 = vmul.f32 %v6737, %v6737
        %v7653 = vmul.f32 %v6739, %v6739
        %v7654 = vmul.f32 %v6741, %v6741
        %v7655 = vmul.f32 %v6745, %v6745
        %v7656 = vmul.f32 %v6747, %v6747
        %v7657 = vmul.f32 %v6749, %v6749
        %v7658 = vmul.f32 %v6751, %v6751
        %v7659 = vmul.f32 %v6755, %v6755
        %v7660 = vmul.f32 %v6757, %v6757
        %v7661 = vmul.f32 %v6759, %v6759
        %v7662 = vmul.f32 %v6761, %v6761
        %v7663 = vmul.f32 %v6765, %v6765
        %v7664 = vmul.f32 %v6767, %v6767
        %v7665 = vmul.f32 %v6769, %v6769
        %v7666 = vmul.f32 %v6771, %v6771
        %v7667 = vmul.f32 %v6775, %v6775
        %v7668 = vmul.f32 %v6777, %v6777
        %v7669 = vmul.f32 %v6779, %v6779
        %v7670 = vmul.f32 %v6781, %v6781
        %v7671 = vmul.f32 %v6785, %v6785
        %v7672 = vmul.f32 %v6787, %v6787
        %v7673 = vmul.f32 %v6789, %v6789
        %v7674 = vmul.f32 %v6791, %v6791
        %v7675 = vmul.f32 %v6795, %v6795
        %v7676 = vmul.f32 %v6797, %v6797
        %v7677 = vmul.f32 %v6799, %v6799
        %v7678 = vmul.f32 %v6801, %v6801
        %v7679 = vmul.f32 %v6805, %v6805
        %v7680 = vmul.f32 %v6807, %v6807
        %v7681 = vmul.f32 %v6809, %v6809
        %v7682 = vmul.f32 %v6811, %v6811
        %v7683 = vmul.f32 %v6815, %v6815
        %v7684 = vmul.f32 %v6817, %v6817
        %v7685 = vmul.f32 %v6819, %v6819
        %v7686 = vmul.f32 %v6821, %v6821
        %v7687 = vmul.f32 %v6825, %v6825
        %v7688 = vmul.f32 %v6827, %v6827
        %v7689 = vmul.f32 %v6829, %v6829
        %v7690 = vmul.f32 %v6831, %v6831
        %v7691 = vmul.f32 %v6835, %v6835
        %v7692 = vmul.f32 %v6837, %v6837
        %v7693 = vmul.f32 %v6839, %v6839
        %v7694 = vmul.f32 %v6841, %v6841
        %v7695 = vmul.f32 %v6845, %v6845
        %v7696 = vmul.f32 %v6847, %v6847
        %v7697 = vmul.f32 %v6849, %v6849
        %v7698 = vmul.f32 %v6851, %v6851
        %v7699 = vmul.f32 %v6855, %v6855
        %v7700 = vmul.f32 %v6857, %v6857
        %v7701 = vmul.f32 %v6859, %v6859
        %v7702 = vmul.f32 %v6861, %v6861
        %v7703 = vmul.f32 %v6865, %v6865
        %v7704 = vmul.f32 %v6867, %v6867
        %v7705 = vmul.f32 %v6869, %v6869
        %v7706 = vmul.f32 %v6871, %v6871
        %v7707 = vmul.f32 %v6875, %v6875
        %v7708 = vmul.f32 %v6877, %v6877
        %v7709 = vmul.f32 %v6879, %v6879
        %v7710 = vmul.f32 %v6881, %v6881
        %v7711 = vmul.f32 %v6885, %v6885
        %v7712 = vmul.f32 %v6887, %v6887
        %v7713 = vmul.f32 %v6889, %v6889
        %v7714 = vmul.f32 %v6891, %v6891
        %v7715 = vmul.f32 %v6895, %v6895
        %v7716 = vmul.f32 %v6897, %v6897
        %v7717 = vmul.f32 %v6899, %v6899
        %v7718 = vmul.f32 %v6901, %v6901
        %v7719 = vmul.f32 %v6905, %v6905
        %v7720 = vmul.f32 %v6907, %v6907
        %v7721 = vmul.f32 %v6909, %v6909
        %v7722 = vmul.f32 %v6911, %v6911
        %v7723 = vmul.f32 %v6915, %v6915
        %v7724 = vmul.f32 %v6917, %v6917
        %v7725 = vmul.f32 %v6919, %v6919
        %v7726 = vmul.f32 %v6921, %v6921
        %v7727 = vmul.f32 %v6925, %v6925
        %v7728 = vmul.f32 %v6927, %v6927
        %v7729 = vmul.f32 %v6929, %v6929
        %v7730 = vmul.f32 %v6931, %v6931
        %v7731 = vmul.f32 %v6935, %v6935
        %v7732 = vmul.f32 %v6937, %v6937
        %v7733 = vmul.f32 %v6939, %v6939
        %v7734 = vmul.f32 %v6941, %v6941
        %v7735 = vmul.f32 %v6945, %v6945
        %v7736 = vmul.f32 %v6947, %v6947
        %v7737 = vmul.f32 %v6949, %v6949
        %v7738 = vmul.f32 %v6951, %v6951
        %v7739 = vmul.f32 %v6955, %v6955
        %v7740 = vmul.f32 %v6957, %v6957
        %v7741 = vmul.f32 %v6959, %v6959
        %v7742 = vmul.f32 %v6961, %v6961
        %v7743 = vmul.f32 %v6965, %v6965
        %v7744 = vmul.f32 %v6967, %v6967
        %v7745 = vmul.f32 %v6969, %v6969
        %v7746 = vmul.f32 %v6971, %v6971
        %v7747 = vmul.f32 %v6975, %v6975
        %v7748 = vmul.f32 %v6977, %v6977
        %v7749 = vmul.f32 %v6979, %v6979
        %v7750 = vmul.f32 %v6981, %v6981
        %v7751 = vmul.f32 %v6985, %v6985
        %v7752 = vmul.f32 %v6987, %v6987
        %v7753 = vmul.f32 %v6989, %v6989
        %v7754 = vmul.f32 %v6991, %v6991
        %v7755 = vmul.f32 %v6995, %v6995
        %v7756 = vmul.f32 %v6997, %v6997
        %v7757 = vmul.f32 %v6999, %v6999
        %v7758 = vmul.f32 %v7001, %v7001
        %v7759 = vmul.f32 %v7005, %v7005
        %v7760 = vmul.f32 %v7007, %v7007
        %v7761 = vmul.f32 %v7009, %v7009
        %v7762 = vmul.f32 %v7011, %v7011
        %v7763 = vmul.f32 %v7015, %v7015
        %v7764 = vmul.f32 %v7017, %v7017
        %v7765 = vmul.f32 %v7019, %v7019
        %v7766 = vmul.f32 %v7021, %v7021
        %v7767 = vmul.f32 %v7025, %v7025
        %v7768 = vmul.f32 %v7027, %v7027
        %v7769 = vmul.f32 %v7029, %v7029
        %v7770 = vmul.f32 %v7031, %v7031
        %v7771 = vmul.f32 %v7035, %v7035
        %v7772 = vmul.f32 %v7037, %v7037
        %v7773 = vmul.f32 %v7039, %v7039
        %v7774 = vmul.f32 %v7041, %v7041
        %v7775 = vmul.f32 %v7045, %v7045
        %v7776 = vmul.f32 %v7047, %v7047
        %v7777 = vmul.f32 %v7049, %v7049
        %v7778 = vmul.f32 %v7051, %v7051
        %v7779 = vmul.f32 %v7055, %v7055
        %v7780 = vmul.f32 %v7057, %v7057
        %v7781 = vmul.f32 %v7059, %v7059
        %v7782 = vmul.f32 %v7061, %v7061
        %v7783 = vmul.f32 %v7065, %v7065
        %v7784 = vmul.f32 %v7067, %v7067
        %v7785 = vmul.f32 %v7069, %v7069
        %v7786 = vmul.f32 %v7071, %v7071
        %v7787 = vmul.f32 %v7075, %v7075
        %v7788 = vmul.f32 %v7077, %v7077
        %v7789 = vmul.f32 %v7079, %v7079
        %v7790 = vmul.f32 %v7081, %v7081
        %v7791 = vmul.f32 %v7085, %v7085
        %v7792 = vmul.f32 %v7087, %v7087
        %v7793 = vmul.f32 %v7089, %v7089
        %v7794 = vmul.f32 %v7091, %v7091
        %v7795 = vmul.f32 %v7095, %v7095
        %v7796 = vmul.f32 %v7097, %v7097
        %v7797 = vmul.f32 %v7099, %v7099
        %v7798 = vmul.f32 %v7101, %v7101
        %v7799 = vmul.f32 %v7105, %v7105
        %v7800 = vmul.f32 %v7107, %v7107
        %v7801 = vmul.f32 %v7109, %v7109
        %v7802 = vmul.f32 %v7111, %v7111
        %v7803 = vmul.f32 %v7115, %v7115
        %v7804 = vmul.f32 %v7117, %v7117
        %v7805 = vmul.f32 %v7119, %v7119
        %v7806 = vmul.f32 %v7121, %v7121
        %v7807 = vmul.f32 %v7125, %v7125
        %v7808 = vmul.f32 %v7127, %v7127
        %v7809 = vmul.f32 %v7129, %v7129
        %v7810 = vmul.f32 %v7131, %v7131
        %v7811 = vmul.f32 %v7135, %v7135
        %v7812 = vmul.f32 %v7137, %v7137
        %v7813 = vmul.f32 %v7139, %v7139
        %v7814 = vmul.f32 %v7141, %v7141
        %v7815 = vmul.f32 %v7145, %v7145
        %v7816 = vmul.f32 %v7147, %v7147
        %v7817 = vmul.f32 %v7149, %v7149
        %v7818 = vmul.f32 %v7151, %v7151
        %v7819 = vmul.f32 %v7155, %v7155
        %v7820 = vmul.f32 %v7157, %v7157
        %v7821 = vmul.f32 %v7159, %v7159
        %v7822 = vmul.f32 %v7161, %v7161
        %v7823 = vmul.f32 %v7165, %v7165
        %v7824 = vmul.f32 %v7167, %v7167
        %v7825 = vmul.f32 %v7169, %v7169
        %v7826 = vmul.f32 %v7171, %v7171
        %v7827 = vmul.f32 %v7175, %v7175
        %v7828 = vmul.f32 %v7177, %v7177
        %v7829 = vmul.f32 %v7179, %v7179
        %v7830 = vmul.f32 %v7181, %v7181
        %v7831 = vmul.f32 %v7185, %v7185
        %v7832 = vmul.f32 %v7187, %v7187
        %v7833 = vmul.f32 %v7189, %v7189
        %v7834 = vmul.f32 %v7191, %v7191
        %v7835 = vmul.f32 %v7195, %v7195
        %v7836 = vmul.f32 %v7197, %v7197
        %v7837 = vmul.f32 %v7199, %v7199
        %v7838 = vmul.f32 %v7201, %v7201
        %v7839 = vmul.f32 %v7205, %v7205
        %v7840 = vmul.f32 %v7207, %v7207
        %v7841 = vmul.f32 %v7209, %v7209
        %v7842 = vmul.f32 %v7211, %v7211
        %v7843 = vmul.f32 %v7215, %v7215
        %v7844 = vmul.f32 %v7217, %v7217
        %v7845 = vmul.f32 %v7219, %v7219
        %v7846 = vmul.f32 %v7221, %v7221
        %v7847 = vmul.f32 %v7225, %v7225
        %v7848 = vmul.f32 %v7227, %v7227
        %v7849 = vmul.f32 %v7229, %v7229
        %v7850 = vmul.f32 %v7231, %v7231
        %v7851 = vmul.f32 %v7235, %v7235
        %v7852 = vmul.f32 %v7237, %v7237
        %v7853 = vmul.f32 %v7239, %v7239
        %v7854 = vmul.f32 %v7241, %v7241
        %v7855 = vmul.f32 %v7245, %v7245
        %v7856 = vmul.f32 %v7247, %v7247
        %v7857 = vmul.f32 %v7249, %v7249
        %v7858 = vmul.f32 %v7251, %v7251
        %v7859 = vmul.f32 %v7255, %v7255
        %v7860 = vmul.f32 %v7257, %v7257
        %v7861 = vmul.f32 %v7259, %v7259
        %v7862 = vmul.f32 %v7261, %v7261
        %v7863 = vmul.f32 %v7265, %v7265
        %v7864 = vmul.f32 %v7267, %v7267
        %v7865 = vmul.f32 %v7269, %v7269
        %v7866 = vmul.f32 %v7271, %v7271
        %v7867 = vadd.f32 %v7611, %v7613
        %v7868 = vadd.f32 %v7867, %v7615
        %v7869 = vadd.f32 %v7868, %v7617
        %v7870 = vadd.f32 %v7869, %v7619
        %v7871 = vadd.f32 %v7870, %v7621
        %v7872 = vadd.f32 %v7871, %v7623
        %v7873 = vadd.f32 %v7872, %v7625
        %v7874 = vadd.f32 %v7873, %v7627
        %v7875 = vadd.f32 %v7874, %v7629
        %v7876 = vadd.f32 %v7875, %v7631
        %v7877 = vadd.f32 %v7876, %v7633
        %v7878 = vadd.f32 %v7877, %v7635
        %v7879 = vadd.f32 %v7878, %v7637
        %v7880 = vadd.f32 %v7879, %v7639
        %v7881 = vadd.f32 %v7880, %v7641
        %v7882 = vrot.slane %v7881, 4
        %v7883 = vadd.f32 %v7881, %v7882
        %v7884 = vrot.slane %v7883, 2
        %v7885 = vadd.f32 %v7883, %v7884
        %v7886 = vrot.slane %v7885, 1
        %v7887 = vadd.f32 %v7885, %v7886
        %v7888 = vadd.f32 %v7612, %v7614
        %v7889 = vadd.f32 %v7888, %v7616
        %v7890 = vadd.f32 %v7889, %v7618
        %v7891 = vadd.f32 %v7890, %v7620
        %v7892 = vadd.f32 %v7891, %v7622
        %v7893 = vadd.f32 %v7892, %v7624
        %v7894 = vadd.f32 %v7893, %v7626
        %v7895 = vadd.f32 %v7894, %v7628
        %v7896 = vadd.f32 %v7895, %v7630
        %v7897 = vadd.f32 %v7896, %v7632
        %v7898 = vadd.f32 %v7897, %v7634
        %v7899 = vadd.f32 %v7898, %v7636
        %v7900 = vadd.f32 %v7899, %v7638
        %v7901 = vadd.f32 %v7900, %v7640
        %v7902 = vadd.f32 %v7901, %v7642
        %v7903 = vrot.slane %v7902, 4
        %v7904 = vadd.f32 %v7902, %v7903
        %v7905 = vrot.slane %v7904, 2
        %v7906 = vadd.f32 %v7904, %v7905
        %v7907 = vrot.slane %v7906, 1
        %v7908 = vadd.f32 %v7906, %v7907
        %v7909 = vadd.f32 %v7643, %v7645
        %v7910 = vadd.f32 %v7909, %v7647
        %v7911 = vadd.f32 %v7910, %v7649
        %v7912 = vadd.f32 %v7911, %v7651
        %v7913 = vadd.f32 %v7912, %v7653
        %v7914 = vadd.f32 %v7913, %v7655
        %v7915 = vadd.f32 %v7914, %v7657
        %v7916 = vadd.f32 %v7915, %v7659
        %v7917 = vadd.f32 %v7916, %v7661
        %v7918 = vadd.f32 %v7917, %v7663
        %v7919 = vadd.f32 %v7918, %v7665
        %v7920 = vadd.f32 %v7919, %v7667
        %v7921 = vadd.f32 %v7920, %v7669
        %v7922 = vadd.f32 %v7921, %v7671
        %v7923 = vadd.f32 %v7922, %v7673
        %v7924 = vrot.slane %v7923, 4
        %v7925 = vadd.f32 %v7923, %v7924
        %v7926 = vrot.slane %v7925, 2
        %v7927 = vadd.f32 %v7925, %v7926
        %v7928 = vrot.slane %v7927, 1
        %v7929 = vadd.f32 %v7927, %v7928
        %v7930 = vadd.f32 %v7644, %v7646
        %v7931 = vadd.f32 %v7930, %v7648
        %v7932 = vadd.f32 %v7931, %v7650
        %v7933 = vadd.f32 %v7932, %v7652
        %v7934 = vadd.f32 %v7933, %v7654
        %v7935 = vadd.f32 %v7934, %v7656
        %v7936 = vadd.f32 %v7935, %v7658
        %v7937 = vadd.f32 %v7936, %v7660
        %v7938 = vadd.f32 %v7937, %v7662
        %v7939 = vadd.f32 %v7938, %v7664
        %v7940 = vadd.f32 %v7939, %v7666
        %v7941 = vadd.f32 %v7940, %v7668
        %v7942 = vadd.f32 %v7941, %v7670
        %v7943 = vadd.f32 %v7942, %v7672
        %v7944 = vadd.f32 %v7943, %v7674
        %v7945 = vrot.slane %v7944, 4
        %v7946 = vadd.f32 %v7944, %v7945
        %v7947 = vrot.slane %v7946, 2
        %v7948 = vadd.f32 %v7946, %v7947
        %v7949 = vrot.slane %v7948, 1
        %v7950 = vadd.f32 %v7948, %v7949
        %v7951 = vadd.f32 %v7675, %v7677
        %v7952 = vadd.f32 %v7951, %v7679
        %v7953 = vadd.f32 %v7952, %v7681
        %v7954 = vadd.f32 %v7953, %v7683
        %v7955 = vadd.f32 %v7954, %v7685
        %v7956 = vadd.f32 %v7955, %v7687
        %v7957 = vadd.f32 %v7956, %v7689
        %v7958 = vadd.f32 %v7957, %v7691
        %v7959 = vadd.f32 %v7958, %v7693
        %v7960 = vadd.f32 %v7959, %v7695
        %v7961 = vadd.f32 %v7960, %v7697
        %v7962 = vadd.f32 %v7961, %v7699
        %v7963 = vadd.f32 %v7962, %v7701
        %v7964 = vadd.f32 %v7963, %v7703
        %v7965 = vadd.f32 %v7964, %v7705
        %v7966 = vrot.slane %v7965, 4
        %v7967 = vadd.f32 %v7965, %v7966
        %v7968 = vrot.slane %v7967, 2
        %v7969 = vadd.f32 %v7967, %v7968
        %v7970 = vrot.slane %v7969, 1
        %v7971 = vadd.f32 %v7969, %v7970
        %v7972 = vadd.f32 %v7676, %v7678
        %v7973 = vadd.f32 %v7972, %v7680
        %v7974 = vadd.f32 %v7973, %v7682
        %v7975 = vadd.f32 %v7974, %v7684
        %v7976 = vadd.f32 %v7975, %v7686
        %v7977 = vadd.f32 %v7976, %v7688
        %v7978 = vadd.f32 %v7977, %v7690
        %v7979 = vadd.f32 %v7978, %v7692
        %v7980 = vadd.f32 %v7979, %v7694
        %v7981 = vadd.f32 %v7980, %v7696
        %v7982 = vadd.f32 %v7981, %v7698
        %v7983 = vadd.f32 %v7982, %v7700
        %v7984 = vadd.f32 %v7983, %v7702
        %v7985 = vadd.f32 %v7984, %v7704
        %v7986 = vadd.f32 %v7985, %v7706
        %v7987 = vrot.slane %v7986, 4
        %v7988 = vadd.f32 %v7986, %v7987
        %v7989 = vrot.slane %v7988, 2
        %v7990 = vadd.f32 %v7988, %v7989
        %v7991 = vrot.slane %v7990, 1
        %v7992 = vadd.f32 %v7990, %v7991
        %v7993 = vadd.f32 %v7707, %v7709
        %v7994 = vadd.f32 %v7993, %v7711
        %v7995 = vadd.f32 %v7994, %v7713
        %v7996 = vadd.f32 %v7995, %v7715
        %v7997 = vadd.f32 %v7996, %v7717
        %v7998 = vadd.f32 %v7997, %v7719
        %v7999 = vadd.f32 %v7998, %v7721
        %v8000 = vadd.f32 %v7999, %v7723
        %v8001 = vadd.f32 %v8000, %v7725
        %v8002 = vadd.f32 %v8001, %v7727
        %v8003 = vadd.f32 %v8002, %v7729
        %v8004 = vadd.f32 %v8003, %v7731
        %v8005 = vadd.f32 %v8004, %v7733
        %v8006 = vadd.f32 %v8005, %v7735
        %v8007 = vadd.f32 %v8006, %v7737
        %v8008 = vrot.slane %v8007, 4
        %v8009 = vadd.f32 %v8007, %v8008
        %v8010 = vrot.slane %v8009, 2
        %v8011 = vadd.f32 %v8009, %v8010
        %v8012 = vrot.slane %v8011, 1
        %v8013 = vadd.f32 %v8011, %v8012
        %v8014 = vadd.f32 %v7708, %v7710
        %v8015 = vadd.f32 %v8014, %v7712
        %v8016 = vadd.f32 %v8015, %v7714
        %v8017 = vadd.f32 %v8016, %v7716
        %v8018 = vadd.f32 %v8017, %v7718
        %v8019 = vadd.f32 %v8018, %v7720
        %v8020 = vadd.f32 %v8019, %v7722
        %v8021 = vadd.f32 %v8020, %v7724
        %v8022 = vadd.f32 %v8021, %v7726
        %v8023 = vadd.f32 %v8022, %v7728
        %v8024 = vadd.f32 %v8023, %v7730
        %v8025 = vadd.f32 %v8024, %v7732
        %v8026 = vadd.f32 %v8025, %v7734
        %v8027 = vadd.f32 %v8026, %v7736
        %v8028 = vadd.f32 %v8027, %v7738
        %v8029 = vrot.slane %v8028, 4
        %v8030 = vadd.f32 %v8028, %v8029
        %v8031 = vrot.slane %v8030, 2
        %v8032 = vadd.f32 %v8030, %v8031
        %v8033 = vrot.slane %v8032, 1
        %v8034 = vadd.f32 %v8032, %v8033
        %v8035 = vadd.f32 %v7739, %v7741
        %v8036 = vadd.f32 %v8035, %v7743
        %v8037 = vadd.f32 %v8036, %v7745
        %v8038 = vadd.f32 %v8037, %v7747
        %v8039 = vadd.f32 %v8038, %v7749
        %v8040 = vadd.f32 %v8039, %v7751
        %v8041 = vadd.f32 %v8040, %v7753
        %v8042 = vadd.f32 %v8041, %v7755
        %v8043 = vadd.f32 %v8042, %v7757
        %v8044 = vadd.f32 %v8043, %v7759
        %v8045 = vadd.f32 %v8044, %v7761
        %v8046 = vadd.f32 %v8045, %v7763
        %v8047 = vadd.f32 %v8046, %v7765
        %v8048 = vadd.f32 %v8047, %v7767
        %v8049 = vadd.f32 %v8048, %v7769
        %v8050 = vrot.slane %v8049, 4
        %v8051 = vadd.f32 %v8049, %v8050
        %v8052 = vrot.slane %v8051, 2
        %v8053 = vadd.f32 %v8051, %v8052
        %v8054 = vrot.slane %v8053, 1
        %v8055 = vadd.f32 %v8053, %v8054
        %v8056 = vadd.f32 %v7740, %v7742
        %v8057 = vadd.f32 %v8056, %v7744
        %v8058 = vadd.f32 %v8057, %v7746
        %v8059 = vadd.f32 %v8058, %v7748
        %v8060 = vadd.f32 %v8059, %v7750
        %v8061 = vadd.f32 %v8060, %v7752
        %v8062 = vadd.f32 %v8061, %v7754
        %v8063 = vadd.f32 %v8062, %v7756
        %v8064 = vadd.f32 %v8063, %v7758
        %v8065 = vadd.f32 %v8064, %v7760
        %v8066 = vadd.f32 %v8065, %v7762
        %v8067 = vadd.f32 %v8066, %v7764
        %v8068 = vadd.f32 %v8067, %v7766
        %v8069 = vadd.f32 %v8068, %v7768
        %v8070 = vadd.f32 %v8069, %v7770
        %v8071 = vrot.slane %v8070, 4
        %v8072 = vadd.f32 %v8070, %v8071
        %v8073 = vrot.slane %v8072, 2
        %v8074 = vadd.f32 %v8072, %v8073
        %v8075 = vrot.slane %v8074, 1
        %v8076 = vadd.f32 %v8074, %v8075
        %v8077 = vadd.f32 %v7771, %v7773
        %v8078 = vadd.f32 %v8077, %v7775
        %v8079 = vadd.f32 %v8078, %v7777
        %v8080 = vadd.f32 %v8079, %v7779
        %v8081 = vadd.f32 %v8080, %v7781
        %v8082 = vadd.f32 %v8081, %v7783
        %v8083 = vadd.f32 %v8082, %v7785
        %v8084 = vadd.f32 %v8083, %v7787
        %v8085 = vadd.f32 %v8084, %v7789
        %v8086 = vadd.f32 %v8085, %v7791
        %v8087 = vadd.f32 %v8086, %v7793
        %v8088 = vadd.f32 %v8087, %v7795
        %v8089 = vadd.f32 %v8088, %v7797
        %v8090 = vadd.f32 %v8089, %v7799
        %v8091 = vadd.f32 %v8090, %v7801
        %v8092 = vrot.slane %v8091, 4
        %v8093 = vadd.f32 %v8091, %v8092
        %v8094 = vrot.slane %v8093, 2
        %v8095 = vadd.f32 %v8093, %v8094
        %v8096 = vrot.slane %v8095, 1
        %v8097 = vadd.f32 %v8095, %v8096
        %v8098 = vadd.f32 %v7772, %v7774
        %v8099 = vadd.f32 %v8098, %v7776
        %v8100 = vadd.f32 %v8099, %v7778
        %v8101 = vadd.f32 %v8100, %v7780
        %v8102 = vadd.f32 %v8101, %v7782
        %v8103 = vadd.f32 %v8102, %v7784
        %v8104 = vadd.f32 %v8103, %v7786
        %v8105 = vadd.f32 %v8104, %v7788
        %v8106 = vadd.f32 %v8105, %v7790
        %v8107 = vadd.f32 %v8106, %v7792
        %v8108 = vadd.f32 %v8107, %v7794
        %v8109 = vadd.f32 %v8108, %v7796
        %v8110 = vadd.f32 %v8109, %v7798
        %v8111 = vadd.f32 %v8110, %v7800
        %v8112 = vadd.f32 %v8111, %v7802
        %v8113 = vrot.slane %v8112, 4
        %v8114 = vadd.f32 %v8112, %v8113
        %v8115 = vrot.slane %v8114, 2
        %v8116 = vadd.f32 %v8114, %v8115
        %v8117 = vrot.slane %v8116, 1
        %v8118 = vadd.f32 %v8116, %v8117
        %v8119 = vadd.f32 %v7803, %v7805
        %v8120 = vadd.f32 %v8119, %v7807
        %v8121 = vadd.f32 %v8120, %v7809
        %v8122 = vadd.f32 %v8121, %v7811
        %v8123 = vadd.f32 %v8122, %v7813
        %v8124 = vadd.f32 %v8123, %v7815
        %v8125 = vadd.f32 %v8124, %v7817
        %v8126 = vadd.f32 %v8125, %v7819
        %v8127 = vadd.f32 %v8126, %v7821
        %v8128 = vadd.f32 %v8127, %v7823
        %v8129 = vadd.f32 %v8128, %v7825
        %v8130 = vadd.f32 %v8129, %v7827
        %v8131 = vadd.f32 %v8130, %v7829
        %v8132 = vadd.f32 %v8131, %v7831
        %v8133 = vadd.f32 %v8132, %v7833
        %v8134 = vrot.slane %v8133, 4
        %v8135 = vadd.f32 %v8133, %v8134
        %v8136 = vrot.slane %v8135, 2
        %v8137 = vadd.f32 %v8135, %v8136
        %v8138 = vrot.slane %v8137, 1
        %v8139 = vadd.f32 %v8137, %v8138
        %v8140 = vadd.f32 %v7804, %v7806
        %v8141 = vadd.f32 %v8140, %v7808
        %v8142 = vadd.f32 %v8141, %v7810
        %v8143 = vadd.f32 %v8142, %v7812
        %v8144 = vadd.f32 %v8143, %v7814
        %v8145 = vadd.f32 %v8144, %v7816
        %v8146 = vadd.f32 %v8145, %v7818
        %v8147 = vadd.f32 %v8146, %v7820
        %v8148 = vadd.f32 %v8147, %v7822
        %v8149 = vadd.f32 %v8148, %v7824
        %v8150 = vadd.f32 %v8149, %v7826
        %v8151 = vadd.f32 %v8150, %v7828
        %v8152 = vadd.f32 %v8151, %v7830
        %v8153 = vadd.f32 %v8152, %v7832
        %v8154 = vadd.f32 %v8153, %v7834
        %v8155 = vrot.slane %v8154, 4
        %v8156 = vadd.f32 %v8154, %v8155
        %v8157 = vrot.slane %v8156, 2
        %v8158 = vadd.f32 %v8156, %v8157
        %v8159 = vrot.slane %v8158, 1
        %v8160 = vadd.f32 %v8158, %v8159
        %v8161 = vadd.f32 %v7835, %v7837
        %v8162 = vadd.f32 %v8161, %v7839
        %v8163 = vadd.f32 %v8162, %v7841
        %v8164 = vadd.f32 %v8163, %v7843
        %v8165 = vadd.f32 %v8164, %v7845
        %v8166 = vadd.f32 %v8165, %v7847
        %v8167 = vadd.f32 %v8166, %v7849
        %v8168 = vadd.f32 %v8167, %v7851
        %v8169 = vadd.f32 %v8168, %v7853
        %v8170 = vadd.f32 %v8169, %v7855
        %v8171 = vadd.f32 %v8170, %v7857
        %v8172 = vadd.f32 %v8171, %v7859
        %v8173 = vadd.f32 %v8172, %v7861
        %v8174 = vadd.f32 %v8173, %v7863
        %v8175 = vadd.f32 %v8174, %v7865
        %v8176 = vrot.slane %v8175, 4
        %v8177 = vadd.f32 %v8175, %v8176
        %v8178 = vrot.slane %v8177, 2
        %v8179 = vadd.f32 %v8177, %v8178
        %v8180 = vrot.slane %v8179, 1
        %v8181 = vadd.f32 %v8179, %v8180
        %v8182 = vadd.f32 %v7836, %v7838
        %v8183 = vadd.f32 %v8182, %v7840
        %v8184 = vadd.f32 %v8183, %v7842
        %v8185 = vadd.f32 %v8184, %v7844
        %v8186 = vadd.f32 %v8185, %v7846
        %v8187 = vadd.f32 %v8186, %v7848
        %v8188 = vadd.f32 %v8187, %v7850
        %v8189 = vadd.f32 %v8188, %v7852
        %v8190 = vadd.f32 %v8189, %v7854
        %v8191 = vadd.f32 %v8190, %v7856
        %v8192 = vadd.f32 %v8191, %v7858
        %v8193 = vadd.f32 %v8192, %v7860
        %v8194 = vadd.f32 %v8193, %v7862
        %v8195 = vadd.f32 %v8194, %v7864
        %v8196 = vadd.f32 %v8195, %v7866
        %v8197 = vrot.slane %v8196, 4
        %v8198 = vadd.f32 %v8196, %v8197
        %v8199 = vrot.slane %v8198, 2
        %v8200 = vadd.f32 %v8198, %v8199
        %v8201 = vrot.slane %v8200, 1
        %v8202 = vadd.f32 %v8200, %v8201
        %8211 = vrot.lane.b32.xlu0 %v7295, 96
        %v8212 = vpop.permute.xlu0 %8211
        %8213 = vrot.lane.b32.xlu0 %v7337, 96
        %v8214 = vpop.permute.xlu0 %8213
        %8215 = vrot.lane.b32.xlu0 %v7379, 96
        %v8216 = vpop.permute.xlu0 %8215
        %8217 = vrot.lane.b32.xlu0 %v7421, 96
        %v8218 = vpop.permute.xlu0 %8217
        %8219 = vrot.lane.b32.xlu0 %v7463, 96
        %v8220 = vpop.permute.xlu0 %8219
        %8221 = vrot.lane.b32.xlu0 %v7505, 96
        %v8222 = vpop.permute.xlu0 %8221
        %8223 = vrot.lane.b32.xlu0 %v7547, 96
        %v8224 = vpop.permute.xlu0 %8223
        %8225 = vrot.lane.b32.xlu0 %v7589, 96
        %v8226 = vpop.permute.xlu0 %8225
        %8227 = vrot.lane.b32.xlu0 %v7295, 64
        %v8228 = vpop.permute.xlu0 %8227
        %8229 = vrot.lane.b32.xlu0 %v7337, 64
        %v8230 = vpop.permute.xlu0 %8229
        %8231 = vrot.lane.b32.xlu0 %v7379, 64
        %v8232 = vpop.permute.xlu0 %8231
        %8233 = vrot.lane.b32.xlu0 %v7421, 64
        %v8234 = vpop.permute.xlu0 %8233
        %8235 = vrot.lane.b32.xlu0 %v7463, 64
        %v8236 = vpop.permute.xlu0 %8235
        %8237 = vrot.lane.b32.xlu0 %v7505, 64
        %v8238 = vpop.permute.xlu0 %8237
        %8239 = vrot.lane.b32.xlu0 %v7547, 64
        %v8240 = vpop.permute.xlu0 %8239
        %8241 = vrot.lane.b32.xlu0 %v7589, 64
        %v8242 = vpop.permute.xlu0 %8241
        %8243 = vrot.lane.b32.xlu0 %v7295, 32
        %v8244 = vpop.permute.xlu0 %8243
        %8245 = vrot.lane.b32.xlu0 %v7337, 32
        %v8246 = vpop.permute.xlu0 %8245
        %8247 = vrot.lane.b32.xlu0 %v7379, 32
        %v8248 = vpop.permute.xlu0 %8247
        %8249 = vrot.lane.b32.xlu0 %v7421, 32
        %v8250 = vpop.permute.xlu0 %8249
        %8251 = vrot.lane.b32.xlu0 %v7463, 32
        %v8252 = vpop.permute.xlu0 %8251
        %8253 = vrot.lane.b32.xlu0 %v7505, 32
        %v8254 = vpop.permute.xlu0 %8253
        %8255 = vrot.lane.b32.xlu0 %v7547, 32
        %v8256 = vpop.permute.xlu0 %8255
        %8257 = vrot.lane.b32.xlu0 %v7589, 32
        %v8258 = vpop.permute.xlu0 %8257
        %8267 = vrot.lane.b32.xlu0 %v7316, 96
        %v8268 = vpop.permute.xlu0 %8267
        %8269 = vrot.lane.b32.xlu0 %v7358, 96
        %v8270 = vpop.permute.xlu0 %8269
        %8271 = vrot.lane.b32.xlu0 %v7400, 96
        %v8272 = vpop.permute.xlu0 %8271
        %8273 = vrot.lane.b32.xlu0 %v7442, 96
        %v8274 = vpop.permute.xlu0 %8273
        %8275 = vrot.lane.b32.xlu0 %v7484, 96
        %v8276 = vpop.permute.xlu0 %8275
        %8277 = vrot.lane.b32.xlu0 %v7526, 96
        %v8278 = vpop.permute.xlu0 %8277
        %8279 = vrot.lane.b32.xlu0 %v7568, 96
        %v8280 = vpop.permute.xlu0 %8279
        %8281 = vrot.lane.b32.xlu0 %v7610, 96
        %v8282 = vpop.permute.xlu0 %8281
        %8283 = vrot.lane.b32.xlu0 %v7316, 64
        %v8284 = vpop.permute.xlu0 %8283
        %8285 = vrot.lane.b32.xlu0 %v7358, 64
        %v8286 = vpop.permute.xlu0 %8285
        %8287 = vrot.lane.b32.xlu0 %v7400, 64
        %v8288 = vpop.permute.xlu0 %8287
        %8289 = vrot.lane.b32.xlu0 %v7442, 64
        %v8290 = vpop.permute.xlu0 %8289
        %8291 = vrot.lane.b32.xlu0 %v7484, 64
        %v8292 = vpop.permute.xlu0 %8291
        %8293 = vrot.lane.b32.xlu0 %v7526, 64
        %v8294 = vpop.permute.xlu0 %8293
        %8295 = vrot.lane.b32.xlu0 %v7568, 64
        %v8296 = vpop.permute.xlu0 %8295
        %8297 = vrot.lane.b32.xlu0 %v7610, 64
        %v8298 = vpop.permute.xlu0 %8297
        %8299 = vrot.lane.b32.xlu0 %v7316, 32
        %v8300 = vpop.permute.xlu0 %8299
        %8301 = vrot.lane.b32.xlu0 %v7358, 32
        %v8302 = vpop.permute.xlu0 %8301
        %8303 = vrot.lane.b32.xlu0 %v7400, 32
        %v8304 = vpop.permute.xlu0 %8303
        %8305 = vrot.lane.b32.xlu0 %v7442, 32
        %v8306 = vpop.permute.xlu0 %8305
        %8307 = vrot.lane.b32.xlu0 %v7484, 32
        %v8308 = vpop.permute.xlu0 %8307
        %8309 = vrot.lane.b32.xlu0 %v7526, 32
        %v8310 = vpop.permute.xlu0 %8309
        %8311 = vrot.lane.b32.xlu0 %v7568, 32
        %v8312 = vpop.permute.xlu0 %8311
        %8313 = vrot.lane.b32.xlu0 %v7610, 32
        %v8314 = vpop.permute.xlu0 %8313
        %v8315 = vrot.slane %v7337, 7
        %v8316 = vsel %vm1414, %v8315, %v7295
        %v8317 = vrot.slane %v7379, 6
        %v8318 = vsel %vm1417, %v8317, %v8316
        %v8319 = vrot.slane %v7421, 5
        %v8320 = vsel %vm1420, %v8319, %v8318
        %v8321 = vrot.slane %v7463, 4
        %v8322 = vsel %vm1423, %v8321, %v8320
        %v8323 = vrot.slane %v7505, 3
        %v8324 = vsel %vm1426, %v8323, %v8322
        %v8325 = vrot.slane %v7547, 2
        %v8326 = vsel %vm1429, %v8325, %v8324
        %v8327 = vrot.slane %v7589, 1
        %v8328 = vsel %vm1432, %v8327, %v8326
        %v8329 = vrot.slane %v8214, 7
        %v8330 = vsel %vm1414, %v8329, %v8212
        %v8331 = vrot.slane %v8216, 6
        %v8332 = vsel %vm1417, %v8331, %v8330
        %v8333 = vrot.slane %v8218, 5
        %v8334 = vsel %vm1420, %v8333, %v8332
        %v8335 = vrot.slane %v8220, 4
        %v8336 = vsel %vm1423, %v8335, %v8334
        %v8337 = vrot.slane %v8222, 3
        %v8338 = vsel %vm1426, %v8337, %v8336
        %v8339 = vrot.slane %v8224, 2
        %v8340 = vsel %vm1429, %v8339, %v8338
        %v8341 = vrot.slane %v8226, 1
        %v8342 = vsel %vm1432, %v8341, %v8340
        %v8343 = vrot.slane %v8230, 7
        %v8344 = vsel %vm1414, %v8343, %v8228
        %v8345 = vrot.slane %v8232, 6
        %v8346 = vsel %vm1417, %v8345, %v8344
        %v8347 = vrot.slane %v8234, 5
        %v8348 = vsel %vm1420, %v8347, %v8346
        %v8349 = vrot.slane %v8236, 4
        %v8350 = vsel %vm1423, %v8349, %v8348
        %v8351 = vrot.slane %v8238, 3
        %v8352 = vsel %vm1426, %v8351, %v8350
        %v8353 = vrot.slane %v8240, 2
        %v8354 = vsel %vm1429, %v8353, %v8352
        %v8355 = vrot.slane %v8242, 1
        %v8356 = vsel %vm1432, %v8355, %v8354
        %v8357 = vrot.slane %v8246, 7
        %v8358 = vsel %vm1414, %v8357, %v8244
        %v8359 = vrot.slane %v8248, 6
        %v8360 = vsel %vm1417, %v8359, %v8358
        %v8361 = vrot.slane %v8250, 5
        %v8362 = vsel %vm1420, %v8361, %v8360
        %v8363 = vrot.slane %v8252, 4
        %v8364 = vsel %vm1423, %v8363, %v8362
        %v8365 = vrot.slane %v8254, 3
        %v8366 = vsel %vm1426, %v8365, %v8364
        %v8367 = vrot.slane %v8256, 2
        %v8368 = vsel %vm1429, %v8367, %v8366
        %v8369 = vrot.slane %v8258, 1
        %v8370 = vsel %vm1432, %v8369, %v8368
        %v8371 = vrot.slane %v7358, 7
        %v8372 = vsel %vm1414, %v8371, %v7316
        %v8373 = vrot.slane %v7400, 6
        %v8374 = vsel %vm1417, %v8373, %v8372
        %v8375 = vrot.slane %v7442, 5
        %v8376 = vsel %vm1420, %v8375, %v8374
        %v8377 = vrot.slane %v7484, 4
        %v8378 = vsel %vm1423, %v8377, %v8376
        %v8379 = vrot.slane %v7526, 3
        %v8380 = vsel %vm1426, %v8379, %v8378
        %v8381 = vrot.slane %v7568, 2
        %v8382 = vsel %vm1429, %v8381, %v8380
        %v8383 = vrot.slane %v7610, 1
        %v8384 = vsel %vm1432, %v8383, %v8382
        %v8385 = vrot.slane %v8270, 7
        %v8386 = vsel %vm1414, %v8385, %v8268
        %v8387 = vrot.slane %v8272, 6
        %v8388 = vsel %vm1417, %v8387, %v8386
        %v8389 = vrot.slane %v8274, 5
        %v8390 = vsel %vm1420, %v8389, %v8388
        %v8391 = vrot.slane %v8276, 4
        %v8392 = vsel %vm1423, %v8391, %v8390
        %v8393 = vrot.slane %v8278, 3
        %v8394 = vsel %vm1426, %v8393, %v8392
        %v8395 = vrot.slane %v8280, 2
        %v8396 = vsel %vm1429, %v8395, %v8394
        %v8397 = vrot.slane %v8282, 1
        %v8398 = vsel %vm1432, %v8397, %v8396
        %v8399 = vrot.slane %v8286, 7
        %v8400 = vsel %vm1414, %v8399, %v8284
        %v8401 = vrot.slane %v8288, 6
        %v8402 = vsel %vm1417, %v8401, %v8400
        %v8403 = vrot.slane %v8290, 5
        %v8404 = vsel %vm1420, %v8403, %v8402
        %v8405 = vrot.slane %v8292, 4
        %v8406 = vsel %vm1423, %v8405, %v8404
        %v8407 = vrot.slane %v8294, 3
        %v8408 = vsel %vm1426, %v8407, %v8406
        %v8409 = vrot.slane %v8296, 2
        %v8410 = vsel %vm1429, %v8409, %v8408
        %v8411 = vrot.slane %v8298, 1
        %v8412 = vsel %vm1432, %v8411, %v8410
        %v8413 = vrot.slane %v8302, 7
        %v8414 = vsel %vm1414, %v8413, %v8300
        %v8415 = vrot.slane %v8304, 6
        %v8416 = vsel %vm1417, %v8415, %v8414
        %v8417 = vrot.slane %v8306, 5
        %v8418 = vsel %vm1420, %v8417, %v8416
        %v8419 = vrot.slane %v8308, 4
        %v8420 = vsel %vm1423, %v8419, %v8418
        %v8421 = vrot.slane %v8310, 3
        %v8422 = vsel %vm1426, %v8421, %v8420
        %v8423 = vrot.slane %v8312, 2
        %v8424 = vsel %vm1429, %v8423, %v8422
        %v8425 = vrot.slane %v8314, 1
        %v8426 = vsel %vm1432, %v8425, %v8424
        %v8435 = vcombine.low %v8328, %v8356
        %v8436 = vcombine.high %v8328, %v8356
        %v8438 = vunpack.c.l.s4 1983009808
        %v8439 = vunpack.c.0.s8 %v8438
        %v8440 = vlaneseq
        %v8441 = vshrl.u32 %v8440, 7
        %v8442 = vsub.s32 %v8439, %v8441
        %v8443 = vrot.slane %v8435, %v8442
        %v8445 = vunpack.c.l.s4 1983009808
        %v8446 = vunpack.c.0.s8 %v8445
        %v8447 = vlaneseq
        %v8448 = vshrl.u32 %v8447, 7
        %v8449 = vsub.s32 %v8446, %v8448
        %v8450 = vrot.slane %v8436, %v8449
        %v8451 = vcombine.low %v8342, %v8370
        %v8452 = vcombine.high %v8342, %v8370
        %v8454 = vunpack.c.l.s4 1983009808
        %v8455 = vunpack.c.0.s8 %v8454
        %v8456 = vlaneseq
        %v8457 = vshrl.u32 %v8456, 7
        %v8458 = vsub.s32 %v8455, %v8457
        %v8459 = vrot.slane %v8451, %v8458
        %v8461 = vunpack.c.l.s4 1983009808
        %v8462 = vunpack.c.0.s8 %v8461
        %v8463 = vlaneseq
        %v8464 = vshrl.u32 %v8463, 7
        %v8465 = vsub.s32 %v8462, %v8464
        %v8466 = vrot.slane %v8452, %v8465
        %v8467 = vcombine.low %v8384, %v8412
        %v8468 = vcombine.high %v8384, %v8412
        %v8470 = vunpack.c.l.s4 1983009808
        %v8471 = vunpack.c.0.s8 %v8470
        %v8472 = vlaneseq
        %v8473 = vshrl.u32 %v8472, 7
        %v8474 = vsub.s32 %v8471, %v8473
        %v8475 = vrot.slane %v8467, %v8474
        %v8477 = vunpack.c.l.s4 1983009808
        %v8478 = vunpack.c.0.s8 %v8477
        %v8479 = vlaneseq
        %v8480 = vshrl.u32 %v8479, 7
        %v8481 = vsub.s32 %v8478, %v8480
        %v8482 = vrot.slane %v8468, %v8481
        %v8483 = vcombine.low %v8398, %v8426
        %v8484 = vcombine.high %v8398, %v8426
        %v8486 = vunpack.c.l.s4 1983009808
        %v8487 = vunpack.c.0.s8 %v8486
        %v8488 = vlaneseq
        %v8489 = vshrl.u32 %v8488, 7
        %v8490 = vsub.s32 %v8487, %v8489
        %v8491 = vrot.slane %v8483, %v8490
        %v8493 = vunpack.c.l.s4 1983009808
        %v8494 = vunpack.c.0.s8 %v8493
        %v8495 = vlaneseq
        %v8496 = vshrl.u32 %v8495, 7
        %v8497 = vsub.s32 %v8494, %v8496
        %v8498 = vrot.slane %v8484, %v8497
        %v8499 = vcombine.low %v8443, %v8459
        %v8500 = vcombine.high %v8443, %v8459
        %v8502 = vunpack.c.l.s4 1934713408
        %v8503 = vunpack.c.0.s8 %v8502
        %v8504 = vlaneseq
        %v8505 = vshrl.u32 %v8504, 7
        %v8506 = vsub.s32 %v8503, %v8505
        %v8507 = vrot.slane %v8499, %v8506
        %v8509 = vunpack.c.l.s4 1934713408
        %v8510 = vunpack.c.0.s8 %v8509
        %v8511 = vlaneseq
        %v8512 = vshrl.u32 %v8511, 7
        %v8513 = vsub.s32 %v8510, %v8512
        %v8514 = vrot.slane %v8500, %v8513
        %v8515 = vcombine.low %v8450, %v8466
        %v8516 = vcombine.high %v8450, %v8466
        %v8518 = vunpack.c.l.s4 1934713408
        %v8519 = vunpack.c.0.s8 %v8518
        %v8520 = vlaneseq
        %v8521 = vshrl.u32 %v8520, 7
        %v8522 = vsub.s32 %v8519, %v8521
        %v8523 = vrot.slane %v8515, %v8522
        %v8525 = vunpack.c.l.s4 1934713408
        %v8526 = vunpack.c.0.s8 %v8525
        %v8527 = vlaneseq
        %v8528 = vshrl.u32 %v8527, 7
        %v8529 = vsub.s32 %v8526, %v8528
        %v8530 = vrot.slane %v8516, %v8529
        %v8531 = vcombine.low %v8475, %v8491
        %v8532 = vcombine.high %v8475, %v8491
        %v8534 = vunpack.c.l.s4 1934713408
        %v8535 = vunpack.c.0.s8 %v8534
        %v8536 = vlaneseq
        %v8537 = vshrl.u32 %v8536, 7
        %v8538 = vsub.s32 %v8535, %v8537
        %v8539 = vrot.slane %v8531, %v8538
        %v8541 = vunpack.c.l.s4 1934713408
        %v8542 = vunpack.c.0.s8 %v8541
        %v8543 = vlaneseq
        %v8544 = vshrl.u32 %v8543, 7
        %v8545 = vsub.s32 %v8542, %v8544
        %v8546 = vrot.slane %v8532, %v8545
        %v8547 = vcombine.low %v8482, %v8498
        %v8548 = vcombine.high %v8482, %v8498
        %v8550 = vunpack.c.l.s4 1934713408
        %v8551 = vunpack.c.0.s8 %v8550
        %v8552 = vlaneseq
        %v8553 = vshrl.u32 %v8552, 7
        %v8554 = vsub.s32 %v8551, %v8553
        %v8555 = vrot.slane %v8547, %v8554
        %v8557 = vunpack.c.l.s4 1934713408
        %v8558 = vunpack.c.0.s8 %v8557
        %v8559 = vlaneseq
        %v8560 = vshrl.u32 %v8559, 7
        %v8561 = vsub.s32 %v8558, %v8560
        %v8562 = vrot.slane %v8548, %v8561
        %v8563 = vcombine.low %v8507, %v8539
        %v8564 = vcombine.high %v8507, %v8539
        %v8565 = vcombine.low %v8514, %v8546
        %v8566 = vcombine.high %v8514, %v8546
        %v8567 = vcombine.low %v8523, %v8555
        %v8568 = vcombine.high %v8523, %v8555
        %v8569 = vcombine.low %v8530, %v8562
        %v8570 = vcombine.high %v8530, %v8562
        %v8571 = vsel %vm2327, %v8563, 0.0
        %8572 = vadd.xlane.f32.xlu0 %v8571
        %v8573 = vpop.xlane.xlu0 %8572
        %v8574 = vsel %vm2327, %v8564, 0.0
        %8575 = vadd.xlane.f32.xlu0 %v8574
        %v8576 = vpop.xlane.xlu0 %8575
        %v8577 = vsel %vm2327, %v8565, 0.0
        %8578 = vadd.xlane.f32.xlu0 %v8577
        %v8579 = vpop.xlane.xlu0 %8578
        %v8580 = vsel %vm2327, %v8566, 0.0
        %8581 = vadd.xlane.f32.xlu0 %v8580
        %v8582 = vpop.xlane.xlu0 %8581
        %v8583 = vsel %vm2327, %v8567, 0.0
        %8584 = vadd.xlane.f32.xlu0 %v8583
        %v8585 = vpop.xlane.xlu0 %8584
        %v8586 = vsel %vm2327, %v8568, 0.0
        %8587 = vadd.xlane.f32.xlu0 %v8586
        %v8588 = vpop.xlane.xlu0 %8587
        %v8589 = vsel %vm2327, %v8569, 0.0
        %8590 = vadd.xlane.f32.xlu0 %v8589
        %v8591 = vpop.xlane.xlu0 %8590
        %v8592 = vsel %vm2327, %v8570, 0.0
        %8593 = vadd.xlane.f32.xlu0 %v8592
        %v8594 = vpop.xlane.xlu0 %8593
        %8603 = vrot.lane.b32.xlu0 %v7887, 96
        %v8604 = vpop.permute.xlu0 %8603
        %8605 = vrot.lane.b32.xlu0 %v7929, 96
        %v8606 = vpop.permute.xlu0 %8605
        %8607 = vrot.lane.b32.xlu0 %v7971, 96
        %v8608 = vpop.permute.xlu0 %8607
        %8609 = vrot.lane.b32.xlu0 %v8013, 96
        %v8610 = vpop.permute.xlu0 %8609
        %8611 = vrot.lane.b32.xlu0 %v8055, 96
        %v8612 = vpop.permute.xlu0 %8611
        %8613 = vrot.lane.b32.xlu0 %v8097, 96
        %v8614 = vpop.permute.xlu0 %8613
        %8615 = vrot.lane.b32.xlu0 %v8139, 96
        %v8616 = vpop.permute.xlu0 %8615
        %8617 = vrot.lane.b32.xlu0 %v8181, 96
        %v8618 = vpop.permute.xlu0 %8617
        %8619 = vrot.lane.b32.xlu0 %v7887, 64
        %v8620 = vpop.permute.xlu0 %8619
        %8621 = vrot.lane.b32.xlu0 %v7929, 64
        %v8622 = vpop.permute.xlu0 %8621
        %8623 = vrot.lane.b32.xlu0 %v7971, 64
        %v8624 = vpop.permute.xlu0 %8623
        %8625 = vrot.lane.b32.xlu0 %v8013, 64
        %v8626 = vpop.permute.xlu0 %8625
        %8627 = vrot.lane.b32.xlu0 %v8055, 64
        %v8628 = vpop.permute.xlu0 %8627
        %8629 = vrot.lane.b32.xlu0 %v8097, 64
        %v8630 = vpop.permute.xlu0 %8629
        %8631 = vrot.lane.b32.xlu0 %v8139, 64
        %v8632 = vpop.permute.xlu0 %8631
        %8633 = vrot.lane.b32.xlu0 %v8181, 64
        %v8634 = vpop.permute.xlu0 %8633
        %8635 = vrot.lane.b32.xlu0 %v7887, 32
        %v8636 = vpop.permute.xlu0 %8635
        %8637 = vrot.lane.b32.xlu0 %v7929, 32
        %v8638 = vpop.permute.xlu0 %8637
        %8639 = vrot.lane.b32.xlu0 %v7971, 32
        %v8640 = vpop.permute.xlu0 %8639
        %8641 = vrot.lane.b32.xlu0 %v8013, 32
        %v8642 = vpop.permute.xlu0 %8641
        %8643 = vrot.lane.b32.xlu0 %v8055, 32
        %v8644 = vpop.permute.xlu0 %8643
        %8645 = vrot.lane.b32.xlu0 %v8097, 32
        %v8646 = vpop.permute.xlu0 %8645
        %8647 = vrot.lane.b32.xlu0 %v8139, 32
        %v8648 = vpop.permute.xlu0 %8647
        %8649 = vrot.lane.b32.xlu0 %v8181, 32
        %v8650 = vpop.permute.xlu0 %8649
        %8659 = vrot.lane.b32.xlu0 %v7908, 96
        %v8660 = vpop.permute.xlu0 %8659
        %8661 = vrot.lane.b32.xlu0 %v7950, 96
        %v8662 = vpop.permute.xlu0 %8661
        %8663 = vrot.lane.b32.xlu0 %v7992, 96
        %v8664 = vpop.permute.xlu0 %8663
        %8665 = vrot.lane.b32.xlu0 %v8034, 96
        %v8666 = vpop.permute.xlu0 %8665
        %8667 = vrot.lane.b32.xlu0 %v8076, 96
        %v8668 = vpop.permute.xlu0 %8667
        %8669 = vrot.lane.b32.xlu0 %v8118, 96
        %v8670 = vpop.permute.xlu0 %8669
        %8671 = vrot.lane.b32.xlu0 %v8160, 96
        %v8672 = vpop.permute.xlu0 %8671
        %8673 = vrot.lane.b32.xlu0 %v8202, 96
        %v8674 = vpop.permute.xlu0 %8673
        %8675 = vrot.lane.b32.xlu0 %v7908, 64
        %v8676 = vpop.permute.xlu0 %8675
        %8677 = vrot.lane.b32.xlu0 %v7950, 64
        %v8678 = vpop.permute.xlu0 %8677
        %8679 = vrot.lane.b32.xlu0 %v7992, 64
        %v8680 = vpop.permute.xlu0 %8679
        %8681 = vrot.lane.b32.xlu0 %v8034, 64
        %v8682 = vpop.permute.xlu0 %8681
        %8683 = vrot.lane.b32.xlu0 %v8076, 64
        %v8684 = vpop.permute.xlu0 %8683
        %8685 = vrot.lane.b32.xlu0 %v8118, 64
        %v8686 = vpop.permute.xlu0 %8685
        %8687 = vrot.lane.b32.xlu0 %v8160, 64
        %v8688 = vpop.permute.xlu0 %8687
        %8689 = vrot.lane.b32.xlu0 %v8202, 64
        %v8690 = vpop.permute.xlu0 %8689
        %8691 = vrot.lane.b32.xlu0 %v7908, 32
        %v8692 = vpop.permute.xlu0 %8691
        %8693 = vrot.lane.b32.xlu0 %v7950, 32
        %v8694 = vpop.permute.xlu0 %8693
        %8695 = vrot.lane.b32.xlu0 %v7992, 32
        %v8696 = vpop.permute.xlu0 %8695
        %8697 = vrot.lane.b32.xlu0 %v8034, 32
        %v8698 = vpop.permute.xlu0 %8697
        %8699 = vrot.lane.b32.xlu0 %v8076, 32
        %v8700 = vpop.permute.xlu0 %8699
        %8701 = vrot.lane.b32.xlu0 %v8118, 32
        %v8702 = vpop.permute.xlu0 %8701
        %8703 = vrot.lane.b32.xlu0 %v8160, 32
        %v8704 = vpop.permute.xlu0 %8703
        %8705 = vrot.lane.b32.xlu0 %v8202, 32
        %v8706 = vpop.permute.xlu0 %8705
        %v8707 = vrot.slane %v7929, 7
        %v8708 = vsel %vm1414, %v8707, %v7887
        %v8709 = vrot.slane %v7971, 6
        %v8710 = vsel %vm1417, %v8709, %v8708
        %v8711 = vrot.slane %v8013, 5
        %v8712 = vsel %vm1420, %v8711, %v8710
        %v8713 = vrot.slane %v8055, 4
        %v8714 = vsel %vm1423, %v8713, %v8712
        %v8715 = vrot.slane %v8097, 3
        %v8716 = vsel %vm1426, %v8715, %v8714
        %v8717 = vrot.slane %v8139, 2
        %v8718 = vsel %vm1429, %v8717, %v8716
        %v8719 = vrot.slane %v8181, 1
        %v8720 = vsel %vm1432, %v8719, %v8718
        %v8721 = vrot.slane %v8606, 7
        %v8722 = vsel %vm1414, %v8721, %v8604
        %v8723 = vrot.slane %v8608, 6
        %v8724 = vsel %vm1417, %v8723, %v8722
        %v8725 = vrot.slane %v8610, 5
        %v8726 = vsel %vm1420, %v8725, %v8724
        %v8727 = vrot.slane %v8612, 4
        %v8728 = vsel %vm1423, %v8727, %v8726
        %v8729 = vrot.slane %v8614, 3
        %v8730 = vsel %vm1426, %v8729, %v8728
        %v8731 = vrot.slane %v8616, 2
        %v8732 = vsel %vm1429, %v8731, %v8730
        %v8733 = vrot.slane %v8618, 1
        %v8734 = vsel %vm1432, %v8733, %v8732
        %v8735 = vrot.slane %v8622, 7
        %v8736 = vsel %vm1414, %v8735, %v8620
        %v8737 = vrot.slane %v8624, 6
        %v8738 = vsel %vm1417, %v8737, %v8736
        %v8739 = vrot.slane %v8626, 5
        %v8740 = vsel %vm1420, %v8739, %v8738
        %v8741 = vrot.slane %v8628, 4
        %v8742 = vsel %vm1423, %v8741, %v8740
        %v8743 = vrot.slane %v8630, 3
        %v8744 = vsel %vm1426, %v8743, %v8742
        %v8745 = vrot.slane %v8632, 2
        %v8746 = vsel %vm1429, %v8745, %v8744
        %v8747 = vrot.slane %v8634, 1
        %v8748 = vsel %vm1432, %v8747, %v8746
        %v8749 = vrot.slane %v8638, 7
        %v8750 = vsel %vm1414, %v8749, %v8636
        %v8751 = vrot.slane %v8640, 6
        %v8752 = vsel %vm1417, %v8751, %v8750
        %v8753 = vrot.slane %v8642, 5
        %v8754 = vsel %vm1420, %v8753, %v8752
        %v8755 = vrot.slane %v8644, 4
        %v8756 = vsel %vm1423, %v8755, %v8754
        %v8757 = vrot.slane %v8646, 3
        %v8758 = vsel %vm1426, %v8757, %v8756
        %v8759 = vrot.slane %v8648, 2
        %v8760 = vsel %vm1429, %v8759, %v8758
        %v8761 = vrot.slane %v8650, 1
        %v8762 = vsel %vm1432, %v8761, %v8760
        %v8763 = vrot.slane %v7950, 7
        %v8764 = vsel %vm1414, %v8763, %v7908
        %v8765 = vrot.slane %v7992, 6
        %v8766 = vsel %vm1417, %v8765, %v8764
        %v8767 = vrot.slane %v8034, 5
        %v8768 = vsel %vm1420, %v8767, %v8766
        %v8769 = vrot.slane %v8076, 4
        %v8770 = vsel %vm1423, %v8769, %v8768
        %v8771 = vrot.slane %v8118, 3
        %v8772 = vsel %vm1426, %v8771, %v8770
        %v8773 = vrot.slane %v8160, 2
        %v8774 = vsel %vm1429, %v8773, %v8772
        %v8775 = vrot.slane %v8202, 1
        %v8776 = vsel %vm1432, %v8775, %v8774
        %v8777 = vrot.slane %v8662, 7
        %v8778 = vsel %vm1414, %v8777, %v8660
        %v8779 = vrot.slane %v8664, 6
        %v8780 = vsel %vm1417, %v8779, %v8778
        %v8781 = vrot.slane %v8666, 5
        %v8782 = vsel %vm1420, %v8781, %v8780
        %v8783 = vrot.slane %v8668, 4
        %v8784 = vsel %vm1423, %v8783, %v8782
        %v8785 = vrot.slane %v8670, 3
        %v8786 = vsel %vm1426, %v8785, %v8784
        %v8787 = vrot.slane %v8672, 2
        %v8788 = vsel %vm1429, %v8787, %v8786
        %v8789 = vrot.slane %v8674, 1
        %v8790 = vsel %vm1432, %v8789, %v8788
        %v8791 = vrot.slane %v8678, 7
        %v8792 = vsel %vm1414, %v8791, %v8676
        %v8793 = vrot.slane %v8680, 6
        %v8794 = vsel %vm1417, %v8793, %v8792
        %v8795 = vrot.slane %v8682, 5
        %v8796 = vsel %vm1420, %v8795, %v8794
        %v8797 = vrot.slane %v8684, 4
        %v8798 = vsel %vm1423, %v8797, %v8796
        %v8799 = vrot.slane %v8686, 3
        %v8800 = vsel %vm1426, %v8799, %v8798
        %v8801 = vrot.slane %v8688, 2
        %v8802 = vsel %vm1429, %v8801, %v8800
        %v8803 = vrot.slane %v8690, 1
        %v8804 = vsel %vm1432, %v8803, %v8802
        %v8805 = vrot.slane %v8694, 7
        %v8806 = vsel %vm1414, %v8805, %v8692
        %v8807 = vrot.slane %v8696, 6
        %v8808 = vsel %vm1417, %v8807, %v8806
        %v8809 = vrot.slane %v8698, 5
        %v8810 = vsel %vm1420, %v8809, %v8808
        %v8811 = vrot.slane %v8700, 4
        %v8812 = vsel %vm1423, %v8811, %v8810
        %v8813 = vrot.slane %v8702, 3
        %v8814 = vsel %vm1426, %v8813, %v8812
        %v8815 = vrot.slane %v8704, 2
        %v8816 = vsel %vm1429, %v8815, %v8814
        %v8817 = vrot.slane %v8706, 1
        %v8818 = vsel %vm1432, %v8817, %v8816
        %v8827 = vcombine.low %v8720, %v8748
        %v8828 = vcombine.high %v8720, %v8748
        %v8830 = vunpack.c.l.s4 1983009808
        %v8831 = vunpack.c.0.s8 %v8830
        %v8832 = vlaneseq
        %v8833 = vshrl.u32 %v8832, 7
        %v8834 = vsub.s32 %v8831, %v8833
        %v8835 = vrot.slane %v8827, %v8834
        %v8837 = vunpack.c.l.s4 1983009808
        %v8838 = vunpack.c.0.s8 %v8837
        %v8839 = vlaneseq
        %v8840 = vshrl.u32 %v8839, 7
        %v8841 = vsub.s32 %v8838, %v8840
        %v8842 = vrot.slane %v8828, %v8841
        %v8843 = vcombine.low %v8734, %v8762
        %v8844 = vcombine.high %v8734, %v8762
        %v8846 = vunpack.c.l.s4 1983009808
        %v8847 = vunpack.c.0.s8 %v8846
        %v8848 = vlaneseq
        %v8849 = vshrl.u32 %v8848, 7
        %v8850 = vsub.s32 %v8847, %v8849
        %v8851 = vrot.slane %v8843, %v8850
        %v8853 = vunpack.c.l.s4 1983009808
        %v8854 = vunpack.c.0.s8 %v8853
        %v8855 = vlaneseq
        %v8856 = vshrl.u32 %v8855, 7
        %v8857 = vsub.s32 %v8854, %v8856
        %v8858 = vrot.slane %v8844, %v8857
        %v8859 = vcombine.low %v8776, %v8804
        %v8860 = vcombine.high %v8776, %v8804
        %v8862 = vunpack.c.l.s4 1983009808
        %v8863 = vunpack.c.0.s8 %v8862
        %v8864 = vlaneseq
        %v8865 = vshrl.u32 %v8864, 7
        %v8866 = vsub.s32 %v8863, %v8865
        %v8867 = vrot.slane %v8859, %v8866
        %v8869 = vunpack.c.l.s4 1983009808
        %v8870 = vunpack.c.0.s8 %v8869
        %v8871 = vlaneseq
        %v8872 = vshrl.u32 %v8871, 7
        %v8873 = vsub.s32 %v8870, %v8872
        %v8874 = vrot.slane %v8860, %v8873
        %v8875 = vcombine.low %v8790, %v8818
        %v8876 = vcombine.high %v8790, %v8818
        %v8878 = vunpack.c.l.s4 1983009808
        %v8879 = vunpack.c.0.s8 %v8878
        %v8880 = vlaneseq
        %v8881 = vshrl.u32 %v8880, 7
        %v8882 = vsub.s32 %v8879, %v8881
        %v8883 = vrot.slane %v8875, %v8882
        %v8885 = vunpack.c.l.s4 1983009808
        %v8886 = vunpack.c.0.s8 %v8885
        %v8887 = vlaneseq
        %v8888 = vshrl.u32 %v8887, 7
        %v8889 = vsub.s32 %v8886, %v8888
        %v8890 = vrot.slane %v8876, %v8889
        %v8891 = vcombine.low %v8835, %v8851
        %v8892 = vcombine.high %v8835, %v8851
        %v8894 = vunpack.c.l.s4 1934713408
        %v8895 = vunpack.c.0.s8 %v8894
        %v8896 = vlaneseq
        %v8897 = vshrl.u32 %v8896, 7
        %v8898 = vsub.s32 %v8895, %v8897
        %v8899 = vrot.slane %v8891, %v8898
        %v8901 = vunpack.c.l.s4 1934713408
        %v8902 = vunpack.c.0.s8 %v8901
        %v8903 = vlaneseq
        %v8904 = vshrl.u32 %v8903, 7
        %v8905 = vsub.s32 %v8902, %v8904
        %v8906 = vrot.slane %v8892, %v8905
        %v8907 = vcombine.low %v8842, %v8858
        %v8908 = vcombine.high %v8842, %v8858
        %v8910 = vunpack.c.l.s4 1934713408
        %v8911 = vunpack.c.0.s8 %v8910
        %v8912 = vlaneseq
        %v8913 = vshrl.u32 %v8912, 7
        %v8914 = vsub.s32 %v8911, %v8913
        %v8915 = vrot.slane %v8907, %v8914
        %v8917 = vunpack.c.l.s4 1934713408
        %v8918 = vunpack.c.0.s8 %v8917
        %v8919 = vlaneseq
        %v8920 = vshrl.u32 %v8919, 7
        %v8921 = vsub.s32 %v8918, %v8920
        %v8922 = vrot.slane %v8908, %v8921
        %v8923 = vcombine.low %v8867, %v8883
        %v8924 = vcombine.high %v8867, %v8883
        %v8926 = vunpack.c.l.s4 1934713408
        %v8927 = vunpack.c.0.s8 %v8926
        %v8928 = vlaneseq
        %v8929 = vshrl.u32 %v8928, 7
        %v8930 = vsub.s32 %v8927, %v8929
        %v8931 = vrot.slane %v8923, %v8930
        %v8933 = vunpack.c.l.s4 1934713408
        %v8934 = vunpack.c.0.s8 %v8933
        %v8935 = vlaneseq
        %v8936 = vshrl.u32 %v8935, 7
        %v8937 = vsub.s32 %v8934, %v8936
        %v8938 = vrot.slane %v8924, %v8937
        %v8939 = vcombine.low %v8874, %v8890
        %v8940 = vcombine.high %v8874, %v8890
        %v8942 = vunpack.c.l.s4 1934713408
        %v8943 = vunpack.c.0.s8 %v8942
        %v8944 = vlaneseq
        %v8945 = vshrl.u32 %v8944, 7
        %v8946 = vsub.s32 %v8943, %v8945
        %v8947 = vrot.slane %v8939, %v8946
        %v8949 = vunpack.c.l.s4 1934713408
        %v8950 = vunpack.c.0.s8 %v8949
        %v8951 = vlaneseq
        %v8952 = vshrl.u32 %v8951, 7
        %v8953 = vsub.s32 %v8950, %v8952
        %v8954 = vrot.slane %v8940, %v8953
        %v8955 = vcombine.low %v8899, %v8931
        %v8956 = vcombine.high %v8899, %v8931
        %v8957 = vcombine.low %v8906, %v8938
        %v8958 = vcombine.high %v8906, %v8938
        %v8959 = vcombine.low %v8915, %v8947
        %v8960 = vcombine.high %v8915, %v8947
        %v8961 = vcombine.low %v8922, %v8954
        %v8962 = vcombine.high %v8922, %v8954
        %v8963 = vsel %vm2327, %v8955, 0.0
        %8964 = vadd.xlane.f32.xlu0 %v8963
        %v8965 = vpop.xlane.xlu0 %8964
        %v8966 = vsel %vm2327, %v8956, 0.0
        %8967 = vadd.xlane.f32.xlu0 %v8966
        %v8968 = vpop.xlane.xlu0 %8967
        %v8969 = vsel %vm2327, %v8957, 0.0
        %8970 = vadd.xlane.f32.xlu0 %v8969
        %v8971 = vpop.xlane.xlu0 %8970
        %v8972 = vsel %vm2327, %v8958, 0.0
        %8973 = vadd.xlane.f32.xlu0 %v8972
        %v8974 = vpop.xlane.xlu0 %8973
        %v8975 = vsel %vm2327, %v8959, 0.0
        %8976 = vadd.xlane.f32.xlu0 %v8975
        %v8977 = vpop.xlane.xlu0 %8976
        %v8978 = vsel %vm2327, %v8960, 0.0
        %8979 = vadd.xlane.f32.xlu0 %v8978
        %v8980 = vpop.xlane.xlu0 %8979
        %v8981 = vsel %vm2327, %v8961, 0.0
        %8982 = vadd.xlane.f32.xlu0 %v8981
        %v8983 = vpop.xlane.xlu0 %8982
        %v8984 = vsel %vm2327, %v8962, 0.0
        %8985 = vadd.xlane.f32.xlu0 %v8984
        %v8986 = vpop.xlane.xlu0 %8985
        %v8987 = vrcp.pop 4096.0
        %v8988 = vmul.f32 %v8573, %v8987
        %v8989 = vmul.f32 %v8576, %v8987
        %v8990 = vmul.f32 %v8579, %v8987
        %v8991 = vmul.f32 %v8582, %v8987
        %v8992 = vmul.f32 %v8585, %v8987
        %v8993 = vmul.f32 %v8588, %v8987
        %v8994 = vmul.f32 %v8591, %v8987
        %v8995 = vmul.f32 %v8594, %v8987
        %v8996 = vmul.f32 %v8965, %v8987
        %v8997 = vmul.f32 %v8968, %v8987
        %v8998 = vmul.f32 %v8971, %v8987
        %v8999 = vmul.f32 %v8974, %v8987
        %v9000 = vmul.f32 %v8977, %v8987
        %v9001 = vmul.f32 %v8980, %v8987
        %v9002 = vmul.f32 %v8983, %v8987
        %v9003 = vmul.f32 %v8986, %v8987
        %v9004 = vmul.f32 %v8988, %v8988
        %v9005 = vmul.f32 %v8989, %v8989
        %v9006 = vmul.f32 %v8990, %v8990
        %v9007 = vmul.f32 %v8991, %v8991
        %v9008 = vmul.f32 %v8992, %v8992
        %v9009 = vmul.f32 %v8993, %v8993
        %v9010 = vmul.f32 %v8994, %v8994
        %v9011 = vmul.f32 %v8995, %v8995
        %v9012 = vsub.f32 %v8996, %v9004
        %v9013 = vsub.f32 %v8997, %v9005
        %v9014 = vsub.f32 %v8998, %v9006
        %v9015 = vsub.f32 %v8999, %v9007
        %v9016 = vsub.f32 %v9000, %v9008
        %v9017 = vsub.f32 %v9001, %v9009
        %v9018 = vsub.f32 %v9002, %v9010
        %v9019 = vsub.f32 %v9003, %v9011
        %v9020 = vmax.f32 %v9012, 0.0
        %v9021 = vmax.f32 %v9013, 0.0
        %v9022 = vmax.f32 %v9014, 0.0
        %v9023 = vmax.f32 %v9015, 0.0
        %v9024 = vmax.f32 %v9016, 0.0
        %v9025 = vmax.f32 %v9017, 0.0
        %v9026 = vmax.f32 %v9018, 0.0
        %v9027 = vmax.f32 %v9019, 0.0
        %v9028 = vadd.f32 %v9020, 1e-05
        %v9029 = vadd.f32 %v9021, 1e-05
        %v9030 = vadd.f32 %v9022, 1e-05
        %v9031 = vadd.f32 %v9023, 1e-05
        %v9032 = vadd.f32 %v9024, 1e-05
        %v9033 = vadd.f32 %v9025, 1e-05
        %v9034 = vadd.f32 %v9026, 1e-05
        %v9035 = vadd.f32 %v9027, 1e-05
        %v9036 = vrsqrt.pop %v9028
        %v9037 = vrsqrt.pop %v9029
        %v9038 = vrsqrt.pop %v9030
        %v9039 = vrsqrt.pop %v9031
        %v9040 = vrsqrt.pop %v9032
        %v9041 = vrsqrt.pop %v9033
        %v9042 = vrsqrt.pop %v9034
        %v9043 = vrsqrt.pop %v9035
        %v9044 = vcombine.low %v8988, %v8990
        %v9045 = vcombine.high %v8988, %v8990
        %v9047 = vunpack.c.l.s4 1983009808
        %v9048 = vunpack.c.0.s8 %v9047
        %v9049 = vlaneseq
        %v9050 = vshrl.u32 %v9049, 7
        %v9051 = vsub.s32 %v9048, %v9050
        %v9052 = vrot.slane %v9044, %v9051
        %v9054 = vunpack.c.l.s4 1983009808
        %v9055 = vunpack.c.0.s8 %v9054
        %v9056 = vlaneseq
        %v9057 = vshrl.u32 %v9056, 7
        %v9058 = vsub.s32 %v9055, %v9057
        %v9059 = vrot.slane %v9045, %v9058
        %v9060 = vcombine.low %v8989, %v8991
        %v9061 = vcombine.high %v8989, %v8991
        %v9063 = vunpack.c.l.s4 1983009808
        %v9064 = vunpack.c.0.s8 %v9063
        %v9065 = vlaneseq
        %v9066 = vshrl.u32 %v9065, 7
        %v9067 = vsub.s32 %v9064, %v9066
        %v9068 = vrot.slane %v9060, %v9067
        %v9070 = vunpack.c.l.s4 1983009808
        %v9071 = vunpack.c.0.s8 %v9070
        %v9072 = vlaneseq
        %v9073 = vshrl.u32 %v9072, 7
        %v9074 = vsub.s32 %v9071, %v9073
        %v9075 = vrot.slane %v9061, %v9074
        %v9076 = vcombine.low %v8992, %v8994
        %v9077 = vcombine.high %v8992, %v8994
        %v9079 = vunpack.c.l.s4 1983009808
        %v9080 = vunpack.c.0.s8 %v9079
        %v9081 = vlaneseq
        %v9082 = vshrl.u32 %v9081, 7
        %v9083 = vsub.s32 %v9080, %v9082
        %v9084 = vrot.slane %v9076, %v9083
        %v9086 = vunpack.c.l.s4 1983009808
        %v9087 = vunpack.c.0.s8 %v9086
        %v9088 = vlaneseq
        %v9089 = vshrl.u32 %v9088, 7
        %v9090 = vsub.s32 %v9087, %v9089
        %v9091 = vrot.slane %v9077, %v9090
        %v9092 = vcombine.low %v8993, %v8995
        %v9093 = vcombine.high %v8993, %v8995
        %v9095 = vunpack.c.l.s4 1983009808
        %v9096 = vunpack.c.0.s8 %v9095
        %v9097 = vlaneseq
        %v9098 = vshrl.u32 %v9097, 7
        %v9099 = vsub.s32 %v9096, %v9098
        %v9100 = vrot.slane %v9092, %v9099
        %v9102 = vunpack.c.l.s4 1983009808
        %v9103 = vunpack.c.0.s8 %v9102
        %v9104 = vlaneseq
        %v9105 = vshrl.u32 %v9104, 7
        %v9106 = vsub.s32 %v9103, %v9105
        %v9107 = vrot.slane %v9093, %v9106
        %v9108 = vcombine.low %v9052, %v9068
        %v9109 = vcombine.high %v9052, %v9068
        %v9111 = vunpack.c.l.s4 1934713408
        %v9112 = vunpack.c.0.s8 %v9111
        %v9113 = vlaneseq
        %v9114 = vshrl.u32 %v9113, 7
        %v9115 = vsub.s32 %v9112, %v9114
        %v9116 = vrot.slane %v9108, %v9115
        %v9118 = vunpack.c.l.s4 1934713408
        %v9119 = vunpack.c.0.s8 %v9118
        %v9120 = vlaneseq
        %v9121 = vshrl.u32 %v9120, 7
        %v9122 = vsub.s32 %v9119, %v9121
        %v9123 = vrot.slane %v9109, %v9122
        %v9124 = vcombine.low %v9059, %v9075
        %v9125 = vcombine.high %v9059, %v9075
        %v9127 = vunpack.c.l.s4 1934713408
        %v9128 = vunpack.c.0.s8 %v9127
        %v9129 = vlaneseq
        %v9130 = vshrl.u32 %v9129, 7
        %v9131 = vsub.s32 %v9128, %v9130
        %v9132 = vrot.slane %v9124, %v9131
        %v9134 = vunpack.c.l.s4 1934713408
        %v9135 = vunpack.c.0.s8 %v9134
        %v9136 = vlaneseq
        %v9137 = vshrl.u32 %v9136, 7
        %v9138 = vsub.s32 %v9135, %v9137
        %v9139 = vrot.slane %v9125, %v9138
        %v9140 = vcombine.low %v9084, %v9100
        %v9141 = vcombine.high %v9084, %v9100
        %v9143 = vunpack.c.l.s4 1934713408
        %v9144 = vunpack.c.0.s8 %v9143
        %v9145 = vlaneseq
        %v9146 = vshrl.u32 %v9145, 7
        %v9147 = vsub.s32 %v9144, %v9146
        %v9148 = vrot.slane %v9140, %v9147
        %v9150 = vunpack.c.l.s4 1934713408
        %v9151 = vunpack.c.0.s8 %v9150
        %v9152 = vlaneseq
        %v9153 = vshrl.u32 %v9152, 7
        %v9154 = vsub.s32 %v9151, %v9153
        %v9155 = vrot.slane %v9141, %v9154
        %v9156 = vcombine.low %v9091, %v9107
        %v9157 = vcombine.high %v9091, %v9107
        %v9159 = vunpack.c.l.s4 1934713408
        %v9160 = vunpack.c.0.s8 %v9159
        %v9161 = vlaneseq
        %v9162 = vshrl.u32 %v9161, 7
        %v9163 = vsub.s32 %v9160, %v9162
        %v9164 = vrot.slane %v9156, %v9163
        %v9166 = vunpack.c.l.s4 1934713408
        %v9167 = vunpack.c.0.s8 %v9166
        %v9168 = vlaneseq
        %v9169 = vshrl.u32 %v9168, 7
        %v9170 = vsub.s32 %v9167, %v9169
        %v9171 = vrot.slane %v9157, %v9170
        %v9172 = vcombine.low %v9116, %v9148
        %v9173 = vcombine.high %v9116, %v9148
        %v9174 = vcombine.low %v9123, %v9155
        %v9175 = vcombine.high %v9123, %v9155
        %v9176 = vcombine.low %v9132, %v9164
        %v9177 = vcombine.high %v9132, %v9164
        %v9178 = vcombine.low %v9139, %v9171
        %v9179 = vcombine.high %v9139, %v9171
        %9181 = vrot.lane.b32.xlu0 %v9173, 32
        %v9182 = vpop.permute.xlu0 %9181
        %9185 = vrot.lane.b32.xlu0 %v9174, 64
        %v9186 = vpop.permute.xlu0 %9185
        %9189 = vrot.lane.b32.xlu0 %v9175, 96
        %v9190 = vpop.permute.xlu0 %9189
        %9193 = vrot.lane.b32.xlu0 %v9177, 32
        %v9194 = vpop.permute.xlu0 %9193
        %9197 = vrot.lane.b32.xlu0 %v9178, 64
        %v9198 = vpop.permute.xlu0 %9197
        %9201 = vrot.lane.b32.xlu0 %v9179, 96
        %v9202 = vpop.permute.xlu0 %9201
        %v9204 = vsel %vm2327, %v9172, %v9182
        %v9205 = vsel %vm572, %v9204, %v9186
        %v9206 = vsel %vm5546, %v9205, %v9190
        %v9207 = vsel %vm2327, %v9176, %v9194
        %v9208 = vsel %vm572, %v9207, %v9198
        %v9209 = vsel %vm5546, %v9208, %v9202
        %v9210 = vcombine.low %v9036, %v9038
        %v9211 = vcombine.high %v9036, %v9038
        %v9213 = vunpack.c.l.s4 1983009808
        %v9214 = vunpack.c.0.s8 %v9213
        %v9215 = vlaneseq
        %v9216 = vshrl.u32 %v9215, 7
        %v9217 = vsub.s32 %v9214, %v9216
        %v9218 = vrot.slane %v9210, %v9217
        %v9220 = vunpack.c.l.s4 1983009808
        %v9221 = vunpack.c.0.s8 %v9220
        %v9222 = vlaneseq
        %v9223 = vshrl.u32 %v9222, 7
        %v9224 = vsub.s32 %v9221, %v9223
        %v9225 = vrot.slane %v9211, %v9224
        %v9226 = vcombine.low %v9037, %v9039
        %v9227 = vcombine.high %v9037, %v9039
        %v9229 = vunpack.c.l.s4 1983009808
        %v9230 = vunpack.c.0.s8 %v9229
        %v9231 = vlaneseq
        %v9232 = vshrl.u32 %v9231, 7
        %v9233 = vsub.s32 %v9230, %v9232
        %v9234 = vrot.slane %v9226, %v9233
        %v9236 = vunpack.c.l.s4 1983009808
        %v9237 = vunpack.c.0.s8 %v9236
        %v9238 = vlaneseq
        %v9239 = vshrl.u32 %v9238, 7
        %v9240 = vsub.s32 %v9237, %v9239
        %v9241 = vrot.slane %v9227, %v9240
        %v9242 = vcombine.low %v9040, %v9042
        %v9243 = vcombine.high %v9040, %v9042
        %v9245 = vunpack.c.l.s4 1983009808
        %v9246 = vunpack.c.0.s8 %v9245
        %v9247 = vlaneseq
        %v9248 = vshrl.u32 %v9247, 7
        %v9249 = vsub.s32 %v9246, %v9248
        %v9250 = vrot.slane %v9242, %v9249
        %v9252 = vunpack.c.l.s4 1983009808
        %v9253 = vunpack.c.0.s8 %v9252
        %v9254 = vlaneseq
        %v9255 = vshrl.u32 %v9254, 7
        %v9256 = vsub.s32 %v9253, %v9255
        %v9257 = vrot.slane %v9243, %v9256
        %v9258 = vcombine.low %v9041, %v9043
        %v9259 = vcombine.high %v9041, %v9043
        %v9261 = vunpack.c.l.s4 1983009808
        %v9262 = vunpack.c.0.s8 %v9261
        %v9263 = vlaneseq
        %v9264 = vshrl.u32 %v9263, 7
        %v9265 = vsub.s32 %v9262, %v9264
        %v9266 = vrot.slane %v9258, %v9265
        %v9268 = vunpack.c.l.s4 1983009808
        %v9269 = vunpack.c.0.s8 %v9268
        %v9270 = vlaneseq
        %v9271 = vshrl.u32 %v9270, 7
        %v9272 = vsub.s32 %v9269, %v9271
        %v9273 = vrot.slane %v9259, %v9272
        %v9274 = vcombine.low %v9218, %v9234
        %v9275 = vcombine.high %v9218, %v9234
        %v9277 = vunpack.c.l.s4 1934713408
        %v9278 = vunpack.c.0.s8 %v9277
        %v9279 = vlaneseq
        %v9280 = vshrl.u32 %v9279, 7
        %v9281 = vsub.s32 %v9278, %v9280
        %v9282 = vrot.slane %v9274, %v9281
        %v9284 = vunpack.c.l.s4 1934713408
        %v9285 = vunpack.c.0.s8 %v9284
        %v9286 = vlaneseq
        %v9287 = vshrl.u32 %v9286, 7
        %v9288 = vsub.s32 %v9285, %v9287
        %v9289 = vrot.slane %v9275, %v9288
        %v9290 = vcombine.low %v9225, %v9241
        %v9291 = vcombine.high %v9225, %v9241
        %v9293 = vunpack.c.l.s4 1934713408
        %v9294 = vunpack.c.0.s8 %v9293
        %v9295 = vlaneseq
        %v9296 = vshrl.u32 %v9295, 7
        %v9297 = vsub.s32 %v9294, %v9296
        %v9298 = vrot.slane %v9290, %v9297
        %v9300 = vunpack.c.l.s4 1934713408
        %v9301 = vunpack.c.0.s8 %v9300
        %v9302 = vlaneseq
        %v9303 = vshrl.u32 %v9302, 7
        %v9304 = vsub.s32 %v9301, %v9303
        %v9305 = vrot.slane %v9291, %v9304
        %v9306 = vcombine.low %v9250, %v9266
        %v9307 = vcombine.high %v9250, %v9266
        %v9309 = vunpack.c.l.s4 1934713408
        %v9310 = vunpack.c.0.s8 %v9309
        %v9311 = vlaneseq
        %v9312 = vshrl.u32 %v9311, 7
        %v9313 = vsub.s32 %v9310, %v9312
        %v9314 = vrot.slane %v9306, %v9313
        %v9316 = vunpack.c.l.s4 1934713408
        %v9317 = vunpack.c.0.s8 %v9316
        %v9318 = vlaneseq
        %v9319 = vshrl.u32 %v9318, 7
        %v9320 = vsub.s32 %v9317, %v9319
        %v9321 = vrot.slane %v9307, %v9320
        %v9322 = vcombine.low %v9257, %v9273
        %v9323 = vcombine.high %v9257, %v9273
        %v9325 = vunpack.c.l.s4 1934713408
        %v9326 = vunpack.c.0.s8 %v9325
        %v9327 = vlaneseq
        %v9328 = vshrl.u32 %v9327, 7
        %v9329 = vsub.s32 %v9326, %v9328
        %v9330 = vrot.slane %v9322, %v9329
        %v9332 = vunpack.c.l.s4 1934713408
        %v9333 = vunpack.c.0.s8 %v9332
        %v9334 = vlaneseq
        %v9335 = vshrl.u32 %v9334, 7
        %v9336 = vsub.s32 %v9333, %v9335
        %v9337 = vrot.slane %v9323, %v9336
        %v9338 = vcombine.low %v9282, %v9314
        %v9339 = vcombine.high %v9282, %v9314
        %v9340 = vcombine.low %v9289, %v9321
        %v9341 = vcombine.high %v9289, %v9321
        %v9342 = vcombine.low %v9298, %v9330
        %v9343 = vcombine.high %v9298, %v9330
        %v9344 = vcombine.low %v9305, %v9337
        %v9345 = vcombine.high %v9305, %v9337
        %9347 = vrot.lane.b32.xlu0 %v9339, 32
        %v9348 = vpop.permute.xlu0 %9347
        %9351 = vrot.lane.b32.xlu0 %v9340, 64
        %v9352 = vpop.permute.xlu0 %9351
        %9355 = vrot.lane.b32.xlu0 %v9341, 96
        %v9356 = vpop.permute.xlu0 %9355
        %9359 = vrot.lane.b32.xlu0 %v9343, 32
        %v9360 = vpop.permute.xlu0 %9359
        %9363 = vrot.lane.b32.xlu0 %v9344, 64
        %v9364 = vpop.permute.xlu0 %9363
        %9367 = vrot.lane.b32.xlu0 %v9345, 96
        %v9368 = vpop.permute.xlu0 %9367
        %v9370 = vsel %vm2327, %v9338, %v9348
        %v9371 = vsel %vm572, %v9370, %v9352
        %v9372 = vsel %vm5546, %v9371, %v9356
        %v9373 = vsel %vm2327, %v9342, %v9360
        %v9374 = vsel %vm572, %v9373, %v9364
        %v9375 = vsel %vm5546, %v9374, %v9368
        %v9377 = vlaneseq
        %v9378 = vshrl.u32 %v9377, 7
        %v9379 = vsub.s32 0, %v9378
        %v9380 = vrot.slane %v7273, %v9379
        %v9381 = vlaneseq
        %v9382 = vshrl.u32 %v9381, 7
        %v9383 = vsub.s32 1, %v9382
        %v9384 = vrot.slane %v7273, %v9383
        %v9387 = vmul.f32 %v9372, %v9380
        %v9388 = vmul.f32 %v9375, %v9384
        %v9389 = vmul.f32 %v9206, %v9387
        %v9390 = vmul.f32 %v9209, %v9388
        %v9392 = vlaneseq
        %v9393 = vshrl.u32 %v9392, 7
        %v9394 = vsub.s32 0, %v9393
        %v9395 = vrot.slane %v7274, %v9394
        %v9396 = vlaneseq
        %v9397 = vshrl.u32 %v9396, 7
        %v9398 = vsub.s32 1, %v9397
        %v9399 = vrot.slane %v7274, %v9398
        %v9402 = vsub.f32 %v9395, %v9389
        %v9403 = vsub.f32 %v9399, %v9390
        %v9406 = vcombine.low %v9387, %v9388
        %v9407 = vcombine.high %v9387, %v9388
        %v9409 = vunpack.c.l.s4 1966171168
        %v9410 = vunpack.c.0.s8 %v9409
        %v9411 = vlaneseq
        %v9412 = vshrl.u32 %v9411, 7
        %v9413 = vsub.s32 %v9410, %v9412
        %v9414 = vrot.slane %v9406, %v9413
        %v9416 = vunpack.c.l.s4 1966171168
        %v9417 = vunpack.c.0.s8 %v9416
        %v9418 = vlaneseq
        %v9419 = vshrl.u32 %v9418, 7
        %v9420 = vsub.s32 %v9417, %v9419
        %v9421 = vrot.slane %v9407, %v9420
        %v9422 = vcombine.high %v9414, %v9414
        %v9423 = vcombine.high %v9421, %v9421
        %v9425 = vunpack.c.l.s4 1966171168
        %v9426 = vunpack.c.0.s8 %v9425
        %v9427 = vlaneseq
        %v9428 = vshrl.u32 %v9427, 7
        %v9429 = vsub.s32 %v9426, %v9428
        %v9430 = vrot.slane %v9414, %v9429
        %v9432 = vunpack.c.l.s4 1966171168
        %v9433 = vunpack.c.0.s8 %v9432
        %v9434 = vlaneseq
        %v9435 = vshrl.u32 %v9434, 7
        %v9436 = vsub.s32 %v9433, %v9435
        %v9437 = vrot.slane %v9421, %v9436
        %v9439 = vunpack.c.l.s4 1966171168
        %v9440 = vunpack.c.0.s8 %v9439
        %v9441 = vlaneseq
        %v9442 = vshrl.u32 %v9441, 7
        %v9443 = vsub.s32 %v9440, %v9442
        %v9444 = vrot.slane %v9422, %v9443
        %v9446 = vunpack.c.l.s4 1966171168
        %v9447 = vunpack.c.0.s8 %v9446
        %v9448 = vlaneseq
        %v9449 = vshrl.u32 %v9448, 7
        %v9450 = vsub.s32 %v9447, %v9449
        %v9451 = vrot.slane %v9423, %v9450
        %v9452 = vcombine.high %v9430, %v9430
        %v9453 = vcombine.high %v9437, %v9437
        %v9454 = vcombine.high %v9444, %v9444
        %v9455 = vcombine.high %v9451, %v9451
        %v9456 = vlaneseq
        %v9457 = vshrl.u32 %v9456, 7
        %v9458 = vsub.s32 0, %v9457
        %v9459 = vrot.slane %v9430, %v9458
        %v9460 = vlaneseq
        %v9461 = vshrl.u32 %v9460, 7
        %v9462 = vsub.s32 1, %v9461
        %v9463 = vrot.slane %v9430, %v9462
        %v9464 = vlaneseq
        %v9465 = vshrl.u32 %v9464, 7
        %v9466 = vsub.s32 0, %v9465
        %v9467 = vrot.slane %v9444, %v9466
        %v9468 = vlaneseq
        %v9469 = vshrl.u32 %v9468, 7
        %v9470 = vsub.s32 1, %v9469
        %v9471 = vrot.slane %v9444, %v9470
        %v9472 = vlaneseq
        %v9473 = vshrl.u32 %v9472, 7
        %v9474 = vsub.s32 0, %v9473
        %v9475 = vrot.slane %v9452, %v9474
        %v9476 = vlaneseq
        %v9477 = vshrl.u32 %v9476, 7
        %v9478 = vsub.s32 1, %v9477
        %v9479 = vrot.slane %v9452, %v9478
        %v9480 = vlaneseq
        %v9481 = vshrl.u32 %v9480, 7
        %v9482 = vsub.s32 0, %v9481
        %v9483 = vrot.slane %v9454, %v9482
        %v9484 = vlaneseq
        %v9485 = vshrl.u32 %v9484, 7
        %v9486 = vsub.s32 1, %v9485
        %v9487 = vrot.slane %v9454, %v9486
        %v9488 = vlaneseq
        %v9489 = vshrl.u32 %v9488, 7
        %v9490 = vsub.s32 0, %v9489
        %v9491 = vrot.slane %v9437, %v9490
        %v9492 = vlaneseq
        %v9493 = vshrl.u32 %v9492, 7
        %v9494 = vsub.s32 1, %v9493
        %v9495 = vrot.slane %v9437, %v9494
        %v9496 = vlaneseq
        %v9497 = vshrl.u32 %v9496, 7
        %v9498 = vsub.s32 0, %v9497
        %v9499 = vrot.slane %v9451, %v9498
        %v9500 = vlaneseq
        %v9501 = vshrl.u32 %v9500, 7
        %v9502 = vsub.s32 1, %v9501
        %v9503 = vrot.slane %v9451, %v9502
        %v9504 = vlaneseq
        %v9505 = vshrl.u32 %v9504, 7
        %v9506 = vsub.s32 0, %v9505
        %v9507 = vrot.slane %v9453, %v9506
        %v9508 = vlaneseq
        %v9509 = vshrl.u32 %v9508, 7
        %v9510 = vsub.s32 1, %v9509
        %v9511 = vrot.slane %v9453, %v9510
        %v9512 = vlaneseq
        %v9513 = vshrl.u32 %v9512, 7
        %v9514 = vsub.s32 0, %v9513
        %v9515 = vrot.slane %v9455, %v9514
        %v9516 = vlaneseq
        %v9517 = vshrl.u32 %v9516, 7
        %v9518 = vsub.s32 1, %v9517
        %v9519 = vrot.slane %v9455, %v9518
        %v9536 = vmul.f32 %v6635, %v9459
        %v9537 = vmul.f32 %v6637, %v9463
        %v9538 = vmul.f32 %v6639, %v9459
        %v9539 = vmul.f32 %v6641, %v9463
        %v9540 = vmul.f32 %v6645, %v9459
        %v9541 = vmul.f32 %v6647, %v9463
        %v9542 = vmul.f32 %v6649, %v9459
        %v9543 = vmul.f32 %v6651, %v9463
        %v9544 = vmul.f32 %v6655, %v9459
        %v9545 = vmul.f32 %v6657, %v9463
        %v9546 = vmul.f32 %v6659, %v9459
        %v9547 = vmul.f32 %v6661, %v9463
        %v9548 = vmul.f32 %v6665, %v9459
        %v9549 = vmul.f32 %v6667, %v9463
        %v9550 = vmul.f32 %v6669, %v9459
        %v9551 = vmul.f32 %v6671, %v9463
        %v9552 = vmul.f32 %v6675, %v9459
        %v9553 = vmul.f32 %v6677, %v9463
        %v9554 = vmul.f32 %v6679, %v9459
        %v9555 = vmul.f32 %v6681, %v9463
        %v9556 = vmul.f32 %v6685, %v9459
        %v9557 = vmul.f32 %v6687, %v9463
        %v9558 = vmul.f32 %v6689, %v9459
        %v9559 = vmul.f32 %v6691, %v9463
        %v9560 = vmul.f32 %v6695, %v9459
        %v9561 = vmul.f32 %v6697, %v9463
        %v9562 = vmul.f32 %v6699, %v9459
        %v9563 = vmul.f32 %v6701, %v9463
        %v9564 = vmul.f32 %v6705, %v9459
        %v9565 = vmul.f32 %v6707, %v9463
        %v9566 = vmul.f32 %v6709, %v9459
        %v9567 = vmul.f32 %v6711, %v9463
        %v9568 = vmul.f32 %v6715, %v9467
        %v9569 = vmul.f32 %v6717, %v9471
        %v9570 = vmul.f32 %v6719, %v9467
        %v9571 = vmul.f32 %v6721, %v9471
        %v9572 = vmul.f32 %v6725, %v9467
        %v9573 = vmul.f32 %v6727, %v9471
        %v9574 = vmul.f32 %v6729, %v9467
        %v9575 = vmul.f32 %v6731, %v9471
        %v9576 = vmul.f32 %v6735, %v9467
        %v9577 = vmul.f32 %v6737, %v9471
        %v9578 = vmul.f32 %v6739, %v9467
        %v9579 = vmul.f32 %v6741, %v9471
        %v9580 = vmul.f32 %v6745, %v9467
        %v9581 = vmul.f32 %v6747, %v9471
        %v9582 = vmul.f32 %v6749, %v9467
        %v9583 = vmul.f32 %v6751, %v9471
        %v9584 = vmul.f32 %v6755, %v9467
        %v9585 = vmul.f32 %v6757, %v9471
        %v9586 = vmul.f32 %v6759, %v9467
        %v9587 = vmul.f32 %v6761, %v9471
        %v9588 = vmul.f32 %v6765, %v9467
        %v9589 = vmul.f32 %v6767, %v9471
        %v9590 = vmul.f32 %v6769, %v9467
        %v9591 = vmul.f32 %v6771, %v9471
        %v9592 = vmul.f32 %v6775, %v9467
        %v9593 = vmul.f32 %v6777, %v9471
        %v9594 = vmul.f32 %v6779, %v9467
        %v9595 = vmul.f32 %v6781, %v9471
        %v9596 = vmul.f32 %v6785, %v9467
        %v9597 = vmul.f32 %v6787, %v9471
        %v9598 = vmul.f32 %v6789, %v9467
        %v9599 = vmul.f32 %v6791, %v9471
        %v9600 = vmul.f32 %v6795, %v9475
        %v9601 = vmul.f32 %v6797, %v9479
        %v9602 = vmul.f32 %v6799, %v9475
        %v9603 = vmul.f32 %v6801, %v9479
        %v9604 = vmul.f32 %v6805, %v9475
        %v9605 = vmul.f32 %v6807, %v9479
        %v9606 = vmul.f32 %v6809, %v9475
        %v9607 = vmul.f32 %v6811, %v9479
        %v9608 = vmul.f32 %v6815, %v9475
        %v9609 = vmul.f32 %v6817, %v9479
        %v9610 = vmul.f32 %v6819, %v9475
        %v9611 = vmul.f32 %v6821, %v9479
        %v9612 = vmul.f32 %v6825, %v9475
        %v9613 = vmul.f32 %v6827, %v9479
        %v9614 = vmul.f32 %v6829, %v9475
        %v9615 = vmul.f32 %v6831, %v9479
        %v9616 = vmul.f32 %v6835, %v9475
        %v9617 = vmul.f32 %v6837, %v9479
        %v9618 = vmul.f32 %v6839, %v9475
        %v9619 = vmul.f32 %v6841, %v9479
        %v9620 = vmul.f32 %v6845, %v9475
        %v9621 = vmul.f32 %v6847, %v9479
        %v9622 = vmul.f32 %v6849, %v9475
        %v9623 = vmul.f32 %v6851, %v9479
        %v9624 = vmul.f32 %v6855, %v9475
        %v9625 = vmul.f32 %v6857, %v9479
        %v9626 = vmul.f32 %v6859, %v9475
        %v9627 = vmul.f32 %v6861, %v9479
        %v9628 = vmul.f32 %v6865, %v9475
        %v9629 = vmul.f32 %v6867, %v9479
        %v9630 = vmul.f32 %v6869, %v9475
        %v9631 = vmul.f32 %v6871, %v9479
        %v9632 = vmul.f32 %v6875, %v9483
        %v9633 = vmul.f32 %v6877, %v9487
        %v9634 = vmul.f32 %v6879, %v9483
        %v9635 = vmul.f32 %v6881, %v9487
        %v9636 = vmul.f32 %v6885, %v9483
        %v9637 = vmul.f32 %v6887, %v9487
        %v9638 = vmul.f32 %v6889, %v9483
        %v9639 = vmul.f32 %v6891, %v9487
        %v9640 = vmul.f32 %v6895, %v9483
        %v9641 = vmul.f32 %v6897, %v9487
        %v9642 = vmul.f32 %v6899, %v9483
        %v9643 = vmul.f32 %v6901, %v9487
        %v9644 = vmul.f32 %v6905, %v9483
        %v9645 = vmul.f32 %v6907, %v9487
        %v9646 = vmul.f32 %v6909, %v9483
        %v9647 = vmul.f32 %v6911, %v9487
        %v9648 = vmul.f32 %v6915, %v9483
        %v9649 = vmul.f32 %v6917, %v9487
        %v9650 = vmul.f32 %v6919, %v9483
        %v9651 = vmul.f32 %v6921, %v9487
        %v9652 = vmul.f32 %v6925, %v9483
        %v9653 = vmul.f32 %v6927, %v9487
        %v9654 = vmul.f32 %v6929, %v9483
        %v9655 = vmul.f32 %v6931, %v9487
        %v9656 = vmul.f32 %v6935, %v9483
        %v9657 = vmul.f32 %v6937, %v9487
        %v9658 = vmul.f32 %v6939, %v9483
        %v9659 = vmul.f32 %v6941, %v9487
        %v9660 = vmul.f32 %v6945, %v9483
        %v9661 = vmul.f32 %v6947, %v9487
        %v9662 = vmul.f32 %v6949, %v9483
        %v9663 = vmul.f32 %v6951, %v9487
        %v9664 = vmul.f32 %v6955, %v9491
        %v9665 = vmul.f32 %v6957, %v9495
        %v9666 = vmul.f32 %v6959, %v9491
        %v9667 = vmul.f32 %v6961, %v9495
        %v9668 = vmul.f32 %v6965, %v9491
        %v9669 = vmul.f32 %v6967, %v9495
        %v9670 = vmul.f32 %v6969, %v9491
        %v9671 = vmul.f32 %v6971, %v9495
        %v9672 = vmul.f32 %v6975, %v9491
        %v9673 = vmul.f32 %v6977, %v9495
        %v9674 = vmul.f32 %v6979, %v9491
        %v9675 = vmul.f32 %v6981, %v9495
        %v9676 = vmul.f32 %v6985, %v9491
        %v9677 = vmul.f32 %v6987, %v9495
        %v9678 = vmul.f32 %v6989, %v9491
        %v9679 = vmul.f32 %v6991, %v9495
        %v9680 = vmul.f32 %v6995, %v9491
        %v9681 = vmul.f32 %v6997, %v9495
        %v9682 = vmul.f32 %v6999, %v9491
        %v9683 = vmul.f32 %v7001, %v9495
        %v9684 = vmul.f32 %v7005, %v9491
        %v9685 = vmul.f32 %v7007, %v9495
        %v9686 = vmul.f32 %v7009, %v9491
        %v9687 = vmul.f32 %v7011, %v9495
        %v9688 = vmul.f32 %v7015, %v9491
        %v9689 = vmul.f32 %v7017, %v9495
        %v9690 = vmul.f32 %v7019, %v9491
        %v9691 = vmul.f32 %v7021, %v9495
        %v9692 = vmul.f32 %v7025, %v9491
        %v9693 = vmul.f32 %v7027, %v9495
        %v9694 = vmul.f32 %v7029, %v9491
        %v9695 = vmul.f32 %v7031, %v9495
        %v9696 = vmul.f32 %v7035, %v9499
        %v9697 = vmul.f32 %v7037, %v9503
        %v9698 = vmul.f32 %v7039, %v9499
        %v9699 = vmul.f32 %v7041, %v9503
        %v9700 = vmul.f32 %v7045, %v9499
        %v9701 = vmul.f32 %v7047, %v9503
        %v9702 = vmul.f32 %v7049, %v9499
        %v9703 = vmul.f32 %v7051, %v9503
        %v9704 = vmul.f32 %v7055, %v9499
        %v9705 = vmul.f32 %v7057, %v9503
        %v9706 = vmul.f32 %v7059, %v9499
        %v9707 = vmul.f32 %v7061, %v9503
        %v9708 = vmul.f32 %v7065, %v9499
        %v9709 = vmul.f32 %v7067, %v9503
        %v9710 = vmul.f32 %v7069, %v9499
        %v9711 = vmul.f32 %v7071, %v9503
        %v9712 = vmul.f32 %v7075, %v9499
        %v9713 = vmul.f32 %v7077, %v9503
        %v9714 = vmul.f32 %v7079, %v9499
        %v9715 = vmul.f32 %v7081, %v9503
        %v9716 = vmul.f32 %v7085, %v9499
        %v9717 = vmul.f32 %v7087, %v9503
        %v9718 = vmul.f32 %v7089, %v9499
        %v9719 = vmul.f32 %v7091, %v9503
        %v9720 = vmul.f32 %v7095, %v9499
        %v9721 = vmul.f32 %v7097, %v9503
        %v9722 = vmul.f32 %v7099, %v9499
        %v9723 = vmul.f32 %v7101, %v9503
        %v9724 = vmul.f32 %v7105, %v9499
        %v9725 = vmul.f32 %v7107, %v9503
        %v9726 = vmul.f32 %v7109, %v9499
        %v9727 = vmul.f32 %v7111, %v9503
        %v9728 = vmul.f32 %v7115, %v9507
        %v9729 = vmul.f32 %v7117, %v9511
        %v9730 = vmul.f32 %v7119, %v9507
        %v9731 = vmul.f32 %v7121, %v9511
        %v9732 = vmul.f32 %v7125, %v9507
        %v9733 = vmul.f32 %v7127, %v9511
        %v9734 = vmul.f32 %v7129, %v9507
        %v9735 = vmul.f32 %v7131, %v9511
        %v9736 = vmul.f32 %v7135, %v9507
        %v9737 = vmul.f32 %v7137, %v9511
        %v9738 = vmul.f32 %v7139, %v9507
        %v9739 = vmul.f32 %v7141, %v9511
        %v9740 = vmul.f32 %v7145, %v9507
        %v9741 = vmul.f32 %v7147, %v9511
        %v9742 = vmul.f32 %v7149, %v9507
        %v9743 = vmul.f32 %v7151, %v9511
        %v9744 = vmul.f32 %v7155, %v9507
        %v9745 = vmul.f32 %v7157, %v9511
        %v9746 = vmul.f32 %v7159, %v9507
        %v9747 = vmul.f32 %v7161, %v9511
        %v9748 = vmul.f32 %v7165, %v9507
        %v9749 = vmul.f32 %v7167, %v9511
        %v9750 = vmul.f32 %v7169, %v9507
        %v9751 = vmul.f32 %v7171, %v9511
        %v9752 = vmul.f32 %v7175, %v9507
        %v9753 = vmul.f32 %v7177, %v9511
        %v9754 = vmul.f32 %v7179, %v9507
        %v9755 = vmul.f32 %v7181, %v9511
        %v9756 = vmul.f32 %v7185, %v9507
        %v9757 = vmul.f32 %v7187, %v9511
        %v9758 = vmul.f32 %v7189, %v9507
        %v9759 = vmul.f32 %v7191, %v9511
        %v9760 = vmul.f32 %v7195, %v9515
        %v9761 = vmul.f32 %v7197, %v9519
        %v9762 = vmul.f32 %v7199, %v9515
        %v9763 = vmul.f32 %v7201, %v9519
        %v9764 = vmul.f32 %v7205, %v9515
        %v9765 = vmul.f32 %v7207, %v9519
        %v9766 = vmul.f32 %v7209, %v9515
        %v9767 = vmul.f32 %v7211, %v9519
        %v9768 = vmul.f32 %v7215, %v9515
        %v9769 = vmul.f32 %v7217, %v9519
        %v9770 = vmul.f32 %v7219, %v9515
        %v9771 = vmul.f32 %v7221, %v9519
        %v9772 = vmul.f32 %v7225, %v9515
        %v9773 = vmul.f32 %v7227, %v9519
        %v9774 = vmul.f32 %v7229, %v9515
        %v9775 = vmul.f32 %v7231, %v9519
        %v9776 = vmul.f32 %v7235, %v9515
        %v9777 = vmul.f32 %v7237, %v9519
        %v9778 = vmul.f32 %v7239, %v9515
        %v9779 = vmul.f32 %v7241, %v9519
        %v9780 = vmul.f32 %v7245, %v9515
        %v9781 = vmul.f32 %v7247, %v9519
        %v9782 = vmul.f32 %v7249, %v9515
        %v9783 = vmul.f32 %v7251, %v9519
        %v9784 = vmul.f32 %v7255, %v9515
        %v9785 = vmul.f32 %v7257, %v9519
        %v9786 = vmul.f32 %v7259, %v9515
        %v9787 = vmul.f32 %v7261, %v9519
        %v9788 = vmul.f32 %v7265, %v9515
        %v9789 = vmul.f32 %v7267, %v9519
        %v9790 = vmul.f32 %v7269, %v9515
        %v9791 = vmul.f32 %v7271, %v9519
        %v9794 = vcombine.low %v9402, %v9403
        %v9795 = vcombine.high %v9402, %v9403
        %v9797 = vunpack.c.l.s4 1966171168
        %v9798 = vunpack.c.0.s8 %v9797
        %v9799 = vlaneseq
        %v9800 = vshrl.u32 %v9799, 7
        %v9801 = vsub.s32 %v9798, %v9800
        %v9802 = vrot.slane %v9794, %v9801
        %v9804 = vunpack.c.l.s4 1966171168
        %v9805 = vunpack.c.0.s8 %v9804
        %v9806 = vlaneseq
        %v9807 = vshrl.u32 %v9806, 7
        %v9808 = vsub.s32 %v9805, %v9807
        %v9809 = vrot.slane %v9795, %v9808
        %v9810 = vcombine.high %v9802, %v9802
        %v9811 = vcombine.high %v9809, %v9809
        %v9813 = vunpack.c.l.s4 1966171168
        %v9814 = vunpack.c.0.s8 %v9813
        %v9815 = vlaneseq
        %v9816 = vshrl.u32 %v9815, 7
        %v9817 = vsub.s32 %v9814, %v9816
        %v9818 = vrot.slane %v9802, %v9817
        %v9820 = vunpack.c.l.s4 1966171168
        %v9821 = vunpack.c.0.s8 %v9820
        %v9822 = vlaneseq
        %v9823 = vshrl.u32 %v9822, 7
        %v9824 = vsub.s32 %v9821, %v9823
        %v9825 = vrot.slane %v9809, %v9824
        %v9827 = vunpack.c.l.s4 1966171168
        %v9828 = vunpack.c.0.s8 %v9827
        %v9829 = vlaneseq
        %v9830 = vshrl.u32 %v9829, 7
        %v9831 = vsub.s32 %v9828, %v9830
        %v9832 = vrot.slane %v9810, %v9831
        %v9834 = vunpack.c.l.s4 1966171168
        %v9835 = vunpack.c.0.s8 %v9834
        %v9836 = vlaneseq
        %v9837 = vshrl.u32 %v9836, 7
        %v9838 = vsub.s32 %v9835, %v9837
        %v9839 = vrot.slane %v9811, %v9838
        %v9840 = vcombine.high %v9818, %v9818
        %v9841 = vcombine.high %v9825, %v9825
        %v9842 = vcombine.high %v9832, %v9832
        %v9843 = vcombine.high %v9839, %v9839
        %v9844 = vlaneseq
        %v9845 = vshrl.u32 %v9844, 7
        %v9846 = vsub.s32 0, %v9845
        %v9847 = vrot.slane %v9818, %v9846
        %v9848 = vlaneseq
        %v9849 = vshrl.u32 %v9848, 7
        %v9850 = vsub.s32 1, %v9849
        %v9851 = vrot.slane %v9818, %v9850
        %v9852 = vlaneseq
        %v9853 = vshrl.u32 %v9852, 7
        %v9854 = vsub.s32 0, %v9853
        %v9855 = vrot.slane %v9832, %v9854
        %v9856 = vlaneseq
        %v9857 = vshrl.u32 %v9856, 7
        %v9858 = vsub.s32 1, %v9857
        %v9859 = vrot.slane %v9832, %v9858
        %v9860 = vlaneseq
        %v9861 = vshrl.u32 %v9860, 7
        %v9862 = vsub.s32 0, %v9861
        %v9863 = vrot.slane %v9840, %v9862
        %v9864 = vlaneseq
        %v9865 = vshrl.u32 %v9864, 7
        %v9866 = vsub.s32 1, %v9865
        %v9867 = vrot.slane %v9840, %v9866
        %v9868 = vlaneseq
        %v9869 = vshrl.u32 %v9868, 7
        %v9870 = vsub.s32 0, %v9869
        %v9871 = vrot.slane %v9842, %v9870
        %v9872 = vlaneseq
        %v9873 = vshrl.u32 %v9872, 7
        %v9874 = vsub.s32 1, %v9873
        %v9875 = vrot.slane %v9842, %v9874
        %v9876 = vlaneseq
        %v9877 = vshrl.u32 %v9876, 7
        %v9878 = vsub.s32 0, %v9877
        %v9879 = vrot.slane %v9825, %v9878
        %v9880 = vlaneseq
        %v9881 = vshrl.u32 %v9880, 7
        %v9882 = vsub.s32 1, %v9881
        %v9883 = vrot.slane %v9825, %v9882
        %v9884 = vlaneseq
        %v9885 = vshrl.u32 %v9884, 7
        %v9886 = vsub.s32 0, %v9885
        %v9887 = vrot.slane %v9839, %v9886
        %v9888 = vlaneseq
        %v9889 = vshrl.u32 %v9888, 7
        %v9890 = vsub.s32 1, %v9889
        %v9891 = vrot.slane %v9839, %v9890
        %v9892 = vlaneseq
        %v9893 = vshrl.u32 %v9892, 7
        %v9894 = vsub.s32 0, %v9893
        %v9895 = vrot.slane %v9841, %v9894
        %v9896 = vlaneseq
        %v9897 = vshrl.u32 %v9896, 7
        %v9898 = vsub.s32 1, %v9897
        %v9899 = vrot.slane %v9841, %v9898
        %v9900 = vlaneseq
        %v9901 = vshrl.u32 %v9900, 7
        %v9902 = vsub.s32 0, %v9901
        %v9903 = vrot.slane %v9843, %v9902
        %v9904 = vlaneseq
        %v9905 = vshrl.u32 %v9904, 7
        %v9906 = vsub.s32 1, %v9905
        %v9907 = vrot.slane %v9843, %v9906
        %v9924 = vadd.f32 %v9536, %v9847
        %v9925 = vadd.f32 %v9537, %v9851
        %v9926 = vadd.f32 %v9538, %v9847
        %v9927 = vadd.f32 %v9539, %v9851
        %v9928 = vadd.f32 %v9540, %v9847
        %v9929 = vadd.f32 %v9541, %v9851
        %v9930 = vadd.f32 %v9542, %v9847
        %v9931 = vadd.f32 %v9543, %v9851
        %v9932 = vadd.f32 %v9544, %v9847
        %v9933 = vadd.f32 %v9545, %v9851
        %v9934 = vadd.f32 %v9546, %v9847
        %v9935 = vadd.f32 %v9547, %v9851
        %v9936 = vadd.f32 %v9548, %v9847
        %v9937 = vadd.f32 %v9549, %v9851
        %v9938 = vadd.f32 %v9550, %v9847
        %v9939 = vadd.f32 %v9551, %v9851
        %v9940 = vadd.f32 %v9552, %v9847
        %v9941 = vadd.f32 %v9553, %v9851
        %v9942 = vadd.f32 %v9554, %v9847
        %v9943 = vadd.f32 %v9555, %v9851
        %v9944 = vadd.f32 %v9556, %v9847
        %v9945 = vadd.f32 %v9557, %v9851
        %v9946 = vadd.f32 %v9558, %v9847
        %v9947 = vadd.f32 %v9559, %v9851
        %v9948 = vadd.f32 %v9560, %v9847
        %v9949 = vadd.f32 %v9561, %v9851
        %v9950 = vadd.f32 %v9562, %v9847
        %v9951 = vadd.f32 %v9563, %v9851
        %v9952 = vadd.f32 %v9564, %v9847
        %v9953 = vadd.f32 %v9565, %v9851
        %v9954 = vadd.f32 %v9566, %v9847
        %v9955 = vadd.f32 %v9567, %v9851
        %v9956 = vadd.f32 %v9568, %v9855
        %v9957 = vadd.f32 %v9569, %v9859
        %v9958 = vadd.f32 %v9570, %v9855
        %v9959 = vadd.f32 %v9571, %v9859
        %v9960 = vadd.f32 %v9572, %v9855
        %v9961 = vadd.f32 %v9573, %v9859
        %v9962 = vadd.f32 %v9574, %v9855
        %v9963 = vadd.f32 %v9575, %v9859
        %v9964 = vadd.f32 %v9576, %v9855
        %v9965 = vadd.f32 %v9577, %v9859
        %v9966 = vadd.f32 %v9578, %v9855
        %v9967 = vadd.f32 %v9579, %v9859
        %v9968 = vadd.f32 %v9580, %v9855
        %v9969 = vadd.f32 %v9581, %v9859
        %v9970 = vadd.f32 %v9582, %v9855
        %v9971 = vadd.f32 %v9583, %v9859
        %v9972 = vadd.f32 %v9584, %v9855
        %v9973 = vadd.f32 %v9585, %v9859
        %v9974 = vadd.f32 %v9586, %v9855
        %v9975 = vadd.f32 %v9587, %v9859
        %v9976 = vadd.f32 %v9588, %v9855
        %v9977 = vadd.f32 %v9589, %v9859
        %v9978 = vadd.f32 %v9590, %v9855
        %v9979 = vadd.f32 %v9591, %v9859
        %v9980 = vadd.f32 %v9592, %v9855
        %v9981 = vadd.f32 %v9593, %v9859
        %v9982 = vadd.f32 %v9594, %v9855
        %v9983 = vadd.f32 %v9595, %v9859
        %v9984 = vadd.f32 %v9596, %v9855
        %v9985 = vadd.f32 %v9597, %v9859
        %v9986 = vadd.f32 %v9598, %v9855
        %v9987 = vadd.f32 %v9599, %v9859
        %v9988 = vadd.f32 %v9600, %v9863
        %v9989 = vadd.f32 %v9601, %v9867
        %v9990 = vadd.f32 %v9602, %v9863
        %v9991 = vadd.f32 %v9603, %v9867
        %v9992 = vadd.f32 %v9604, %v9863
        %v9993 = vadd.f32 %v9605, %v9867
        %v9994 = vadd.f32 %v9606, %v9863
        %v9995 = vadd.f32 %v9607, %v9867
        %v9996 = vadd.f32 %v9608, %v9863
        %v9997 = vadd.f32 %v9609, %v9867
        %v9998 = vadd.f32 %v9610, %v9863
        %v9999 = vadd.f32 %v9611, %v9867
        %v10000 = vadd.f32 %v9612, %v9863
        %v10001 = vadd.f32 %v9613, %v9867
        %v10002 = vadd.f32 %v9614, %v9863
        %v10003 = vadd.f32 %v9615, %v9867
        %v10004 = vadd.f32 %v9616, %v9863
        %v10005 = vadd.f32 %v9617, %v9867
        %v10006 = vadd.f32 %v9618, %v9863
        %v10007 = vadd.f32 %v9619, %v9867
        %v10008 = vadd.f32 %v9620, %v9863
        %v10009 = vadd.f32 %v9621, %v9867
        %v10010 = vadd.f32 %v9622, %v9863
        %v10011 = vadd.f32 %v9623, %v9867
        %v10012 = vadd.f32 %v9624, %v9863
        %v10013 = vadd.f32 %v9625, %v9867
        %v10014 = vadd.f32 %v9626, %v9863
        %v10015 = vadd.f32 %v9627, %v9867
        %v10016 = vadd.f32 %v9628, %v9863
        %v10017 = vadd.f32 %v9629, %v9867
        %v10018 = vadd.f32 %v9630, %v9863
        %v10019 = vadd.f32 %v9631, %v9867
        %v10020 = vadd.f32 %v9632, %v9871
        %v10021 = vadd.f32 %v9633, %v9875
        %v10022 = vadd.f32 %v9634, %v9871
        %v10023 = vadd.f32 %v9635, %v9875
        %v10024 = vadd.f32 %v9636, %v9871
        %v10025 = vadd.f32 %v9637, %v9875
        %v10026 = vadd.f32 %v9638, %v9871
        %v10027 = vadd.f32 %v9639, %v9875
        %v10028 = vadd.f32 %v9640, %v9871
        %v10029 = vadd.f32 %v9641, %v9875
        %v10030 = vadd.f32 %v9642, %v9871
        %v10031 = vadd.f32 %v9643, %v9875
        %v10032 = vadd.f32 %v9644, %v9871
        %v10033 = vadd.f32 %v9645, %v9875
        %v10034 = vadd.f32 %v9646, %v9871
        %v10035 = vadd.f32 %v9647, %v9875
        %v10036 = vadd.f32 %v9648, %v9871
        %v10037 = vadd.f32 %v9649, %v9875
        %v10038 = vadd.f32 %v9650, %v9871
        %v10039 = vadd.f32 %v9651, %v9875
        %v10040 = vadd.f32 %v9652, %v9871
        %v10041 = vadd.f32 %v9653, %v9875
        %v10042 = vadd.f32 %v9654, %v9871
        %v10043 = vadd.f32 %v9655, %v9875
        %v10044 = vadd.f32 %v9656, %v9871
        %v10045 = vadd.f32 %v9657, %v9875
        %v10046 = vadd.f32 %v9658, %v9871
        %v10047 = vadd.f32 %v9659, %v9875
        %v10048 = vadd.f32 %v9660, %v9871
        %v10049 = vadd.f32 %v9661, %v9875
        %v10050 = vadd.f32 %v9662, %v9871
        %v10051 = vadd.f32 %v9663, %v9875
        %v10052 = vadd.f32 %v9664, %v9879
        %v10053 = vadd.f32 %v9665, %v9883
        %v10054 = vadd.f32 %v9666, %v9879
        %v10055 = vadd.f32 %v9667, %v9883
        %v10056 = vadd.f32 %v9668, %v9879
        %v10057 = vadd.f32 %v9669, %v9883
        %v10058 = vadd.f32 %v9670, %v9879
        %v10059 = vadd.f32 %v9671, %v9883
        %v10060 = vadd.f32 %v9672, %v9879
        %v10061 = vadd.f32 %v9673, %v9883
        %v10062 = vadd.f32 %v9674, %v9879
        %v10063 = vadd.f32 %v9675, %v9883
        %v10064 = vadd.f32 %v9676, %v9879
        %v10065 = vadd.f32 %v9677, %v9883
        %v10066 = vadd.f32 %v9678, %v9879
        %v10067 = vadd.f32 %v9679, %v9883
        %v10068 = vadd.f32 %v9680, %v9879
        %v10069 = vadd.f32 %v9681, %v9883
        %v10070 = vadd.f32 %v9682, %v9879
        %v10071 = vadd.f32 %v9683, %v9883
        %v10072 = vadd.f32 %v9684, %v9879
        %v10073 = vadd.f32 %v9685, %v9883
        %v10074 = vadd.f32 %v9686, %v9879
        %v10075 = vadd.f32 %v9687, %v9883
        %v10076 = vadd.f32 %v9688, %v9879
        %v10077 = vadd.f32 %v9689, %v9883
        %v10078 = vadd.f32 %v9690, %v9879
        %v10079 = vadd.f32 %v9691, %v9883
        %v10080 = vadd.f32 %v9692, %v9879
        %v10081 = vadd.f32 %v9693, %v9883
        %v10082 = vadd.f32 %v9694, %v9879
        %v10083 = vadd.f32 %v9695, %v9883
        %v10084 = vadd.f32 %v9696, %v9887
        %v10085 = vadd.f32 %v9697, %v9891
        %v10086 = vadd.f32 %v9698, %v9887
        %v10087 = vadd.f32 %v9699, %v9891
        %v10088 = vadd.f32 %v9700, %v9887
        %v10089 = vadd.f32 %v9701, %v9891
        %v10090 = vadd.f32 %v9702, %v9887
        %v10091 = vadd.f32 %v9703, %v9891
        %v10092 = vadd.f32 %v9704, %v9887
        %v10093 = vadd.f32 %v9705, %v9891
        %v10094 = vadd.f32 %v9706, %v9887
        %v10095 = vadd.f32 %v9707, %v9891
        %v10096 = vadd.f32 %v9708, %v9887
        %v10097 = vadd.f32 %v9709, %v9891
        %v10098 = vadd.f32 %v9710, %v9887
        %v10099 = vadd.f32 %v9711, %v9891
        %v10100 = vadd.f32 %v9712, %v9887
        %v10101 = vadd.f32 %v9713, %v9891
        %v10102 = vadd.f32 %v9714, %v9887
        %v10103 = vadd.f32 %v9715, %v9891
        %v10104 = vadd.f32 %v9716, %v9887
        %v10105 = vadd.f32 %v9717, %v9891
        %v10106 = vadd.f32 %v9718, %v9887
        %v10107 = vadd.f32 %v9719, %v9891
        %v10108 = vadd.f32 %v9720, %v9887
        %v10109 = vadd.f32 %v9721, %v9891
        %v10110 = vadd.f32 %v9722, %v9887
        %v10111 = vadd.f32 %v9723, %v9891
        %v10112 = vadd.f32 %v9724, %v9887
        %v10113 = vadd.f32 %v9725, %v9891
        %v10114 = vadd.f32 %v9726, %v9887
        %v10115 = vadd.f32 %v9727, %v9891
        %v10116 = vadd.f32 %v9728, %v9895
        %v10117 = vadd.f32 %v9729, %v9899
        %v10118 = vadd.f32 %v9730, %v9895
        %v10119 = vadd.f32 %v9731, %v9899
        %v10120 = vadd.f32 %v9732, %v9895
        %v10121 = vadd.f32 %v9733, %v9899
        %v10122 = vadd.f32 %v9734, %v9895
        %v10123 = vadd.f32 %v9735, %v9899
        %v10124 = vadd.f32 %v9736, %v9895
        %v10125 = vadd.f32 %v9737, %v9899
        %v10126 = vadd.f32 %v9738, %v9895
        %v10127 = vadd.f32 %v9739, %v9899
        %v10128 = vadd.f32 %v9740, %v9895
        %v10129 = vadd.f32 %v9741, %v9899
        %v10130 = vadd.f32 %v9742, %v9895
        %v10131 = vadd.f32 %v9743, %v9899
        %v10132 = vadd.f32 %v9744, %v9895
        %v10133 = vadd.f32 %v9745, %v9899
        %v10134 = vadd.f32 %v9746, %v9895
        %v10135 = vadd.f32 %v9747, %v9899
        %v10136 = vadd.f32 %v9748, %v9895
        %v10137 = vadd.f32 %v9749, %v9899
        %v10138 = vadd.f32 %v9750, %v9895
        %v10139 = vadd.f32 %v9751, %v9899
        %v10140 = vadd.f32 %v9752, %v9895
        %v10141 = vadd.f32 %v9753, %v9899
        %v10142 = vadd.f32 %v9754, %v9895
        %v10143 = vadd.f32 %v9755, %v9899
        %v10144 = vadd.f32 %v9756, %v9895
        %v10145 = vadd.f32 %v9757, %v9899
        %v10146 = vadd.f32 %v9758, %v9895
        %v10147 = vadd.f32 %v9759, %v9899
        %v10148 = vadd.f32 %v9760, %v9903
        %v10149 = vadd.f32 %v9761, %v9907
        %v10150 = vadd.f32 %v9762, %v9903
        %v10151 = vadd.f32 %v9763, %v9907
        %v10152 = vadd.f32 %v9764, %v9903
        %v10153 = vadd.f32 %v9765, %v9907
        %v10154 = vadd.f32 %v9766, %v9903
        %v10155 = vadd.f32 %v9767, %v9907
        %v10156 = vadd.f32 %v9768, %v9903
        %v10157 = vadd.f32 %v9769, %v9907
        %v10158 = vadd.f32 %v9770, %v9903
        %v10159 = vadd.f32 %v9771, %v9907
        %v10160 = vadd.f32 %v9772, %v9903
        %v10161 = vadd.f32 %v9773, %v9907
        %v10162 = vadd.f32 %v9774, %v9903
        %v10163 = vadd.f32 %v9775, %v9907
        %v10164 = vadd.f32 %v9776, %v9903
        %v10165 = vadd.f32 %v9777, %v9907
        %v10166 = vadd.f32 %v9778, %v9903
        %v10167 = vadd.f32 %v9779, %v9907
        %v10168 = vadd.f32 %v9780, %v9903
        %v10169 = vadd.f32 %v9781, %v9907
        %v10170 = vadd.f32 %v9782, %v9903
        %v10171 = vadd.f32 %v9783, %v9907
        %v10172 = vadd.f32 %v9784, %v9903
        %v10173 = vadd.f32 %v9785, %v9907
        %v10174 = vadd.f32 %v9786, %v9903
        %v10175 = vadd.f32 %v9787, %v9907
        %v10176 = vadd.f32 %v9788, %v9903
        %v10177 = vadd.f32 %v9789, %v9907
        %v10178 = vadd.f32 %v9790, %v9903
        %v10179 = vadd.f32 %v9791, %v9907
        %v10180 = vmul.f32 %v9924, 0.01
        %v10181 = vmul.f32 %v9925, 0.01
        %v10182 = vmul.f32 %v9926, 0.01
        %v10183 = vmul.f32 %v9927, 0.01
        %v10184 = vmul.f32 %v9928, 0.01
        %v10185 = vmul.f32 %v9929, 0.01
        %v10186 = vmul.f32 %v9930, 0.01
        %v10187 = vmul.f32 %v9931, 0.01
        %v10188 = vmul.f32 %v9932, 0.01
        %v10189 = vmul.f32 %v9933, 0.01
        %v10190 = vmul.f32 %v9934, 0.01
        %v10191 = vmul.f32 %v9935, 0.01
        %v10192 = vmul.f32 %v9936, 0.01
        %v10193 = vmul.f32 %v9937, 0.01
        %v10194 = vmul.f32 %v9938, 0.01
        %v10195 = vmul.f32 %v9939, 0.01
        %v10196 = vmul.f32 %v9940, 0.01
        %v10197 = vmul.f32 %v9941, 0.01
        %v10198 = vmul.f32 %v9942, 0.01
        %v10199 = vmul.f32 %v9943, 0.01
        %v10200 = vmul.f32 %v9944, 0.01
        %v10201 = vmul.f32 %v9945, 0.01
        %v10202 = vmul.f32 %v9946, 0.01
        %v10203 = vmul.f32 %v9947, 0.01
        %v10204 = vmul.f32 %v9948, 0.01
        %v10205 = vmul.f32 %v9949, 0.01
        %v10206 = vmul.f32 %v9950, 0.01
        %v10207 = vmul.f32 %v9951, 0.01
        %v10208 = vmul.f32 %v9952, 0.01
        %v10209 = vmul.f32 %v9953, 0.01
        %v10210 = vmul.f32 %v9954, 0.01
        %v10211 = vmul.f32 %v9955, 0.01
        %v10212 = vmul.f32 %v9956, 0.01
        %v10213 = vmul.f32 %v9957, 0.01
        %v10214 = vmul.f32 %v9958, 0.01
        %v10215 = vmul.f32 %v9959, 0.01
        %v10216 = vmul.f32 %v9960, 0.01
        %v10217 = vmul.f32 %v9961, 0.01
        %v10218 = vmul.f32 %v9962, 0.01
        %v10219 = vmul.f32 %v9963, 0.01
        %v10220 = vmul.f32 %v9964, 0.01
        %v10221 = vmul.f32 %v9965, 0.01
        %v10222 = vmul.f32 %v9966, 0.01
        %v10223 = vmul.f32 %v9967, 0.01
        %v10224 = vmul.f32 %v9968, 0.01
        %v10225 = vmul.f32 %v9969, 0.01
        %v10226 = vmul.f32 %v9970, 0.01
        %v10227 = vmul.f32 %v9971, 0.01
        %v10228 = vmul.f32 %v9972, 0.01
        %v10229 = vmul.f32 %v9973, 0.01
        %v10230 = vmul.f32 %v9974, 0.01
        %v10231 = vmul.f32 %v9975, 0.01
        %v10232 = vmul.f32 %v9976, 0.01
        %v10233 = vmul.f32 %v9977, 0.01
        %v10234 = vmul.f32 %v9978, 0.01
        %v10235 = vmul.f32 %v9979, 0.01
        %v10236 = vmul.f32 %v9980, 0.01
        %v10237 = vmul.f32 %v9981, 0.01
        %v10238 = vmul.f32 %v9982, 0.01
        %v10239 = vmul.f32 %v9983, 0.01
        %v10240 = vmul.f32 %v9984, 0.01
        %v10241 = vmul.f32 %v9985, 0.01
        %v10242 = vmul.f32 %v9986, 0.01
        %v10243 = vmul.f32 %v9987, 0.01
        %v10244 = vmul.f32 %v9988, 0.01
        %v10245 = vmul.f32 %v9989, 0.01
        %v10246 = vmul.f32 %v9990, 0.01
        %v10247 = vmul.f32 %v9991, 0.01
        %v10248 = vmul.f32 %v9992, 0.01
        %v10249 = vmul.f32 %v9993, 0.01
        %v10250 = vmul.f32 %v9994, 0.01
        %v10251 = vmul.f32 %v9995, 0.01
        %v10252 = vmul.f32 %v9996, 0.01
        %v10253 = vmul.f32 %v9997, 0.01
        %v10254 = vmul.f32 %v9998, 0.01
        %v10255 = vmul.f32 %v9999, 0.01
        %v10256 = vmul.f32 %v10000, 0.01
        %v10257 = vmul.f32 %v10001, 0.01
        %v10258 = vmul.f32 %v10002, 0.01
        %v10259 = vmul.f32 %v10003, 0.01
        %v10260 = vmul.f32 %v10004, 0.01
        %v10261 = vmul.f32 %v10005, 0.01
        %v10262 = vmul.f32 %v10006, 0.01
        %v10263 = vmul.f32 %v10007, 0.01
        %v10264 = vmul.f32 %v10008, 0.01
        %v10265 = vmul.f32 %v10009, 0.01
        %v10266 = vmul.f32 %v10010, 0.01
        %v10267 = vmul.f32 %v10011, 0.01
        %v10268 = vmul.f32 %v10012, 0.01
        %v10269 = vmul.f32 %v10013, 0.01
        %v10270 = vmul.f32 %v10014, 0.01
        %v10271 = vmul.f32 %v10015, 0.01
        %v10272 = vmul.f32 %v10016, 0.01
        %v10273 = vmul.f32 %v10017, 0.01
        %v10274 = vmul.f32 %v10018, 0.01
        %v10275 = vmul.f32 %v10019, 0.01
        %v10276 = vmul.f32 %v10020, 0.01
        %v10277 = vmul.f32 %v10021, 0.01
        %v10278 = vmul.f32 %v10022, 0.01
        %v10279 = vmul.f32 %v10023, 0.01
        %v10280 = vmul.f32 %v10024, 0.01
        %v10281 = vmul.f32 %v10025, 0.01
        %v10282 = vmul.f32 %v10026, 0.01
        %v10283 = vmul.f32 %v10027, 0.01
        %v10284 = vmul.f32 %v10028, 0.01
        %v10285 = vmul.f32 %v10029, 0.01
        %v10286 = vmul.f32 %v10030, 0.01
        %v10287 = vmul.f32 %v10031, 0.01
        %v10288 = vmul.f32 %v10032, 0.01
        %v10289 = vmul.f32 %v10033, 0.01
        %v10290 = vmul.f32 %v10034, 0.01
        %v10291 = vmul.f32 %v10035, 0.01
        %v10292 = vmul.f32 %v10036, 0.01
        %v10293 = vmul.f32 %v10037, 0.01
        %v10294 = vmul.f32 %v10038, 0.01
        %v10295 = vmul.f32 %v10039, 0.01
        %v10296 = vmul.f32 %v10040, 0.01
        %v10297 = vmul.f32 %v10041, 0.01
        %v10298 = vmul.f32 %v10042, 0.01
        %v10299 = vmul.f32 %v10043, 0.01
        %v10300 = vmul.f32 %v10044, 0.01
        %v10301 = vmul.f32 %v10045, 0.01
        %v10302 = vmul.f32 %v10046, 0.01
        %v10303 = vmul.f32 %v10047, 0.01
        %v10304 = vmul.f32 %v10048, 0.01
        %v10305 = vmul.f32 %v10049, 0.01
        %v10306 = vmul.f32 %v10050, 0.01
        %v10307 = vmul.f32 %v10051, 0.01
        %v10308 = vmul.f32 %v10052, 0.01
        %v10309 = vmul.f32 %v10053, 0.01
        %v10310 = vmul.f32 %v10054, 0.01
        %v10311 = vmul.f32 %v10055, 0.01
        %v10312 = vmul.f32 %v10056, 0.01
        %v10313 = vmul.f32 %v10057, 0.01
        %v10314 = vmul.f32 %v10058, 0.01
        %v10315 = vmul.f32 %v10059, 0.01
        %v10316 = vmul.f32 %v10060, 0.01
        %v10317 = vmul.f32 %v10061, 0.01
        %v10318 = vmul.f32 %v10062, 0.01
        %v10319 = vmul.f32 %v10063, 0.01
        %v10320 = vmul.f32 %v10064, 0.01
        %v10321 = vmul.f32 %v10065, 0.01
        %v10322 = vmul.f32 %v10066, 0.01
        %v10323 = vmul.f32 %v10067, 0.01
        %v10324 = vmul.f32 %v10068, 0.01
        %v10325 = vmul.f32 %v10069, 0.01
        %v10326 = vmul.f32 %v10070, 0.01
        %v10327 = vmul.f32 %v10071, 0.01
        %v10328 = vmul.f32 %v10072, 0.01
        %v10329 = vmul.f32 %v10073, 0.01
        %v10330 = vmul.f32 %v10074, 0.01
        %v10331 = vmul.f32 %v10075, 0.01
        %v10332 = vmul.f32 %v10076, 0.01
        %v10333 = vmul.f32 %v10077, 0.01
        %v10334 = vmul.f32 %v10078, 0.01
        %v10335 = vmul.f32 %v10079, 0.01
        %v10336 = vmul.f32 %v10080, 0.01
        %v10337 = vmul.f32 %v10081, 0.01
        %v10338 = vmul.f32 %v10082, 0.01
        %v10339 = vmul.f32 %v10083, 0.01
        %v10340 = vmul.f32 %v10084, 0.01
        %v10341 = vmul.f32 %v10085, 0.01
        %v10342 = vmul.f32 %v10086, 0.01
        %v10343 = vmul.f32 %v10087, 0.01
        %v10344 = vmul.f32 %v10088, 0.01
        %v10345 = vmul.f32 %v10089, 0.01
        %v10346 = vmul.f32 %v10090, 0.01
        %v10347 = vmul.f32 %v10091, 0.01
        %v10348 = vmul.f32 %v10092, 0.01
        %v10349 = vmul.f32 %v10093, 0.01
        %v10350 = vmul.f32 %v10094, 0.01
        %v10351 = vmul.f32 %v10095, 0.01
        %v10352 = vmul.f32 %v10096, 0.01
        %v10353 = vmul.f32 %v10097, 0.01
        %v10354 = vmul.f32 %v10098, 0.01
        %v10355 = vmul.f32 %v10099, 0.01
        %v10356 = vmul.f32 %v10100, 0.01
        %v10357 = vmul.f32 %v10101, 0.01
        %v10358 = vmul.f32 %v10102, 0.01
        %v10359 = vmul.f32 %v10103, 0.01
        %v10360 = vmul.f32 %v10104, 0.01
        %v10361 = vmul.f32 %v10105, 0.01
        %v10362 = vmul.f32 %v10106, 0.01
        %v10363 = vmul.f32 %v10107, 0.01
        %v10364 = vmul.f32 %v10108, 0.01
        %v10365 = vmul.f32 %v10109, 0.01
        %v10366 = vmul.f32 %v10110, 0.01
        %v10367 = vmul.f32 %v10111, 0.01
        %v10368 = vmul.f32 %v10112, 0.01
        %v10369 = vmul.f32 %v10113, 0.01
        %v10370 = vmul.f32 %v10114, 0.01
        %v10371 = vmul.f32 %v10115, 0.01
        %v10372 = vmul.f32 %v10116, 0.01
        %v10373 = vmul.f32 %v10117, 0.01
        %v10374 = vmul.f32 %v10118, 0.01
        %v10375 = vmul.f32 %v10119, 0.01
        %v10376 = vmul.f32 %v10120, 0.01
        %v10377 = vmul.f32 %v10121, 0.01
        %v10378 = vmul.f32 %v10122, 0.01
        %v10379 = vmul.f32 %v10123, 0.01
        %v10380 = vmul.f32 %v10124, 0.01
        %v10381 = vmul.f32 %v10125, 0.01
        %v10382 = vmul.f32 %v10126, 0.01
        %v10383 = vmul.f32 %v10127, 0.01
        %v10384 = vmul.f32 %v10128, 0.01
        %v10385 = vmul.f32 %v10129, 0.01
        %v10386 = vmul.f32 %v10130, 0.01
        %v10387 = vmul.f32 %v10131, 0.01
        %v10388 = vmul.f32 %v10132, 0.01
        %v10389 = vmul.f32 %v10133, 0.01
        %v10390 = vmul.f32 %v10134, 0.01
        %v10391 = vmul.f32 %v10135, 0.01
        %v10392 = vmul.f32 %v10136, 0.01
        %v10393 = vmul.f32 %v10137, 0.01
        %v10394 = vmul.f32 %v10138, 0.01
        %v10395 = vmul.f32 %v10139, 0.01
        %v10396 = vmul.f32 %v10140, 0.01
        %v10397 = vmul.f32 %v10141, 0.01
        %v10398 = vmul.f32 %v10142, 0.01
        %v10399 = vmul.f32 %v10143, 0.01
        %v10400 = vmul.f32 %v10144, 0.01
        %v10401 = vmul.f32 %v10145, 0.01
        %v10402 = vmul.f32 %v10146, 0.01
        %v10403 = vmul.f32 %v10147, 0.01
        %v10404 = vmul.f32 %v10148, 0.01
        %v10405 = vmul.f32 %v10149, 0.01
        %v10406 = vmul.f32 %v10150, 0.01
        %v10407 = vmul.f32 %v10151, 0.01
        %v10408 = vmul.f32 %v10152, 0.01
        %v10409 = vmul.f32 %v10153, 0.01
        %v10410 = vmul.f32 %v10154, 0.01
        %v10411 = vmul.f32 %v10155, 0.01
        %v10412 = vmul.f32 %v10156, 0.01
        %v10413 = vmul.f32 %v10157, 0.01
        %v10414 = vmul.f32 %v10158, 0.01
        %v10415 = vmul.f32 %v10159, 0.01
        %v10416 = vmul.f32 %v10160, 0.01
        %v10417 = vmul.f32 %v10161, 0.01
        %v10418 = vmul.f32 %v10162, 0.01
        %v10419 = vmul.f32 %v10163, 0.01
        %v10420 = vmul.f32 %v10164, 0.01
        %v10421 = vmul.f32 %v10165, 0.01
        %v10422 = vmul.f32 %v10166, 0.01
        %v10423 = vmul.f32 %v10167, 0.01
        %v10424 = vmul.f32 %v10168, 0.01
        %v10425 = vmul.f32 %v10169, 0.01
        %v10426 = vmul.f32 %v10170, 0.01
        %v10427 = vmul.f32 %v10171, 0.01
        %v10428 = vmul.f32 %v10172, 0.01
        %v10429 = vmul.f32 %v10173, 0.01
        %v10430 = vmul.f32 %v10174, 0.01
        %v10431 = vmul.f32 %v10175, 0.01
        %v10432 = vmul.f32 %v10176, 0.01
        %v10433 = vmul.f32 %v10177, 0.01
        %v10434 = vmul.f32 %v10178, 0.01
        %v10435 = vmul.f32 %v10179, 0.01
        %v10436 = vmax.f32 %v9924, %v10180
        %v10437 = vmax.f32 %v9925, %v10181
        %v10438 = vmax.f32 %v9926, %v10182
        %v10439 = vmax.f32 %v9927, %v10183
        %v10440 = vmax.f32 %v9928, %v10184
        %v10441 = vmax.f32 %v9929, %v10185
        %v10442 = vmax.f32 %v9930, %v10186
        %v10443 = vmax.f32 %v9931, %v10187
        %v10444 = vmax.f32 %v9932, %v10188
        %v10445 = vmax.f32 %v9933, %v10189
        %v10446 = vmax.f32 %v9934, %v10190
        %v10447 = vmax.f32 %v9935, %v10191
        %v10448 = vmax.f32 %v9936, %v10192
        %v10449 = vmax.f32 %v9937, %v10193
        %v10450 = vmax.f32 %v9938, %v10194
        %v10451 = vmax.f32 %v9939, %v10195
        %v10452 = vmax.f32 %v9940, %v10196
        %v10453 = vmax.f32 %v9941, %v10197
        %v10454 = vmax.f32 %v9942, %v10198
        %v10455 = vmax.f32 %v9943, %v10199
        %v10456 = vmax.f32 %v9944, %v10200
        %v10457 = vmax.f32 %v9945, %v10201
        %v10458 = vmax.f32 %v9946, %v10202
        %v10459 = vmax.f32 %v9947, %v10203
        %v10460 = vmax.f32 %v9948, %v10204
        %v10461 = vmax.f32 %v9949, %v10205
        %v10462 = vmax.f32 %v9950, %v10206
        %v10463 = vmax.f32 %v9951, %v10207
        %v10464 = vmax.f32 %v9952, %v10208
        %v10465 = vmax.f32 %v9953, %v10209
        %v10466 = vmax.f32 %v9954, %v10210
        %v10467 = vmax.f32 %v9955, %v10211
        %v10468 = vmax.f32 %v9956, %v10212
        %v10469 = vmax.f32 %v9957, %v10213
        %v10470 = vmax.f32 %v9958, %v10214
        %v10471 = vmax.f32 %v9959, %v10215
        %v10472 = vmax.f32 %v9960, %v10216
        %v10473 = vmax.f32 %v9961, %v10217
        %v10474 = vmax.f32 %v9962, %v10218
        %v10475 = vmax.f32 %v9963, %v10219
        %v10476 = vmax.f32 %v9964, %v10220
        %v10477 = vmax.f32 %v9965, %v10221
        %v10478 = vmax.f32 %v9966, %v10222
        %v10479 = vmax.f32 %v9967, %v10223
        %v10480 = vmax.f32 %v9968, %v10224
        %v10481 = vmax.f32 %v9969, %v10225
        %v10482 = vmax.f32 %v9970, %v10226
        %v10483 = vmax.f32 %v9971, %v10227
        %v10484 = vmax.f32 %v9972, %v10228
        %v10485 = vmax.f32 %v9973, %v10229
        %v10486 = vmax.f32 %v9974, %v10230
        %v10487 = vmax.f32 %v9975, %v10231
        %v10488 = vmax.f32 %v9976, %v10232
        %v10489 = vmax.f32 %v9977, %v10233
        %v10490 = vmax.f32 %v9978, %v10234
        %v10491 = vmax.f32 %v9979, %v10235
        %v10492 = vmax.f32 %v9980, %v10236
        %v10493 = vmax.f32 %v9981, %v10237
        %v10494 = vmax.f32 %v9982, %v10238
        %v10495 = vmax.f32 %v9983, %v10239
        %v10496 = vmax.f32 %v9984, %v10240
        %v10497 = vmax.f32 %v9985, %v10241
        %v10498 = vmax.f32 %v9986, %v10242
        %v10499 = vmax.f32 %v9987, %v10243
        %v10500 = vmax.f32 %v9988, %v10244
        %v10501 = vmax.f32 %v9989, %v10245
        %v10502 = vmax.f32 %v9990, %v10246
        %v10503 = vmax.f32 %v9991, %v10247
        %v10504 = vmax.f32 %v9992, %v10248
        %v10505 = vmax.f32 %v9993, %v10249
        %v10506 = vmax.f32 %v9994, %v10250
        %v10507 = vmax.f32 %v9995, %v10251
        %v10508 = vmax.f32 %v9996, %v10252
        %v10509 = vmax.f32 %v9997, %v10253
        %v10510 = vmax.f32 %v9998, %v10254
        %v10511 = vmax.f32 %v9999, %v10255
        %v10512 = vmax.f32 %v10000, %v10256
        %v10513 = vmax.f32 %v10001, %v10257
        %v10514 = vmax.f32 %v10002, %v10258
        %v10515 = vmax.f32 %v10003, %v10259
        %v10516 = vmax.f32 %v10004, %v10260
        %v10517 = vmax.f32 %v10005, %v10261
        %v10518 = vmax.f32 %v10006, %v10262
        %v10519 = vmax.f32 %v10007, %v10263
        %v10520 = vmax.f32 %v10008, %v10264
        %v10521 = vmax.f32 %v10009, %v10265
        %v10522 = vmax.f32 %v10010, %v10266
        %v10523 = vmax.f32 %v10011, %v10267
        %v10524 = vmax.f32 %v10012, %v10268
        %v10525 = vmax.f32 %v10013, %v10269
        %v10526 = vmax.f32 %v10014, %v10270
        %v10527 = vmax.f32 %v10015, %v10271
        %v10528 = vmax.f32 %v10016, %v10272
        %v10529 = vmax.f32 %v10017, %v10273
        %v10530 = vmax.f32 %v10018, %v10274
        %v10531 = vmax.f32 %v10019, %v10275
        %v10532 = vmax.f32 %v10020, %v10276
        %v10533 = vmax.f32 %v10021, %v10277
        %v10534 = vmax.f32 %v10022, %v10278
        %v10535 = vmax.f32 %v10023, %v10279
        %v10536 = vmax.f32 %v10024, %v10280
        %v10537 = vmax.f32 %v10025, %v10281
        %v10538 = vmax.f32 %v10026, %v10282
        %v10539 = vmax.f32 %v10027, %v10283
        %v10540 = vmax.f32 %v10028, %v10284
        %v10541 = vmax.f32 %v10029, %v10285
        %v10542 = vmax.f32 %v10030, %v10286
        %v10543 = vmax.f32 %v10031, %v10287
        %v10544 = vmax.f32 %v10032, %v10288
        %v10545 = vmax.f32 %v10033, %v10289
        %v10546 = vmax.f32 %v10034, %v10290
        %v10547 = vmax.f32 %v10035, %v10291
        %v10548 = vmax.f32 %v10036, %v10292
        %v10549 = vmax.f32 %v10037, %v10293
        %v10550 = vmax.f32 %v10038, %v10294
        %v10551 = vmax.f32 %v10039, %v10295
        %v10552 = vmax.f32 %v10040, %v10296
        %v10553 = vmax.f32 %v10041, %v10297
        %v10554 = vmax.f32 %v10042, %v10298
        %v10555 = vmax.f32 %v10043, %v10299
        %v10556 = vmax.f32 %v10044, %v10300
        %v10557 = vmax.f32 %v10045, %v10301
        %v10558 = vmax.f32 %v10046, %v10302
        %v10559 = vmax.f32 %v10047, %v10303
        %v10560 = vmax.f32 %v10048, %v10304
        %v10561 = vmax.f32 %v10049, %v10305
        %v10562 = vmax.f32 %v10050, %v10306
        %v10563 = vmax.f32 %v10051, %v10307
        %v10564 = vmax.f32 %v10052, %v10308
        %v10565 = vmax.f32 %v10053, %v10309
        %v10566 = vmax.f32 %v10054, %v10310
        %v10567 = vmax.f32 %v10055, %v10311
        %v10568 = vmax.f32 %v10056, %v10312
        %v10569 = vmax.f32 %v10057, %v10313
        %v10570 = vmax.f32 %v10058, %v10314
        %v10571 = vmax.f32 %v10059, %v10315
        %v10572 = vmax.f32 %v10060, %v10316
        %v10573 = vmax.f32 %v10061, %v10317
        %v10574 = vmax.f32 %v10062, %v10318
        %v10575 = vmax.f32 %v10063, %v10319
        %v10576 = vmax.f32 %v10064, %v10320
        %v10577 = vmax.f32 %v10065, %v10321
        %v10578 = vmax.f32 %v10066, %v10322
        %v10579 = vmax.f32 %v10067, %v10323
        %v10580 = vmax.f32 %v10068, %v10324
        %v10581 = vmax.f32 %v10069, %v10325
        %v10582 = vmax.f32 %v10070, %v10326
        %v10583 = vmax.f32 %v10071, %v10327
        %v10584 = vmax.f32 %v10072, %v10328
        %v10585 = vmax.f32 %v10073, %v10329
        %v10586 = vmax.f32 %v10074, %v10330
        %v10587 = vmax.f32 %v10075, %v10331
        %v10588 = vmax.f32 %v10076, %v10332
        %v10589 = vmax.f32 %v10077, %v10333
        %v10590 = vmax.f32 %v10078, %v10334
        %v10591 = vmax.f32 %v10079, %v10335
        %v10592 = vmax.f32 %v10080, %v10336
        %v10593 = vmax.f32 %v10081, %v10337
        %v10594 = vmax.f32 %v10082, %v10338
        %v10595 = vmax.f32 %v10083, %v10339
        %v10596 = vmax.f32 %v10084, %v10340
        %v10597 = vmax.f32 %v10085, %v10341
        %v10598 = vmax.f32 %v10086, %v10342
        %v10599 = vmax.f32 %v10087, %v10343
        %v10600 = vmax.f32 %v10088, %v10344
        %v10601 = vmax.f32 %v10089, %v10345
        %v10602 = vmax.f32 %v10090, %v10346
        %v10603 = vmax.f32 %v10091, %v10347
        %v10604 = vmax.f32 %v10092, %v10348
        %v10605 = vmax.f32 %v10093, %v10349
        %v10606 = vmax.f32 %v10094, %v10350
        %v10607 = vmax.f32 %v10095, %v10351
        %v10608 = vmax.f32 %v10096, %v10352
        %v10609 = vmax.f32 %v10097, %v10353
        %v10610 = vmax.f32 %v10098, %v10354
        %v10611 = vmax.f32 %v10099, %v10355
        %v10612 = vmax.f32 %v10100, %v10356
        %v10613 = vmax.f32 %v10101, %v10357
        %v10614 = vmax.f32 %v10102, %v10358
        %v10615 = vmax.f32 %v10103, %v10359
        %v10616 = vmax.f32 %v10104, %v10360
        %v10617 = vmax.f32 %v10105, %v10361
        %v10618 = vmax.f32 %v10106, %v10362
        %v10619 = vmax.f32 %v10107, %v10363
        %v10620 = vmax.f32 %v10108, %v10364
        %v10621 = vmax.f32 %v10109, %v10365
        %v10622 = vmax.f32 %v10110, %v10366
        %v10623 = vmax.f32 %v10111, %v10367
        %v10624 = vmax.f32 %v10112, %v10368
        %v10625 = vmax.f32 %v10113, %v10369
        %v10626 = vmax.f32 %v10114, %v10370
        %v10627 = vmax.f32 %v10115, %v10371
        %v10628 = vmax.f32 %v10116, %v10372
        %v10629 = vmax.f32 %v10117, %v10373
        %v10630 = vmax.f32 %v10118, %v10374
        %v10631 = vmax.f32 %v10119, %v10375
        %v10632 = vmax.f32 %v10120, %v10376
        %v10633 = vmax.f32 %v10121, %v10377
        %v10634 = vmax.f32 %v10122, %v10378
        %v10635 = vmax.f32 %v10123, %v10379
        %v10636 = vmax.f32 %v10124, %v10380
        %v10637 = vmax.f32 %v10125, %v10381
        %v10638 = vmax.f32 %v10126, %v10382
        %v10639 = vmax.f32 %v10127, %v10383
        %v10640 = vmax.f32 %v10128, %v10384
        %v10641 = vmax.f32 %v10129, %v10385
        %v10642 = vmax.f32 %v10130, %v10386
        %v10643 = vmax.f32 %v10131, %v10387
        %v10644 = vmax.f32 %v10132, %v10388
        %v10645 = vmax.f32 %v10133, %v10389
        %v10646 = vmax.f32 %v10134, %v10390
        %v10647 = vmax.f32 %v10135, %v10391
        %v10648 = vmax.f32 %v10136, %v10392
        %v10649 = vmax.f32 %v10137, %v10393
        %v10650 = vmax.f32 %v10138, %v10394
        %v10651 = vmax.f32 %v10139, %v10395
        %v10652 = vmax.f32 %v10140, %v10396
        %v10653 = vmax.f32 %v10141, %v10397
        %v10654 = vmax.f32 %v10142, %v10398
        %v10655 = vmax.f32 %v10143, %v10399
        %v10656 = vmax.f32 %v10144, %v10400
        %v10657 = vmax.f32 %v10145, %v10401
        %v10658 = vmax.f32 %v10146, %v10402
        %v10659 = vmax.f32 %v10147, %v10403
        %v10660 = vmax.f32 %v10148, %v10404
        %v10661 = vmax.f32 %v10149, %v10405
        %v10662 = vmax.f32 %v10150, %v10406
        %v10663 = vmax.f32 %v10151, %v10407
        %v10664 = vmax.f32 %v10152, %v10408
        %v10665 = vmax.f32 %v10153, %v10409
        %v10666 = vmax.f32 %v10154, %v10410
        %v10667 = vmax.f32 %v10155, %v10411
        %v10668 = vmax.f32 %v10156, %v10412
        %v10669 = vmax.f32 %v10157, %v10413
        %v10670 = vmax.f32 %v10158, %v10414
        %v10671 = vmax.f32 %v10159, %v10415
        %v10672 = vmax.f32 %v10160, %v10416
        %v10673 = vmax.f32 %v10161, %v10417
        %v10674 = vmax.f32 %v10162, %v10418
        %v10675 = vmax.f32 %v10163, %v10419
        %v10676 = vmax.f32 %v10164, %v10420
        %v10677 = vmax.f32 %v10165, %v10421
        %v10678 = vmax.f32 %v10166, %v10422
        %v10679 = vmax.f32 %v10167, %v10423
        %v10680 = vmax.f32 %v10168, %v10424
        %v10681 = vmax.f32 %v10169, %v10425
        %v10682 = vmax.f32 %v10170, %v10426
        %v10683 = vmax.f32 %v10171, %v10427
        %v10684 = vmax.f32 %v10172, %v10428
        %v10685 = vmax.f32 %v10173, %v10429
        %v10686 = vmax.f32 %v10174, %v10430
        %v10687 = vmax.f32 %v10175, %v10431
        %v10688 = vmax.f32 %v10176, %v10432
        %v10689 = vmax.f32 %v10177, %v10433
        %v10690 = vmax.f32 %v10178, %v10434
        %v10691 = vmax.f32 %v10179, %v10435
        %v10692 = vmax.f32 %v10436, %v10438
        %v10693 = vmax.f32 %v10692, %v10440
        %v10694 = vmax.f32 %v10693, %v10442
        %v10695 = vmax.f32 %v10694, %v10444
        %v10696 = vmax.f32 %v10695, %v10446
        %v10697 = vmax.f32 %v10696, %v10448
        %v10698 = vmax.f32 %v10697, %v10450
        %v10699 = vmax.f32 %v10698, %v10452
        %v10700 = vmax.f32 %v10699, %v10454
        %v10701 = vmax.f32 %v10700, %v10456
        %v10702 = vmax.f32 %v10701, %v10458
        %v10703 = vmax.f32 %v10702, %v10460
        %v10704 = vmax.f32 %v10703, %v10462
        %v10705 = vmax.f32 %v10704, %v10464
        %v10706 = vmax.f32 %v10705, %v10466
        %v10707 = vrot.slane %v10706, 4
        %v10708 = vmax.f32 %v10706, %v10707
        %v10709 = vrot.slane %v10708, 2
        %v10710 = vmax.f32 %v10708, %v10709
        %v10711 = vrot.slane %v10710, 1
        %v10712 = vmax.f32 %v10710, %v10711
        %v10713 = vmax.f32 %v10437, %v10439
        %v10714 = vmax.f32 %v10713, %v10441
        %v10715 = vmax.f32 %v10714, %v10443
        %v10716 = vmax.f32 %v10715, %v10445
        %v10717 = vmax.f32 %v10716, %v10447
        %v10718 = vmax.f32 %v10717, %v10449
        %v10719 = vmax.f32 %v10718, %v10451
        %v10720 = vmax.f32 %v10719, %v10453
        %v10721 = vmax.f32 %v10720, %v10455
        %v10722 = vmax.f32 %v10721, %v10457
        %v10723 = vmax.f32 %v10722, %v10459
        %v10724 = vmax.f32 %v10723, %v10461
        %v10725 = vmax.f32 %v10724, %v10463
        %v10726 = vmax.f32 %v10725, %v10465
        %v10727 = vmax.f32 %v10726, %v10467
        %v10728 = vrot.slane %v10727, 4
        %v10729 = vmax.f32 %v10727, %v10728
        %v10730 = vrot.slane %v10729, 2
        %v10731 = vmax.f32 %v10729, %v10730
        %v10732 = vrot.slane %v10731, 1
        %v10733 = vmax.f32 %v10731, %v10732
        %v10734 = vmax.f32 %v10468, %v10470
        %v10735 = vmax.f32 %v10734, %v10472
        %v10736 = vmax.f32 %v10735, %v10474
        %v10737 = vmax.f32 %v10736, %v10476
        %v10738 = vmax.f32 %v10737, %v10478
        %v10739 = vmax.f32 %v10738, %v10480
        %v10740 = vmax.f32 %v10739, %v10482
        %v10741 = vmax.f32 %v10740, %v10484
        %v10742 = vmax.f32 %v10741, %v10486
        %v10743 = vmax.f32 %v10742, %v10488
        %v10744 = vmax.f32 %v10743, %v10490
        %v10745 = vmax.f32 %v10744, %v10492
        %v10746 = vmax.f32 %v10745, %v10494
        %v10747 = vmax.f32 %v10746, %v10496
        %v10748 = vmax.f32 %v10747, %v10498
        %v10749 = vrot.slane %v10748, 4
        %v10750 = vmax.f32 %v10748, %v10749
        %v10751 = vrot.slane %v10750, 2
        %v10752 = vmax.f32 %v10750, %v10751
        %v10753 = vrot.slane %v10752, 1
        %v10754 = vmax.f32 %v10752, %v10753
        %v10755 = vmax.f32 %v10469, %v10471
        %v10756 = vmax.f32 %v10755, %v10473
        %v10757 = vmax.f32 %v10756, %v10475
        %v10758 = vmax.f32 %v10757, %v10477
        %v10759 = vmax.f32 %v10758, %v10479
        %v10760 = vmax.f32 %v10759, %v10481
        %v10761 = vmax.f32 %v10760, %v10483
        %v10762 = vmax.f32 %v10761, %v10485
        %v10763 = vmax.f32 %v10762, %v10487
        %v10764 = vmax.f32 %v10763, %v10489
        %v10765 = vmax.f32 %v10764, %v10491
        %v10766 = vmax.f32 %v10765, %v10493
        %v10767 = vmax.f32 %v10766, %v10495
        %v10768 = vmax.f32 %v10767, %v10497
        %v10769 = vmax.f32 %v10768, %v10499
        %v10770 = vrot.slane %v10769, 4
        %v10771 = vmax.f32 %v10769, %v10770
        %v10772 = vrot.slane %v10771, 2
        %v10773 = vmax.f32 %v10771, %v10772
        %v10774 = vrot.slane %v10773, 1
        %v10775 = vmax.f32 %v10773, %v10774
        %v10776 = vmax.f32 %v10500, %v10502
        %v10777 = vmax.f32 %v10776, %v10504
        %v10778 = vmax.f32 %v10777, %v10506
        %v10779 = vmax.f32 %v10778, %v10508
        %v10780 = vmax.f32 %v10779, %v10510
        %v10781 = vmax.f32 %v10780, %v10512
        %v10782 = vmax.f32 %v10781, %v10514
        %v10783 = vmax.f32 %v10782, %v10516
        %v10784 = vmax.f32 %v10783, %v10518
        %v10785 = vmax.f32 %v10784, %v10520
        %v10786 = vmax.f32 %v10785, %v10522
        %v10787 = vmax.f32 %v10786, %v10524
        %v10788 = vmax.f32 %v10787, %v10526
        %v10789 = vmax.f32 %v10788, %v10528
        %v10790 = vmax.f32 %v10789, %v10530
        %v10791 = vrot.slane %v10790, 4
        %v10792 = vmax.f32 %v10790, %v10791
        %v10793 = vrot.slane %v10792, 2
        %v10794 = vmax.f32 %v10792, %v10793
        %v10795 = vrot.slane %v10794, 1
        %v10796 = vmax.f32 %v10794, %v10795
        %v10797 = vmax.f32 %v10501, %v10503
        %v10798 = vmax.f32 %v10797, %v10505
        %v10799 = vmax.f32 %v10798, %v10507
        %v10800 = vmax.f32 %v10799, %v10509
        %v10801 = vmax.f32 %v10800, %v10511
        %v10802 = vmax.f32 %v10801, %v10513
        %v10803 = vmax.f32 %v10802, %v10515
        %v10804 = vmax.f32 %v10803, %v10517
        %v10805 = vmax.f32 %v10804, %v10519
        %v10806 = vmax.f32 %v10805, %v10521
        %v10807 = vmax.f32 %v10806, %v10523
        %v10808 = vmax.f32 %v10807, %v10525
        %v10809 = vmax.f32 %v10808, %v10527
        %v10810 = vmax.f32 %v10809, %v10529
        %v10811 = vmax.f32 %v10810, %v10531
        %v10812 = vrot.slane %v10811, 4
        %v10813 = vmax.f32 %v10811, %v10812
        %v10814 = vrot.slane %v10813, 2
        %v10815 = vmax.f32 %v10813, %v10814
        %v10816 = vrot.slane %v10815, 1
        %v10817 = vmax.f32 %v10815, %v10816
        %v10818 = vmax.f32 %v10532, %v10534
        %v10819 = vmax.f32 %v10818, %v10536
        %v10820 = vmax.f32 %v10819, %v10538
        %v10821 = vmax.f32 %v10820, %v10540
        %v10822 = vmax.f32 %v10821, %v10542
        %v10823 = vmax.f32 %v10822, %v10544
        %v10824 = vmax.f32 %v10823, %v10546
        %v10825 = vmax.f32 %v10824, %v10548
        %v10826 = vmax.f32 %v10825, %v10550
        %v10827 = vmax.f32 %v10826, %v10552
        %v10828 = vmax.f32 %v10827, %v10554
        %v10829 = vmax.f32 %v10828, %v10556
        %v10830 = vmax.f32 %v10829, %v10558
        %v10831 = vmax.f32 %v10830, %v10560
        %v10832 = vmax.f32 %v10831, %v10562
        %v10833 = vrot.slane %v10832, 4
        %v10834 = vmax.f32 %v10832, %v10833
        %v10835 = vrot.slane %v10834, 2
        %v10836 = vmax.f32 %v10834, %v10835
        %v10837 = vrot.slane %v10836, 1
        %v10838 = vmax.f32 %v10836, %v10837
        %v10839 = vmax.f32 %v10533, %v10535
        %v10840 = vmax.f32 %v10839, %v10537
        %v10841 = vmax.f32 %v10840, %v10539
        %v10842 = vmax.f32 %v10841, %v10541
        %v10843 = vmax.f32 %v10842, %v10543
        %v10844 = vmax.f32 %v10843, %v10545
        %v10845 = vmax.f32 %v10844, %v10547
        %v10846 = vmax.f32 %v10845, %v10549
        %v10847 = vmax.f32 %v10846, %v10551
        %v10848 = vmax.f32 %v10847, %v10553
        %v10849 = vmax.f32 %v10848, %v10555
        %v10850 = vmax.f32 %v10849, %v10557
        %v10851 = vmax.f32 %v10850, %v10559
        %v10852 = vmax.f32 %v10851, %v10561
        %v10853 = vmax.f32 %v10852, %v10563
        %v10854 = vrot.slane %v10853, 4
        %v10855 = vmax.f32 %v10853, %v10854
        %v10856 = vrot.slane %v10855, 2
        %v10857 = vmax.f32 %v10855, %v10856
        %v10858 = vrot.slane %v10857, 1
        %v10859 = vmax.f32 %v10857, %v10858
        %v10860 = vmax.f32 %v10564, %v10566
        %v10861 = vmax.f32 %v10860, %v10568
        %v10862 = vmax.f32 %v10861, %v10570
        %v10863 = vmax.f32 %v10862, %v10572
        %v10864 = vmax.f32 %v10863, %v10574
        %v10865 = vmax.f32 %v10864, %v10576
        %v10866 = vmax.f32 %v10865, %v10578
        %v10867 = vmax.f32 %v10866, %v10580
        %v10868 = vmax.f32 %v10867, %v10582
        %v10869 = vmax.f32 %v10868, %v10584
        %v10870 = vmax.f32 %v10869, %v10586
        %v10871 = vmax.f32 %v10870, %v10588
        %v10872 = vmax.f32 %v10871, %v10590
        %v10873 = vmax.f32 %v10872, %v10592
        %v10874 = vmax.f32 %v10873, %v10594
        %v10875 = vrot.slane %v10874, 4
        %v10876 = vmax.f32 %v10874, %v10875
        %v10877 = vrot.slane %v10876, 2
        %v10878 = vmax.f32 %v10876, %v10877
        %v10879 = vrot.slane %v10878, 1
        %v10880 = vmax.f32 %v10878, %v10879
        %v10881 = vmax.f32 %v10565, %v10567
        %v10882 = vmax.f32 %v10881, %v10569
        %v10883 = vmax.f32 %v10882, %v10571
        %v10884 = vmax.f32 %v10883, %v10573
        %v10885 = vmax.f32 %v10884, %v10575
        %v10886 = vmax.f32 %v10885, %v10577
        %v10887 = vmax.f32 %v10886, %v10579
        %v10888 = vmax.f32 %v10887, %v10581
        %v10889 = vmax.f32 %v10888, %v10583
        %v10890 = vmax.f32 %v10889, %v10585
        %v10891 = vmax.f32 %v10890, %v10587
        %v10892 = vmax.f32 %v10891, %v10589
        %v10893 = vmax.f32 %v10892, %v10591
        %v10894 = vmax.f32 %v10893, %v10593
        %v10895 = vmax.f32 %v10894, %v10595
        %v10896 = vrot.slane %v10895, 4
        %v10897 = vmax.f32 %v10895, %v10896
        %v10898 = vrot.slane %v10897, 2
        %v10899 = vmax.f32 %v10897, %v10898
        %v10900 = vrot.slane %v10899, 1
        %v10901 = vmax.f32 %v10899, %v10900
        %v10902 = vmax.f32 %v10596, %v10598
        %v10903 = vmax.f32 %v10902, %v10600
        %v10904 = vmax.f32 %v10903, %v10602
        %v10905 = vmax.f32 %v10904, %v10604
        %v10906 = vmax.f32 %v10905, %v10606
        %v10907 = vmax.f32 %v10906, %v10608
        %v10908 = vmax.f32 %v10907, %v10610
        %v10909 = vmax.f32 %v10908, %v10612
        %v10910 = vmax.f32 %v10909, %v10614
        %v10911 = vmax.f32 %v10910, %v10616
        %v10912 = vmax.f32 %v10911, %v10618
        %v10913 = vmax.f32 %v10912, %v10620
        %v10914 = vmax.f32 %v10913, %v10622
        %v10915 = vmax.f32 %v10914, %v10624
        %v10916 = vmax.f32 %v10915, %v10626
        %v10917 = vrot.slane %v10916, 4
        %v10918 = vmax.f32 %v10916, %v10917
        %v10919 = vrot.slane %v10918, 2
        %v10920 = vmax.f32 %v10918, %v10919
        %v10921 = vrot.slane %v10920, 1
        %v10922 = vmax.f32 %v10920, %v10921
        %v10923 = vmax.f32 %v10597, %v10599
        %v10924 = vmax.f32 %v10923, %v10601
        %v10925 = vmax.f32 %v10924, %v10603
        %v10926 = vmax.f32 %v10925, %v10605
        %v10927 = vmax.f32 %v10926, %v10607
        %v10928 = vmax.f32 %v10927, %v10609
        %v10929 = vmax.f32 %v10928, %v10611
        %v10930 = vmax.f32 %v10929, %v10613
        %v10931 = vmax.f32 %v10930, %v10615
        %v10932 = vmax.f32 %v10931, %v10617
        %v10933 = vmax.f32 %v10932, %v10619
        %v10934 = vmax.f32 %v10933, %v10621
        %v10935 = vmax.f32 %v10934, %v10623
        %v10936 = vmax.f32 %v10935, %v10625
        %v10937 = vmax.f32 %v10936, %v10627
        %v10938 = vrot.slane %v10937, 4
        %v10939 = vmax.f32 %v10937, %v10938
        %v10940 = vrot.slane %v10939, 2
        %v10941 = vmax.f32 %v10939, %v10940
        %v10942 = vrot.slane %v10941, 1
        %v10943 = vmax.f32 %v10941, %v10942
        %v10944 = vmax.f32 %v10628, %v10630
        %v10945 = vmax.f32 %v10944, %v10632
        %v10946 = vmax.f32 %v10945, %v10634
        %v10947 = vmax.f32 %v10946, %v10636
        %v10948 = vmax.f32 %v10947, %v10638
        %v10949 = vmax.f32 %v10948, %v10640
        %v10950 = vmax.f32 %v10949, %v10642
        %v10951 = vmax.f32 %v10950, %v10644
        %v10952 = vmax.f32 %v10951, %v10646
        %v10953 = vmax.f32 %v10952, %v10648
        %v10954 = vmax.f32 %v10953, %v10650
        %v10955 = vmax.f32 %v10954, %v10652
        %v10956 = vmax.f32 %v10955, %v10654
        %v10957 = vmax.f32 %v10956, %v10656
        %v10958 = vmax.f32 %v10957, %v10658
        %v10959 = vrot.slane %v10958, 4
        %v10960 = vmax.f32 %v10958, %v10959
        %v10961 = vrot.slane %v10960, 2
        %v10962 = vmax.f32 %v10960, %v10961
        %v10963 = vrot.slane %v10962, 1
        %v10964 = vmax.f32 %v10962, %v10963
        %v10965 = vmax.f32 %v10629, %v10631
        %v10966 = vmax.f32 %v10965, %v10633
        %v10967 = vmax.f32 %v10966, %v10635
        %v10968 = vmax.f32 %v10967, %v10637
        %v10969 = vmax.f32 %v10968, %v10639
        %v10970 = vmax.f32 %v10969, %v10641
        %v10971 = vmax.f32 %v10970, %v10643
        %v10972 = vmax.f32 %v10971, %v10645
        %v10973 = vmax.f32 %v10972, %v10647
        %v10974 = vmax.f32 %v10973, %v10649
        %v10975 = vmax.f32 %v10974, %v10651
        %v10976 = vmax.f32 %v10975, %v10653
        %v10977 = vmax.f32 %v10976, %v10655
        %v10978 = vmax.f32 %v10977, %v10657
        %v10979 = vmax.f32 %v10978, %v10659
        %v10980 = vrot.slane %v10979, 4
        %v10981 = vmax.f32 %v10979, %v10980
        %v10982 = vrot.slane %v10981, 2
        %v10983 = vmax.f32 %v10981, %v10982
        %v10984 = vrot.slane %v10983, 1
        %v10985 = vmax.f32 %v10983, %v10984
        %v10986 = vmax.f32 %v10660, %v10662
        %v10987 = vmax.f32 %v10986, %v10664
        %v10988 = vmax.f32 %v10987, %v10666
        %v10989 = vmax.f32 %v10988, %v10668
        %v10990 = vmax.f32 %v10989, %v10670
        %v10991 = vmax.f32 %v10990, %v10672
        %v10992 = vmax.f32 %v10991, %v10674
        %v10993 = vmax.f32 %v10992, %v10676
        %v10994 = vmax.f32 %v10993, %v10678
        %v10995 = vmax.f32 %v10994, %v10680
        %v10996 = vmax.f32 %v10995, %v10682
        %v10997 = vmax.f32 %v10996, %v10684
        %v10998 = vmax.f32 %v10997, %v10686
        %v10999 = vmax.f32 %v10998, %v10688
        %v11000 = vmax.f32 %v10999, %v10690
        %v11001 = vrot.slane %v11000, 4
        %v11002 = vmax.f32 %v11000, %v11001
        %v11003 = vrot.slane %v11002, 2
        %v11004 = vmax.f32 %v11002, %v11003
        %v11005 = vrot.slane %v11004, 1
        %v11006 = vmax.f32 %v11004, %v11005
        %v11007 = vmax.f32 %v10661, %v10663
        %v11008 = vmax.f32 %v11007, %v10665
        %v11009 = vmax.f32 %v11008, %v10667
        %v11010 = vmax.f32 %v11009, %v10669
        %v11011 = vmax.f32 %v11010, %v10671
        %v11012 = vmax.f32 %v11011, %v10673
        %v11013 = vmax.f32 %v11012, %v10675
        %v11014 = vmax.f32 %v11013, %v10677
        %v11015 = vmax.f32 %v11014, %v10679
        %v11016 = vmax.f32 %v11015, %v10681
        %v11017 = vmax.f32 %v11016, %v10683
        %v11018 = vmax.f32 %v11017, %v10685
        %v11019 = vmax.f32 %v11018, %v10687
        %v11020 = vmax.f32 %v11019, %v10689
        %v11021 = vmax.f32 %v11020, %v10691
        %v11022 = vrot.slane %v11021, 4
        %v11023 = vmax.f32 %v11021, %v11022
        %v11024 = vrot.slane %v11023, 2
        %v11025 = vmax.f32 %v11023, %v11024
        %v11026 = vrot.slane %v11025, 1
        %v11027 = vmax.f32 %v11025, %v11026
        %v11028 = vpack.c.bf16 %v10712, %v10712
        %v11029 = vpack.c.bf16 %v10733, %v10733
        %v11030 = vpack.c.bf16 %v10754, %v10754
        %v11031 = vpack.c.bf16 %v10775, %v10775
        %v11032 = vpack.c.bf16 %v10796, %v10796
        %v11033 = vpack.c.bf16 %v10817, %v10817
        %v11034 = vpack.c.bf16 %v10838, %v10838
        %v11035 = vpack.c.bf16 %v10859, %v10859
        %v11036 = vpack.c.bf16 %v10880, %v10880
        %v11037 = vpack.c.bf16 %v10901, %v10901
        %v11038 = vpack.c.bf16 %v10922, %v10922
        %v11039 = vpack.c.bf16 %v10943, %v10943
        %v11040 = vpack.c.bf16 %v10964, %v10964
        %v11041 = vpack.c.bf16 %v10985, %v10985
        %v11042 = vpack.c.bf16 %v11006, %v11006
        %v11043 = vpack.c.bf16 %v11027, %v11027
        %v11044 = vld [vmem:[%s11] sm:$0xff]
        %v11045 = vld [vmem:[%s11 + $0x8] sm:$0xff]
        %v11046 = vld [vmem:[%s11 + $0x10] sm:$0xff]
        %v11047 = vld [vmem:[%s11 + $0x18] sm:$0xff]
        %v11048 = vld [vmem:[%s11 + $0x20] sm:$0xff]
        %v11049 = vld [vmem:[%s11 + $0x28] sm:$0xff]
        %v11050 = vld [vmem:[%s11 + $0x30] sm:$0xff]
        %v11051 = vld [vmem:[%s11 + $0x38] sm:$0xff]
        %v11052 = vld [vmem:[%s11 + $0x40] sm:$0xff]
        %v11053 = vld [vmem:[%s11 + $0x48] sm:$0xff]
        %v11054 = vld [vmem:[%s11 + $0x50] sm:$0xff]
        %v11055 = vld [vmem:[%s11 + $0x58] sm:$0xff]
        %v11056 = vld [vmem:[%s11 + $0x60] sm:$0xff]
        %v11057 = vld [vmem:[%s11 + $0x68] sm:$0xff]
        %v11058 = vld [vmem:[%s11 + $0x70] sm:$0xff]
        %v11059 = vld [vmem:[%s11 + $0x78] sm:$0xff]
        %v11060 = vld [vmem:[%s11 + $0x80] sm:$0xff]
        %v11061 = vld [vmem:[%s11 + $0x88] sm:$0xff]
        %v11062 = vld [vmem:[%s11 + $0x90] sm:$0xff]
        %v11063 = vld [vmem:[%s11 + $0x98] sm:$0xff]
        %v11064 = vld [vmem:[%s11 + $0xa0] sm:$0xff]
        %v11065 = vld [vmem:[%s11 + $0xa8] sm:$0xff]
        %v11066 = vld [vmem:[%s11 + $0xb0] sm:$0xff]
        %v11067 = vld [vmem:[%s11 + $0xb8] sm:$0xff]
        %v11068 = vld [vmem:[%s11 + $0xc0] sm:$0xff]
        %v11069 = vld [vmem:[%s11 + $0xc8] sm:$0xff]
        %v11070 = vld [vmem:[%s11 + $0xd0] sm:$0xff]
        %v11071 = vld [vmem:[%s11 + $0xd8] sm:$0xff]
        %v11072 = vld [vmem:[%s11 + $0xe0] sm:$0xff]
        %v11073 = vld [vmem:[%s11 + $0xe8] sm:$0xff]
        %v11074 = vld [vmem:[%s11 + $0xf0] sm:$0xff]
        %v11075 = vld [vmem:[%s11 + $0xf8] sm:$0xff]
        %v11076 = vld [vmem:[%s12] sm:$0x3]
        %v11078 = vlaneseq
        %v11079 = vshrl.u32 %v11078, 7
        %v11080 = vsub.s32 0, %v11079
        %v11081 = vrot.slane %v11076, %v11080
        %v11082 = vlaneseq
        %v11083 = vshrl.u32 %v11082, 7
        %v11084 = vsub.s32 1, %v11083
        %v11085 = vrot.slane %v11076, %v11084
        %v11104 = vunpack.c.l.b16 %v11028
        %v11105 = vunpack.c.l.b16 %v11029
        %v11106 = vunpack.c.l.b16 %v11030
        %v11107 = vunpack.c.l.b16 %v11031
        %v11108 = vunpack.c.l.b16 %v11032
        %v11109 = vunpack.c.l.b16 %v11033
        %v11110 = vunpack.c.l.b16 %v11034
        %v11111 = vunpack.c.l.b16 %v11035
        %v11112 = vunpack.c.l.b16 %v11036
        %v11113 = vunpack.c.l.b16 %v11037
        %v11114 = vunpack.c.l.b16 %v11038
        %v11115 = vunpack.c.l.b16 %v11039
        %v11116 = vunpack.c.l.b16 %v11040
        %v11117 = vunpack.c.l.b16 %v11041
        %v11118 = vunpack.c.l.b16 %v11042
        %v11119 = vunpack.c.l.b16 %v11043
        %v11120 = vsel %vm1414, %v11106, %v11104
        %v11121 = vsel %vm1417, %v11108, %v11120
        %v11122 = vsel %vm1420, %v11110, %v11121
        %v11123 = vsel %vm1423, %v11112, %v11122
        %v11124 = vsel %vm1426, %v11114, %v11123
        %v11125 = vsel %vm1429, %v11116, %v11124
        %v11126 = vsel %vm1432, %v11118, %v11125
        %v11127 = vsel %vm1414, %v11107, %v11105
        %v11128 = vsel %vm1417, %v11109, %v11127
        %v11129 = vsel %vm1420, %v11111, %v11128
        %v11130 = vsel %vm1423, %v11113, %v11129
        %v11131 = vsel %vm1426, %v11115, %v11130
        %v11132 = vsel %vm1429, %v11117, %v11131
        %v11133 = vsel %vm1432, %v11119, %v11132
        %v11134 = vpack.c.b16 %v11126, %v11126
        %v11135 = vpack.c.b16 %v11133, %v11133
        %v11170 = vunpack.c.l.b16 %v11044
        %v11171 = vunpack.c.h.b16 %v11044
        %v11172 = vunpack.c.l.b16 %v11045
        %v11173 = vunpack.c.h.b16 %v11045
        %v11174 = vunpack.c.l.b16 %v11046
        %v11175 = vunpack.c.h.b16 %v11046
        %v11176 = vunpack.c.l.b16 %v11047
        %v11177 = vunpack.c.h.b16 %v11047
        %v11178 = vunpack.c.l.b16 %v11048
        %v11179 = vunpack.c.h.b16 %v11048
        %v11180 = vunpack.c.l.b16 %v11049
        %v11181 = vunpack.c.h.b16 %v11049
        %v11182 = vunpack.c.l.b16 %v11050
        %v11183 = vunpack.c.h.b16 %v11050
        %v11184 = vunpack.c.l.b16 %v11051
        %v11185 = vunpack.c.h.b16 %v11051
        %v11186 = vunpack.c.l.b16 %v11052
        %v11187 = vunpack.c.h.b16 %v11052
        %v11188 = vunpack.c.l.b16 %v11053
        %v11189 = vunpack.c.h.b16 %v11053
        %v11190 = vunpack.c.l.b16 %v11054
        %v11191 = vunpack.c.h.b16 %v11054
        %v11192 = vunpack.c.l.b16 %v11055
        %v11193 = vunpack.c.h.b16 %v11055
        %v11194 = vunpack.c.l.b16 %v11056
        %v11195 = vunpack.c.h.b16 %v11056
        %v11196 = vunpack.c.l.b16 %v11057
        %v11197 = vunpack.c.h.b16 %v11057
        %v11198 = vunpack.c.l.b16 %v11058
        %v11199 = vunpack.c.h.b16 %v11058
        %v11200 = vunpack.c.l.b16 %v11059
        %v11201 = vunpack.c.h.b16 %v11059
        %v11202 = vunpack.c.l.b16 %v11060
        %v11203 = vunpack.c.h.b16 %v11060
        %v11204 = vunpack.c.l.b16 %v11061
        %v11205 = vunpack.c.h.b16 %v11061
        %v11206 = vunpack.c.l.b16 %v11062
        %v11207 = vunpack.c.h.b16 %v11062
        %v11208 = vunpack.c.l.b16 %v11063
        %v11209 = vunpack.c.h.b16 %v11063
        %v11210 = vunpack.c.l.b16 %v11064
        %v11211 = vunpack.c.h.b16 %v11064
        %v11212 = vunpack.c.l.b16 %v11065
        %v11213 = vunpack.c.h.b16 %v11065
        %v11214 = vunpack.c.l.b16 %v11066
        %v11215 = vunpack.c.h.b16 %v11066
        %v11216 = vunpack.c.l.b16 %v11067
        %v11217 = vunpack.c.h.b16 %v11067
        %v11218 = vunpack.c.l.b16 %v11068
        %v11219 = vunpack.c.h.b16 %v11068
        %v11220 = vunpack.c.l.b16 %v11069
        %v11221 = vunpack.c.h.b16 %v11069
        %v11222 = vunpack.c.l.b16 %v11070
        %v11223 = vunpack.c.h.b16 %v11070
        %v11224 = vunpack.c.l.b16 %v11071
        %v11225 = vunpack.c.h.b16 %v11071
        %v11226 = vunpack.c.l.b16 %v11072
        %v11227 = vunpack.c.h.b16 %v11072
        %v11228 = vunpack.c.l.b16 %v11073
        %v11229 = vunpack.c.h.b16 %v11073
        %v11230 = vunpack.c.l.b16 %v11074
        %v11231 = vunpack.c.h.b16 %v11074
        %v11232 = vunpack.c.l.b16 %v11075
        %v11233 = vunpack.c.h.b16 %v11075
        %v11234 = vpack.c.b16 %v11172, %v11170
        %v11235 = vpack.c.b16 %v11173, %v11171
        %v11236 = vpack.c.b16 %v11176, %v11174
        %v11237 = vpack.c.b16 %v11177, %v11175
        %v11238 = vpack.c.b16 %v11180, %v11178
        %v11239 = vpack.c.b16 %v11181, %v11179
        %v11240 = vpack.c.b16 %v11184, %v11182
        %v11241 = vpack.c.b16 %v11185, %v11183
        %v11242 = vpack.c.b16 %v11188, %v11186
        %v11243 = vpack.c.b16 %v11189, %v11187
        %v11244 = vpack.c.b16 %v11192, %v11190
        %v11245 = vpack.c.b16 %v11193, %v11191
        %v11246 = vpack.c.b16 %v11196, %v11194
        %v11247 = vpack.c.b16 %v11197, %v11195
        %v11248 = vpack.c.b16 %v11200, %v11198
        %v11249 = vpack.c.b16 %v11201, %v11199
        %v11250 = vpack.c.b16 %v11204, %v11202
        %v11251 = vpack.c.b16 %v11205, %v11203
        %v11252 = vpack.c.b16 %v11208, %v11206
        %v11253 = vpack.c.b16 %v11209, %v11207
        %v11254 = vpack.c.b16 %v11212, %v11210
        %v11255 = vpack.c.b16 %v11213, %v11211
        %v11256 = vpack.c.b16 %v11216, %v11214
        %v11257 = vpack.c.b16 %v11217, %v11215
        %v11258 = vpack.c.b16 %v11220, %v11218
        %v11259 = vpack.c.b16 %v11221, %v11219
        %v11260 = vpack.c.b16 %v11224, %v11222
        %v11261 = vpack.c.b16 %v11225, %v11223
        %v11262 = vpack.c.b16 %v11228, %v11226
        %v11263 = vpack.c.b16 %v11229, %v11227
        %v11264 = vpack.c.b16 %v11232, %v11230
        %v11265 = vpack.c.b16 %v11233, %v11231
        %11298 = vmatprep.subr.bf16.mxu0 %v11235
        %11299 = vmatpush1.bf16.msra.mxu0 %v11234
        %11300 = vmatprep.subr.bf16.mxu0 %v11237
        %11301 = vmatpush1.bf16.msra.mxu0 %v11236
        %11302 = vmatprep.subr.bf16.mxu0 %v11239
        %11303 = vmatpush1.bf16.msra.mxu0 %v11238
        %11304 = vmatprep.subr.bf16.mxu0 %v11241
        %11305 = vmatpush1.bf16.msra.mxu0 %v11240
        %11306 = vmatprep.subr.bf16.mxu0 %v11243
        %11307 = vmatpush1.bf16.msra.mxu0 %v11242
        %11308 = vmatprep.subr.bf16.mxu0 %v11245
        %11309 = vmatpush1.bf16.msra.mxu0 %v11244
        %11310 = vmatprep.subr.bf16.mxu0 %v11247
        %11311 = vmatpush1.bf16.msra.mxu0 %v11246
        %11312 = vmatprep.subr.bf16.mxu0 %v11249
        %11313 = vmatpush1.bf16.msra.mxu0 %v11248
        %11314 = vmatprep.subr.bf16.mxu0 %v11251
        %11315 = vmatpush1.bf16.msra.mxu0 %v11250
        %11316 = vmatprep.subr.bf16.mxu0 %v11253
        %11317 = vmatpush1.bf16.msra.mxu0 %v11252
        %11318 = vmatprep.subr.bf16.mxu0 %v11255
        %11319 = vmatpush1.bf16.msra.mxu0 %v11254
        %11320 = vmatprep.subr.bf16.mxu0 %v11257
        %11321 = vmatpush1.bf16.msra.mxu0 %v11256
        %11322 = vmatprep.subr.bf16.mxu0 %v11259
        %11323 = vmatpush1.bf16.msra.mxu0 %v11258
        %11324 = vmatprep.subr.bf16.mxu0 %v11261
        %11325 = vmatpush1.bf16.msra.mxu0 %v11260
        %11326 = vmatprep.subr.bf16.mxu0 %v11263
        %11327 = vmatpush1.bf16.msra.mxu0 %v11262
        %11328 = vmatprep.subr.bf16.mxu0 %v11265
        %11329 = vmatpush1.bf16.msra.mxu0 %v11264
        %11330 = vmatprep.mubr.bf16.mxu0 %v11135
        %11331 = vmatmul.mubr.bf16.gmra.mrb[0].mxu0 %v11134
        %v11332 = vpop.f32.mrb[0].mxu0
        %v11333 = vadd.f32 %v11081, %v11332
        %v11334 = vpop.f32.mrb[0].mxu0
        %v11335 = vadd.f32 %v11085, %v11334
        %v11336 = vpop.f32.mrb[0].mxu0
        %v11337 = vpop.f32.mrb[0].mxu0
        %11338 = vdwg.mxu0
        %11339 = vst [vmem:[%s434] sm:$0xff] %v11333
        %11340 = vst [vmem:[%s434 + $0x8] sm:$0xff] %v11335
        %s11341 = sand.u32 %s313, 1
        %s11342 = scalar_lea.sflag [#allocation3], %s11341
        %s11343 = sand.u32 %s313, 1
        %s11344 = smul.addr %s11343, 16
        %s11345 = scalar_lea.vmem [#allocation2], %s11344
        // Predicated region
        $region73: #{tpu_custom_call.1} parent=71 // pred_check
          %p11346 = pneg %p323
        $region74: #{tpu_custom_call.1} parent=71 // pred_check_branch
          %11348 = sbr.rel (%p11346) target = $region76
        $region75: #{tpu_custom_call.1} parent=71 // pred_region
          %s11350 = ssub.s32 256, 256
          %11351 = vsyncadd %s11342, %s11350
          %s11352 = smul.addr %s27, 2
          %s11353 = smul.addr %s11352, 128
          %s11354 = scalar_lea.hbm %s13, %s11353
          %s11356 = sshll.u32 %s11345, 4
          %s11357 = int_to_ptr.vmem [resolvable:$true] %s11356
          %11359 = dma.vmem_to_hbm [thread:$0]  %s11357, 256, %s11354, %s11342
        $region76: #{tpu_custom_call.1} parent=71 // pred_fallthru
          _
      $region72: #{tpu_custom_call.1} parent=5 // pred_fallthru
        _
      %p11360 = scmp.le.s32.totalorder 2, %s22
      // Predicated region
      $region77: #{tpu_custom_call.1} parent=5 // pred_check
        %p11361 = pneg %p11360
      $region78: #{tpu_custom_call.1} parent=5 // pred_check_branch
        %11363 = sbr.rel (%p11361) target = $region80
      $region79: #{tpu_custom_call.1} parent=5 // pred_region
        %s11364 = ssub.s32 %s22, 2
        // Predicated region
        $region81: #{tpu_custom_call.1} parent=79 // pred_check
          %p11365 = pneg %p329
        $region82: #{tpu_custom_call.1} parent=79 // pred_check_branch
          %11367 = sbr.rel (%p11365) target = $region84
        $region83: #{tpu_custom_call.1} parent=79 // pred_region
          %s11368 = sand.u32 %s314, 1
          %s11369 = scalar_lea.sflag [#allocation3], %s11368
          %s11370 = sand.u32 %s314, 1
          %s11371 = smul.addr %s11370, 16
          %s11372 = scalar_lea.vmem [#allocation2], %s11371
          %11373 = dma.done %s11369, 256
        $region84: #{tpu_custom_call.1} parent=79 // pred_fallthru
          _
      $region80: #{tpu_custom_call.1} parent=5 // pred_fallthru
        _
    $region6: #{tpu_custom_call.1} parent=1 // loop_footer
      %s26 = sadd.s32 1, %s22
    $region7: #{tpu_custom_call.1} parent=1 // loop_footer_branch
      %21 = sbr.rel target = $region3
    $region8: #{tpu_custom_call.1} parent=1 // loop_exit
      _
    %11374 = vsyncpa [#allocation3], 1
    %s11375 = scalar_lea.sflag [#allocation3], 1
    %11376 = vsyncpa %s11375, 1

</llo_original>
